<compile_context>
chip_gen: v7x
topology: tpu7x:2x2x1
jax: 0.10.0
libtpu: 0.0.40
codegen_flags: <defaults>
</compile_context>

<pallas_src>
import jax
import jax.numpy as jnp
from jax.experimental import pallas as pl
from jax.experimental.pallas import tpu as pltpu


def _conv3x3_accum(xpad, w_ref, H, W, F):
    """3x3 'same' conv of a spatially padded (1, H+2, W+2, F) bf16 activation.

    Concat-free: 9 accumulating (H*W, F) x (F, F) bf16 MXU matmuls with f32
    accumulation (no im2col patch buffer).
    """
    acc = jnp.zeros((H * W, F), jnp.float32)
    for ky in range(3):
        for kx in range(3):
            tap = xpad[:, ky:ky + H, kx:kx + W, :].reshape(H * W, F)
            acc = acc + jnp.dot(tap, w_ref[ky * 3 + kx],
                                preferred_element_type=jnp.float32)
    return acc


def res_kernel(x_ref, wa_ref, wb_ref, sa_ref, ta_ref, tb_ref, o_ref, pad_scr):
    # Block shapes:
    #   x_ref  : (1, H, W, F)        f32   one batch image (channels-last)
    #   wa_ref : (9, F, F)           bf16  conv_a weight, HWIO flattened over taps
    #                                      (BN_b scale folded into output channels)
    #   wb_ref : (9, F, F)           bf16  conv_b weight
    #   sa_ref, ta_ref, tb_ref : (1, F)  f32  BN_a scale / BN_a shift / BN_b shift
    #   o_ref  : (1, H, W, F)        f32
    #   pad_scr: (1, H+2, W+2, F)    bf16  spatially padded activation staging
    _, H, W, F = x_ref.shape

    # Zero ONLY the 1-pixel border each step; the interior is fully overwritten
    # before each conv, so the zero border is reused by both convs.
    zero_row = jnp.zeros((1, 1, W + 2, F), jnp.bfloat16)
    zero_col = jnp.zeros((1, H + 2, 1, F), jnp.bfloat16)
    pad_scr[:, 0:1, :, :] = zero_row
    pad_scr[:, H + 1:H + 2, :, :] = zero_row
    pad_scr[:, :, 0:1, :] = zero_col
    pad_scr[:, :, W + 1:W + 2, :] = zero_col

    x = x_ref[...]                                              # (1, H, W, F) f32

    # --- BatchNorm2d (folded scale/shift) + LeakyReLU(0.01), f32 on the VPU ---
    a = x * sa_ref[...] + ta_ref[...]
    a = jnp.where(a > 0, a, 0.01 * a)
    pad_scr[:, 1:H + 1, 1:W + 1, :] = a.astype(jnp.bfloat16)

    # --- Conv2d(F, F, 3, padding=1, bias=False): 9 accumulating MXU matmuls ---
    h = _conv3x3_accum(pad_scr[...], wa_ref, H, W, F)           # (H*W, F) f32

    # --- BatchNorm2d (scale pre-folded into wa, shift here) + LeakyReLU ---
    a2 = h + tb_ref[...]
    a2 = jnp.where(a2 > 0, a2, 0.01 * a2)
    pad_scr[:, 1:H + 1, 1:W + 1, :] = a2.reshape(1, H, W, F).astype(jnp.bfloat16)

    # --- second Conv2d(F, F, 3, padding=1, bias=False) ---
    h3 = _conv3x3_accum(pad_scr[...], wb_ref, H, W, F)          # (H*W, F) f32

    # --- residual add (f32, uses the raw input) ---
    o_ref[...] = (x + h3.reshape(1, H, W, F)).astype(o_ref.dtype)


def res_forward(x_nhwc, params, eps=1e-5):
    """x_nhwc: (N, H, W, F) float32 (torch NCHW (N,F,H,W) transposed). Returns same shape."""
    N, H, W, F = x_nhwc.shape

    # Fold BatchNorm running stats + affine into per-channel scale/shift.
    s_a = params["g_a"] / jnp.sqrt(params["v_a"] + eps)
    t_a = params["b_a"] - params["m_a"] * s_a
    s_b = params["g_b"] / jnp.sqrt(params["v_b"] + eps)
    t_b = params["b_b"] - params["m_b"] * s_b

    # Fold BN_b's scale into conv_a's output channels (shift stays in-kernel);
    # flatten the 3x3 taps of each HWIO weight into the leading dim, cast bf16.
    w_a = (params["w_a"] * s_b[None, None, None, :]).reshape(9, F, F).astype(jnp.bfloat16)
    w_b = params["w_b"].reshape(9, F, F).astype(jnp.bfloat16)

    sa = s_a.reshape(1, F).astype(jnp.float32)
    ta = t_a.reshape(1, F).astype(jnp.float32)
    tb = t_b.reshape(1, F).astype(jnp.float32)

    img_map = lambda n: (n, 0, 0, 0)
    w_map = lambda n: (0, 0, 0)
    v_map = lambda n: (0, 0)

    return pl.pallas_call(
        res_kernel,
        out_shape=jax.ShapeDtypeStruct((N, H, W, F), x_nhwc.dtype),
        grid=(N,),
        in_specs=[
            pl.BlockSpec((1, H, W, F), img_map),   # input image (one per grid step)
            pl.BlockSpec((9, F, F), w_map),        # conv_a weight (bf16, taps-major)
            pl.BlockSpec((9, F, F), w_map),        # conv_b weight
            pl.BlockSpec((1, F), v_map),           # BN_a scale
            pl.BlockSpec((1, F), v_map),           # BN_a shift
            pl.BlockSpec((1, F), v_map),           # BN_b shift
        ],
        out_specs=pl.BlockSpec((1, H, W, F), img_map),
        scratch_shapes=[pltpu.VMEM((1, H + 2, W + 2, F), jnp.bfloat16)],
        compiler_params=pltpu.CompilerParams(
            dimension_semantics=("parallel",),
            vmem_limit_bytes=32 * 1024 * 1024),
    )(x_nhwc, w_a, w_b, sa, ta, tb)


def res_forward_reference(x_nhwc, params, eps=1e-5):
    """Pure-JAX reference (lax conv), matching the kernel's bf16-operand / f32-acc math."""
    s_a = params["g_a"] / jnp.sqrt(params["v_a"] + eps)
    t_a = params["b_a"] - params["m_a"] * s_a
    s_b = params["g_b"] / jnp.sqrt(params["v_b"] + eps)
    t_b = params["b_b"] - params["m_b"] * s_b

    dn = jax.lax.conv_dimension_numbers(x_nhwc.shape, params["w_a"].shape,
                                        ("NHWC", "HWIO", "NHWC"))

    def conv(x, w):
        return jax.lax.conv_general_dilated(
            x.astype(jnp.bfloat16), w.astype(jnp.bfloat16), (1, 1), "SAME",
            dimension_numbers=dn, preferred_element_type=jnp.float32)

    a = x_nhwc * s_a + t_a
    a = jnp.where(a > 0, a, 0.01 * a)
    h = conv(a, params["w_a"] * s_b[None, None, None, :]) + t_b
    a2 = jnp.where(h > 0, h, 0.01 * h)
    h3 = conv(a2, params["w_b"])
    return x_nhwc + h3


def make_params(key, filters):
    ks = jax.random.split(key, 10)
    F = filters
    return {
        "w_a": 0.1 * jax.random.normal(ks[0], (3, 3, F, F), jnp.float32),
        "w_b": 0.1 * jax.random.normal(ks[1], (3, 3, F, F), jnp.float32),
        "g_a": 1.0 + 0.1 * jax.random.normal(ks[2], (F,), jnp.float32),
        "b_a": 0.1 * jax.random.normal(ks[3], (F,), jnp.float32),
        "m_a": 0.1 * jax.random.normal(ks[4], (F,), jnp.float32),
        "v_a": jax.random.uniform(ks[5], (F,), jnp.float32, 0.5, 1.5),
        "g_b": 1.0 + 0.1 * jax.random.normal(ks[6], (F,), jnp.float32),
        "b_b": 0.1 * jax.random.normal(ks[7], (F,), jnp.float32),
        "m_b": 0.1 * jax.random.normal(ks[8], (F,), jnp.float32),
        "v_b": jax.random.uniform(ks[9], (F,), jnp.float32, 0.5, 1.5),
    }


if __name__ == "__main__":
    key = jax.random.PRNGKey(0)
    k_x, k_p = jax.random.split(key)

    # torch input (2, 8, 16, 16) NCHW  ->  NHWC (2, 16, 16, 8), filters = 8
    N, H, W, F = 2, 16, 16, 8
    x = jax.random.normal(k_x, (N, H, W, F), jnp.float32)
    params = make_params(k_p, F)

    out = jax.block_until_ready(res_forward(x, params))
    ref = jax.block_until_ready(res_forward_reference(x, params))

    assert out.shape == (N, H, W, F)
    assert jnp.allclose(out, ref, rtol=1e-3, atol=1e-3), "mismatch vs JAX reference"

    print("KERNEL_OK")
</pallas_src>

<mosaic_0001>
module attributes {stable_mosaic.version = 11 : i64} {
  func.func @res_kernel(%arg0: i32, %arg1: memref<1x16x16x8xf32, #tpu.memory_space<vmem>>, %arg2: memref<9x8x8xbf16, #tpu.memory_space<vmem>>, %arg3: memref<9x8x8xbf16, #tpu.memory_space<vmem>>, %arg4: memref<1x8xf32, #tpu.memory_space<vmem>>, %arg5: memref<1x8xf32, #tpu.memory_space<vmem>>, %arg6: memref<1x8xf32, #tpu.memory_space<vmem>>, %arg7: memref<1x16x16x8xf32, #tpu.memory_space<vmem>>, %arg8: memref<1x18x18x8xbf16, #tpu.memory_space<vmem>>) attributes {dimension_semantics = [#tpu.dimension_semantics<parallel>], iteration_bounds = array<i64: 2>, scalar_prefetch = 0 : i64, scratch_operands = 1 : i64, tpu.core_type = #tpu.core_type<tc>, window_params = [{transform_indices = @transform_0, window_bounds = array<i64: 1, 16, 16, 8>}, {pipeline_mode = #tpu.pipeline_mode<synchronous>, transform_indices = @transform_1, window_bounds = array<i64: 9, 8, 8>}, {pipeline_mode = #tpu.pipeline_mode<synchronous>, transform_indices = @transform_2, window_bounds = array<i64: 9, 8, 8>}, {pipeline_mode = #tpu.pipeline_mode<synchronous>, transform_indices = @transform_3, window_bounds = array<i64: 1, 8>}, {pipeline_mode = #tpu.pipeline_mode<synchronous>, transform_indices = @transform_4, window_bounds = array<i64: 1, 8>}, {pipeline_mode = #tpu.pipeline_mode<synchronous>, transform_indices = @transform_5, window_bounds = array<i64: 1, 8>}, {transform_indices = @transform_6, window_bounds = array<i64: 1, 16, 16, 8>}]} {
    %cst = arith.constant 0.000000e+00 : bf16
    %0 = vector.broadcast %cst : bf16 to vector<1x1x18x8xbf16>
    %cst_0 = arith.constant 0.000000e+00 : bf16
    %1 = vector.broadcast %cst_0 : bf16 to vector<1x18x1x8xbf16>
    %c0 = arith.constant 0 : index
    %c0_1 = arith.constant 0 : index
    %c0_2 = arith.constant 0 : index
    %c0_3 = arith.constant 0 : index
    %2 = vector.load %arg8[%c0, %c0_1, %c0_2, %c0_3] : memref<1x18x18x8xbf16, #tpu.memory_space<vmem>>, vector<1x1x18x8xbf16>
    tpu.vector_store %arg8[%c0, %c0_1, %c0_2, %c0_3], %0 {strides = array<i32>} : memref<1x18x18x8xbf16, #tpu.memory_space<vmem>>, vector<1x1x18x8xbf16>,
    %c0_4 = arith.constant 0 : index
    %c17 = arith.constant 17 : index
    %c0_5 = arith.constant 0 : index
    %c0_6 = arith.constant 0 : index
    %3 = vector.load %arg8[%c0_4, %c17, %c0_5, %c0_6] : memref<1x18x18x8xbf16, #tpu.memory_space<vmem>>, vector<1x1x18x8xbf16>
    tpu.vector_store %arg8[%c0_4, %c17, %c0_5, %c0_6], %0 {strides = array<i32>} : memref<1x18x18x8xbf16, #tpu.memory_space<vmem>>, vector<1x1x18x8xbf16>,
    %c0_7 = arith.constant 0 : index
    %c0_8 = arith.constant 0 : index
    %c0_9 = arith.constant 0 : index
    %c0_10 = arith.constant 0 : index
    %4 = vector.load %arg8[%c0_7, %c0_8, %c0_9, %c0_10] : memref<1x18x18x8xbf16, #tpu.memory_space<vmem>>, vector<1x18x1x8xbf16>
    tpu.vector_store %arg8[%c0_7, %c0_8, %c0_9, %c0_10], %1 {strides = array<i32>} : memref<1x18x18x8xbf16, #tpu.memory_space<vmem>>, vector<1x18x1x8xbf16>,
    %c0_11 = arith.constant 0 : index
    %c0_12 = arith.constant 0 : index
    %c17_13 = arith.constant 17 : index
    %c0_14 = arith.constant 0 : index
    %5 = vector.load %arg8[%c0_11, %c0_12, %c17_13, %c0_14] : memref<1x18x18x8xbf16, #tpu.memory_space<vmem>>, vector<1x18x1x8xbf16>
    tpu.vector_store %arg8[%c0_11, %c0_12, %c17_13, %c0_14], %1 {strides = array<i32>} : memref<1x18x18x8xbf16, #tpu.memory_space<vmem>>, vector<1x18x1x8xbf16>,
    %c0_15 = arith.constant 0 : index
    %c0_16 = arith.constant 0 : index
    %c0_17 = arith.constant 0 : index
    %c0_18 = arith.constant 0 : index
    %6 = vector.load %arg1[%c0_15, %c0_16, %c0_17, %c0_18] : memref<1x16x16x8xf32, #tpu.memory_space<vmem>>, vector<1x16x16x8xf32>
    %c0_19 = arith.constant 0 : index
    %c0_20 = arith.constant 0 : index
    %7 = vector.load %arg4[%c0_19, %c0_20] : memref<1x8xf32, #tpu.memory_space<vmem>>, vector<1x8xf32>
    %8 = vector.shape_cast %7 : vector<1x8xf32> to vector<1x1x1x8xf32>
    %9 = vector.broadcast %8 : vector<1x1x1x8xf32> to vector<1x16x16x8xf32>
    %10 = arith.mulf %6, %9 : vector<1x16x16x8xf32>
    %c0_21 = arith.constant 0 : index
    %c0_22 = arith.constant 0 : index
    %11 = vector.load %arg5[%c0_21, %c0_22] : memref<1x8xf32, #tpu.memory_space<vmem>>, vector<1x8xf32>
    %12 = vector.shape_cast %11 : vector<1x8xf32> to vector<1x1x1x8xf32>
    %13 = vector.broadcast %12 : vector<1x1x1x8xf32> to vector<1x16x16x8xf32>
    %14 = arith.addf %10, %13 : vector<1x16x16x8xf32>
    %cst_23 = arith.constant 0.000000e+00 : f32
    %15 = vector.broadcast %cst_23 : f32 to vector<1x16x16x8xf32>
    %16 = arith.cmpf ogt, %14, %15 : vector<1x16x16x8xf32>
    %cst_24 = arith.constant 0.00999999977 : f32
    %17 = vector.broadcast %cst_24 : f32 to vector<1x16x16x8xf32>
    %18 = arith.mulf %17, %14 : vector<1x16x16x8xf32>
    %19 = arith.select %16, %14, %18 : vector<1x16x16x8xi1>, vector<1x16x16x8xf32>
    %20 = arith.truncf %19 : vector<1x16x16x8xf32> to vector<1x16x16x8xbf16>
    %c0_25 = arith.constant 0 : index
    %c1 = arith.constant 1 : index
    %c1_26 = arith.constant 1 : index
    %c0_27 = arith.constant 0 : index
    %21 = vector.load %arg8[%c0_25, %c1, %c1_26, %c0_27] : memref<1x18x18x8xbf16, #tpu.memory_space<vmem>>, vector<1x16x16x8xbf16>
    tpu.vector_store %arg8[%c0_25, %c1, %c1_26, %c0_27], %20 {strides = array<i32>} : memref<1x18x18x8xbf16, #tpu.memory_space<vmem>>, vector<1x16x16x8xbf16>,
    %c0_28 = arith.constant 0 : index
    %c0_29 = arith.constant 0 : index
    %c0_30 = arith.constant 0 : index
    %c0_31 = arith.constant 0 : index
    %22 = vector.load %arg8[%c0_28, %c0_29, %c0_30, %c0_31] : memref<1x18x18x8xbf16, #tpu.memory_space<vmem>>, vector<1x18x18x8xbf16>
    %cst_32 = arith.constant 0.000000e+00 : f32
    %23 = vector.broadcast %cst_32 : f32 to vector<256x8xf32>
    %24 = vector.extract_strided_slice %22 {offsets = [0, 0, 0, 0], sizes = [1, 16, 16, 8], strides = [1, 1, 1, 1]} : vector<1x18x18x8xbf16> to vector<1x16x16x8xbf16>
    %25 = vector.shape_cast %24 : vector<1x16x16x8xbf16> to vector<256x8xbf16>
    %c0_33 = arith.constant 0 : index
    %c0_34 = arith.constant 0 : index
    %c0_35 = arith.constant 0 : index
    %26 = vector.load %arg2[%c0_33, %c0_34, %c0_35] : memref<9x8x8xbf16, #tpu.memory_space<vmem>>, vector<1x8x8xbf16>
    %27 = vector.shape_cast %26 : vector<1x8x8xbf16> to vector<8x8xbf16>
    %cst_36 = arith.constant dense<0.000000e+00> : vector<256x8xf32>
    %28 = tpu.matmul %25, %27, %cst_36 {dimension_numbers = #tpu.dot_dimension_numbers<[1], [0], [0], [1], [0, 0, 1, 1], [], []>} : vector<256x8xbf16>, vector<8x8xbf16>, vector<256x8xf32> -> vector<256x8xf32>
    %29 = arith.addf %23, %28 : vector<256x8xf32>
    %30 = vector.extract_strided_slice %22 {offsets = [0, 0, 1, 0], sizes = [1, 16, 16, 8], strides = [1, 1, 1, 1]} : vector<1x18x18x8xbf16> to vector<1x16x16x8xbf16>
    %31 = vector.shape_cast %30 : vector<1x16x16x8xbf16> to vector<256x8xbf16>
    %c1_37 = arith.constant 1 : index
    %c0_38 = arith.constant 0 : index
    %c0_39 = arith.constant 0 : index
    %32 = vector.load %arg2[%c1_37, %c0_38, %c0_39] : memref<9x8x8xbf16, #tpu.memory_space<vmem>>, vector<1x8x8xbf16>
    %33 = vector.shape_cast %32 : vector<1x8x8xbf16> to vector<8x8xbf16>
    %cst_40 = arith.constant dense<0.000000e+00> : vector<256x8xf32>
    %34 = tpu.matmul %31, %33, %cst_40 {dimension_numbers = #tpu.dot_dimension_numbers<[1], [0], [0], [1], [0, 0, 1, 1], [], []>} : vector<256x8xbf16>, vector<8x8xbf16>, vector<256x8xf32> -> vector<256x8xf32>
    %35 = arith.addf %29, %34 : vector<256x8xf32>
    %36 = vector.extract_strided_slice %22 {offsets = [0, 0, 2, 0], sizes = [1, 16, 16, 8], strides = [1, 1, 1, 1]} : vector<1x18x18x8xbf16> to vector<1x16x16x8xbf16>
    %37 = vector.shape_cast %36 : vector<1x16x16x8xbf16> to vector<256x8xbf16>
    %c2 = arith.constant 2 : index
    %c0_41 = arith.constant 0 : index
    %c0_42 = arith.constant 0 : index
    %38 = vector.load %arg2[%c2, %c0_41, %c0_42] : memref<9x8x8xbf16, #tpu.memory_space<vmem>>, vector<1x8x8xbf16>
    %39 = vector.shape_cast %38 : vector<1x8x8xbf16> to vector<8x8xbf16>
    %cst_43 = arith.constant dense<0.000000e+00> : vector<256x8xf32>
    %40 = tpu.matmul %37, %39, %cst_43 {dimension_numbers = #tpu.dot_dimension_numbers<[1], [0], [0], [1], [0, 0, 1, 1], [], []>} : vector<256x8xbf16>, vector<8x8xbf16>, vector<256x8xf32> -> vector<256x8xf32>
    %41 = arith.addf %35, %40 : vector<256x8xf32>
    %42 = vector.extract_strided_slice %22 {offsets = [0, 1, 0, 0], sizes = [1, 16, 16, 8], strides = [1, 1, 1, 1]} : vector<1x18x18x8xbf16> to vector<1x16x16x8xbf16>
    %43 = vector.shape_cast %42 : vector<1x16x16x8xbf16> to vector<256x8xbf16>
    %c3 = arith.constant 3 : index
    %c0_44 = arith.constant 0 : index
    %c0_45 = arith.constant 0 : index
    %44 = vector.load %arg2[%c3, %c0_44, %c0_45] : memref<9x8x8xbf16, #tpu.memory_space<vmem>>, vector<1x8x8xbf16>
    %45 = vector.shape_cast %44 : vector<1x8x8xbf16> to vector<8x8xbf16>
    %cst_46 = arith.constant dense<0.000000e+00> : vector<256x8xf32>
    %46 = tpu.matmul %43, %45, %cst_46 {dimension_numbers = #tpu.dot_dimension_numbers<[1], [0], [0], [1], [0, 0, 1, 1], [], []>} : vector<256x8xbf16>, vector<8x8xbf16>, vector<256x8xf32> -> vector<256x8xf32>
    %47 = arith.addf %41, %46 : vector<256x8xf32>
    %48 = vector.extract_strided_slice %22 {offsets = [0, 1, 1, 0], sizes = [1, 16, 16, 8], strides = [1, 1, 1, 1]} : vector<1x18x18x8xbf16> to vector<1x16x16x8xbf16>
    %49 = vector.shape_cast %48 : vector<1x16x16x8xbf16> to vector<256x8xbf16>
    %c4 = arith.constant 4 : index
    %c0_47 = arith.constant 0 : index
    %c0_48 = arith.constant 0 : index
    %50 = vector.load %arg2[%c4, %c0_47, %c0_48] : memref<9x8x8xbf16, #tpu.memory_space<vmem>>, vector<1x8x8xbf16>
    %51 = vector.shape_cast %50 : vector<1x8x8xbf16> to vector<8x8xbf16>
    %cst_49 = arith.constant dense<0.000000e+00> : vector<256x8xf32>
    %52 = tpu.matmul %49, %51, %cst_49 {dimension_numbers = #tpu.dot_dimension_numbers<[1], [0], [0], [1], [0, 0, 1, 1], [], []>} : vector<256x8xbf16>, vector<8x8xbf16>, vector<256x8xf32> -> vector<256x8xf32>
    %53 = arith.addf %47, %52 : vector<256x8xf32>
    %54 = vector.extract_strided_slice %22 {offsets = [0, 1, 2, 0], sizes = [1, 16, 16, 8], strides = [1, 1, 1, 1]} : vector<1x18x18x8xbf16> to vector<1x16x16x8xbf16>
    %55 = vector.shape_cast %54 : vector<1x16x16x8xbf16> to vector<256x8xbf16>
    %c5 = arith.constant 5 : index
    %c0_50 = arith.constant 0 : index
    %c0_51 = arith.constant 0 : index
    %56 = vector.load %arg2[%c5, %c0_50, %c0_51] : memref<9x8x8xbf16, #tpu.memory_space<vmem>>, vector<1x8x8xbf16>
    %57 = vector.shape_cast %56 : vector<1x8x8xbf16> to vector<8x8xbf16>
    %cst_52 = arith.constant dense<0.000000e+00> : vector<256x8xf32>
    %58 = tpu.matmul %55, %57, %cst_52 {dimension_numbers = #tpu.dot_dimension_numbers<[1], [0], [0], [1], [0, 0, 1, 1], [], []>} : vector<256x8xbf16>, vector<8x8xbf16>, vector<256x8xf32> -> vector<256x8xf32>
    %59 = arith.addf %53, %58 : vector<256x8xf32>
    %60 = vector.extract_strided_slice %22 {offsets = [0, 2, 0, 0], sizes = [1, 16, 16, 8], strides = [1, 1, 1, 1]} : vector<1x18x18x8xbf16> to vector<1x16x16x8xbf16>
    %61 = vector.shape_cast %60 : vector<1x16x16x8xbf16> to vector<256x8xbf16>
    %c6 = arith.constant 6 : index
    %c0_53 = arith.constant 0 : index
    %c0_54 = arith.constant 0 : index
    %62 = vector.load %arg2[%c6, %c0_53, %c0_54] : memref<9x8x8xbf16, #tpu.memory_space<vmem>>, vector<1x8x8xbf16>
    %63 = vector.shape_cast %62 : vector<1x8x8xbf16> to vector<8x8xbf16>
    %cst_55 = arith.constant dense<0.000000e+00> : vector<256x8xf32>
    %64 = tpu.matmul %61, %63, %cst_55 {dimension_numbers = #tpu.dot_dimension_numbers<[1], [0], [0], [1], [0, 0, 1, 1], [], []>} : vector<256x8xbf16>, vector<8x8xbf16>, vector<256x8xf32> -> vector<256x8xf32>
    %65 = arith.addf %59, %64 : vector<256x8xf32>
    %66 = vector.extract_strided_slice %22 {offsets = [0, 2, 1, 0], sizes = [1, 16, 16, 8], strides = [1, 1, 1, 1]} : vector<1x18x18x8xbf16> to vector<1x16x16x8xbf16>
    %67 = vector.shape_cast %66 : vector<1x16x16x8xbf16> to vector<256x8xbf16>
    %c7 = arith.constant 7 : index
    %c0_56 = arith.constant 0 : index
    %c0_57 = arith.constant 0 : index
    %68 = vector.load %arg2[%c7, %c0_56, %c0_57] : memref<9x8x8xbf16, #tpu.memory_space<vmem>>, vector<1x8x8xbf16>
    %69 = vector.shape_cast %68 : vector<1x8x8xbf16> to vector<8x8xbf16>
    %cst_58 = arith.constant dense<0.000000e+00> : vector<256x8xf32>
    %70 = tpu.matmul %67, %69, %cst_58 {dimension_numbers = #tpu.dot_dimension_numbers<[1], [0], [0], [1], [0, 0, 1, 1], [], []>} : vector<256x8xbf16>, vector<8x8xbf16>, vector<256x8xf32> -> vector<256x8xf32>
    %71 = arith.addf %65, %70 : vector<256x8xf32>
    %72 = vector.extract_strided_slice %22 {offsets = [0, 2, 2, 0], sizes = [1, 16, 16, 8], strides = [1, 1, 1, 1]} : vector<1x18x18x8xbf16> to vector<1x16x16x8xbf16>
    %73 = vector.shape_cast %72 : vector<1x16x16x8xbf16> to vector<256x8xbf16>
    %c8 = arith.constant 8 : index
    %c0_59 = arith.constant 0 : index
    %c0_60 = arith.constant 0 : index
    %74 = vector.load %arg2[%c8, %c0_59, %c0_60] : memref<9x8x8xbf16, #tpu.memory_space<vmem>>, vector<1x8x8xbf16>
    %75 = vector.shape_cast %74 : vector<1x8x8xbf16> to vector<8x8xbf16>
    %cst_61 = arith.constant dense<0.000000e+00> : vector<256x8xf32>
    %76 = tpu.matmul %73, %75, %cst_61 {dimension_numbers = #tpu.dot_dimension_numbers<[1], [0], [0], [1], [0, 0, 1, 1], [], []>} : vector<256x8xbf16>, vector<8x8xbf16>, vector<256x8xf32> -> vector<256x8xf32>
    %77 = arith.addf %71, %76 : vector<256x8xf32>
    %c0_62 = arith.constant 0 : index
    %c0_63 = arith.constant 0 : index
    %78 = vector.load %arg6[%c0_62, %c0_63] : memref<1x8xf32, #tpu.memory_space<vmem>>, vector<1x8xf32>
    %79 = vector.broadcast %78 : vector<1x8xf32> to vector<256x8xf32>
    %80 = arith.addf %77, %79 : vector<256x8xf32>
    %cst_64 = arith.constant 0.000000e+00 : f32
    %81 = vector.broadcast %cst_64 : f32 to vector<256x8xf32>
    %82 = arith.cmpf ogt, %80, %81 : vector<256x8xf32>
    %cst_65 = arith.constant 0.00999999977 : f32
    %83 = vector.broadcast %cst_65 : f32 to vector<256x8xf32>
    %84 = arith.mulf %83, %80 : vector<256x8xf32>
    %85 = arith.select %82, %80, %84 : vector<256x8xi1>, vector<256x8xf32>
    %86 = vector.shape_cast %85 : vector<256x8xf32> to vector<1x16x16x8xf32>
    %87 = arith.truncf %86 : vector<1x16x16x8xf32> to vector<1x16x16x8xbf16>
    %c0_66 = arith.constant 0 : index
    %c1_67 = arith.constant 1 : index
    %c1_68 = arith.constant 1 : index
    %c0_69 = arith.constant 0 : index
    %88 = vector.load %arg8[%c0_66, %c1_67, %c1_68, %c0_69] : memref<1x18x18x8xbf16, #tpu.memory_space<vmem>>, vector<1x16x16x8xbf16>
    tpu.vector_store %arg8[%c0_66, %c1_67, %c1_68, %c0_69], %87 {strides = array<i32>} : memref<1x18x18x8xbf16, #tpu.memory_space<vmem>>, vector<1x16x16x8xbf16>,
    %c0_70 = arith.constant 0 : index
    %c0_71 = arith.constant 0 : index
    %c0_72 = arith.constant 0 : index
    %c0_73 = arith.constant 0 : index
    %89 = vector.load %arg8[%c0_70, %c0_71, %c0_72, %c0_73] : memref<1x18x18x8xbf16, #tpu.memory_space<vmem>>, vector<1x18x18x8xbf16>
    %cst_74 = arith.constant 0.000000e+00 : f32
    %90 = vector.broadcast %cst_74 : f32 to vector<256x8xf32>
    %91 = vector.extract_strided_slice %89 {offsets = [0, 0, 0, 0], sizes = [1, 16, 16, 8], strides = [1, 1, 1, 1]} : vector<1x18x18x8xbf16> to vector<1x16x16x8xbf16>
    %92 = vector.shape_cast %91 : vector<1x16x16x8xbf16> to vector<256x8xbf16>
    %c0_75 = arith.constant 0 : index
    %c0_76 = arith.constant 0 : index
    %c0_77 = arith.constant 0 : index
    %93 = vector.load %arg3[%c0_75, %c0_76, %c0_77] : memref<9x8x8xbf16, #tpu.memory_space<vmem>>, vector<1x8x8xbf16>
    %94 = vector.shape_cast %93 : vector<1x8x8xbf16> to vector<8x8xbf16>
    %cst_78 = arith.constant dense<0.000000e+00> : vector<256x8xf32>
    %95 = tpu.matmul %92, %94, %cst_78 {dimension_numbers = #tpu.dot_dimension_numbers<[1], [0], [0], [1], [0, 0, 1, 1], [], []>} : vector<256x8xbf16>, vector<8x8xbf16>, vector<256x8xf32> -> vector<256x8xf32>
    %96 = arith.addf %90, %95 : vector<256x8xf32>
    %97 = vector.extract_strided_slice %89 {offsets = [0, 0, 1, 0], sizes = [1, 16, 16, 8], strides = [1, 1, 1, 1]} : vector<1x18x18x8xbf16> to vector<1x16x16x8xbf16>
    %98 = vector.shape_cast %97 : vector<1x16x16x8xbf16> to vector<256x8xbf16>
    %c1_79 = arith.constant 1 : index
    %c0_80 = arith.constant 0 : index
    %c0_81 = arith.constant 0 : index
    %99 = vector.load %arg3[%c1_79, %c0_80, %c0_81] : memref<9x8x8xbf16, #tpu.memory_space<vmem>>, vector<1x8x8xbf16>
    %100 = vector.shape_cast %99 : vector<1x8x8xbf16> to vector<8x8xbf16>
    %cst_82 = arith.constant dense<0.000000e+00> : vector<256x8xf32>
    %101 = tpu.matmul %98, %100, %cst_82 {dimension_numbers = #tpu.dot_dimension_numbers<[1], [0], [0], [1], [0, 0, 1, 1], [], []>} : vector<256x8xbf16>, vector<8x8xbf16>, vector<256x8xf32> -> vector<256x8xf32>
    %102 = arith.addf %96, %101 : vector<256x8xf32>
    %103 = vector.extract_strided_slice %89 {offsets = [0, 0, 2, 0], sizes = [1, 16, 16, 8], strides = [1, 1, 1, 1]} : vector<1x18x18x8xbf16> to vector<1x16x16x8xbf16>
    %104 = vector.shape_cast %103 : vector<1x16x16x8xbf16> to vector<256x8xbf16>
    %c2_83 = arith.constant 2 : index
    %c0_84 = arith.constant 0 : index
    %c0_85 = arith.constant 0 : index
    %105 = vector.load %arg3[%c2_83, %c0_84, %c0_85] : memref<9x8x8xbf16, #tpu.memory_space<vmem>>, vector<1x8x8xbf16>
    %106 = vector.shape_cast %105 : vector<1x8x8xbf16> to vector<8x8xbf16>
    %cst_86 = arith.constant dense<0.000000e+00> : vector<256x8xf32>
    %107 = tpu.matmul %104, %106, %cst_86 {dimension_numbers = #tpu.dot_dimension_numbers<[1], [0], [0], [1], [0, 0, 1, 1], [], []>} : vector<256x8xbf16>, vector<8x8xbf16>, vector<256x8xf32> -> vector<256x8xf32>
    %108 = arith.addf %102, %107 : vector<256x8xf32>
    %109 = vector.extract_strided_slice %89 {offsets = [0, 1, 0, 0], sizes = [1, 16, 16, 8], strides = [1, 1, 1, 1]} : vector<1x18x18x8xbf16> to vector<1x16x16x8xbf16>
    %110 = vector.shape_cast %109 : vector<1x16x16x8xbf16> to vector<256x8xbf16>
    %c3_87 = arith.constant 3 : index
    %c0_88 = arith.constant 0 : index
    %c0_89 = arith.constant 0 : index
    %111 = vector.load %arg3[%c3_87, %c0_88, %c0_89] : memref<9x8x8xbf16, #tpu.memory_space<vmem>>, vector<1x8x8xbf16>
    %112 = vector.shape_cast %111 : vector<1x8x8xbf16> to vector<8x8xbf16>
    %cst_90 = arith.constant dense<0.000000e+00> : vector<256x8xf32>
    %113 = tpu.matmul %110, %112, %cst_90 {dimension_numbers = #tpu.dot_dimension_numbers<[1], [0], [0], [1], [0, 0, 1, 1], [], []>} : vector<256x8xbf16>, vector<8x8xbf16>, vector<256x8xf32> -> vector<256x8xf32>
    %114 = arith.addf %108, %113 : vector<256x8xf32>
    %115 = vector.extract_strided_slice %89 {offsets = [0, 1, 1, 0], sizes = [1, 16, 16, 8], strides = [1, 1, 1, 1]} : vector<1x18x18x8xbf16> to vector<1x16x16x8xbf16>
    %116 = vector.shape_cast %115 : vector<1x16x16x8xbf16> to vector<256x8xbf16>
    %c4_91 = arith.constant 4 : index
    %c0_92 = arith.constant 0 : index
    %c0_93 = arith.constant 0 : index
    %117 = vector.load %arg3[%c4_91, %c0_92, %c0_93] : memref<9x8x8xbf16, #tpu.memory_space<vmem>>, vector<1x8x8xbf16>
    %118 = vector.shape_cast %117 : vector<1x8x8xbf16> to vector<8x8xbf16>
    %cst_94 = arith.constant dense<0.000000e+00> : vector<256x8xf32>
    %119 = tpu.matmul %116, %118, %cst_94 {dimension_numbers = #tpu.dot_dimension_numbers<[1], [0], [0], [1], [0, 0, 1, 1], [], []>} : vector<256x8xbf16>, vector<8x8xbf16>, vector<256x8xf32> -> vector<256x8xf32>
    %120 = arith.addf %114, %119 : vector<256x8xf32>
    %121 = vector.extract_strided_slice %89 {offsets = [0, 1, 2, 0], sizes = [1, 16, 16, 8], strides = [1, 1, 1, 1]} : vector<1x18x18x8xbf16> to vector<1x16x16x8xbf16>
    %122 = vector.shape_cast %121 : vector<1x16x16x8xbf16> to vector<256x8xbf16>
    %c5_95 = arith.constant 5 : index
    %c0_96 = arith.constant 0 : index
    %c0_97 = arith.constant 0 : index
    %123 = vector.load %arg3[%c5_95, %c0_96, %c0_97] : memref<9x8x8xbf16, #tpu.memory_space<vmem>>, vector<1x8x8xbf16>
    %124 = vector.shape_cast %123 : vector<1x8x8xbf16> to vector<8x8xbf16>
    %cst_98 = arith.constant dense<0.000000e+00> : vector<256x8xf32>
    %125 = tpu.matmul %122, %124, %cst_98 {dimension_numbers = #tpu.dot_dimension_numbers<[1], [0], [0], [1], [0, 0, 1, 1], [], []>} : vector<256x8xbf16>, vector<8x8xbf16>, vector<256x8xf32> -> vector<256x8xf32>
    %126 = arith.addf %120, %125 : vector<256x8xf32>
    %127 = vector.extract_strided_slice %89 {offsets = [0, 2, 0, 0], sizes = [1, 16, 16, 8], strides = [1, 1, 1, 1]} : vector<1x18x18x8xbf16> to vector<1x16x16x8xbf16>
    %128 = vector.shape_cast %127 : vector<1x16x16x8xbf16> to vector<256x8xbf16>
    %c6_99 = arith.constant 6 : index
    %c0_100 = arith.constant 0 : index
    %c0_101 = arith.constant 0 : index
    %129 = vector.load %arg3[%c6_99, %c0_100, %c0_101] : memref<9x8x8xbf16, #tpu.memory_space<vmem>>, vector<1x8x8xbf16>
    %130 = vector.shape_cast %129 : vector<1x8x8xbf16> to vector<8x8xbf16>
    %cst_102 = arith.constant dense<0.000000e+00> : vector<256x8xf32>
    %131 = tpu.matmul %128, %130, %cst_102 {dimension_numbers = #tpu.dot_dimension_numbers<[1], [0], [0], [1], [0, 0, 1, 1], [], []>} : vector<256x8xbf16>, vector<8x8xbf16>, vector<256x8xf32> -> vector<256x8xf32>
    %132 = arith.addf %126, %131 : vector<256x8xf32>
    %133 = vector.extract_strided_slice %89 {offsets = [0, 2, 1, 0], sizes = [1, 16, 16, 8], strides = [1, 1, 1, 1]} : vector<1x18x18x8xbf16> to vector<1x16x16x8xbf16>
    %134 = vector.shape_cast %133 : vector<1x16x16x8xbf16> to vector<256x8xbf16>
    %c7_103 = arith.constant 7 : index
    %c0_104 = arith.constant 0 : index
    %c0_105 = arith.constant 0 : index
    %135 = vector.load %arg3[%c7_103, %c0_104, %c0_105] : memref<9x8x8xbf16, #tpu.memory_space<vmem>>, vector<1x8x8xbf16>
    %136 = vector.shape_cast %135 : vector<1x8x8xbf16> to vector<8x8xbf16>
    %cst_106 = arith.constant dense<0.000000e+00> : vector<256x8xf32>
    %137 = tpu.matmul %134, %136, %cst_106 {dimension_numbers = #tpu.dot_dimension_numbers<[1], [0], [0], [1], [0, 0, 1, 1], [], []>} : vector<256x8xbf16>, vector<8x8xbf16>, vector<256x8xf32> -> vector<256x8xf32>
    %138 = arith.addf %132, %137 : vector<256x8xf32>
    %139 = vector.extract_strided_slice %89 {offsets = [0, 2, 2, 0], sizes = [1, 16, 16, 8], strides = [1, 1, 1, 1]} : vector<1x18x18x8xbf16> to vector<1x16x16x8xbf16>
    %140 = vector.shape_cast %139 : vector<1x16x16x8xbf16> to vector<256x8xbf16>
    %c8_107 = arith.constant 8 : index
    %c0_108 = arith.constant 0 : index
    %c0_109 = arith.constant 0 : index
    %141 = vector.load %arg3[%c8_107, %c0_108, %c0_109] : memref<9x8x8xbf16, #tpu.memory_space<vmem>>, vector<1x8x8xbf16>
    %142 = vector.shape_cast %141 : vector<1x8x8xbf16> to vector<8x8xbf16>
    %cst_110 = arith.constant dense<0.000000e+00> : vector<256x8xf32>
    %143 = tpu.matmul %140, %142, %cst_110 {dimension_numbers = #tpu.dot_dimension_numbers<[1], [0], [0], [1], [0, 0, 1, 1], [], []>} : vector<256x8xbf16>, vector<8x8xbf16>, vector<256x8xf32> -> vector<256x8xf32>
    %144 = arith.addf %138, %143 : vector<256x8xf32>
    %145 = vector.shape_cast %144 : vector<256x8xf32> to vector<1x16x16x8xf32>
    %146 = arith.addf %6, %145 : vector<1x16x16x8xf32>
    %c0_111 = arith.constant 0 : index
    %c0_112 = arith.constant 0 : index
    %c0_113 = arith.constant 0 : index
    %c0_114 = arith.constant 0 : index
    %147 = vector.load %arg7[%c0_111, %c0_112, %c0_113, %c0_114] : memref<1x16x16x8xf32, #tpu.memory_space<vmem>>, vector<1x16x16x8xf32>
    tpu.vector_store %arg7[%c0_111, %c0_112, %c0_113, %c0_114], %146 {strides = array<i32>} : memref<1x16x16x8xf32, #tpu.memory_space<vmem>>, vector<1x16x16x8xf32>,
    return
  }
  func.func @transform_0(%arg0: i32) -> (i32, i32, i32, i32) {
    %c0_i32 = arith.constant 0 : i32
    %c0_i32_0 = arith.constant 0 : i32
    %c0_i32_1 = arith.constant 0 : i32
    %c0_i32_2 = arith.constant 0 : i32
    return %arg0, %c0_i32, %c0_i32_0, %c0_i32_1 : i32, i32, i32, i32
  }
  func.func @transform_1(%arg0: i32) -> (i32, i32, i32) {
    %c0_i32 = arith.constant 0 : i32
    %c0_i32_0 = arith.constant 0 : i32
    %c0_i32_1 = arith.constant 0 : i32
    %c0_i32_2 = arith.constant 0 : i32
    return %c0_i32, %c0_i32_0, %c0_i32_1 : i32, i32, i32
  }
  func.func @transform_2(%arg0: i32) -> (i32, i32, i32) {
    %c0_i32 = arith.constant 0 : i32
    %c0_i32_0 = arith.constant 0 : i32
    %c0_i32_1 = arith.constant 0 : i32
    %c0_i32_2 = arith.constant 0 : i32
    return %c0_i32, %c0_i32_0, %c0_i32_1 : i32, i32, i32
  }
  func.func @transform_3(%arg0: i32) -> (i32, i32) {
    %c0_i32 = arith.constant 0 : i32
    %c0_i32_0 = arith.constant 0 : i32
    %c0_i32_1 = arith.constant 0 : i32
    return %c0_i32, %c0_i32_0 : i32, i32
  }
  func.func @transform_4(%arg0: i32) -> (i32, i32) {
    %c0_i32 = arith.constant 0 : i32
    %c0_i32_0 = arith.constant 0 : i32
    %c0_i32_1 = arith.constant 0 : i32
    return %c0_i32, %c0_i32_0 : i32, i32
  }
  func.func @transform_5(%arg0: i32) -> (i32, i32) {
    %c0_i32 = arith.constant 0 : i32
    %c0_i32_0 = arith.constant 0 : i32
    %c0_i32_1 = arith.constant 0 : i32
    return %c0_i32, %c0_i32_0 : i32, i32
  }
  func.func @transform_6(%arg0: i32) -> (i32, i32, i32, i32) {
    %c0_i32 = arith.constant 0 : i32
    %c0_i32_0 = arith.constant 0 : i32
    %c0_i32_1 = arith.constant 0 : i32
    %c0_i32_2 = arith.constant 0 : i32
    return %arg0, %c0_i32, %c0_i32_0, %c0_i32_1 : i32, i32, i32, i32
  }
}

</mosaic_0001>

<llo_original>
// kernel: tpu_custom_call.1
$region0: #{tpu_custom_call.1}
  #allocation0 [shape = 'u32[]', space=smem, size = 0x4, offset = 0x4, fixed_abs, tag = 'smem constant byte address 0x4 - core index']
  #allocation1 [shape = 'u32[144,128]{1,0:T(1,128)}', space=vmem, size = 0x12000, scoped, tag = 'internal scratch']
  #allocation2 [shape = 'bf16[1,18,18,8]{3,2,1,0:T(8,128)(2,1)}', space=vmem, size = 0x1b000, scoped, tag = 'scratch operand']
  %s0 = inlined_call_operand.vmem [shape: f32[2,16,16,8], index: 0, kind: input, shape index: {}]
  %s1 = inlined_call_operand.vmem [shape: bf16[9,8,8], index: 1, kind: input, shape index: {}]
  %s2 = inlined_call_operand.vmem [shape: bf16[9,8,8], index: 2, kind: input, shape index: {}]
  %s3 = inlined_call_operand.vmem [shape: f32[1,8], index: 3, kind: input, shape index: {}]
  %s4 = inlined_call_operand.vmem [shape: f32[1,8], index: 4, kind: input, shape index: {}]
  %s5 = inlined_call_operand.vmem [shape: f32[1,8], index: 5, kind: input, shape index: {}]
  %s6 = inlined_call_operand.vmem [shape: f32[2,16,16,8], index: 6, kind: output, shape index: {}]
  %s7 = sld [smem:[#allocation0]]
  $region57: #{tpu_custom_call.1} parent=0
    _
  %s9 = ssub.s32 1, %s7
  %s10 = scalar_select 0, %s9, %s7
  loop: start=0, step=1, limit=4
  $region2: #{tpu_custom_call.1} parent=0 // loop_pre_header
    _
  $region3: #{tpu_custom_call.1} parent=0 // loop_header
    %s12 = sphi 0, %s16
    %p13 = scmp.ge.s32.totalorder %s12, 4
    %s22 = sphi 0, %s24
    %s25 = sphi 0, %s22
    %s26 = sphi 0, %s25
    %s42 = sphi 0, %s26
    %s46 = sphi 0, %s46
    %s48 = sphi 0, %s46
    %s49 = sphi 0, %s48
    %s63 = sphi 0, %s49
    %s67 = sphi 0, %s67
    %s69 = sphi 0, %s67
    %s70 = sphi 0, %s69
    %s84 = sphi 0, %s70
    %s88 = sphi 0, %s88
    %s90 = sphi 0, %s88
    %s91 = sphi 0, %s90
    %s105 = sphi 0, %s91
    %s109 = sphi 0, %s109
    %s111 = sphi 0, %s109
    %s112 = sphi 0, %s111
    %s126 = sphi 0, %s112
    %s130 = sphi 0, %s130
    %s132 = sphi 0, %s130
    %s133 = sphi 0, %s132
    %s147 = sphi 0, %s133
    %s153 = sphi 0, %s155
    %s156 = sphi 0, %s153
    %s157 = sphi 0, %s156
    %s173 = sphi 0, %s157
  $region4: #{tpu_custom_call.1} parent=0 // loop_header_branch
    %15 = sbr.rel (%p13) target = $region8
  $region5: #{tpu_custom_call.1} parent=0 // loop_body
    %s17 = ssub.s32 %s12, 1
    %s18 = ssub.s32 %s12, 2
    %s19 = sadd.s32 %s12, 1
    %s20 = ssub.s32 %s12, %s19
    %p21 = scmp.eq.s32.totalorder %s20, 0
    %s23 = sadd.s32 %s22, 1
    %s24 = scalar_select %p21, %s22, %s23
    %p27 = pneg %p21
    %p28 = scmp.eq.s32.totalorder %s12, 1
    %p29 = por %p27, %p28
    %p30 = scmp.ne.s32.totalorder %s22, %s25
    %p31 = scmp.eq.s32.totalorder %s12, 0
    %p32 = por %p30, %p31
    %p33 = scmp.ne.s32.totalorder %s22, %s25
    %p34 = scmp.eq.s32.totalorder %s17, 1
    %p35 = por %p33, %p34
    %p36 = scmp.ne.s32.totalorder %s25, %s26
    %p37 = scmp.eq.s32.totalorder %s17, 0
    %p38 = por %p36, %p37
    %p39 = scmp.ne.s32.totalorder %s25, %s26
    %p40 = scmp.eq.s32.totalorder %s18, 1
    %p41 = por %p39, %p40
    %p43 = scmp.ne.s32.totalorder %s26, %s42
    %p44 = scmp.eq.s32.totalorder %s18, 0
    %p45 = por %p43, %p44
    %s47 = sadd.s32 %s46, 1
    %p50 = scmp.eq.s32.totalorder %s12, 1
    %p51 = scmp.ne.s32.totalorder %s46, %s48
    %p52 = scmp.eq.s32.totalorder %s12, 0
    %p53 = por %p51, %p52
    %p54 = scmp.ne.s32.totalorder %s46, %s48
    %p55 = scmp.eq.s32.totalorder %s17, 1
    %p56 = por %p54, %p55
    %p57 = scmp.ne.s32.totalorder %s48, %s49
    %p58 = scmp.eq.s32.totalorder %s17, 0
    %p59 = por %p57, %p58
    %p60 = scmp.ne.s32.totalorder %s48, %s49
    %p61 = scmp.eq.s32.totalorder %s18, 1
    %p62 = por %p60, %p61
    %p64 = scmp.ne.s32.totalorder %s49, %s63
    %p65 = scmp.eq.s32.totalorder %s18, 0
    %p66 = por %p64, %p65
    %s68 = sadd.s32 %s67, 1
    %p71 = scmp.eq.s32.totalorder %s12, 1
    %p72 = scmp.ne.s32.totalorder %s67, %s69
    %p73 = scmp.eq.s32.totalorder %s12, 0
    %p74 = por %p72, %p73
    %p75 = scmp.ne.s32.totalorder %s67, %s69
    %p76 = scmp.eq.s32.totalorder %s17, 1
    %p77 = por %p75, %p76
    %p78 = scmp.ne.s32.totalorder %s69, %s70
    %p79 = scmp.eq.s32.totalorder %s17, 0
    %p80 = por %p78, %p79
    %p81 = scmp.ne.s32.totalorder %s69, %s70
    %p82 = scmp.eq.s32.totalorder %s18, 1
    %p83 = por %p81, %p82
    %p85 = scmp.ne.s32.totalorder %s70, %s84
    %p86 = scmp.eq.s32.totalorder %s18, 0
    %p87 = por %p85, %p86
    %s89 = sadd.s32 %s88, 1
    %p92 = scmp.eq.s32.totalorder %s12, 1
    %p93 = scmp.ne.s32.totalorder %s88, %s90
    %p94 = scmp.eq.s32.totalorder %s12, 0
    %p95 = por %p93, %p94
    %p96 = scmp.ne.s32.totalorder %s88, %s90
    %p97 = scmp.eq.s32.totalorder %s17, 1
    %p98 = por %p96, %p97
    %p99 = scmp.ne.s32.totalorder %s90, %s91
    %p100 = scmp.eq.s32.totalorder %s17, 0
    %p101 = por %p99, %p100
    %p102 = scmp.ne.s32.totalorder %s90, %s91
    %p103 = scmp.eq.s32.totalorder %s18, 1
    %p104 = por %p102, %p103
    %p106 = scmp.ne.s32.totalorder %s91, %s105
    %p107 = scmp.eq.s32.totalorder %s18, 0
    %p108 = por %p106, %p107
    %s110 = sadd.s32 %s109, 1
    %p113 = scmp.eq.s32.totalorder %s12, 1
    %p114 = scmp.ne.s32.totalorder %s109, %s111
    %p115 = scmp.eq.s32.totalorder %s12, 0
    %p116 = por %p114, %p115
    %p117 = scmp.ne.s32.totalorder %s109, %s111
    %p118 = scmp.eq.s32.totalorder %s17, 1
    %p119 = por %p117, %p118
    %p120 = scmp.ne.s32.totalorder %s111, %s112
    %p121 = scmp.eq.s32.totalorder %s17, 0
    %p122 = por %p120, %p121
    %p123 = scmp.ne.s32.totalorder %s111, %s112
    %p124 = scmp.eq.s32.totalorder %s18, 1
    %p125 = por %p123, %p124
    %p127 = scmp.ne.s32.totalorder %s112, %s126
    %p128 = scmp.eq.s32.totalorder %s18, 0
    %p129 = por %p127, %p128
    %s131 = sadd.s32 %s130, 1
    %p134 = scmp.eq.s32.totalorder %s12, 1
    %p135 = scmp.ne.s32.totalorder %s130, %s132
    %p136 = scmp.eq.s32.totalorder %s12, 0
    %p137 = por %p135, %p136
    %p138 = scmp.ne.s32.totalorder %s130, %s132
    %p139 = scmp.eq.s32.totalorder %s17, 1
    %p140 = por %p138, %p139
    %p141 = scmp.ne.s32.totalorder %s132, %s133
    %p142 = scmp.eq.s32.totalorder %s17, 0
    %p143 = por %p141, %p142
    %p144 = scmp.ne.s32.totalorder %s132, %s133
    %p145 = scmp.eq.s32.totalorder %s18, 1
    %p146 = por %p144, %p145
    %p148 = scmp.ne.s32.totalorder %s133, %s147
    %p149 = scmp.eq.s32.totalorder %s18, 0
    %p150 = por %p148, %p149
    %s151 = ssub.s32 %s12, %s19
    %p152 = scmp.eq.s32.totalorder %s151, 0
    %s154 = sadd.s32 %s153, 1
    %s155 = scalar_select %p152, %s153, %s154
    %p158 = pneg %p152
    %p159 = scmp.eq.s32.totalorder %s12, 1
    %p160 = por %p158, %p159
    %p161 = scmp.ne.s32.totalorder %s153, %s156
    %p162 = scmp.eq.s32.totalorder %s12, 0
    %p163 = por %p161, %p162
    %p164 = scmp.ne.s32.totalorder %s153, %s156
    %p165 = scmp.eq.s32.totalorder %s17, 1
    %p166 = por %p164, %p165
    %p167 = scmp.ne.s32.totalorder %s156, %s157
    %p168 = scmp.eq.s32.totalorder %s17, 0
    %p169 = por %p167, %p168
    %p170 = scmp.ne.s32.totalorder %s156, %s157
    %p171 = scmp.eq.s32.totalorder %s18, 1
    %p172 = por %p170, %p171
    %p174 = scmp.ne.s32.totalorder %s157, %s173
    %p175 = scmp.eq.s32.totalorder %s18, 0
    %p176 = por %p174, %p175
    %p177 = scmp.le.s32.totalorder 1, %s12
    %p178 = scmp.lt.s32.totalorder %s12, 3
    %p179 = pnand %p177, %p178
    %p180 = pneg %p179
    // Predicated region
    $region9: #{tpu_custom_call.1} parent=5 // pred_check
      _
    $region10: #{tpu_custom_call.1} parent=5 // pred_check_branch
      %182 = sbr.rel (%p179) target = $region12
    $region11: #{tpu_custom_call.1} parent=5 // pred_region
      %s183 = ssub.s32 %s12, 1
      // Predicated region
      $region13: #{tpu_custom_call.1} parent=11 // pred_check
        %p184 = pneg %p59
      $region14: #{tpu_custom_call.1} parent=11 // pred_check_branch
        %186 = sbr.rel (%p184) target = $region16
      $region15: #{tpu_custom_call.1} parent=11 // pred_region
        _
      $region16: #{tpu_custom_call.1} parent=11 // pred_fallthru
        _
      // Predicated region
      $region17: #{tpu_custom_call.1} parent=11 // pred_check
        %p187 = pneg %p80
      $region18: #{tpu_custom_call.1} parent=11 // pred_check_branch
        %189 = sbr.rel (%p187) target = $region20
      $region19: #{tpu_custom_call.1} parent=11 // pred_region
        _
      $region20: #{tpu_custom_call.1} parent=11 // pred_fallthru
        _
      // Predicated region
      $region21: #{tpu_custom_call.1} parent=11 // pred_check
        %p190 = pneg %p101
      $region22: #{tpu_custom_call.1} parent=11 // pred_check_branch
        %192 = sbr.rel (%p190) target = $region24
      $region23: #{tpu_custom_call.1} parent=11 // pred_region
        _
      $region24: #{tpu_custom_call.1} parent=11 // pred_fallthru
        _
      // Predicated region
      $region25: #{tpu_custom_call.1} parent=11 // pred_check
        %p193 = pneg %p122
      $region26: #{tpu_custom_call.1} parent=11 // pred_check_branch
        %195 = sbr.rel (%p193) target = $region28
      $region27: #{tpu_custom_call.1} parent=11 // pred_region
        _
      $region28: #{tpu_custom_call.1} parent=11 // pred_fallthru
        _
      // Predicated region
      $region29: #{tpu_custom_call.1} parent=11 // pred_check
        %p196 = pneg %p143
      $region30: #{tpu_custom_call.1} parent=11 // pred_check_branch
        %198 = sbr.rel (%p196) target = $region32
      $region31: #{tpu_custom_call.1} parent=11 // pred_region
        _
      $region32: #{tpu_custom_call.1} parent=11 // pred_fallthru
        _
    $region12: #{tpu_custom_call.1} parent=5 // pred_fallthru
      _
    %p199 = scmp.lt.s32.totalorder %s12, 2
    // Predicated region
    $region33: #{tpu_custom_call.1} parent=5 // pred_check
      %p200 = pneg %p199
    $region34: #{tpu_custom_call.1} parent=5 // pred_check_branch
      %202 = sbr.rel (%p200) target = $region36
    $region35: #{tpu_custom_call.1} parent=5 // pred_region
      // Predicated region
      $region37: #{tpu_custom_call.1} parent=35 // pred_check
        %p203 = pneg %p32
      $region38: #{tpu_custom_call.1} parent=35 // pred_check_branch
        %205 = sbr.rel (%p203) target = $region40
      $region39: #{tpu_custom_call.1} parent=35 // pred_region
        %p206 = scmp.lt.s32.totalorder %s12, 1
        %s207 = scalar_select %p206, %s12, 1
        %s208 = smul.addr %s207, 32
        %s209 = smul.addr %s208, 8
        %s210 = scalar_lea.vmem %s0, %s209
      $region40: #{tpu_custom_call.1} parent=35 // pred_fallthru
        _
    $region36: #{tpu_custom_call.1} parent=5 // pred_fallthru
      _
    %p211 = scmp.le.s32.totalorder 1, %s12
    %p212 = scmp.lt.s32.totalorder %s12, 3
    %p213 = pnand %p211, %p212
    %p214 = pneg %p213
    // Predicated region
    $region41: #{tpu_custom_call.1} parent=5 // pred_check
      _
    $region42: #{tpu_custom_call.1} parent=5 // pred_check_branch
      %216 = sbr.rel (%p213) target = $region44
    $region43: #{tpu_custom_call.1} parent=5 // pred_region
      %s217 = ssub.s32 %s12, 1
      %p218 = scmp.lt.s32.totalorder %s17, 1
      %s219 = scalar_select %p218, %s17, 1
      %s220 = smul.addr %s219, 32
      %s221 = smul.addr %s220, 8
      %s222 = scalar_lea.vmem %s0, %s221
      %p223 = pneg %p38
      %p224 = pneg %p35
      %p225 = pneg %p59
      %p226 = pneg %p56
      %p227 = pneg %p80
      %p228 = pneg %p77
      %p229 = pneg %p101
      %p230 = pneg %p98
      %p231 = pneg %p122
      %p232 = pneg %p119
      %p233 = pneg %p143
      %p234 = pneg %p140
      %p235 = pneg %p169
      %p236 = pneg %p166
      %p237 = scmp.lt.s32.totalorder %s17, 1
      %s238 = scalar_select %p237, %s17, 1
      %s239 = smul.addr %s238, 32
      %s240 = smul.addr %s239, 8
      %s241 = scalar_lea.vmem %s6, %s240
      %p242 = scmp.lt.s32.totalorder %s17, 1
      %s243 = scalar_select %p242, %s17, 1
      %s244 = smul.addr %s243, 32
      %s245 = smul.addr %s244, 8
      %s246 = scalar_lea.vmem %s0, %s245
      %p247 = scmp.lt.s32.totalorder %s17, 1
      %s248 = scalar_select %p247, %s17, 1
      %s249 = smul.addr %s248, 32
      %s250 = smul.addr %s249, 8
      %s251 = scalar_lea.vmem %s6, %s250
      %vm253 = vcmask 60416
      %254 = vst.msk [vmem:[#allocation2] sm:$0xf] %vm253, 0
      %255 = vst.msk [vmem:[#allocation2 + $0x4] sm:$0xf] %vm253, 0
      %vm256 = vcmask 57344
      %257 = vst.msk [vmem:[#allocation2 + $0x8] sm:$0x1] %vm256, 0
      %s258 = scalar_lea.vmem [#allocation2], 204
      %259 = vst.msk [vmem:[%s258] sm:$0xf] %vm253, 0
      %260 = vst.msk [vmem:[%s258 + $0x4] sm:$0xf] %vm253, 0
      %261 = vst.msk [vmem:[%s258 + $0x8] sm:$0x1] %vm256, 0
      %vm262 = vcmask 57344
      %vm263 = vsmask.f32 256
      %vm264 = vmand %vm262, %vm263
      %v265 = vld [vmem:[#allocation2] sm:$0x1]
      %v266 = vsel %vm264, 0, %v265
      %267 = vst [vmem:[#allocation2] sm:$0x1] %v266
      %v268 = vld [vmem:[#allocation2 + $0xc] sm:$0x1]
      %v269 = vsel %vm264, 0, %v268
      %270 = vst [vmem:[#allocation2 + $0xc] sm:$0x1] %v269
      %v271 = vld [vmem:[#allocation2 + $0x18] sm:$0x1]
      %v272 = vsel %vm264, 0, %v271
      %273 = vst [vmem:[#allocation2 + $0x18] sm:$0x1] %v272
      %v274 = vld [vmem:[#allocation2 + $0x24] sm:$0x1]
      %v275 = vsel %vm264, 0, %v274
      %276 = vst [vmem:[#allocation2 + $0x24] sm:$0x1] %v275
      %v277 = vld [vmem:[#allocation2 + $0x30] sm:$0x1]
      %v278 = vsel %vm264, 0, %v277
      %279 = vst [vmem:[#allocation2 + $0x30] sm:$0x1] %v278
      %v280 = vld [vmem:[#allocation2 + $0x3c] sm:$0x1]
      %v281 = vsel %vm264, 0, %v280
      %282 = vst [vmem:[#allocation2 + $0x3c] sm:$0x1] %v281
      %v283 = vld [vmem:[#allocation2 + $0x48] sm:$0x1]
      %v284 = vsel %vm264, 0, %v283
      %285 = vst [vmem:[#allocation2 + $0x48] sm:$0x1] %v284
      %v286 = vld [vmem:[#allocation2 + $0x54] sm:$0x1]
      %v287 = vsel %vm264, 0, %v286
      %288 = vst [vmem:[#allocation2 + $0x54] sm:$0x1] %v287
      %v289 = vld [vmem:[#allocation2 + $0x60] sm:$0x1]
      %v290 = vsel %vm264, 0, %v289
      %291 = vst [vmem:[#allocation2 + $0x60] sm:$0x1] %v290
      %v292 = vld [vmem:[#allocation2 + $0x6c] sm:$0x1]
      %v293 = vsel %vm264, 0, %v292
      %294 = vst [vmem:[#allocation2 + $0x6c] sm:$0x1] %v293
      %v295 = vld [vmem:[#allocation2 + $0x78] sm:$0x1]
      %v296 = vsel %vm264, 0, %v295
      %297 = vst [vmem:[#allocation2 + $0x78] sm:$0x1] %v296
      %v298 = vld [vmem:[#allocation2 + $0x84] sm:$0x1]
      %v299 = vsel %vm264, 0, %v298
      %300 = vst [vmem:[#allocation2 + $0x84] sm:$0x1] %v299
      %v301 = vld [vmem:[#allocation2 + $0x90] sm:$0x1]
      %v302 = vsel %vm264, 0, %v301
      %303 = vst [vmem:[#allocation2 + $0x90] sm:$0x1] %v302
      %v304 = vld [vmem:[#allocation2 + $0x9c] sm:$0x1]
      %v305 = vsel %vm264, 0, %v304
      %306 = vst [vmem:[#allocation2 + $0x9c] sm:$0x1] %v305
      %v307 = vld [vmem:[#allocation2 + $0xa8] sm:$0x1]
      %v308 = vsel %vm264, 0, %v307
      %309 = vst [vmem:[#allocation2 + $0xa8] sm:$0x1] %v308
      %v310 = vld [vmem:[#allocation2 + $0xb4] sm:$0x1]
      %v311 = vsel %vm264, 0, %v310
      %312 = vst [vmem:[#allocation2 + $0xb4] sm:$0x1] %v311
      %v313 = vld [vmem:[#allocation2 + $0xc0] sm:$0x1]
      %v314 = vsel %vm264, 0, %v313
      %315 = vst [vmem:[#allocation2 + $0xc0] sm:$0x1] %v314
      %v316 = vld [vmem:[#allocation2 + $0xcc] sm:$0x1]
      %v317 = vsel %vm264, 0, %v316
      %318 = vst [vmem:[#allocation2 + $0xcc] sm:$0x1] %v317
      %vm319 = vsmask.f32 7938
      %vm320 = vmand %vm262, %vm319
      %v321 = vld [vmem:[#allocation2 + $0x8] sm:$0x1]
      %v322 = vsel %vm320, 0, %v321
      %323 = vst [vmem:[#allocation2 + $0x8] sm:$0x1] %v322
      %v324 = vld [vmem:[#allocation2 + $0x14] sm:$0x1]
      %v325 = vsel %vm320, 0, %v324
      %326 = vst [vmem:[#allocation2 + $0x14] sm:$0x1] %v325
      %v327 = vld [vmem:[#allocation2 + $0x20] sm:$0x1]
      %v328 = vsel %vm320, 0, %v327
      %329 = vst [vmem:[#allocation2 + $0x20] sm:$0x1] %v328
      %v330 = vld [vmem:[#allocation2 + $0x2c] sm:$0x1]
      %v331 = vsel %vm320, 0, %v330
      %332 = vst [vmem:[#allocation2 + $0x2c] sm:$0x1] %v331
      %v333 = vld [vmem:[#allocation2 + $0x38] sm:$0x1]
      %v334 = vsel %vm320, 0, %v333
      %335 = vst [vmem:[#allocation2 + $0x38] sm:$0x1] %v334
      %v336 = vld [vmem:[#allocation2 + $0x44] sm:$0x1]
      %v337 = vsel %vm320, 0, %v336
      %338 = vst [vmem:[#allocation2 + $0x44] sm:$0x1] %v337
      %v339 = vld [vmem:[#allocation2 + $0x50] sm:$0x1]
      %v340 = vsel %vm320, 0, %v339
      %341 = vst [vmem:[#allocation2 + $0x50] sm:$0x1] %v340
      %v342 = vld [vmem:[#allocation2 + $0x5c] sm:$0x1]
      %v343 = vsel %vm320, 0, %v342
      %344 = vst [vmem:[#allocation2 + $0x5c] sm:$0x1] %v343
      %v345 = vld [vmem:[#allocation2 + $0x68] sm:$0x1]
      %v346 = vsel %vm320, 0, %v345
      %347 = vst [vmem:[#allocation2 + $0x68] sm:$0x1] %v346
      %v348 = vld [vmem:[#allocation2 + $0x74] sm:$0x1]
      %v349 = vsel %vm320, 0, %v348
      %350 = vst [vmem:[#allocation2 + $0x74] sm:$0x1] %v349
      %v351 = vld [vmem:[#allocation2 + $0x80] sm:$0x1]
      %v352 = vsel %vm320, 0, %v351
      %353 = vst [vmem:[#allocation2 + $0x80] sm:$0x1] %v352
      %v354 = vld [vmem:[#allocation2 + $0x8c] sm:$0x1]
      %v355 = vsel %vm320, 0, %v354
      %356 = vst [vmem:[#allocation2 + $0x8c] sm:$0x1] %v355
      %v357 = vld [vmem:[#allocation2 + $0x98] sm:$0x1]
      %v358 = vsel %vm320, 0, %v357
      %359 = vst [vmem:[#allocation2 + $0x98] sm:$0x1] %v358
      %v360 = vld [vmem:[#allocation2 + $0xa4] sm:$0x1]
      %v361 = vsel %vm320, 0, %v360
      %362 = vst [vmem:[#allocation2 + $0xa4] sm:$0x1] %v361
      %v363 = vld [vmem:[#allocation2 + $0xb0] sm:$0x1]
      %v364 = vsel %vm320, 0, %v363
      %365 = vst [vmem:[#allocation2 + $0xb0] sm:$0x1] %v364
      %v366 = vld [vmem:[#allocation2 + $0xbc] sm:$0x1]
      %v367 = vsel %vm320, 0, %v366
      %368 = vst [vmem:[#allocation2 + $0xbc] sm:$0x1] %v367
      %v369 = vld [vmem:[#allocation2 + $0xc8] sm:$0x1]
      %v370 = vsel %vm320, 0, %v369
      %371 = vst [vmem:[#allocation2 + $0xc8] sm:$0x1] %v370
      %v372 = vld [vmem:[#allocation2 + $0xd4] sm:$0x1]
      %v373 = vsel %vm320, 0, %v372
      %374 = vst [vmem:[#allocation2 + $0xd4] sm:$0x1] %v373
      %v375 = vld [vmem:[%s246] sm:$0xff]
      %v376 = vld [vmem:[%s246 + $0x8] sm:$0xff]
      %v377 = vld [vmem:[%s246 + $0x10] sm:$0xff]
      %v378 = vld [vmem:[%s246 + $0x18] sm:$0xff]
      %v379 = vld [vmem:[%s246 + $0x20] sm:$0xff]
      %v380 = vld [vmem:[%s246 + $0x28] sm:$0xff]
      %v381 = vld [vmem:[%s246 + $0x30] sm:$0xff]
      %v382 = vld [vmem:[%s246 + $0x38] sm:$0xff]
      %v383 = vld [vmem:[%s246 + $0x40] sm:$0xff]
      %v384 = vld [vmem:[%s246 + $0x48] sm:$0xff]
      %v385 = vld [vmem:[%s246 + $0x50] sm:$0xff]
      %v386 = vld [vmem:[%s246 + $0x58] sm:$0xff]
      %v387 = vld [vmem:[%s246 + $0x60] sm:$0xff]
      %v388 = vld [vmem:[%s246 + $0x68] sm:$0xff]
      %v389 = vld [vmem:[%s246 + $0x70] sm:$0xff]
      %v390 = vld [vmem:[%s246 + $0x78] sm:$0xff]
      %v391 = vld [vmem:[%s246 + $0x80] sm:$0xff]
      %v392 = vld [vmem:[%s246 + $0x88] sm:$0xff]
      %v393 = vld [vmem:[%s246 + $0x90] sm:$0xff]
      %v394 = vld [vmem:[%s246 + $0x98] sm:$0xff]
      %v395 = vld [vmem:[%s246 + $0xa0] sm:$0xff]
      %v396 = vld [vmem:[%s246 + $0xa8] sm:$0xff]
      %v397 = vld [vmem:[%s246 + $0xb0] sm:$0xff]
      %v398 = vld [vmem:[%s246 + $0xb8] sm:$0xff]
      %v399 = vld [vmem:[%s246 + $0xc0] sm:$0xff]
      %v400 = vld [vmem:[%s246 + $0xc8] sm:$0xff]
      %v401 = vld [vmem:[%s246 + $0xd0] sm:$0xff]
      %v402 = vld [vmem:[%s246 + $0xd8] sm:$0xff]
      %v403 = vld [vmem:[%s246 + $0xe0] sm:$0xff]
      %v404 = vld [vmem:[%s246 + $0xe8] sm:$0xff]
      %v405 = vld [vmem:[%s246 + $0xf0] sm:$0xff]
      %v406 = vld [vmem:[%s246 + $0xf8] sm:$0xff]
      %v407 = vld [vmem:[%s3] sm:$0x1]
      %v409 = vlaneseq
      %v410 = vshrl.u32 %v409, 7
      %v411 = vsub.s32 0, %v410
      %v412 = vrot.slane %v407, %v411
      %v414 = vmul.f32 %v375, %v412
      %v415 = vmul.f32 %v376, %v412
      %v416 = vmul.f32 %v377, %v412
      %v417 = vmul.f32 %v378, %v412
      %v418 = vmul.f32 %v379, %v412
      %v419 = vmul.f32 %v380, %v412
      %v420 = vmul.f32 %v381, %v412
      %v421 = vmul.f32 %v382, %v412
      %v422 = vmul.f32 %v383, %v412
      %v423 = vmul.f32 %v384, %v412
      %v424 = vmul.f32 %v385, %v412
      %v425 = vmul.f32 %v386, %v412
      %v426 = vmul.f32 %v387, %v412
      %v427 = vmul.f32 %v388, %v412
      %v428 = vmul.f32 %v389, %v412
      %v429 = vmul.f32 %v390, %v412
      %v430 = vmul.f32 %v391, %v412
      %v431 = vmul.f32 %v392, %v412
      %v432 = vmul.f32 %v393, %v412
      %v433 = vmul.f32 %v394, %v412
      %v434 = vmul.f32 %v395, %v412
      %v435 = vmul.f32 %v396, %v412
      %v436 = vmul.f32 %v397, %v412
      %v437 = vmul.f32 %v398, %v412
      %v438 = vmul.f32 %v399, %v412
      %v439 = vmul.f32 %v400, %v412
      %v440 = vmul.f32 %v401, %v412
      %v441 = vmul.f32 %v402, %v412
      %v442 = vmul.f32 %v403, %v412
      %v443 = vmul.f32 %v404, %v412
      %v444 = vmul.f32 %v405, %v412
      %v445 = vmul.f32 %v406, %v412
      %v446 = vld [vmem:[%s4] sm:$0x1]
      %v448 = vlaneseq
      %v449 = vshrl.u32 %v448, 7
      %v450 = vsub.s32 0, %v449
      %v451 = vrot.slane %v446, %v450
      %v453 = vadd.f32 %v414, %v451
      %v454 = vadd.f32 %v415, %v451
      %v455 = vadd.f32 %v416, %v451
      %v456 = vadd.f32 %v417, %v451
      %v457 = vadd.f32 %v418, %v451
      %v458 = vadd.f32 %v419, %v451
      %v459 = vadd.f32 %v420, %v451
      %v460 = vadd.f32 %v421, %v451
      %v461 = vadd.f32 %v422, %v451
      %v462 = vadd.f32 %v423, %v451
      %v463 = vadd.f32 %v424, %v451
      %v464 = vadd.f32 %v425, %v451
      %v465 = vadd.f32 %v426, %v451
      %v466 = vadd.f32 %v427, %v451
      %v467 = vadd.f32 %v428, %v451
      %v468 = vadd.f32 %v429, %v451
      %v469 = vadd.f32 %v430, %v451
      %v470 = vadd.f32 %v431, %v451
      %v471 = vadd.f32 %v432, %v451
      %v472 = vadd.f32 %v433, %v451
      %v473 = vadd.f32 %v434, %v451
      %v474 = vadd.f32 %v435, %v451
      %v475 = vadd.f32 %v436, %v451
      %v476 = vadd.f32 %v437, %v451
      %v477 = vadd.f32 %v438, %v451
      %v478 = vadd.f32 %v439, %v451
      %v479 = vadd.f32 %v440, %v451
      %v480 = vadd.f32 %v441, %v451
      %v481 = vadd.f32 %v442, %v451
      %v482 = vadd.f32 %v443, %v451
      %v483 = vadd.f32 %v444, %v451
      %v484 = vadd.f32 %v445, %v451
      %vm485 = vcmp.gt.f32.partialorder %v453, 0.0
      %vm486 = vcmp.gt.f32.partialorder %v454, 0.0
      %vm487 = vcmp.gt.f32.partialorder %v455, 0.0
      %vm488 = vcmp.gt.f32.partialorder %v456, 0.0
      %vm489 = vcmp.gt.f32.partialorder %v457, 0.0
      %vm490 = vcmp.gt.f32.partialorder %v458, 0.0
      %vm491 = vcmp.gt.f32.partialorder %v459, 0.0
      %vm492 = vcmp.gt.f32.partialorder %v460, 0.0
      %vm493 = vcmp.gt.f32.partialorder %v461, 0.0
      %vm494 = vcmp.gt.f32.partialorder %v462, 0.0
      %vm495 = vcmp.gt.f32.partialorder %v463, 0.0
      %vm496 = vcmp.gt.f32.partialorder %v464, 0.0
      %vm497 = vcmp.gt.f32.partialorder %v465, 0.0
      %vm498 = vcmp.gt.f32.partialorder %v466, 0.0
      %vm499 = vcmp.gt.f32.partialorder %v467, 0.0
      %vm500 = vcmp.gt.f32.partialorder %v468, 0.0
      %vm501 = vcmp.gt.f32.partialorder %v469, 0.0
      %vm502 = vcmp.gt.f32.partialorder %v470, 0.0
      %vm503 = vcmp.gt.f32.partialorder %v471, 0.0
      %vm504 = vcmp.gt.f32.partialorder %v472, 0.0
      %vm505 = vcmp.gt.f32.partialorder %v473, 0.0
      %vm506 = vcmp.gt.f32.partialorder %v474, 0.0
      %vm507 = vcmp.gt.f32.partialorder %v475, 0.0
      %vm508 = vcmp.gt.f32.partialorder %v476, 0.0
      %vm509 = vcmp.gt.f32.partialorder %v477, 0.0
      %vm510 = vcmp.gt.f32.partialorder %v478, 0.0
      %vm511 = vcmp.gt.f32.partialorder %v479, 0.0
      %vm512 = vcmp.gt.f32.partialorder %v480, 0.0
      %vm513 = vcmp.gt.f32.partialorder %v481, 0.0
      %vm514 = vcmp.gt.f32.partialorder %v482, 0.0
      %vm515 = vcmp.gt.f32.partialorder %v483, 0.0
      %vm516 = vcmp.gt.f32.partialorder %v484, 0.0
      %v517 = vmul.f32 %v453, 0.01
      %v518 = vmul.f32 %v454, 0.01
      %v519 = vmul.f32 %v455, 0.01
      %v520 = vmul.f32 %v456, 0.01
      %v521 = vmul.f32 %v457, 0.01
      %v522 = vmul.f32 %v458, 0.01
      %v523 = vmul.f32 %v459, 0.01
      %v524 = vmul.f32 %v460, 0.01
      %v525 = vmul.f32 %v461, 0.01
      %v526 = vmul.f32 %v462, 0.01
      %v527 = vmul.f32 %v463, 0.01
      %v528 = vmul.f32 %v464, 0.01
      %v529 = vmul.f32 %v465, 0.01
      %v530 = vmul.f32 %v466, 0.01
      %v531 = vmul.f32 %v467, 0.01
      %v532 = vmul.f32 %v468, 0.01
      %v533 = vmul.f32 %v469, 0.01
      %v534 = vmul.f32 %v470, 0.01
      %v535 = vmul.f32 %v471, 0.01
      %v536 = vmul.f32 %v472, 0.01
      %v537 = vmul.f32 %v473, 0.01
      %v538 = vmul.f32 %v474, 0.01
      %v539 = vmul.f32 %v475, 0.01
      %v540 = vmul.f32 %v476, 0.01
      %v541 = vmul.f32 %v477, 0.01
      %v542 = vmul.f32 %v478, 0.01
      %v543 = vmul.f32 %v479, 0.01
      %v544 = vmul.f32 %v480, 0.01
      %v545 = vmul.f32 %v481, 0.01
      %v546 = vmul.f32 %v482, 0.01
      %v547 = vmul.f32 %v483, 0.01
      %v548 = vmul.f32 %v484, 0.01
      %v549 = vsel %vm485, %v453, %v517
      %v550 = vsel %vm486, %v454, %v518
      %v551 = vsel %vm487, %v455, %v519
      %v552 = vsel %vm488, %v456, %v520
      %v553 = vsel %vm489, %v457, %v521
      %v554 = vsel %vm490, %v458, %v522
      %v555 = vsel %vm491, %v459, %v523
      %v556 = vsel %vm492, %v460, %v524
      %v557 = vsel %vm493, %v461, %v525
      %v558 = vsel %vm494, %v462, %v526
      %v559 = vsel %vm495, %v463, %v527
      %v560 = vsel %vm496, %v464, %v528
      %v561 = vsel %vm497, %v465, %v529
      %v562 = vsel %vm498, %v466, %v530
      %v563 = vsel %vm499, %v467, %v531
      %v564 = vsel %vm500, %v468, %v532
      %v565 = vsel %vm501, %v469, %v533
      %v566 = vsel %vm502, %v470, %v534
      %v567 = vsel %vm503, %v471, %v535
      %v568 = vsel %vm504, %v472, %v536
      %v569 = vsel %vm505, %v473, %v537
      %v570 = vsel %vm506, %v474, %v538
      %v571 = vsel %vm507, %v475, %v539
      %v572 = vsel %vm508, %v476, %v540
      %v573 = vsel %vm509, %v477, %v541
      %v574 = vsel %vm510, %v478, %v542
      %v575 = vsel %vm511, %v479, %v543
      %v576 = vsel %vm512, %v480, %v544
      %v577 = vsel %vm513, %v481, %v545
      %v578 = vsel %vm514, %v482, %v546
      %v579 = vsel %vm515, %v483, %v547
      %v580 = vsel %vm516, %v484, %v548
      %v581 = vpack.c.bf16 %v550, %v549
      %v582 = vpack.c.bf16 %v552, %v551
      %v583 = vpack.c.bf16 %v554, %v553
      %v584 = vpack.c.bf16 %v556, %v555
      %v585 = vpack.c.bf16 %v558, %v557
      %v586 = vpack.c.bf16 %v560, %v559
      %v587 = vpack.c.bf16 %v562, %v561
      %v588 = vpack.c.bf16 %v564, %v563
      %v589 = vpack.c.bf16 %v566, %v565
      %v590 = vpack.c.bf16 %v568, %v567
      %v591 = vpack.c.bf16 %v570, %v569
      %v592 = vpack.c.bf16 %v572, %v571
      %v593 = vpack.c.bf16 %v574, %v573
      %v594 = vpack.c.bf16 %v576, %v575
      %v595 = vpack.c.bf16 %v578, %v577
      %v596 = vpack.c.bf16 %v580, %v579
      %v613 = vunpack.c.l.b16 %v581
      %v614 = vunpack.c.h.b16 %v581
      %v615 = vunpack.c.l.b16 %v582
      %v616 = vunpack.c.h.b16 %v582
      %v617 = vunpack.c.l.b16 %v583
      %v618 = vunpack.c.h.b16 %v583
      %v619 = vunpack.c.l.b16 %v584
      %v620 = vunpack.c.h.b16 %v584
      %v621 = vunpack.c.l.b16 %v585
      %v622 = vunpack.c.h.b16 %v585
      %v623 = vunpack.c.l.b16 %v586
      %v624 = vunpack.c.h.b16 %v586
      %v625 = vunpack.c.l.b16 %v587
      %v626 = vunpack.c.h.b16 %v587
      %v627 = vunpack.c.l.b16 %v588
      %v628 = vunpack.c.h.b16 %v588
      %v629 = vunpack.c.l.b16 %v589
      %v630 = vunpack.c.h.b16 %v589
      %v631 = vunpack.c.l.b16 %v590
      %v632 = vunpack.c.h.b16 %v590
      %v633 = vunpack.c.l.b16 %v591
      %v634 = vunpack.c.h.b16 %v591
      %v635 = vunpack.c.l.b16 %v592
      %v636 = vunpack.c.h.b16 %v592
      %v637 = vunpack.c.l.b16 %v593
      %v638 = vunpack.c.h.b16 %v593
      %v639 = vunpack.c.l.b16 %v594
      %v640 = vunpack.c.h.b16 %v594
      %v641 = vunpack.c.l.b16 %v595
      %v642 = vunpack.c.h.b16 %v595
      %v643 = vunpack.c.l.b16 %v596
      %v644 = vunpack.c.h.b16 %v596
      %v645 = vpack.c.b16 %v613, %v613
      %v646 = vpack.c.b16 %v614, %v614
      %v647 = vpack.c.b16 %v615, %v615
      %v648 = vpack.c.b16 %v616, %v616
      %v649 = vpack.c.b16 %v617, %v617
      %v650 = vpack.c.b16 %v618, %v618
      %v651 = vpack.c.b16 %v619, %v619
      %v652 = vpack.c.b16 %v620, %v620
      %v653 = vpack.c.b16 %v621, %v621
      %v654 = vpack.c.b16 %v622, %v622
      %v655 = vpack.c.b16 %v623, %v623
      %v656 = vpack.c.b16 %v624, %v624
      %v657 = vpack.c.b16 %v625, %v625
      %v658 = vpack.c.b16 %v626, %v626
      %v659 = vpack.c.b16 %v627, %v627
      %v660 = vpack.c.b16 %v628, %v628
      %v661 = vpack.c.b16 %v629, %v629
      %v662 = vpack.c.b16 %v630, %v630
      %v663 = vpack.c.b16 %v631, %v631
      %v664 = vpack.c.b16 %v632, %v632
      %v665 = vpack.c.b16 %v633, %v633
      %v666 = vpack.c.b16 %v634, %v634
      %v667 = vpack.c.b16 %v635, %v635
      %v668 = vpack.c.b16 %v636, %v636
      %v669 = vpack.c.b16 %v637, %v637
      %v670 = vpack.c.b16 %v638, %v638
      %v671 = vpack.c.b16 %v639, %v639
      %v672 = vpack.c.b16 %v640, %v640
      %v673 = vpack.c.b16 %v641, %v641
      %v674 = vpack.c.b16 %v642, %v642
      %v675 = vpack.c.b16 %v643, %v643
      %v676 = vpack.c.b16 %v644, %v644
      %vm677 = vsmask.f32 4368
      %vm678 = vmor %vm263, %vm677
      %v680 = vshrl.u32 %v645, 16
      %v682 = vrot.slane %v680, 7
      %v683 = vshll.u32 %v645, 16
      %v685 = vor.u32 %v682, %v683
      %v686 = vrot.slane %v682, 4
      %v688 = vshrl.u32 %v646, 16
      %v690 = vrot.slane %v688, 7
      %v691 = vshll.u32 %v646, 16
      %v693 = vor.u32 %v690, %v691
      %v694 = vsel %vm678, %v686, %v693
      %v695 = vrot.slane %v690, 4
      %v697 = vshrl.u32 %v647, 16
      %v699 = vrot.slane %v697, 7
      %v700 = vshll.u32 %v647, 16
      %v702 = vor.u32 %v699, %v700
      %v703 = vrot.slane %v699, 4
      %v705 = vshrl.u32 %v648, 16
      %v707 = vrot.slane %v705, 7
      %v708 = vshll.u32 %v648, 16
      %v710 = vor.u32 %v707, %v708
      %v711 = vsel %vm678, %v703, %v710
      %v712 = vrot.slane %v707, 4
      %v714 = vshrl.u32 %v649, 16
      %v716 = vrot.slane %v714, 7
      %v717 = vshll.u32 %v649, 16
      %v719 = vor.u32 %v716, %v717
      %v720 = vrot.slane %v716, 4
      %v722 = vshrl.u32 %v650, 16
      %v724 = vrot.slane %v722, 7
      %v725 = vshll.u32 %v650, 16
      %v727 = vor.u32 %v724, %v725
      %v728 = vsel %vm678, %v720, %v727
      %v729 = vrot.slane %v724, 4
      %v731 = vshrl.u32 %v651, 16
      %v733 = vrot.slane %v731, 7
      %v734 = vshll.u32 %v651, 16
      %v736 = vor.u32 %v733, %v734
      %v737 = vrot.slane %v733, 4
      %v739 = vshrl.u32 %v652, 16
      %v741 = vrot.slane %v739, 7
      %v742 = vshll.u32 %v652, 16
      %v744 = vor.u32 %v741, %v742
      %v745 = vsel %vm678, %v737, %v744
      %v746 = vrot.slane %v741, 4
      %v748 = vshrl.u32 %v653, 16
      %v750 = vrot.slane %v748, 7
      %v751 = vshll.u32 %v653, 16
      %v753 = vor.u32 %v750, %v751
      %v754 = vrot.slane %v750, 4
      %v756 = vshrl.u32 %v654, 16
      %v758 = vrot.slane %v756, 7
      %v759 = vshll.u32 %v654, 16
      %v761 = vor.u32 %v758, %v759
      %v762 = vsel %vm678, %v754, %v761
      %v763 = vrot.slane %v758, 4
      %v765 = vshrl.u32 %v655, 16
      %v767 = vrot.slane %v765, 7
      %v768 = vshll.u32 %v655, 16
      %v770 = vor.u32 %v767, %v768
      %v771 = vrot.slane %v767, 4
      %v773 = vshrl.u32 %v656, 16
      %v775 = vrot.slane %v773, 7
      %v776 = vshll.u32 %v656, 16
      %v778 = vor.u32 %v775, %v776
      %v779 = vsel %vm678, %v771, %v778
      %v780 = vrot.slane %v775, 4
      %v782 = vshrl.u32 %v657, 16
      %v784 = vrot.slane %v782, 7
      %v785 = vshll.u32 %v657, 16
      %v787 = vor.u32 %v784, %v785
      %v788 = vrot.slane %v784, 4
      %v790 = vshrl.u32 %v658, 16
      %v792 = vrot.slane %v790, 7
      %v793 = vshll.u32 %v658, 16
      %v795 = vor.u32 %v792, %v793
      %v796 = vsel %vm678, %v788, %v795
      %v797 = vrot.slane %v792, 4
      %v799 = vshrl.u32 %v659, 16
      %v801 = vrot.slane %v799, 7
      %v802 = vshll.u32 %v659, 16
      %v804 = vor.u32 %v801, %v802
      %v805 = vrot.slane %v801, 4
      %v807 = vshrl.u32 %v660, 16
      %v809 = vrot.slane %v807, 7
      %v810 = vshll.u32 %v660, 16
      %v812 = vor.u32 %v809, %v810
      %v813 = vsel %vm678, %v805, %v812
      %v814 = vrot.slane %v809, 4
      %v816 = vshrl.u32 %v661, 16
      %v818 = vrot.slane %v816, 7
      %v819 = vshll.u32 %v661, 16
      %v821 = vor.u32 %v818, %v819
      %v822 = vrot.slane %v818, 4
      %v824 = vshrl.u32 %v662, 16
      %v826 = vrot.slane %v824, 7
      %v827 = vshll.u32 %v662, 16
      %v829 = vor.u32 %v826, %v827
      %v830 = vsel %vm678, %v822, %v829
      %v831 = vrot.slane %v826, 4
      %v833 = vshrl.u32 %v663, 16
      %v835 = vrot.slane %v833, 7
      %v836 = vshll.u32 %v663, 16
      %v838 = vor.u32 %v835, %v836
      %v839 = vrot.slane %v835, 4
      %v841 = vshrl.u32 %v664, 16
      %v843 = vrot.slane %v841, 7
      %v844 = vshll.u32 %v664, 16
      %v846 = vor.u32 %v843, %v844
      %v847 = vsel %vm678, %v839, %v846
      %v848 = vrot.slane %v843, 4
      %v850 = vshrl.u32 %v665, 16
      %v852 = vrot.slane %v850, 7
      %v853 = vshll.u32 %v665, 16
      %v855 = vor.u32 %v852, %v853
      %v856 = vrot.slane %v852, 4
      %v858 = vshrl.u32 %v666, 16
      %v860 = vrot.slane %v858, 7
      %v861 = vshll.u32 %v666, 16
      %v863 = vor.u32 %v860, %v861
      %v864 = vsel %vm678, %v856, %v863
      %v865 = vrot.slane %v860, 4
      %v867 = vshrl.u32 %v667, 16
      %v869 = vrot.slane %v867, 7
      %v870 = vshll.u32 %v667, 16
      %v872 = vor.u32 %v869, %v870
      %v873 = vrot.slane %v869, 4
      %v875 = vshrl.u32 %v668, 16
      %v877 = vrot.slane %v875, 7
      %v878 = vshll.u32 %v668, 16
      %v880 = vor.u32 %v877, %v878
      %v881 = vsel %vm678, %v873, %v880
      %v882 = vrot.slane %v877, 4
      %v884 = vshrl.u32 %v669, 16
      %v886 = vrot.slane %v884, 7
      %v887 = vshll.u32 %v669, 16
      %v889 = vor.u32 %v886, %v887
      %v890 = vrot.slane %v886, 4
      %v892 = vshrl.u32 %v670, 16
      %v894 = vrot.slane %v892, 7
      %v895 = vshll.u32 %v670, 16
      %v897 = vor.u32 %v894, %v895
      %v898 = vsel %vm678, %v890, %v897
      %v899 = vrot.slane %v894, 4
      %v901 = vshrl.u32 %v671, 16
      %v903 = vrot.slane %v901, 7
      %v904 = vshll.u32 %v671, 16
      %v906 = vor.u32 %v903, %v904
      %v907 = vrot.slane %v903, 4
      %v909 = vshrl.u32 %v672, 16
      %v911 = vrot.slane %v909, 7
      %v912 = vshll.u32 %v672, 16
      %v914 = vor.u32 %v911, %v912
      %v915 = vsel %vm678, %v907, %v914
      %v916 = vrot.slane %v911, 4
      %v918 = vshrl.u32 %v673, 16
      %v920 = vrot.slane %v918, 7
      %v921 = vshll.u32 %v673, 16
      %v923 = vor.u32 %v920, %v921
      %v924 = vrot.slane %v920, 4
      %v926 = vshrl.u32 %v674, 16
      %v928 = vrot.slane %v926, 7
      %v929 = vshll.u32 %v674, 16
      %v931 = vor.u32 %v928, %v929
      %v932 = vsel %vm678, %v924, %v931
      %v933 = vrot.slane %v928, 4
      %v935 = vshrl.u32 %v675, 16
      %v937 = vrot.slane %v935, 7
      %v938 = vshll.u32 %v675, 16
      %v940 = vor.u32 %v937, %v938
      %v941 = vrot.slane %v937, 4
      %v943 = vshrl.u32 %v676, 16
      %v945 = vrot.slane %v943, 7
      %v946 = vshll.u32 %v676, 16
      %v948 = vor.u32 %v945, %v946
      %v949 = vsel %vm678, %v941, %v948
      %v950 = vrot.slane %v945, 4
      %s999 = scalar_lea.vmem [#allocation2], 12
      %vm1000 = vcmask 60416
      %vm1001 = vmand %vm1000, %vm319
      %v1002 = vld [vmem:[%s999] sm:$0xf]
      %v1003 = vsel %vm1001, %v685, %v1002
      %1004 = vst [vmem:[%s999] sm:$0xf] %v1003
      %1005 = vst.msk [vmem:[%s999 + $0x4] sm:$0xf] %vm253, %v694
      %v1006 = vld [vmem:[%s999 + $0x8] sm:$0x1]
      %v1007 = vsel %vm264, %v695, %v1006
      %1008 = vst [vmem:[%s999 + $0x8] sm:$0x1] %v1007
      %v1009 = vld [vmem:[%s999 + $0xc] sm:$0xf]
      %v1010 = vsel %vm1001, %v702, %v1009
      %1011 = vst [vmem:[%s999 + $0xc] sm:$0xf] %v1010
      %1012 = vst.msk [vmem:[%s999 + $0x10] sm:$0xf] %vm253, %v711
      %v1013 = vld [vmem:[%s999 + $0x14] sm:$0x1]
      %v1014 = vsel %vm264, %v712, %v1013
      %1015 = vst [vmem:[%s999 + $0x14] sm:$0x1] %v1014
      %v1016 = vld [vmem:[%s999 + $0x18] sm:$0xf]
      %v1017 = vsel %vm1001, %v719, %v1016
      %1018 = vst [vmem:[%s999 + $0x18] sm:$0xf] %v1017
      %1019 = vst.msk [vmem:[%s999 + $0x1c] sm:$0xf] %vm253, %v728
      %v1020 = vld [vmem:[%s999 + $0x20] sm:$0x1]
      %v1021 = vsel %vm264, %v729, %v1020
      %1022 = vst [vmem:[%s999 + $0x20] sm:$0x1] %v1021
      %v1023 = vld [vmem:[%s999 + $0x24] sm:$0xf]
      %v1024 = vsel %vm1001, %v736, %v1023
      %1025 = vst [vmem:[%s999 + $0x24] sm:$0xf] %v1024
      %1026 = vst.msk [vmem:[%s999 + $0x28] sm:$0xf] %vm253, %v745
      %v1027 = vld [vmem:[%s999 + $0x2c] sm:$0x1]
      %v1028 = vsel %vm264, %v746, %v1027
      %1029 = vst [vmem:[%s999 + $0x2c] sm:$0x1] %v1028
      %v1030 = vld [vmem:[%s999 + $0x30] sm:$0xf]
      %v1031 = vsel %vm1001, %v753, %v1030
      %1032 = vst [vmem:[%s999 + $0x30] sm:$0xf] %v1031
      %1033 = vst.msk [vmem:[%s999 + $0x34] sm:$0xf] %vm253, %v762
      %v1034 = vld [vmem:[%s999 + $0x38] sm:$0x1]
      %v1035 = vsel %vm264, %v763, %v1034
      %1036 = vst [vmem:[%s999 + $0x38] sm:$0x1] %v1035
      %v1037 = vld [vmem:[%s999 + $0x3c] sm:$0xf]
      %v1038 = vsel %vm1001, %v770, %v1037
      %1039 = vst [vmem:[%s999 + $0x3c] sm:$0xf] %v1038
      %1040 = vst.msk [vmem:[%s999 + $0x40] sm:$0xf] %vm253, %v779
      %v1041 = vld [vmem:[%s999 + $0x44] sm:$0x1]
      %v1042 = vsel %vm264, %v780, %v1041
      %1043 = vst [vmem:[%s999 + $0x44] sm:$0x1] %v1042
      %v1044 = vld [vmem:[%s999 + $0x48] sm:$0xf]
      %v1045 = vsel %vm1001, %v787, %v1044
      %1046 = vst [vmem:[%s999 + $0x48] sm:$0xf] %v1045
      %1047 = vst.msk [vmem:[%s999 + $0x4c] sm:$0xf] %vm253, %v796
      %v1048 = vld [vmem:[%s999 + $0x50] sm:$0x1]
      %v1049 = vsel %vm264, %v797, %v1048
      %1050 = vst [vmem:[%s999 + $0x50] sm:$0x1] %v1049
      %v1051 = vld [vmem:[%s999 + $0x54] sm:$0xf]
      %v1052 = vsel %vm1001, %v804, %v1051
      %1053 = vst [vmem:[%s999 + $0x54] sm:$0xf] %v1052
      %1054 = vst.msk [vmem:[%s999 + $0x58] sm:$0xf] %vm253, %v813
      %v1055 = vld [vmem:[%s999 + $0x5c] sm:$0x1]
      %v1056 = vsel %vm264, %v814, %v1055
      %1057 = vst [vmem:[%s999 + $0x5c] sm:$0x1] %v1056
      %v1058 = vld [vmem:[%s999 + $0x60] sm:$0xf]
      %v1059 = vsel %vm1001, %v821, %v1058
      %1060 = vst [vmem:[%s999 + $0x60] sm:$0xf] %v1059
      %1061 = vst.msk [vmem:[%s999 + $0x64] sm:$0xf] %vm253, %v830
      %v1062 = vld [vmem:[%s999 + $0x68] sm:$0x1]
      %v1063 = vsel %vm264, %v831, %v1062
      %1064 = vst [vmem:[%s999 + $0x68] sm:$0x1] %v1063
      %v1065 = vld [vmem:[%s999 + $0x6c] sm:$0xf]
      %v1066 = vsel %vm1001, %v838, %v1065
      %1067 = vst [vmem:[%s999 + $0x6c] sm:$0xf] %v1066
      %1068 = vst.msk [vmem:[%s999 + $0x70] sm:$0xf] %vm253, %v847
      %v1069 = vld [vmem:[%s999 + $0x74] sm:$0x1]
      %v1070 = vsel %vm264, %v848, %v1069
      %1071 = vst [vmem:[%s999 + $0x74] sm:$0x1] %v1070
      %v1072 = vld [vmem:[%s999 + $0x78] sm:$0xf]
      %v1073 = vsel %vm1001, %v855, %v1072
      %1074 = vst [vmem:[%s999 + $0x78] sm:$0xf] %v1073
      %1075 = vst.msk [vmem:[%s999 + $0x7c] sm:$0xf] %vm253, %v864
      %v1076 = vld [vmem:[%s999 + $0x80] sm:$0x1]
      %v1077 = vsel %vm264, %v865, %v1076
      %1078 = vst [vmem:[%s999 + $0x80] sm:$0x1] %v1077
      %v1079 = vld [vmem:[%s999 + $0x84] sm:$0xf]
      %v1080 = vsel %vm1001, %v872, %v1079
      %1081 = vst [vmem:[%s999 + $0x84] sm:$0xf] %v1080
      %1082 = vst.msk [vmem:[%s999 + $0x88] sm:$0xf] %vm253, %v881
      %v1083 = vld [vmem:[%s999 + $0x8c] sm:$0x1]
      %v1084 = vsel %vm264, %v882, %v1083
      %1085 = vst [vmem:[%s999 + $0x8c] sm:$0x1] %v1084
      %v1086 = vld [vmem:[%s999 + $0x90] sm:$0xf]
      %v1087 = vsel %vm1001, %v889, %v1086
      %1088 = vst [vmem:[%s999 + $0x90] sm:$0xf] %v1087
      %1089 = vst.msk [vmem:[%s999 + $0x94] sm:$0xf] %vm253, %v898
      %v1090 = vld [vmem:[%s999 + $0x98] sm:$0x1]
      %v1091 = vsel %vm264, %v899, %v1090
      %1092 = vst [vmem:[%s999 + $0x98] sm:$0x1] %v1091
      %v1093 = vld [vmem:[%s999 + $0x9c] sm:$0xf]
      %v1094 = vsel %vm1001, %v906, %v1093
      %1095 = vst [vmem:[%s999 + $0x9c] sm:$0xf] %v1094
      %1096 = vst.msk [vmem:[%s999 + $0xa0] sm:$0xf] %vm253, %v915
      %v1097 = vld [vmem:[%s999 + $0xa4] sm:$0x1]
      %v1098 = vsel %vm264, %v916, %v1097
      %1099 = vst [vmem:[%s999 + $0xa4] sm:$0x1] %v1098
      %v1100 = vld [vmem:[%s999 + $0xa8] sm:$0xf]
      %v1101 = vsel %vm1001, %v923, %v1100
      %1102 = vst [vmem:[%s999 + $0xa8] sm:$0xf] %v1101
      %1103 = vst.msk [vmem:[%s999 + $0xac] sm:$0xf] %vm253, %v932
      %v1104 = vld [vmem:[%s999 + $0xb0] sm:$0x1]
      %v1105 = vsel %vm264, %v933, %v1104
      %1106 = vst [vmem:[%s999 + $0xb0] sm:$0x1] %v1105
      %v1107 = vld [vmem:[%s999 + $0xb4] sm:$0xf]
      %v1108 = vsel %vm1001, %v940, %v1107
      %1109 = vst [vmem:[%s999 + $0xb4] sm:$0xf] %v1108
      %1110 = vst.msk [vmem:[%s999 + $0xb8] sm:$0xf] %vm253, %v949
      %v1111 = vld [vmem:[%s999 + $0xbc] sm:$0x1]
      %v1112 = vsel %vm264, %v950, %v1111
      %1113 = vst [vmem:[%s999 + $0xbc] sm:$0x1] %v1112
      %v1114 = vld [vmem:[#allocation2] sm:$0xf]
      %v1115 = vld [vmem:[#allocation2 + $0x4] sm:$0xf]
      %v1116 = vld [vmem:[#allocation2 + $0x8] sm:$0x1]
      %v1117 = vld [vmem:[#allocation2 + $0xc] sm:$0xf]
      %v1118 = vld [vmem:[#allocation2 + $0x10] sm:$0xf]
      %v1119 = vld [vmem:[#allocation2 + $0x14] sm:$0x1]
      %v1120 = vld [vmem:[#allocation2 + $0x18] sm:$0xf]
      %v1121 = vld [vmem:[#allocation2 + $0x1c] sm:$0xf]
      %v1122 = vld [vmem:[#allocation2 + $0x20] sm:$0x1]
      %v1123 = vld [vmem:[#allocation2 + $0x24] sm:$0xf]
      %v1124 = vld [vmem:[#allocation2 + $0x28] sm:$0xf]
      %v1125 = vld [vmem:[#allocation2 + $0x2c] sm:$0x1]
      %v1126 = vld [vmem:[#allocation2 + $0x30] sm:$0xf]
      %v1127 = vld [vmem:[#allocation2 + $0x34] sm:$0xf]
      %v1128 = vld [vmem:[#allocation2 + $0x38] sm:$0x1]
      %v1129 = vld [vmem:[#allocation2 + $0x3c] sm:$0xf]
      %v1130 = vld [vmem:[#allocation2 + $0x40] sm:$0xf]
      %v1131 = vld [vmem:[#allocation2 + $0x44] sm:$0x1]
      %v1132 = vld [vmem:[#allocation2 + $0x48] sm:$0xf]
      %v1133 = vld [vmem:[#allocation2 + $0x4c] sm:$0xf]
      %v1134 = vld [vmem:[#allocation2 + $0x50] sm:$0x1]
      %v1135 = vld [vmem:[#allocation2 + $0x54] sm:$0xf]
      %v1136 = vld [vmem:[#allocation2 + $0x58] sm:$0xf]
      %v1137 = vld [vmem:[#allocation2 + $0x5c] sm:$0x1]
      %v1138 = vld [vmem:[#allocation2 + $0x60] sm:$0xf]
      %v1139 = vld [vmem:[#allocation2 + $0x64] sm:$0xf]
      %v1140 = vld [vmem:[#allocation2 + $0x68] sm:$0x1]
      %v1141 = vld [vmem:[#allocation2 + $0x6c] sm:$0xf]
      %v1142 = vld [vmem:[#allocation2 + $0x70] sm:$0xf]
      %v1143 = vld [vmem:[#allocation2 + $0x74] sm:$0x1]
      %v1144 = vld [vmem:[#allocation2 + $0x78] sm:$0xf]
      %v1145 = vld [vmem:[#allocation2 + $0x7c] sm:$0xf]
      %v1146 = vld [vmem:[#allocation2 + $0x80] sm:$0x1]
      %v1147 = vld [vmem:[#allocation2 + $0x84] sm:$0xf]
      %v1148 = vld [vmem:[#allocation2 + $0x88] sm:$0xf]
      %v1149 = vld [vmem:[#allocation2 + $0x8c] sm:$0x1]
      %v1150 = vld [vmem:[#allocation2 + $0x90] sm:$0xf]
      %v1151 = vld [vmem:[#allocation2 + $0x94] sm:$0xf]
      %v1152 = vld [vmem:[#allocation2 + $0x98] sm:$0x1]
      %v1153 = vld [vmem:[#allocation2 + $0x9c] sm:$0xf]
      %v1154 = vld [vmem:[#allocation2 + $0xa0] sm:$0xf]
      %v1155 = vld [vmem:[#allocation2 + $0xa4] sm:$0x1]
      %v1156 = vld [vmem:[#allocation2 + $0xa8] sm:$0xf]
      %v1157 = vld [vmem:[#allocation2 + $0xac] sm:$0xf]
      %v1158 = vld [vmem:[#allocation2 + $0xb0] sm:$0x1]
      %v1159 = vld [vmem:[#allocation2 + $0xb4] sm:$0xf]
      %v1160 = vld [vmem:[#allocation2 + $0xb8] sm:$0xf]
      %v1161 = vld [vmem:[#allocation2 + $0xbc] sm:$0x1]
      %v1162 = vld [vmem:[#allocation2 + $0xc0] sm:$0xf]
      %v1163 = vld [vmem:[#allocation2 + $0xc4] sm:$0xf]
      %v1164 = vld [vmem:[#allocation2 + $0xc8] sm:$0x1]
      %v1165 = vld [vmem:[#allocation2 + $0xcc] sm:$0xf]
      %v1166 = vld [vmem:[#allocation2 + $0xd0] sm:$0xf]
      %v1167 = vld [vmem:[#allocation2 + $0xd4] sm:$0x1]
      %v1168 = vld [vmem:[%s1] sm:$0xf]
      %vm1169 = vsmask.f32 3328
      %vm1170 = vsmask.f32 7440
      %vm1171 = vmor %vm1169, %vm1170
      %v1173 = vshrl.u32 %v1114, 16
      %v1175 = vrot.slane %v1173, 4
      %v1176 = vshll.u32 %v1114, 16
      %v1178 = vrot.slane %v1176, 5
      %v1179 = vor.u32 %v1175, %v1178
      %v1180 = vrot.slane %v1179, 4
      %v1182 = vshll.u32 %v1115, 16
      %v1184 = vrot.slane %v1182, 5
      %v1185 = vsel %vm1171, %v1180, %v1184
      %v1186 = vshrl.u32 %v1115, 16
      %v1188 = vrot.slane %v1186, 4
      %v1189 = vor.u32 %v1188, %v1184
      %v1190 = vrot.slane %v1189, 4
      %v1192 = vshll.u32 %v1116, 16
      %v1194 = vrot.slane %v1192, 5
      %v1195 = vsel %vm1171, %v1190, %v1194
      %v1197 = vshrl.u32 %v1117, 16
      %v1199 = vrot.slane %v1197, 4
      %v1200 = vshll.u32 %v1117, 16
      %v1202 = vrot.slane %v1200, 5
      %v1203 = vor.u32 %v1199, %v1202
      %v1204 = vrot.slane %v1203, 4
      %v1206 = vshll.u32 %v1118, 16
      %v1208 = vrot.slane %v1206, 5
      %v1209 = vsel %vm1171, %v1204, %v1208
      %v1210 = vshrl.u32 %v1118, 16
      %v1212 = vrot.slane %v1210, 4
      %v1213 = vor.u32 %v1212, %v1208
      %v1214 = vrot.slane %v1213, 4
      %v1216 = vshll.u32 %v1119, 16
      %v1218 = vrot.slane %v1216, 5
      %v1219 = vsel %vm1171, %v1214, %v1218
      %v1221 = vshrl.u32 %v1120, 16
      %v1223 = vrot.slane %v1221, 4
      %v1224 = vshll.u32 %v1120, 16
      %v1226 = vrot.slane %v1224, 5
      %v1227 = vor.u32 %v1223, %v1226
      %v1228 = vrot.slane %v1227, 4
      %v1230 = vshll.u32 %v1121, 16
      %v1232 = vrot.slane %v1230, 5
      %v1233 = vsel %vm1171, %v1228, %v1232
      %v1234 = vshrl.u32 %v1121, 16
      %v1236 = vrot.slane %v1234, 4
      %v1237 = vor.u32 %v1236, %v1232
      %v1238 = vrot.slane %v1237, 4
      %v1240 = vshll.u32 %v1122, 16
      %v1242 = vrot.slane %v1240, 5
      %v1243 = vsel %vm1171, %v1238, %v1242
      %v1245 = vshrl.u32 %v1123, 16
      %v1247 = vrot.slane %v1245, 4
      %v1248 = vshll.u32 %v1123, 16
      %v1250 = vrot.slane %v1248, 5
      %v1251 = vor.u32 %v1247, %v1250
      %v1252 = vrot.slane %v1251, 4
      %v1254 = vshll.u32 %v1124, 16
      %v1256 = vrot.slane %v1254, 5
      %v1257 = vsel %vm1171, %v1252, %v1256
      %v1258 = vshrl.u32 %v1124, 16
      %v1260 = vrot.slane %v1258, 4
      %v1261 = vor.u32 %v1260, %v1256
      %v1262 = vrot.slane %v1261, 4
      %v1264 = vshll.u32 %v1125, 16
      %v1266 = vrot.slane %v1264, 5
      %v1267 = vsel %vm1171, %v1262, %v1266
      %v1269 = vshrl.u32 %v1126, 16
      %v1271 = vrot.slane %v1269, 4
      %v1272 = vshll.u32 %v1126, 16
      %v1274 = vrot.slane %v1272, 5
      %v1275 = vor.u32 %v1271, %v1274
      %v1276 = vrot.slane %v1275, 4
      %v1278 = vshll.u32 %v1127, 16
      %v1280 = vrot.slane %v1278, 5
      %v1281 = vsel %vm1171, %v1276, %v1280
      %v1282 = vshrl.u32 %v1127, 16
      %v1284 = vrot.slane %v1282, 4
      %v1285 = vor.u32 %v1284, %v1280
      %v1286 = vrot.slane %v1285, 4
      %v1288 = vshll.u32 %v1128, 16
      %v1290 = vrot.slane %v1288, 5
      %v1291 = vsel %vm1171, %v1286, %v1290
      %v1293 = vshrl.u32 %v1129, 16
      %v1295 = vrot.slane %v1293, 4
      %v1296 = vshll.u32 %v1129, 16
      %v1298 = vrot.slane %v1296, 5
      %v1299 = vor.u32 %v1295, %v1298
      %v1300 = vrot.slane %v1299, 4
      %v1302 = vshll.u32 %v1130, 16
      %v1304 = vrot.slane %v1302, 5
      %v1305 = vsel %vm1171, %v1300, %v1304
      %v1306 = vshrl.u32 %v1130, 16
      %v1308 = vrot.slane %v1306, 4
      %v1309 = vor.u32 %v1308, %v1304
      %v1310 = vrot.slane %v1309, 4
      %v1312 = vshll.u32 %v1131, 16
      %v1314 = vrot.slane %v1312, 5
      %v1315 = vsel %vm1171, %v1310, %v1314
      %v1317 = vshrl.u32 %v1132, 16
      %v1319 = vrot.slane %v1317, 4
      %v1320 = vshll.u32 %v1132, 16
      %v1322 = vrot.slane %v1320, 5
      %v1323 = vor.u32 %v1319, %v1322
      %v1324 = vrot.slane %v1323, 4
      %v1326 = vshll.u32 %v1133, 16
      %v1328 = vrot.slane %v1326, 5
      %v1329 = vsel %vm1171, %v1324, %v1328
      %v1330 = vshrl.u32 %v1133, 16
      %v1332 = vrot.slane %v1330, 4
      %v1333 = vor.u32 %v1332, %v1328
      %v1334 = vrot.slane %v1333, 4
      %v1336 = vshll.u32 %v1134, 16
      %v1338 = vrot.slane %v1336, 5
      %v1339 = vsel %vm1171, %v1334, %v1338
      %v1341 = vshrl.u32 %v1135, 16
      %v1343 = vrot.slane %v1341, 4
      %v1344 = vshll.u32 %v1135, 16
      %v1346 = vrot.slane %v1344, 5
      %v1347 = vor.u32 %v1343, %v1346
      %v1348 = vrot.slane %v1347, 4
      %v1350 = vshll.u32 %v1136, 16
      %v1352 = vrot.slane %v1350, 5
      %v1353 = vsel %vm1171, %v1348, %v1352
      %v1354 = vshrl.u32 %v1136, 16
      %v1356 = vrot.slane %v1354, 4
      %v1357 = vor.u32 %v1356, %v1352
      %v1358 = vrot.slane %v1357, 4
      %v1360 = vshll.u32 %v1137, 16
      %v1362 = vrot.slane %v1360, 5
      %v1363 = vsel %vm1171, %v1358, %v1362
      %v1365 = vshrl.u32 %v1138, 16
      %v1367 = vrot.slane %v1365, 4
      %v1368 = vshll.u32 %v1138, 16
      %v1370 = vrot.slane %v1368, 5
      %v1371 = vor.u32 %v1367, %v1370
      %v1372 = vrot.slane %v1371, 4
      %v1374 = vshll.u32 %v1139, 16
      %v1376 = vrot.slane %v1374, 5
      %v1377 = vsel %vm1171, %v1372, %v1376
      %v1378 = vshrl.u32 %v1139, 16
      %v1380 = vrot.slane %v1378, 4
      %v1381 = vor.u32 %v1380, %v1376
      %v1382 = vrot.slane %v1381, 4
      %v1384 = vshll.u32 %v1140, 16
      %v1386 = vrot.slane %v1384, 5
      %v1387 = vsel %vm1171, %v1382, %v1386
      %v1389 = vshrl.u32 %v1141, 16
      %v1391 = vrot.slane %v1389, 4
      %v1392 = vshll.u32 %v1141, 16
      %v1394 = vrot.slane %v1392, 5
      %v1395 = vor.u32 %v1391, %v1394
      %v1396 = vrot.slane %v1395, 4
      %v1398 = vshll.u32 %v1142, 16
      %v1400 = vrot.slane %v1398, 5
      %v1401 = vsel %vm1171, %v1396, %v1400
      %v1402 = vshrl.u32 %v1142, 16
      %v1404 = vrot.slane %v1402, 4
      %v1405 = vor.u32 %v1404, %v1400
      %v1406 = vrot.slane %v1405, 4
      %v1408 = vshll.u32 %v1143, 16
      %v1410 = vrot.slane %v1408, 5
      %v1411 = vsel %vm1171, %v1406, %v1410
      %v1413 = vshrl.u32 %v1144, 16
      %v1415 = vrot.slane %v1413, 4
      %v1416 = vshll.u32 %v1144, 16
      %v1418 = vrot.slane %v1416, 5
      %v1419 = vor.u32 %v1415, %v1418
      %v1420 = vrot.slane %v1419, 4
      %v1422 = vshll.u32 %v1145, 16
      %v1424 = vrot.slane %v1422, 5
      %v1425 = vsel %vm1171, %v1420, %v1424
      %v1426 = vshrl.u32 %v1145, 16
      %v1428 = vrot.slane %v1426, 4
      %v1429 = vor.u32 %v1428, %v1424
      %v1430 = vrot.slane %v1429, 4
      %v1432 = vshll.u32 %v1146, 16
      %v1434 = vrot.slane %v1432, 5
      %v1435 = vsel %vm1171, %v1430, %v1434
      %v1437 = vshrl.u32 %v1147, 16
      %v1439 = vrot.slane %v1437, 4
      %v1440 = vshll.u32 %v1147, 16
      %v1442 = vrot.slane %v1440, 5
      %v1443 = vor.u32 %v1439, %v1442
      %v1444 = vrot.slane %v1443, 4
      %v1446 = vshll.u32 %v1148, 16
      %v1448 = vrot.slane %v1446, 5
      %v1449 = vsel %vm1171, %v1444, %v1448
      %v1450 = vshrl.u32 %v1148, 16
      %v1452 = vrot.slane %v1450, 4
      %v1453 = vor.u32 %v1452, %v1448
      %v1454 = vrot.slane %v1453, 4
      %v1456 = vshll.u32 %v1149, 16
      %v1458 = vrot.slane %v1456, 5
      %v1459 = vsel %vm1171, %v1454, %v1458
      %v1461 = vshrl.u32 %v1150, 16
      %v1463 = vrot.slane %v1461, 4
      %v1464 = vshll.u32 %v1150, 16
      %v1466 = vrot.slane %v1464, 5
      %v1467 = vor.u32 %v1463, %v1466
      %v1468 = vrot.slane %v1467, 4
      %v1470 = vshll.u32 %v1151, 16
      %v1472 = vrot.slane %v1470, 5
      %v1473 = vsel %vm1171, %v1468, %v1472
      %v1474 = vshrl.u32 %v1151, 16
      %v1476 = vrot.slane %v1474, 4
      %v1477 = vor.u32 %v1476, %v1472
      %v1478 = vrot.slane %v1477, 4
      %v1480 = vshll.u32 %v1152, 16
      %v1482 = vrot.slane %v1480, 5
      %v1483 = vsel %vm1171, %v1478, %v1482
      %v1485 = vshrl.u32 %v1153, 16
      %v1487 = vrot.slane %v1485, 4
      %v1488 = vshll.u32 %v1153, 16
      %v1490 = vrot.slane %v1488, 5
      %v1491 = vor.u32 %v1487, %v1490
      %v1492 = vrot.slane %v1491, 4
      %v1494 = vshll.u32 %v1154, 16
      %v1496 = vrot.slane %v1494, 5
      %v1497 = vsel %vm1171, %v1492, %v1496
      %v1498 = vshrl.u32 %v1154, 16
      %v1500 = vrot.slane %v1498, 4
      %v1501 = vor.u32 %v1500, %v1496
      %v1502 = vrot.slane %v1501, 4
      %v1504 = vshll.u32 %v1155, 16
      %v1506 = vrot.slane %v1504, 5
      %v1507 = vsel %vm1171, %v1502, %v1506
      %v1509 = vshrl.u32 %v1156, 16
      %v1511 = vrot.slane %v1509, 4
      %v1512 = vshll.u32 %v1156, 16
      %v1514 = vrot.slane %v1512, 5
      %v1515 = vor.u32 %v1511, %v1514
      %v1516 = vrot.slane %v1515, 4
      %v1518 = vshll.u32 %v1157, 16
      %v1520 = vrot.slane %v1518, 5
      %v1521 = vsel %vm1171, %v1516, %v1520
      %v1522 = vshrl.u32 %v1157, 16
      %v1524 = vrot.slane %v1522, 4
      %v1525 = vor.u32 %v1524, %v1520
      %v1526 = vrot.slane %v1525, 4
      %v1528 = vshll.u32 %v1158, 16
      %v1530 = vrot.slane %v1528, 5
      %v1531 = vsel %vm1171, %v1526, %v1530
      %v1533 = vshrl.u32 %v1159, 16
      %v1535 = vrot.slane %v1533, 4
      %v1536 = vshll.u32 %v1159, 16
      %v1538 = vrot.slane %v1536, 5
      %v1539 = vor.u32 %v1535, %v1538
      %v1540 = vrot.slane %v1539, 4
      %v1542 = vshll.u32 %v1160, 16
      %v1544 = vrot.slane %v1542, 5
      %v1545 = vsel %vm1171, %v1540, %v1544
      %v1546 = vshrl.u32 %v1160, 16
      %v1548 = vrot.slane %v1546, 4
      %v1549 = vor.u32 %v1548, %v1544
      %v1550 = vrot.slane %v1549, 4
      %v1552 = vshll.u32 %v1161, 16
      %v1554 = vrot.slane %v1552, 5
      %v1555 = vsel %vm1171, %v1550, %v1554
      %s1556 = scalar_lea.vmem %s1, 4
      %v1557 = vld [vmem:[%s1556] sm:$0xf]
      %v1558 = vunpack.c.l.b16 %v1185
      %v1559 = vunpack.c.l.b16 %v1195
      %v1560 = vunpack.c.l.b16 %v1209
      %v1561 = vunpack.c.l.b16 %v1219
      %v1562 = vunpack.c.l.b16 %v1233
      %v1563 = vunpack.c.l.b16 %v1243
      %v1564 = vunpack.c.l.b16 %v1257
      %v1565 = vunpack.c.l.b16 %v1267
      %v1566 = vunpack.c.l.b16 %v1281
      %v1567 = vunpack.c.l.b16 %v1291
      %v1568 = vunpack.c.l.b16 %v1305
      %v1569 = vunpack.c.l.b16 %v1315
      %v1570 = vunpack.c.l.b16 %v1329
      %v1571 = vunpack.c.l.b16 %v1339
      %v1572 = vunpack.c.l.b16 %v1353
      %v1573 = vunpack.c.l.b16 %v1363
      %v1574 = vunpack.c.l.b16 %v1377
      %v1575 = vunpack.c.l.b16 %v1387
      %v1576 = vunpack.c.l.b16 %v1401
      %v1577 = vunpack.c.l.b16 %v1411
      %v1578 = vunpack.c.l.b16 %v1425
      %v1579 = vunpack.c.l.b16 %v1435
      %v1580 = vunpack.c.l.b16 %v1449
      %v1581 = vunpack.c.l.b16 %v1459
      %v1582 = vunpack.c.l.b16 %v1473
      %v1583 = vunpack.c.l.b16 %v1483
      %v1584 = vunpack.c.l.b16 %v1497
      %v1585 = vunpack.c.l.b16 %v1507
      %v1586 = vunpack.c.l.b16 %v1521
      %v1587 = vunpack.c.l.b16 %v1531
      %v1588 = vunpack.c.l.b16 %v1545
      %v1589 = vunpack.c.l.b16 %v1555
      %v1590 = vpack.c.b16 %v1559, %v1558
      %v1591 = vpack.c.b16 %v1561, %v1560
      %v1592 = vpack.c.b16 %v1563, %v1562
      %v1593 = vpack.c.b16 %v1565, %v1564
      %v1594 = vpack.c.b16 %v1567, %v1566
      %v1595 = vpack.c.b16 %v1569, %v1568
      %v1596 = vpack.c.b16 %v1571, %v1570
      %v1597 = vpack.c.b16 %v1573, %v1572
      %v1598 = vpack.c.b16 %v1575, %v1574
      %v1599 = vpack.c.b16 %v1577, %v1576
      %v1600 = vpack.c.b16 %v1579, %v1578
      %v1601 = vpack.c.b16 %v1581, %v1580
      %v1602 = vpack.c.b16 %v1583, %v1582
      %v1603 = vpack.c.b16 %v1585, %v1584
      %v1604 = vpack.c.b16 %v1587, %v1586
      %v1605 = vpack.c.b16 %v1589, %v1588
      %vm1606 = vcmask 64512
      %v1608 = vsel %vm1606, %v1590, 0
      %v1611 = vsel %vm1606, %v1591, 0
      %v1614 = vsel %vm1606, %v1592, 0
      %v1617 = vsel %vm1606, %v1593, 0
      %v1620 = vsel %vm1606, %v1594, 0
      %v1623 = vsel %vm1606, %v1595, 0
      %v1626 = vsel %vm1606, %v1596, 0
      %v1629 = vsel %vm1606, %v1597, 0
      %v1632 = vsel %vm1606, %v1598, 0
      %v1635 = vsel %vm1606, %v1599, 0
      %v1638 = vsel %vm1606, %v1600, 0
      %v1641 = vsel %vm1606, %v1601, 0
      %v1644 = vsel %vm1606, %v1602, 0
      %v1647 = vsel %vm1606, %v1603, 0
      %v1650 = vsel %vm1606, %v1604, 0
      %v1653 = vsel %vm1606, %v1605, 0
      %vm1655 = vcmask 1043456
      %v1657 = vsel %vm1655, %v1557, 0
      %1659 = vmatprep.subr.bf16.mxu0 0
      %1660 = vmatpush1.bf16.msra.mxu0 %v1657
      %1661 = vmatprep.subr.bf16.mxu0 0
      %1662 = vmatpush1.bf16.msra.mxu0 0
      %1663 = vmatprep.subr.bf16.mxu0 0
      %1664 = vmatpush1.bf16.msra.mxu0 0
      %1665 = vmatprep.subr.bf16.mxu0 0
      %1666 = vmatpush1.bf16.msra.mxu0 0
      %1667 = vmatprep.subr.bf16.mxu0 0
      %1668 = vmatpush1.bf16.msra.mxu0 0
      %1669 = vmatprep.subr.bf16.mxu0 0
      %1670 = vmatpush1.bf16.msra.mxu0 0
      %1671 = vmatprep.subr.bf16.mxu0 0
      %1672 = vmatpush1.bf16.msra.mxu0 0
      %1673 = vmatprep.subr.bf16.mxu0 0
      %1674 = vmatpush1.bf16.msra.mxu0 0
      %1675 = vmatprep.subr.bf16.mxu0 0
      %1676 = vmatpush1.bf16.msra.mxu0 0
      %1677 = vmatprep.subr.bf16.mxu0 0
      %1678 = vmatpush1.bf16.msra.mxu0 0
      %1679 = vmatprep.subr.bf16.mxu0 0
      %1680 = vmatpush1.bf16.msra.mxu0 0
      %1681 = vmatprep.subr.bf16.mxu0 0
      %1682 = vmatpush1.bf16.msra.mxu0 0
      %1683 = vmatprep.subr.bf16.mxu0 0
      %1684 = vmatpush1.bf16.msra.mxu0 0
      %1685 = vmatprep.subr.bf16.mxu0 0
      %1686 = vmatpush1.bf16.msra.mxu0 0
      %1687 = vmatprep.subr.bf16.mxu0 0
      %1688 = vmatpush1.bf16.msra.mxu0 0
      %1689 = vmatprep.subr.bf16.mxu0 0
      %1690 = vmatpush1.bf16.msra.mxu0 0
      %1691 = vmatprep.mubr.bf16.mxu0 0
      %1692 = vmatmul.mubr.bf16.gmra.mrb[0].mxu0 %v1608
      %v1693 = vpop.f32.mrb[0].mxu0
      %v1694 = vadd.f32 0.0, %v1693
      %v1695 = vpop.f32.mrb[0].mxu0
      %v1696 = vpop.f32.mrb[0].mxu0
      %v1697 = vadd.f32 0.0, %v1696
      %v1698 = vpop.f32.mrb[0].mxu0
      %1699 = vmatprep.mubr.bf16.mxu0 0
      %1700 = vmatmul.mubr.bf16.gmra.mrb[0].mxu0 %v1611
      %v1701 = vpop.f32.mrb[0].mxu0
      %v1702 = vadd.f32 0.0, %v1701
      %v1703 = vpop.f32.mrb[0].mxu0
      %v1704 = vpop.f32.mrb[0].mxu0
      %v1705 = vadd.f32 0.0, %v1704
      %v1706 = vpop.f32.mrb[0].mxu0
      %1707 = vmatprep.mubr.bf16.mxu0 0
      %1708 = vmatmul.mubr.bf16.gmra.mrb[0].mxu0 %v1614
      %v1709 = vpop.f32.mrb[0].mxu0
      %v1710 = vadd.f32 0.0, %v1709
      %v1711 = vpop.f32.mrb[0].mxu0
      %v1712 = vpop.f32.mrb[0].mxu0
      %v1713 = vadd.f32 0.0, %v1712
      %v1714 = vpop.f32.mrb[0].mxu0
      %1715 = vmatprep.mubr.bf16.mxu0 0
      %1716 = vmatmul.mubr.bf16.gmra.mrb[0].mxu0 %v1617
      %v1717 = vpop.f32.mrb[0].mxu0
      %v1718 = vadd.f32 0.0, %v1717
      %v1719 = vpop.f32.mrb[0].mxu0
      %v1720 = vpop.f32.mrb[0].mxu0
      %v1721 = vadd.f32 0.0, %v1720
      %v1722 = vpop.f32.mrb[0].mxu0
      %1723 = vmatprep.mubr.bf16.mxu0 0
      %1724 = vmatmul.mubr.bf16.gmra.mrb[0].mxu0 %v1620
      %v1725 = vpop.f32.mrb[0].mxu0
      %v1726 = vadd.f32 0.0, %v1725
      %v1727 = vpop.f32.mrb[0].mxu0
      %v1728 = vpop.f32.mrb[0].mxu0
      %v1729 = vadd.f32 0.0, %v1728
      %v1730 = vpop.f32.mrb[0].mxu0
      %1731 = vmatprep.mubr.bf16.mxu0 0
      %1732 = vmatmul.mubr.bf16.gmra.mrb[0].mxu0 %v1623
      %v1733 = vpop.f32.mrb[0].mxu0
      %v1734 = vadd.f32 0.0, %v1733
      %v1735 = vpop.f32.mrb[0].mxu0
      %v1736 = vpop.f32.mrb[0].mxu0
      %v1737 = vadd.f32 0.0, %v1736
      %v1738 = vpop.f32.mrb[0].mxu0
      %1739 = vmatprep.mubr.bf16.mxu0 0
      %1740 = vmatmul.mubr.bf16.gmra.mrb[0].mxu0 %v1626
      %v1741 = vpop.f32.mrb[0].mxu0
      %v1742 = vadd.f32 0.0, %v1741
      %v1743 = vpop.f32.mrb[0].mxu0
      %v1744 = vpop.f32.mrb[0].mxu0
      %v1745 = vadd.f32 0.0, %v1744
      %v1746 = vpop.f32.mrb[0].mxu0
      %1747 = vmatprep.mubr.bf16.mxu0 0
      %1748 = vmatmul.mubr.bf16.gmra.mrb[0].mxu0 %v1629
      %v1749 = vpop.f32.mrb[0].mxu0
      %v1750 = vadd.f32 0.0, %v1749
      %v1751 = vpop.f32.mrb[0].mxu0
      %v1752 = vpop.f32.mrb[0].mxu0
      %v1753 = vadd.f32 0.0, %v1752
      %v1754 = vpop.f32.mrb[0].mxu0
      %1755 = vmatprep.mubr.bf16.mxu0 0
      %1756 = vmatmul.mubr.bf16.gmra.mrb[0].mxu0 %v1632
      %v1757 = vpop.f32.mrb[0].mxu0
      %v1758 = vadd.f32 0.0, %v1757
      %v1759 = vpop.f32.mrb[0].mxu0
      %v1760 = vpop.f32.mrb[0].mxu0
      %v1761 = vadd.f32 0.0, %v1760
      %v1762 = vpop.f32.mrb[0].mxu0
      %1763 = vmatprep.mubr.bf16.mxu0 0
      %1764 = vmatmul.mubr.bf16.gmra.mrb[0].mxu0 %v1635
      %v1765 = vpop.f32.mrb[0].mxu0
      %v1766 = vadd.f32 0.0, %v1765
      %v1767 = vpop.f32.mrb[0].mxu0
      %v1768 = vpop.f32.mrb[0].mxu0
      %v1769 = vadd.f32 0.0, %v1768
      %v1770 = vpop.f32.mrb[0].mxu0
      %1771 = vmatprep.mubr.bf16.mxu0 0
      %1772 = vmatmul.mubr.bf16.gmra.mrb[0].mxu0 %v1638
      %v1773 = vpop.f32.mrb[0].mxu0
      %v1774 = vadd.f32 0.0, %v1773
      %v1775 = vpop.f32.mrb[0].mxu0
      %v1776 = vpop.f32.mrb[0].mxu0
      %v1777 = vadd.f32 0.0, %v1776
      %v1778 = vpop.f32.mrb[0].mxu0
      %1779 = vmatprep.mubr.bf16.mxu0 0
      %1780 = vmatmul.mubr.bf16.gmra.mrb[0].mxu0 %v1641
      %v1781 = vpop.f32.mrb[0].mxu0
      %v1782 = vadd.f32 0.0, %v1781
      %v1783 = vpop.f32.mrb[0].mxu0
      %v1784 = vpop.f32.mrb[0].mxu0
      %v1785 = vadd.f32 0.0, %v1784
      %v1786 = vpop.f32.mrb[0].mxu0
      %1787 = vmatprep.mubr.bf16.mxu0 0
      %1788 = vmatmul.mubr.bf16.gmra.mrb[0].mxu0 %v1644
      %v1789 = vpop.f32.mrb[0].mxu0
      %v1790 = vadd.f32 0.0, %v1789
      %v1791 = vpop.f32.mrb[0].mxu0
      %v1792 = vpop.f32.mrb[0].mxu0
      %v1793 = vadd.f32 0.0, %v1792
      %v1794 = vpop.f32.mrb[0].mxu0
      %1795 = vmatprep.mubr.bf16.mxu0 0
      %1796 = vmatmul.mubr.bf16.gmra.mrb[0].mxu0 %v1647
      %v1797 = vpop.f32.mrb[0].mxu0
      %v1798 = vadd.f32 0.0, %v1797
      %v1799 = vpop.f32.mrb[0].mxu0
      %v1800 = vpop.f32.mrb[0].mxu0
      %v1801 = vadd.f32 0.0, %v1800
      %v1802 = vpop.f32.mrb[0].mxu0
      %1803 = vmatprep.mubr.bf16.mxu0 0
      %1804 = vmatmul.mubr.bf16.gmra.mrb[0].mxu0 %v1650
      %v1805 = vpop.f32.mrb[0].mxu0
      %v1806 = vadd.f32 0.0, %v1805
      %v1807 = vpop.f32.mrb[0].mxu0
      %v1808 = vpop.f32.mrb[0].mxu0
      %v1809 = vadd.f32 0.0, %v1808
      %v1810 = vpop.f32.mrb[0].mxu0
      %1811 = vmatprep.mubr.bf16.mxu0 0
      %1812 = vmatmul.mubr.bf16.gmra.mrb[0].mxu0 %v1653
      %v1813 = vpop.f32.mrb[0].mxu0
      %v1814 = vadd.f32 0.0, %v1813
      %v1815 = vpop.f32.mrb[0].mxu0
      %v1816 = vpop.f32.mrb[0].mxu0
      %v1817 = vadd.f32 0.0, %v1816
      %v1818 = vpop.f32.mrb[0].mxu0
      %1819 = vdwg.mxu0
      %v1852 = vunpack.c.l.b16 %v1114
      %v1853 = vunpack.c.l.b16 %v1115
      %v1854 = vunpack.c.l.b16 %v1117
      %v1855 = vunpack.c.l.b16 %v1118
      %v1856 = vunpack.c.l.b16 %v1120
      %v1857 = vunpack.c.l.b16 %v1121
      %v1858 = vunpack.c.l.b16 %v1123
      %v1859 = vunpack.c.l.b16 %v1124
      %v1860 = vunpack.c.l.b16 %v1126
      %v1861 = vunpack.c.l.b16 %v1127
      %v1862 = vunpack.c.l.b16 %v1129
      %v1863 = vunpack.c.l.b16 %v1130
      %v1864 = vunpack.c.l.b16 %v1132
      %v1865 = vunpack.c.l.b16 %v1133
      %v1866 = vunpack.c.l.b16 %v1135
      %v1867 = vunpack.c.l.b16 %v1136
      %v1868 = vunpack.c.l.b16 %v1138
      %v1869 = vunpack.c.l.b16 %v1139
      %v1870 = vunpack.c.l.b16 %v1141
      %v1871 = vunpack.c.l.b16 %v1142
      %v1872 = vunpack.c.l.b16 %v1144
      %v1873 = vunpack.c.l.b16 %v1145
      %v1874 = vunpack.c.l.b16 %v1147
      %v1875 = vunpack.c.l.b16 %v1148
      %v1876 = vunpack.c.l.b16 %v1150
      %v1877 = vunpack.c.l.b16 %v1151
      %v1878 = vunpack.c.l.b16 %v1153
      %v1879 = vunpack.c.l.b16 %v1154
      %v1880 = vunpack.c.l.b16 %v1156
      %v1881 = vunpack.c.l.b16 %v1157
      %v1882 = vunpack.c.l.b16 %v1159
      %v1883 = vunpack.c.l.b16 %v1160
      %v1884 = vpack.c.b16 %v1853, %v1852
      %v1885 = vpack.c.b16 %v1855, %v1854
      %v1886 = vpack.c.b16 %v1857, %v1856
      %v1887 = vpack.c.b16 %v1859, %v1858
      %v1888 = vpack.c.b16 %v1861, %v1860
      %v1889 = vpack.c.b16 %v1863, %v1862
      %v1890 = vpack.c.b16 %v1865, %v1864
      %v1891 = vpack.c.b16 %v1867, %v1866
      %v1892 = vpack.c.b16 %v1869, %v1868
      %v1893 = vpack.c.b16 %v1871, %v1870
      %v1894 = vpack.c.b16 %v1873, %v1872
      %v1895 = vpack.c.b16 %v1875, %v1874
      %v1896 = vpack.c.b16 %v1877, %v1876
      %v1897 = vpack.c.b16 %v1879, %v1878
      %v1898 = vpack.c.b16 %v1881, %v1880
      %v1899 = vpack.c.b16 %v1883, %v1882
      %v1901 = vsel %vm1606, %v1884, 0
      %v1904 = vsel %vm1606, %v1885, 0
      %v1907 = vsel %vm1606, %v1886, 0
      %v1910 = vsel %vm1606, %v1887, 0
      %v1913 = vsel %vm1606, %v1888, 0
      %v1916 = vsel %vm1606, %v1889, 0
      %v1919 = vsel %vm1606, %v1890, 0
      %v1922 = vsel %vm1606, %v1891, 0
      %v1925 = vsel %vm1606, %v1892, 0
      %v1928 = vsel %vm1606, %v1893, 0
      %v1931 = vsel %vm1606, %v1894, 0
      %v1934 = vsel %vm1606, %v1895, 0
      %v1937 = vsel %vm1606, %v1896, 0
      %v1940 = vsel %vm1606, %v1897, 0
      %v1943 = vsel %vm1606, %v1898, 0
      %v1946 = vsel %vm1606, %v1899, 0
      %v1949 = vsel %vm1655, %v1168, 0
      %1951 = vmatprep.subr.bf16.mxu0 0
      %1952 = vmatpush1.bf16.msra.mxu0 %v1949
      %1953 = vmatprep.subr.bf16.mxu0 0
      %1954 = vmatpush1.bf16.msra.mxu0 0
      %1955 = vmatprep.subr.bf16.mxu0 0
      %1956 = vmatpush1.bf16.msra.mxu0 0
      %1957 = vmatprep.subr.bf16.mxu0 0
      %1958 = vmatpush1.bf16.msra.mxu0 0
      %1959 = vmatprep.subr.bf16.mxu0 0
      %1960 = vmatpush1.bf16.msra.mxu0 0
      %1961 = vmatprep.subr.bf16.mxu0 0
      %1962 = vmatpush1.bf16.msra.mxu0 0
      %1963 = vmatprep.subr.bf16.mxu0 0
      %1964 = vmatpush1.bf16.msra.mxu0 0
      %1965 = vmatprep.subr.bf16.mxu0 0
      %1966 = vmatpush1.bf16.msra.mxu0 0
      %1967 = vmatprep.subr.bf16.mxu0 0
      %1968 = vmatpush1.bf16.msra.mxu0 0
      %1969 = vmatprep.subr.bf16.mxu0 0
      %1970 = vmatpush1.bf16.msra.mxu0 0
      %1971 = vmatprep.subr.bf16.mxu0 0
      %1972 = vmatpush1.bf16.msra.mxu0 0
      %1973 = vmatprep.subr.bf16.mxu0 0
      %1974 = vmatpush1.bf16.msra.mxu0 0
      %1975 = vmatprep.subr.bf16.mxu0 0
      %1976 = vmatpush1.bf16.msra.mxu0 0
      %1977 = vmatprep.subr.bf16.mxu0 0
      %1978 = vmatpush1.bf16.msra.mxu0 0
      %1979 = vmatprep.subr.bf16.mxu0 0
      %1980 = vmatpush1.bf16.msra.mxu0 0
      %1981 = vmatprep.subr.bf16.mxu0 0
      %1982 = vmatpush1.bf16.msra.mxu0 0
      %1983 = vmatprep.mubr.bf16.mxu0 0
      %1984 = vmatmul.mubr.bf16.gmra.mrb[0].mxu0 %v1901
      %v1985 = vpop.f32.mrb[0].mxu0
      %v1986 = vadd.f32 %v1694, %v1985
      %v1987 = vpop.f32.mrb[0].mxu0
      %v1988 = vpop.f32.mrb[0].mxu0
      %v1989 = vadd.f32 %v1697, %v1988
      %v1990 = vpop.f32.mrb[0].mxu0
      %1991 = vmatprep.mubr.bf16.mxu0 0
      %1992 = vmatmul.mubr.bf16.gmra.mrb[0].mxu0 %v1904
      %v1993 = vpop.f32.mrb[0].mxu0
      %v1994 = vadd.f32 %v1702, %v1993
      %v1995 = vpop.f32.mrb[0].mxu0
      %v1996 = vpop.f32.mrb[0].mxu0
      %v1997 = vadd.f32 %v1705, %v1996
      %v1998 = vpop.f32.mrb[0].mxu0
      %1999 = vmatprep.mubr.bf16.mxu0 0
      %2000 = vmatmul.mubr.bf16.gmra.mrb[0].mxu0 %v1907
      %v2001 = vpop.f32.mrb[0].mxu0
      %v2002 = vadd.f32 %v1710, %v2001
      %v2003 = vpop.f32.mrb[0].mxu0
      %v2004 = vpop.f32.mrb[0].mxu0
      %v2005 = vadd.f32 %v1713, %v2004
      %v2006 = vpop.f32.mrb[0].mxu0
      %2007 = vmatprep.mubr.bf16.mxu0 0
      %2008 = vmatmul.mubr.bf16.gmra.mrb[0].mxu0 %v1910
      %v2009 = vpop.f32.mrb[0].mxu0
      %v2010 = vadd.f32 %v1718, %v2009
      %v2011 = vpop.f32.mrb[0].mxu0
      %v2012 = vpop.f32.mrb[0].mxu0
      %v2013 = vadd.f32 %v1721, %v2012
      %v2014 = vpop.f32.mrb[0].mxu0
      %2015 = vmatprep.mubr.bf16.mxu0 0
      %2016 = vmatmul.mubr.bf16.gmra.mrb[0].mxu0 %v1913
      %v2017 = vpop.f32.mrb[0].mxu0
      %v2018 = vadd.f32 %v1726, %v2017
      %v2019 = vpop.f32.mrb[0].mxu0
      %v2020 = vpop.f32.mrb[0].mxu0
      %v2021 = vadd.f32 %v1729, %v2020
      %v2022 = vpop.f32.mrb[0].mxu0
      %2023 = vmatprep.mubr.bf16.mxu0 0
      %2024 = vmatmul.mubr.bf16.gmra.mrb[0].mxu0 %v1916
      %v2025 = vpop.f32.mrb[0].mxu0
      %v2026 = vadd.f32 %v1734, %v2025
      %v2027 = vpop.f32.mrb[0].mxu0
      %v2028 = vpop.f32.mrb[0].mxu0
      %v2029 = vadd.f32 %v1737, %v2028
      %v2030 = vpop.f32.mrb[0].mxu0
      %2031 = vmatprep.mubr.bf16.mxu0 0
      %2032 = vmatmul.mubr.bf16.gmra.mrb[0].mxu0 %v1919
      %v2033 = vpop.f32.mrb[0].mxu0
      %v2034 = vadd.f32 %v1742, %v2033
      %v2035 = vpop.f32.mrb[0].mxu0
      %v2036 = vpop.f32.mrb[0].mxu0
      %v2037 = vadd.f32 %v1745, %v2036
      %v2038 = vpop.f32.mrb[0].mxu0
      %2039 = vmatprep.mubr.bf16.mxu0 0
      %2040 = vmatmul.mubr.bf16.gmra.mrb[0].mxu0 %v1922
      %v2041 = vpop.f32.mrb[0].mxu0
      %v2042 = vadd.f32 %v1750, %v2041
      %v2043 = vpop.f32.mrb[0].mxu0
      %v2044 = vpop.f32.mrb[0].mxu0
      %v2045 = vadd.f32 %v1753, %v2044
      %v2046 = vpop.f32.mrb[0].mxu0
      %2047 = vmatprep.mubr.bf16.mxu0 0
      %2048 = vmatmul.mubr.bf16.gmra.mrb[0].mxu0 %v1925
      %v2049 = vpop.f32.mrb[0].mxu0
      %v2050 = vadd.f32 %v1758, %v2049
      %v2051 = vpop.f32.mrb[0].mxu0
      %v2052 = vpop.f32.mrb[0].mxu0
      %v2053 = vadd.f32 %v1761, %v2052
      %v2054 = vpop.f32.mrb[0].mxu0
      %2055 = vmatprep.mubr.bf16.mxu0 0
      %2056 = vmatmul.mubr.bf16.gmra.mrb[0].mxu0 %v1928
      %v2057 = vpop.f32.mrb[0].mxu0
      %v2058 = vadd.f32 %v1766, %v2057
      %v2059 = vpop.f32.mrb[0].mxu0
      %v2060 = vpop.f32.mrb[0].mxu0
      %v2061 = vadd.f32 %v1769, %v2060
      %v2062 = vpop.f32.mrb[0].mxu0
      %2063 = vmatprep.mubr.bf16.mxu0 0
      %2064 = vmatmul.mubr.bf16.gmra.mrb[0].mxu0 %v1931
      %v2065 = vpop.f32.mrb[0].mxu0
      %v2066 = vadd.f32 %v1774, %v2065
      %v2067 = vpop.f32.mrb[0].mxu0
      %v2068 = vpop.f32.mrb[0].mxu0
      %v2069 = vadd.f32 %v1777, %v2068
      %v2070 = vpop.f32.mrb[0].mxu0
      %2071 = vmatprep.mubr.bf16.mxu0 0
      %2072 = vmatmul.mubr.bf16.gmra.mrb[0].mxu0 %v1934
      %v2073 = vpop.f32.mrb[0].mxu0
      %v2074 = vadd.f32 %v1782, %v2073
      %v2075 = vpop.f32.mrb[0].mxu0
      %v2076 = vpop.f32.mrb[0].mxu0
      %v2077 = vadd.f32 %v1785, %v2076
      %v2078 = vpop.f32.mrb[0].mxu0
      %2079 = vmatprep.mubr.bf16.mxu0 0
      %2080 = vmatmul.mubr.bf16.gmra.mrb[0].mxu0 %v1937
      %v2081 = vpop.f32.mrb[0].mxu0
      %v2082 = vadd.f32 %v1790, %v2081
      %v2083 = vpop.f32.mrb[0].mxu0
      %v2084 = vpop.f32.mrb[0].mxu0
      %v2085 = vadd.f32 %v1793, %v2084
      %v2086 = vpop.f32.mrb[0].mxu0
      %2087 = vmatprep.mubr.bf16.mxu0 0
      %2088 = vmatmul.mubr.bf16.gmra.mrb[0].mxu0 %v1940
      %v2089 = vpop.f32.mrb[0].mxu0
      %v2090 = vadd.f32 %v1798, %v2089
      %v2091 = vpop.f32.mrb[0].mxu0
      %v2092 = vpop.f32.mrb[0].mxu0
      %v2093 = vadd.f32 %v1801, %v2092
      %v2094 = vpop.f32.mrb[0].mxu0
      %2095 = vmatprep.mubr.bf16.mxu0 0
      %2096 = vmatmul.mubr.bf16.gmra.mrb[0].mxu0 %v1943
      %v2097 = vpop.f32.mrb[0].mxu0
      %v2098 = vadd.f32 %v1806, %v2097
      %v2099 = vpop.f32.mrb[0].mxu0
      %v2100 = vpop.f32.mrb[0].mxu0
      %v2101 = vadd.f32 %v1809, %v2100
      %v2102 = vpop.f32.mrb[0].mxu0
      %2103 = vmatprep.mubr.bf16.mxu0 0
      %2104 = vmatmul.mubr.bf16.gmra.mrb[0].mxu0 %v1946
      %v2105 = vpop.f32.mrb[0].mxu0
      %v2106 = vadd.f32 %v1814, %v2105
      %v2107 = vpop.f32.mrb[0].mxu0
      %v2108 = vpop.f32.mrb[0].mxu0
      %v2109 = vadd.f32 %v1817, %v2108
      %v2110 = vpop.f32.mrb[0].mxu0
      %2111 = vdwg.mxu0
      %vm2128 = vcmask 1042432
      %vm2129 = vcmask 1046532
      %vm2130 = vmor %vm2128, %vm2129
      %v2131 = vrot.slane %v1114, 5
      %v2132 = vrot.slane %v2131, 4
      %v2133 = vrot.slane %v1115, 5
      %v2134 = vsel %vm2130, %v2132, %v2133
      %v2135 = vrot.slane %v2133, 4
      %v2136 = vrot.slane %v1116, 5
      %v2137 = vsel %vm2130, %v2135, %v2136
      %v2138 = vrot.slane %v1117, 5
      %v2139 = vrot.slane %v2138, 4
      %v2140 = vrot.slane %v1118, 5
      %v2141 = vsel %vm2130, %v2139, %v2140
      %v2142 = vrot.slane %v2140, 4
      %v2143 = vrot.slane %v1119, 5
      %v2144 = vsel %vm2130, %v2142, %v2143
      %v2145 = vrot.slane %v1120, 5
      %v2146 = vrot.slane %v2145, 4
      %v2147 = vrot.slane %v1121, 5
      %v2148 = vsel %vm2130, %v2146, %v2147
      %v2149 = vrot.slane %v2147, 4
      %v2150 = vrot.slane %v1122, 5
      %v2151 = vsel %vm2130, %v2149, %v2150
      %v2152 = vrot.slane %v1123, 5
      %v2153 = vrot.slane %v2152, 4
      %v2154 = vrot.slane %v1124, 5
      %v2155 = vsel %vm2130, %v2153, %v2154
      %v2156 = vrot.slane %v2154, 4
      %v2157 = vrot.slane %v1125, 5
      %v2158 = vsel %vm2130, %v2156, %v2157
      %v2159 = vrot.slane %v1126, 5
      %v2160 = vrot.slane %v2159, 4
      %v2161 = vrot.slane %v1127, 5
      %v2162 = vsel %vm2130, %v2160, %v2161
      %v2163 = vrot.slane %v2161, 4
      %v2164 = vrot.slane %v1128, 5
      %v2165 = vsel %vm2130, %v2163, %v2164
      %v2166 = vrot.slane %v1129, 5
      %v2167 = vrot.slane %v2166, 4
      %v2168 = vrot.slane %v1130, 5
      %v2169 = vsel %vm2130, %v2167, %v2168
      %v2170 = vrot.slane %v2168, 4
      %v2171 = vrot.slane %v1131, 5
      %v2172 = vsel %vm2130, %v2170, %v2171
      %v2173 = vrot.slane %v1132, 5
      %v2174 = vrot.slane %v2173, 4
      %v2175 = vrot.slane %v1133, 5
      %v2176 = vsel %vm2130, %v2174, %v2175
      %v2177 = vrot.slane %v2175, 4
      %v2178 = vrot.slane %v1134, 5
      %v2179 = vsel %vm2130, %v2177, %v2178
      %v2180 = vrot.slane %v1135, 5
      %v2181 = vrot.slane %v2180, 4
      %v2182 = vrot.slane %v1136, 5
      %v2183 = vsel %vm2130, %v2181, %v2182
      %v2184 = vrot.slane %v2182, 4
      %v2185 = vrot.slane %v1137, 5
      %v2186 = vsel %vm2130, %v2184, %v2185
      %v2187 = vrot.slane %v1138, 5
      %v2188 = vrot.slane %v2187, 4
      %v2189 = vrot.slane %v1139, 5
      %v2190 = vsel %vm2130, %v2188, %v2189
      %v2191 = vrot.slane %v2189, 4
      %v2192 = vrot.slane %v1140, 5
      %v2193 = vsel %vm2130, %v2191, %v2192
      %v2194 = vrot.slane %v1141, 5
      %v2195 = vrot.slane %v2194, 4
      %v2196 = vrot.slane %v1142, 5
      %v2197 = vsel %vm2130, %v2195, %v2196
      %v2198 = vrot.slane %v2196, 4
      %v2199 = vrot.slane %v1143, 5
      %v2200 = vsel %vm2130, %v2198, %v2199
      %v2201 = vrot.slane %v1144, 5
      %v2202 = vrot.slane %v2201, 4
      %v2203 = vrot.slane %v1145, 5
      %v2204 = vsel %vm2130, %v2202, %v2203
      %v2205 = vrot.slane %v2203, 4
      %v2206 = vrot.slane %v1146, 5
      %v2207 = vsel %vm2130, %v2205, %v2206
      %v2208 = vrot.slane %v1147, 5
      %v2209 = vrot.slane %v2208, 4
      %v2210 = vrot.slane %v1148, 5
      %v2211 = vsel %vm2130, %v2209, %v2210
      %v2212 = vrot.slane %v2210, 4
      %v2213 = vrot.slane %v1149, 5
      %v2214 = vsel %vm2130, %v2212, %v2213
      %v2215 = vrot.slane %v1150, 5
      %v2216 = vrot.slane %v2215, 4
      %v2217 = vrot.slane %v1151, 5
      %v2218 = vsel %vm2130, %v2216, %v2217
      %v2219 = vrot.slane %v2217, 4
      %v2220 = vrot.slane %v1152, 5
      %v2221 = vsel %vm2130, %v2219, %v2220
      %v2222 = vrot.slane %v1153, 5
      %v2223 = vrot.slane %v2222, 4
      %v2224 = vrot.slane %v1154, 5
      %v2225 = vsel %vm2130, %v2223, %v2224
      %v2226 = vrot.slane %v2224, 4
      %v2227 = vrot.slane %v1155, 5
      %v2228 = vsel %vm2130, %v2226, %v2227
      %v2229 = vrot.slane %v1156, 5
      %v2230 = vrot.slane %v2229, 4
      %v2231 = vrot.slane %v1157, 5
      %v2232 = vsel %vm2130, %v2230, %v2231
      %v2233 = vrot.slane %v2231, 4
      %v2234 = vrot.slane %v1158, 5
      %v2235 = vsel %vm2130, %v2233, %v2234
      %v2236 = vrot.slane %v1159, 5
      %v2237 = vrot.slane %v2236, 4
      %v2238 = vrot.slane %v1160, 5
      %v2239 = vsel %vm2130, %v2237, %v2238
      %v2240 = vrot.slane %v2238, 4
      %v2241 = vrot.slane %v1161, 5
      %v2242 = vsel %vm2130, %v2240, %v2241
      %s2243 = scalar_lea.vmem %s1, 8
      %v2244 = vld [vmem:[%s2243] sm:$0xf]
      %v2245 = vunpack.c.l.b16 %v2134
      %v2246 = vunpack.c.l.b16 %v2137
      %v2247 = vunpack.c.l.b16 %v2141
      %v2248 = vunpack.c.l.b16 %v2144
      %v2249 = vunpack.c.l.b16 %v2148
      %v2250 = vunpack.c.l.b16 %v2151
      %v2251 = vunpack.c.l.b16 %v2155
      %v2252 = vunpack.c.l.b16 %v2158
      %v2253 = vunpack.c.l.b16 %v2162
      %v2254 = vunpack.c.l.b16 %v2165
      %v2255 = vunpack.c.l.b16 %v2169
      %v2256 = vunpack.c.l.b16 %v2172
      %v2257 = vunpack.c.l.b16 %v2176
      %v2258 = vunpack.c.l.b16 %v2179
      %v2259 = vunpack.c.l.b16 %v2183
      %v2260 = vunpack.c.l.b16 %v2186
      %v2261 = vunpack.c.l.b16 %v2190
      %v2262 = vunpack.c.l.b16 %v2193
      %v2263 = vunpack.c.l.b16 %v2197
      %v2264 = vunpack.c.l.b16 %v2200
      %v2265 = vunpack.c.l.b16 %v2204
      %v2266 = vunpack.c.l.b16 %v2207
      %v2267 = vunpack.c.l.b16 %v2211
      %v2268 = vunpack.c.l.b16 %v2214
      %v2269 = vunpack.c.l.b16 %v2218
      %v2270 = vunpack.c.l.b16 %v2221
      %v2271 = vunpack.c.l.b16 %v2225
      %v2272 = vunpack.c.l.b16 %v2228
      %v2273 = vunpack.c.l.b16 %v2232
      %v2274 = vunpack.c.l.b16 %v2235
      %v2275 = vunpack.c.l.b16 %v2239
      %v2276 = vunpack.c.l.b16 %v2242
      %v2277 = vpack.c.b16 %v2246, %v2245
      %v2278 = vpack.c.b16 %v2248, %v2247
      %v2279 = vpack.c.b16 %v2250, %v2249
      %v2280 = vpack.c.b16 %v2252, %v2251
      %v2281 = vpack.c.b16 %v2254, %v2253
      %v2282 = vpack.c.b16 %v2256, %v2255
      %v2283 = vpack.c.b16 %v2258, %v2257
      %v2284 = vpack.c.b16 %v2260, %v2259
      %v2285 = vpack.c.b16 %v2262, %v2261
      %v2286 = vpack.c.b16 %v2264, %v2263
      %v2287 = vpack.c.b16 %v2266, %v2265
      %v2288 = vpack.c.b16 %v2268, %v2267
      %v2289 = vpack.c.b16 %v2270, %v2269
      %v2290 = vpack.c.b16 %v2272, %v2271
      %v2291 = vpack.c.b16 %v2274, %v2273
      %v2292 = vpack.c.b16 %v2276, %v2275
      %v2294 = vsel %vm1606, %v2277, 0
      %v2297 = vsel %vm1606, %v2278, 0
      %v2300 = vsel %vm1606, %v2279, 0
      %v2303 = vsel %vm1606, %v2280, 0
      %v2306 = vsel %vm1606, %v2281, 0
      %v2309 = vsel %vm1606, %v2282, 0
      %v2312 = vsel %vm1606, %v2283, 0
      %v2315 = vsel %vm1606, %v2284, 0
      %v2318 = vsel %vm1606, %v2285, 0
      %v2321 = vsel %vm1606, %v2286, 0
      %v2324 = vsel %vm1606, %v2287, 0
      %v2327 = vsel %vm1606, %v2288, 0
      %v2330 = vsel %vm1606, %v2289, 0
      %v2333 = vsel %vm1606, %v2290, 0
      %v2336 = vsel %vm1606, %v2291, 0
      %v2339 = vsel %vm1606, %v2292, 0
      %v2342 = vsel %vm1655, %v2244, 0
      %2344 = vmatprep.subr.bf16.mxu0 0
      %2345 = vmatpush1.bf16.msra.mxu0 %v2342
      %2346 = vmatprep.subr.bf16.mxu0 0
      %2347 = vmatpush1.bf16.msra.mxu0 0
      %2348 = vmatprep.subr.bf16.mxu0 0
      %2349 = vmatpush1.bf16.msra.mxu0 0
      %2350 = vmatprep.subr.bf16.mxu0 0
      %2351 = vmatpush1.bf16.msra.mxu0 0
      %2352 = vmatprep.subr.bf16.mxu0 0
      %2353 = vmatpush1.bf16.msra.mxu0 0
      %2354 = vmatprep.subr.bf16.mxu0 0
      %2355 = vmatpush1.bf16.msra.mxu0 0
      %2356 = vmatprep.subr.bf16.mxu0 0
      %2357 = vmatpush1.bf16.msra.mxu0 0
      %2358 = vmatprep.subr.bf16.mxu0 0
      %2359 = vmatpush1.bf16.msra.mxu0 0
      %2360 = vmatprep.subr.bf16.mxu0 0
      %2361 = vmatpush1.bf16.msra.mxu0 0
      %2362 = vmatprep.subr.bf16.mxu0 0
      %2363 = vmatpush1.bf16.msra.mxu0 0
      %2364 = vmatprep.subr.bf16.mxu0 0
      %2365 = vmatpush1.bf16.msra.mxu0 0
      %2366 = vmatprep.subr.bf16.mxu0 0
      %2367 = vmatpush1.bf16.msra.mxu0 0
      %2368 = vmatprep.subr.bf16.mxu0 0
      %2369 = vmatpush1.bf16.msra.mxu0 0
      %2370 = vmatprep.subr.bf16.mxu0 0
      %2371 = vmatpush1.bf16.msra.mxu0 0
      %2372 = vmatprep.subr.bf16.mxu0 0
      %2373 = vmatpush1.bf16.msra.mxu0 0
      %2374 = vmatprep.subr.bf16.mxu0 0
      %2375 = vmatpush1.bf16.msra.mxu0 0
      %2376 = vmatprep.mubr.bf16.mxu0 0
      %2377 = vmatmul.mubr.bf16.gmra.mrb[0].mxu0 %v2294
      %v2378 = vpop.f32.mrb[0].mxu0
      %v2379 = vadd.f32 0.0, %v2378
      %v2380 = vpop.f32.mrb[0].mxu0
      %v2381 = vpop.f32.mrb[0].mxu0
      %v2382 = vadd.f32 0.0, %v2381
      %v2383 = vpop.f32.mrb[0].mxu0
      %2384 = vmatprep.mubr.bf16.mxu0 0
      %2385 = vmatmul.mubr.bf16.gmra.mrb[0].mxu0 %v2297
      %v2386 = vpop.f32.mrb[0].mxu0
      %v2387 = vadd.f32 0.0, %v2386
      %v2388 = vpop.f32.mrb[0].mxu0
      %v2389 = vpop.f32.mrb[0].mxu0
      %v2390 = vadd.f32 0.0, %v2389
      %v2391 = vpop.f32.mrb[0].mxu0
      %2392 = vmatprep.mubr.bf16.mxu0 0
      %2393 = vmatmul.mubr.bf16.gmra.mrb[0].mxu0 %v2300
      %v2394 = vpop.f32.mrb[0].mxu0
      %v2395 = vadd.f32 0.0, %v2394
      %v2396 = vpop.f32.mrb[0].mxu0
      %v2397 = vpop.f32.mrb[0].mxu0
      %v2398 = vadd.f32 0.0, %v2397
      %v2399 = vpop.f32.mrb[0].mxu0
      %2400 = vmatprep.mubr.bf16.mxu0 0
      %2401 = vmatmul.mubr.bf16.gmra.mrb[0].mxu0 %v2303
      %v2402 = vpop.f32.mrb[0].mxu0
      %v2403 = vadd.f32 0.0, %v2402
      %v2404 = vpop.f32.mrb[0].mxu0
      %v2405 = vpop.f32.mrb[0].mxu0
      %v2406 = vadd.f32 0.0, %v2405
      %v2407 = vpop.f32.mrb[0].mxu0
      %2408 = vmatprep.mubr.bf16.mxu0 0
      %2409 = vmatmul.mubr.bf16.gmra.mrb[0].mxu0 %v2306
      %v2410 = vpop.f32.mrb[0].mxu0
      %v2411 = vadd.f32 0.0, %v2410
      %v2412 = vpop.f32.mrb[0].mxu0
      %v2413 = vpop.f32.mrb[0].mxu0
      %v2414 = vadd.f32 0.0, %v2413
      %v2415 = vpop.f32.mrb[0].mxu0
      %2416 = vmatprep.mubr.bf16.mxu0 0
      %2417 = vmatmul.mubr.bf16.gmra.mrb[0].mxu0 %v2309
      %v2418 = vpop.f32.mrb[0].mxu0
      %v2419 = vadd.f32 0.0, %v2418
      %v2420 = vpop.f32.mrb[0].mxu0
      %v2421 = vpop.f32.mrb[0].mxu0
      %v2422 = vadd.f32 0.0, %v2421
      %v2423 = vpop.f32.mrb[0].mxu0
      %2424 = vmatprep.mubr.bf16.mxu0 0
      %2425 = vmatmul.mubr.bf16.gmra.mrb[0].mxu0 %v2312
      %v2426 = vpop.f32.mrb[0].mxu0
      %v2427 = vadd.f32 0.0, %v2426
      %v2428 = vpop.f32.mrb[0].mxu0
      %v2429 = vpop.f32.mrb[0].mxu0
      %v2430 = vadd.f32 0.0, %v2429
      %v2431 = vpop.f32.mrb[0].mxu0
      %2432 = vmatprep.mubr.bf16.mxu0 0
      %2433 = vmatmul.mubr.bf16.gmra.mrb[0].mxu0 %v2315
      %v2434 = vpop.f32.mrb[0].mxu0
      %v2435 = vadd.f32 0.0, %v2434
      %v2436 = vpop.f32.mrb[0].mxu0
      %v2437 = vpop.f32.mrb[0].mxu0
      %v2438 = vadd.f32 0.0, %v2437
      %v2439 = vpop.f32.mrb[0].mxu0
      %2440 = vmatprep.mubr.bf16.mxu0 0
      %2441 = vmatmul.mubr.bf16.gmra.mrb[0].mxu0 %v2318
      %v2442 = vpop.f32.mrb[0].mxu0
      %v2443 = vadd.f32 0.0, %v2442
      %v2444 = vpop.f32.mrb[0].mxu0
      %v2445 = vpop.f32.mrb[0].mxu0
      %v2446 = vadd.f32 0.0, %v2445
      %v2447 = vpop.f32.mrb[0].mxu0
      %2448 = vmatprep.mubr.bf16.mxu0 0
      %2449 = vmatmul.mubr.bf16.gmra.mrb[0].mxu0 %v2321
      %v2450 = vpop.f32.mrb[0].mxu0
      %v2451 = vadd.f32 0.0, %v2450
      %v2452 = vpop.f32.mrb[0].mxu0
      %v2453 = vpop.f32.mrb[0].mxu0
      %v2454 = vadd.f32 0.0, %v2453
      %v2455 = vpop.f32.mrb[0].mxu0
      %2456 = vmatprep.mubr.bf16.mxu0 0
      %2457 = vmatmul.mubr.bf16.gmra.mrb[0].mxu0 %v2324
      %v2458 = vpop.f32.mrb[0].mxu0
      %v2459 = vadd.f32 0.0, %v2458
      %v2460 = vpop.f32.mrb[0].mxu0
      %v2461 = vpop.f32.mrb[0].mxu0
      %v2462 = vadd.f32 0.0, %v2461
      %v2463 = vpop.f32.mrb[0].mxu0
      %2464 = vmatprep.mubr.bf16.mxu0 0
      %2465 = vmatmul.mubr.bf16.gmra.mrb[0].mxu0 %v2327
      %v2466 = vpop.f32.mrb[0].mxu0
      %v2467 = vadd.f32 0.0, %v2466
      %v2468 = vpop.f32.mrb[0].mxu0
      %v2469 = vpop.f32.mrb[0].mxu0
      %v2470 = vadd.f32 0.0, %v2469
      %v2471 = vpop.f32.mrb[0].mxu0
      %2472 = vmatprep.mubr.bf16.mxu0 0
      %2473 = vmatmul.mubr.bf16.gmra.mrb[0].mxu0 %v2330
      %v2474 = vpop.f32.mrb[0].mxu0
      %v2475 = vadd.f32 0.0, %v2474
      %v2476 = vpop.f32.mrb[0].mxu0
      %v2477 = vpop.f32.mrb[0].mxu0
      %v2478 = vadd.f32 0.0, %v2477
      %v2479 = vpop.f32.mrb[0].mxu0
      %2480 = vmatprep.mubr.bf16.mxu0 0
      %2481 = vmatmul.mubr.bf16.gmra.mrb[0].mxu0 %v2333
      %v2482 = vpop.f32.mrb[0].mxu0
      %v2483 = vadd.f32 0.0, %v2482
      %v2484 = vpop.f32.mrb[0].mxu0
      %v2485 = vpop.f32.mrb[0].mxu0
      %v2486 = vadd.f32 0.0, %v2485
      %v2487 = vpop.f32.mrb[0].mxu0
      %2488 = vmatprep.mubr.bf16.mxu0 0
      %2489 = vmatmul.mubr.bf16.gmra.mrb[0].mxu0 %v2336
      %v2490 = vpop.f32.mrb[0].mxu0
      %v2491 = vadd.f32 0.0, %v2490
      %v2492 = vpop.f32.mrb[0].mxu0
      %v2493 = vpop.f32.mrb[0].mxu0
      %v2494 = vadd.f32 0.0, %v2493
      %v2495 = vpop.f32.mrb[0].mxu0
      %2496 = vmatprep.mubr.bf16.mxu0 0
      %2497 = vmatmul.mubr.bf16.gmra.mrb[0].mxu0 %v2339
      %v2498 = vpop.f32.mrb[0].mxu0
      %v2499 = vadd.f32 0.0, %v2498
      %v2500 = vpop.f32.mrb[0].mxu0
      %v2501 = vpop.f32.mrb[0].mxu0
      %v2502 = vadd.f32 0.0, %v2501
      %v2503 = vpop.f32.mrb[0].mxu0
      %2504 = vdwg.mxu0
      %v2505 = vadd.f32 %v1986, %v2379
      %v2506 = vadd.f32 %v1989, %v2382
      %v2507 = vadd.f32 %v1994, %v2387
      %v2508 = vadd.f32 %v1997, %v2390
      %v2509 = vadd.f32 %v2002, %v2395
      %v2510 = vadd.f32 %v2005, %v2398
      %v2511 = vadd.f32 %v2010, %v2403
      %v2512 = vadd.f32 %v2013, %v2406
      %v2513 = vadd.f32 %v2018, %v2411
      %v2514 = vadd.f32 %v2021, %v2414
      %v2515 = vadd.f32 %v2026, %v2419
      %v2516 = vadd.f32 %v2029, %v2422
      %v2517 = vadd.f32 %v2034, %v2427
      %v2518 = vadd.f32 %v2037, %v2430
      %v2519 = vadd.f32 %v2042, %v2435
      %v2520 = vadd.f32 %v2045, %v2438
      %v2521 = vadd.f32 %v2050, %v2443
      %v2522 = vadd.f32 %v2053, %v2446
      %v2523 = vadd.f32 %v2058, %v2451
      %v2524 = vadd.f32 %v2061, %v2454
      %v2525 = vadd.f32 %v2066, %v2459
      %v2526 = vadd.f32 %v2069, %v2462
      %v2527 = vadd.f32 %v2074, %v2467
      %v2528 = vadd.f32 %v2077, %v2470
      %v2529 = vadd.f32 %v2082, %v2475
      %v2530 = vadd.f32 %v2085, %v2478
      %v2531 = vadd.f32 %v2090, %v2483
      %v2532 = vadd.f32 %v2093, %v2486
      %v2533 = vadd.f32 %v2098, %v2491
      %v2534 = vadd.f32 %v2101, %v2494
      %v2535 = vadd.f32 %v2106, %v2499
      %v2536 = vadd.f32 %v2109, %v2502
      %s2537 = scalar_lea.vmem %s1, 12
      %v2538 = vld [vmem:[%s2537] sm:$0xf]
      %v2541 = vunpack.c.l.b16 %v1162
      %v2542 = vunpack.c.l.b16 %v1163
      %v2543 = vpack.c.b16 %v2542, %v2541
      %v2545 = vsel %vm1606, %v2543, 0
      %v2548 = vsel %vm1655, %v2538, 0
      %2550 = vmatprep.subr.bf16.mxu0 0
      %2551 = vmatpush1.bf16.msra.mxu0 %v2548
      %2552 = vmatprep.subr.bf16.mxu0 0
      %2553 = vmatpush1.bf16.msra.mxu0 0
      %2554 = vmatprep.subr.bf16.mxu0 0
      %2555 = vmatpush1.bf16.msra.mxu0 0
      %2556 = vmatprep.subr.bf16.mxu0 0
      %2557 = vmatpush1.bf16.msra.mxu0 0
      %2558 = vmatprep.subr.bf16.mxu0 0
      %2559 = vmatpush1.bf16.msra.mxu0 0
      %2560 = vmatprep.subr.bf16.mxu0 0
      %2561 = vmatpush1.bf16.msra.mxu0 0
      %2562 = vmatprep.subr.bf16.mxu0 0
      %2563 = vmatpush1.bf16.msra.mxu0 0
      %2564 = vmatprep.subr.bf16.mxu0 0
      %2565 = vmatpush1.bf16.msra.mxu0 0
      %2566 = vmatprep.subr.bf16.mxu0 0
      %2567 = vmatpush1.bf16.msra.mxu0 0
      %2568 = vmatprep.subr.bf16.mxu0 0
      %2569 = vmatpush1.bf16.msra.mxu0 0
      %2570 = vmatprep.subr.bf16.mxu0 0
      %2571 = vmatpush1.bf16.msra.mxu0 0
      %2572 = vmatprep.subr.bf16.mxu0 0
      %2573 = vmatpush1.bf16.msra.mxu0 0
      %2574 = vmatprep.subr.bf16.mxu0 0
      %2575 = vmatpush1.bf16.msra.mxu0 0
      %2576 = vmatprep.subr.bf16.mxu0 0
      %2577 = vmatpush1.bf16.msra.mxu0 0
      %2578 = vmatprep.subr.bf16.mxu0 0
      %2579 = vmatpush1.bf16.msra.mxu0 0
      %2580 = vmatprep.subr.bf16.mxu0 0
      %2581 = vmatpush1.bf16.msra.mxu0 0
      %2582 = vmatprep.mubr.bf16.mxu0 0
      %2583 = vmatmul.mubr.bf16.gmra.mrb[0].mxu0 %v1904
      %v2584 = vpop.f32.mrb[0].mxu0
      %v2585 = vadd.f32 0.0, %v2584
      %v2586 = vpop.f32.mrb[0].mxu0
      %v2587 = vpop.f32.mrb[0].mxu0
      %v2588 = vadd.f32 0.0, %v2587
      %v2589 = vpop.f32.mrb[0].mxu0
      %2590 = vmatprep.mubr.bf16.mxu0 0
      %2591 = vmatmul.mubr.bf16.gmra.mrb[0].mxu0 %v1907
      %v2592 = vpop.f32.mrb[0].mxu0
      %v2593 = vadd.f32 0.0, %v2592
      %v2594 = vpop.f32.mrb[0].mxu0
      %v2595 = vpop.f32.mrb[0].mxu0
      %v2596 = vadd.f32 0.0, %v2595
      %v2597 = vpop.f32.mrb[0].mxu0
      %2598 = vmatprep.mubr.bf16.mxu0 0
      %2599 = vmatmul.mubr.bf16.gmra.mrb[0].mxu0 %v1910
      %v2600 = vpop.f32.mrb[0].mxu0
      %v2601 = vadd.f32 0.0, %v2600
      %v2602 = vpop.f32.mrb[0].mxu0
      %v2603 = vpop.f32.mrb[0].mxu0
      %v2604 = vadd.f32 0.0, %v2603
      %v2605 = vpop.f32.mrb[0].mxu0
      %2606 = vmatprep.mubr.bf16.mxu0 0
      %2607 = vmatmul.mubr.bf16.gmra.mrb[0].mxu0 %v1913
      %v2608 = vpop.f32.mrb[0].mxu0
      %v2609 = vadd.f32 0.0, %v2608
      %v2610 = vpop.f32.mrb[0].mxu0
      %v2611 = vpop.f32.mrb[0].mxu0
      %v2612 = vadd.f32 0.0, %v2611
      %v2613 = vpop.f32.mrb[0].mxu0
      %2614 = vmatprep.mubr.bf16.mxu0 0
      %2615 = vmatmul.mubr.bf16.gmra.mrb[0].mxu0 %v1916
      %v2616 = vpop.f32.mrb[0].mxu0
      %v2617 = vadd.f32 0.0, %v2616
      %v2618 = vpop.f32.mrb[0].mxu0
      %v2619 = vpop.f32.mrb[0].mxu0
      %v2620 = vadd.f32 0.0, %v2619
      %v2621 = vpop.f32.mrb[0].mxu0
      %2622 = vmatprep.mubr.bf16.mxu0 0
      %2623 = vmatmul.mubr.bf16.gmra.mrb[0].mxu0 %v1919
      %v2624 = vpop.f32.mrb[0].mxu0
      %v2625 = vadd.f32 0.0, %v2624
      %v2626 = vpop.f32.mrb[0].mxu0
      %v2627 = vpop.f32.mrb[0].mxu0
      %v2628 = vadd.f32 0.0, %v2627
      %v2629 = vpop.f32.mrb[0].mxu0
      %2630 = vmatprep.mubr.bf16.mxu0 0
      %2631 = vmatmul.mubr.bf16.gmra.mrb[0].mxu0 %v1922
      %v2632 = vpop.f32.mrb[0].mxu0
      %v2633 = vadd.f32 0.0, %v2632
      %v2634 = vpop.f32.mrb[0].mxu0
      %v2635 = vpop.f32.mrb[0].mxu0
      %v2636 = vadd.f32 0.0, %v2635
      %v2637 = vpop.f32.mrb[0].mxu0
      %2638 = vmatprep.mubr.bf16.mxu0 0
      %2639 = vmatmul.mubr.bf16.gmra.mrb[0].mxu0 %v1925
      %v2640 = vpop.f32.mrb[0].mxu0
      %v2641 = vadd.f32 0.0, %v2640
      %v2642 = vpop.f32.mrb[0].mxu0
      %v2643 = vpop.f32.mrb[0].mxu0
      %v2644 = vadd.f32 0.0, %v2643
      %v2645 = vpop.f32.mrb[0].mxu0
      %2646 = vmatprep.mubr.bf16.mxu0 0
      %2647 = vmatmul.mubr.bf16.gmra.mrb[0].mxu0 %v1928
      %v2648 = vpop.f32.mrb[0].mxu0
      %v2649 = vadd.f32 0.0, %v2648
      %v2650 = vpop.f32.mrb[0].mxu0
      %v2651 = vpop.f32.mrb[0].mxu0
      %v2652 = vadd.f32 0.0, %v2651
      %v2653 = vpop.f32.mrb[0].mxu0
      %2654 = vmatprep.mubr.bf16.mxu0 0
      %2655 = vmatmul.mubr.bf16.gmra.mrb[0].mxu0 %v1931
      %v2656 = vpop.f32.mrb[0].mxu0
      %v2657 = vadd.f32 0.0, %v2656
      %v2658 = vpop.f32.mrb[0].mxu0
      %v2659 = vpop.f32.mrb[0].mxu0
      %v2660 = vadd.f32 0.0, %v2659
      %v2661 = vpop.f32.mrb[0].mxu0
      %2662 = vmatprep.mubr.bf16.mxu0 0
      %2663 = vmatmul.mubr.bf16.gmra.mrb[0].mxu0 %v1934
      %v2664 = vpop.f32.mrb[0].mxu0
      %v2665 = vadd.f32 0.0, %v2664
      %v2666 = vpop.f32.mrb[0].mxu0
      %v2667 = vpop.f32.mrb[0].mxu0
      %v2668 = vadd.f32 0.0, %v2667
      %v2669 = vpop.f32.mrb[0].mxu0
      %2670 = vmatprep.mubr.bf16.mxu0 0
      %2671 = vmatmul.mubr.bf16.gmra.mrb[0].mxu0 %v1937
      %v2672 = vpop.f32.mrb[0].mxu0
      %v2673 = vadd.f32 0.0, %v2672
      %v2674 = vpop.f32.mrb[0].mxu0
      %v2675 = vpop.f32.mrb[0].mxu0
      %v2676 = vadd.f32 0.0, %v2675
      %v2677 = vpop.f32.mrb[0].mxu0
      %2678 = vmatprep.mubr.bf16.mxu0 0
      %2679 = vmatmul.mubr.bf16.gmra.mrb[0].mxu0 %v1940
      %v2680 = vpop.f32.mrb[0].mxu0
      %v2681 = vadd.f32 0.0, %v2680
      %v2682 = vpop.f32.mrb[0].mxu0
      %v2683 = vpop.f32.mrb[0].mxu0
      %v2684 = vadd.f32 0.0, %v2683
      %v2685 = vpop.f32.mrb[0].mxu0
      %2686 = vmatprep.mubr.bf16.mxu0 0
      %2687 = vmatmul.mubr.bf16.gmra.mrb[0].mxu0 %v1943
      %v2688 = vpop.f32.mrb[0].mxu0
      %v2689 = vadd.f32 0.0, %v2688
      %v2690 = vpop.f32.mrb[0].mxu0
      %v2691 = vpop.f32.mrb[0].mxu0
      %v2692 = vadd.f32 0.0, %v2691
      %v2693 = vpop.f32.mrb[0].mxu0
      %2694 = vmatprep.mubr.bf16.mxu0 0
      %2695 = vmatmul.mubr.bf16.gmra.mrb[0].mxu0 %v1946
      %v2696 = vpop.f32.mrb[0].mxu0
      %v2697 = vadd.f32 0.0, %v2696
      %v2698 = vpop.f32.mrb[0].mxu0
      %v2699 = vpop.f32.mrb[0].mxu0
      %v2700 = vadd.f32 0.0, %v2699
      %v2701 = vpop.f32.mrb[0].mxu0
      %2702 = vmatprep.mubr.bf16.mxu0 0
      %2703 = vmatmul.mubr.bf16.gmra.mrb[0].mxu0 %v2545
      %v2704 = vpop.f32.mrb[0].mxu0
      %v2705 = vadd.f32 0.0, %v2704
      %v2706 = vpop.f32.mrb[0].mxu0
      %v2707 = vpop.f32.mrb[0].mxu0
      %v2708 = vadd.f32 0.0, %v2707
      %v2709 = vpop.f32.mrb[0].mxu0
      %2710 = vdwg.mxu0
      %v2711 = vadd.f32 %v2505, %v2585
      %v2712 = vadd.f32 %v2506, %v2588
      %v2713 = vadd.f32 %v2507, %v2593
      %v2714 = vadd.f32 %v2508, %v2596
      %v2715 = vadd.f32 %v2509, %v2601
      %v2716 = vadd.f32 %v2510, %v2604
      %v2717 = vadd.f32 %v2511, %v2609
      %v2718 = vadd.f32 %v2512, %v2612
      %v2719 = vadd.f32 %v2513, %v2617
      %v2720 = vadd.f32 %v2514, %v2620
      %v2721 = vadd.f32 %v2515, %v2625
      %v2722 = vadd.f32 %v2516, %v2628
      %v2723 = vadd.f32 %v2517, %v2633
      %v2724 = vadd.f32 %v2518, %v2636
      %v2725 = vadd.f32 %v2519, %v2641
      %v2726 = vadd.f32 %v2520, %v2644
      %v2727 = vadd.f32 %v2521, %v2649
      %v2728 = vadd.f32 %v2522, %v2652
      %v2729 = vadd.f32 %v2523, %v2657
      %v2730 = vadd.f32 %v2524, %v2660
      %v2731 = vadd.f32 %v2525, %v2665
      %v2732 = vadd.f32 %v2526, %v2668
      %v2733 = vadd.f32 %v2527, %v2673
      %v2734 = vadd.f32 %v2528, %v2676
      %v2735 = vadd.f32 %v2529, %v2681
      %v2736 = vadd.f32 %v2530, %v2684
      %v2737 = vadd.f32 %v2531, %v2689
      %v2738 = vadd.f32 %v2532, %v2692
      %v2739 = vadd.f32 %v2533, %v2697
      %v2740 = vadd.f32 %v2534, %v2700
      %v2741 = vadd.f32 %v2535, %v2705
      %v2742 = vadd.f32 %v2536, %v2708
      %v2744 = vshrl.u32 %v1162, 16
      %v2746 = vrot.slane %v2744, 4
      %v2747 = vshll.u32 %v1162, 16
      %v2749 = vrot.slane %v2747, 5
      %v2750 = vor.u32 %v2746, %v2749
      %v2751 = vrot.slane %v2750, 4
      %v2753 = vshll.u32 %v1163, 16
      %v2755 = vrot.slane %v2753, 5
      %v2756 = vsel %vm1171, %v2751, %v2755
      %v2757 = vshrl.u32 %v1163, 16
      %v2759 = vrot.slane %v2757, 4
      %v2760 = vor.u32 %v2759, %v2755
      %v2761 = vrot.slane %v2760, 4
      %v2763 = vshll.u32 %v1164, 16
      %v2765 = vrot.slane %v2763, 5
      %v2766 = vsel %vm1171, %v2761, %v2765
      %s2767 = scalar_lea.vmem %s1, 16
      %v2768 = vld [vmem:[%s2767] sm:$0xf]
      %v2769 = vunpack.c.l.b16 %v2756
      %v2770 = vunpack.c.l.b16 %v2766
      %v2771 = vpack.c.b16 %v2770, %v2769
      %v2773 = vsel %vm1606, %v2771, 0
      %v2776 = vsel %vm1655, %v2768, 0
      %2778 = vmatprep.subr.bf16.mxu0 0
      %2779 = vmatpush1.bf16.msra.mxu0 %v2776
      %2780 = vmatprep.subr.bf16.mxu0 0
      %2781 = vmatpush1.bf16.msra.mxu0 0
      %2782 = vmatprep.subr.bf16.mxu0 0
      %2783 = vmatpush1.bf16.msra.mxu0 0
      %2784 = vmatprep.subr.bf16.mxu0 0
      %2785 = vmatpush1.bf16.msra.mxu0 0
      %2786 = vmatprep.subr.bf16.mxu0 0
      %2787 = vmatpush1.bf16.msra.mxu0 0
      %2788 = vmatprep.subr.bf16.mxu0 0
      %2789 = vmatpush1.bf16.msra.mxu0 0
      %2790 = vmatprep.subr.bf16.mxu0 0
      %2791 = vmatpush1.bf16.msra.mxu0 0
      %2792 = vmatprep.subr.bf16.mxu0 0
      %2793 = vmatpush1.bf16.msra.mxu0 0
      %2794 = vmatprep.subr.bf16.mxu0 0
      %2795 = vmatpush1.bf16.msra.mxu0 0
      %2796 = vmatprep.subr.bf16.mxu0 0
      %2797 = vmatpush1.bf16.msra.mxu0 0
      %2798 = vmatprep.subr.bf16.mxu0 0
      %2799 = vmatpush1.bf16.msra.mxu0 0
      %2800 = vmatprep.subr.bf16.mxu0 0
      %2801 = vmatpush1.bf16.msra.mxu0 0
      %2802 = vmatprep.subr.bf16.mxu0 0
      %2803 = vmatpush1.bf16.msra.mxu0 0
      %2804 = vmatprep.subr.bf16.mxu0 0
      %2805 = vmatpush1.bf16.msra.mxu0 0
      %2806 = vmatprep.subr.bf16.mxu0 0
      %2807 = vmatpush1.bf16.msra.mxu0 0
      %2808 = vmatprep.subr.bf16.mxu0 0
      %2809 = vmatpush1.bf16.msra.mxu0 0
      %2810 = vmatprep.mubr.bf16.mxu0 0
      %2811 = vmatmul.mubr.bf16.gmra.mrb[0].mxu0 %v1611
      %v2812 = vpop.f32.mrb[0].mxu0
      %v2813 = vadd.f32 0.0, %v2812
      %v2814 = vpop.f32.mrb[0].mxu0
      %v2815 = vpop.f32.mrb[0].mxu0
      %v2816 = vadd.f32 0.0, %v2815
      %v2817 = vpop.f32.mrb[0].mxu0
      %2818 = vmatprep.mubr.bf16.mxu0 0
      %2819 = vmatmul.mubr.bf16.gmra.mrb[0].mxu0 %v1614
      %v2820 = vpop.f32.mrb[0].mxu0
      %v2821 = vadd.f32 0.0, %v2820
      %v2822 = vpop.f32.mrb[0].mxu0
      %v2823 = vpop.f32.mrb[0].mxu0
      %v2824 = vadd.f32 0.0, %v2823
      %v2825 = vpop.f32.mrb[0].mxu0
      %2826 = vmatprep.mubr.bf16.mxu0 0
      %2827 = vmatmul.mubr.bf16.gmra.mrb[0].mxu0 %v1617
      %v2828 = vpop.f32.mrb[0].mxu0
      %v2829 = vadd.f32 0.0, %v2828
      %v2830 = vpop.f32.mrb[0].mxu0
      %v2831 = vpop.f32.mrb[0].mxu0
      %v2832 = vadd.f32 0.0, %v2831
      %v2833 = vpop.f32.mrb[0].mxu0
      %2834 = vmatprep.mubr.bf16.mxu0 0
      %2835 = vmatmul.mubr.bf16.gmra.mrb[0].mxu0 %v1620
      %v2836 = vpop.f32.mrb[0].mxu0
      %v2837 = vadd.f32 0.0, %v2836
      %v2838 = vpop.f32.mrb[0].mxu0
      %v2839 = vpop.f32.mrb[0].mxu0
      %v2840 = vadd.f32 0.0, %v2839
      %v2841 = vpop.f32.mrb[0].mxu0
      %2842 = vmatprep.mubr.bf16.mxu0 0
      %2843 = vmatmul.mubr.bf16.gmra.mrb[0].mxu0 %v1623
      %v2844 = vpop.f32.mrb[0].mxu0
      %v2845 = vadd.f32 0.0, %v2844
      %v2846 = vpop.f32.mrb[0].mxu0
      %v2847 = vpop.f32.mrb[0].mxu0
      %v2848 = vadd.f32 0.0, %v2847
      %v2849 = vpop.f32.mrb[0].mxu0
      %2850 = vmatprep.mubr.bf16.mxu0 0
      %2851 = vmatmul.mubr.bf16.gmra.mrb[0].mxu0 %v1626
      %v2852 = vpop.f32.mrb[0].mxu0
      %v2853 = vadd.f32 0.0, %v2852
      %v2854 = vpop.f32.mrb[0].mxu0
      %v2855 = vpop.f32.mrb[0].mxu0
      %v2856 = vadd.f32 0.0, %v2855
      %v2857 = vpop.f32.mrb[0].mxu0
      %2858 = vmatprep.mubr.bf16.mxu0 0
      %2859 = vmatmul.mubr.bf16.gmra.mrb[0].mxu0 %v1629
      %v2860 = vpop.f32.mrb[0].mxu0
      %v2861 = vadd.f32 0.0, %v2860
      %v2862 = vpop.f32.mrb[0].mxu0
      %v2863 = vpop.f32.mrb[0].mxu0
      %v2864 = vadd.f32 0.0, %v2863
      %v2865 = vpop.f32.mrb[0].mxu0
      %2866 = vmatprep.mubr.bf16.mxu0 0
      %2867 = vmatmul.mubr.bf16.gmra.mrb[0].mxu0 %v1632
      %v2868 = vpop.f32.mrb[0].mxu0
      %v2869 = vadd.f32 0.0, %v2868
      %v2870 = vpop.f32.mrb[0].mxu0
      %v2871 = vpop.f32.mrb[0].mxu0
      %v2872 = vadd.f32 0.0, %v2871
      %v2873 = vpop.f32.mrb[0].mxu0
      %2874 = vmatprep.mubr.bf16.mxu0 0
      %2875 = vmatmul.mubr.bf16.gmra.mrb[0].mxu0 %v1635
      %v2876 = vpop.f32.mrb[0].mxu0
      %v2877 = vadd.f32 0.0, %v2876
      %v2878 = vpop.f32.mrb[0].mxu0
      %v2879 = vpop.f32.mrb[0].mxu0
      %v2880 = vadd.f32 0.0, %v2879
      %v2881 = vpop.f32.mrb[0].mxu0
      %2882 = vmatprep.mubr.bf16.mxu0 0
      %2883 = vmatmul.mubr.bf16.gmra.mrb[0].mxu0 %v1638
      %v2884 = vpop.f32.mrb[0].mxu0
      %v2885 = vadd.f32 0.0, %v2884
      %v2886 = vpop.f32.mrb[0].mxu0
      %v2887 = vpop.f32.mrb[0].mxu0
      %v2888 = vadd.f32 0.0, %v2887
      %v2889 = vpop.f32.mrb[0].mxu0
      %2890 = vmatprep.mubr.bf16.mxu0 0
      %2891 = vmatmul.mubr.bf16.gmra.mrb[0].mxu0 %v1641
      %v2892 = vpop.f32.mrb[0].mxu0
      %v2893 = vadd.f32 0.0, %v2892
      %v2894 = vpop.f32.mrb[0].mxu0
      %v2895 = vpop.f32.mrb[0].mxu0
      %v2896 = vadd.f32 0.0, %v2895
      %v2897 = vpop.f32.mrb[0].mxu0
      %2898 = vmatprep.mubr.bf16.mxu0 0
      %2899 = vmatmul.mubr.bf16.gmra.mrb[0].mxu0 %v1644
      %v2900 = vpop.f32.mrb[0].mxu0
      %v2901 = vadd.f32 0.0, %v2900
      %v2902 = vpop.f32.mrb[0].mxu0
      %v2903 = vpop.f32.mrb[0].mxu0
      %v2904 = vadd.f32 0.0, %v2903
      %v2905 = vpop.f32.mrb[0].mxu0
      %2906 = vmatprep.mubr.bf16.mxu0 0
      %2907 = vmatmul.mubr.bf16.gmra.mrb[0].mxu0 %v1647
      %v2908 = vpop.f32.mrb[0].mxu0
      %v2909 = vadd.f32 0.0, %v2908
      %v2910 = vpop.f32.mrb[0].mxu0
      %v2911 = vpop.f32.mrb[0].mxu0
      %v2912 = vadd.f32 0.0, %v2911
      %v2913 = vpop.f32.mrb[0].mxu0
      %2914 = vmatprep.mubr.bf16.mxu0 0
      %2915 = vmatmul.mubr.bf16.gmra.mrb[0].mxu0 %v1650
      %v2916 = vpop.f32.mrb[0].mxu0
      %v2917 = vadd.f32 0.0, %v2916
      %v2918 = vpop.f32.mrb[0].mxu0
      %v2919 = vpop.f32.mrb[0].mxu0
      %v2920 = vadd.f32 0.0, %v2919
      %v2921 = vpop.f32.mrb[0].mxu0
      %2922 = vmatprep.mubr.bf16.mxu0 0
      %2923 = vmatmul.mubr.bf16.gmra.mrb[0].mxu0 %v1653
      %v2924 = vpop.f32.mrb[0].mxu0
      %v2925 = vadd.f32 0.0, %v2924
      %v2926 = vpop.f32.mrb[0].mxu0
      %v2927 = vpop.f32.mrb[0].mxu0
      %v2928 = vadd.f32 0.0, %v2927
      %v2929 = vpop.f32.mrb[0].mxu0
      %2930 = vmatprep.mubr.bf16.mxu0 0
      %2931 = vmatmul.mubr.bf16.gmra.mrb[0].mxu0 %v2773
      %v2932 = vpop.f32.mrb[0].mxu0
      %v2933 = vadd.f32 0.0, %v2932
      %v2934 = vpop.f32.mrb[0].mxu0
      %v2935 = vpop.f32.mrb[0].mxu0
      %v2936 = vadd.f32 0.0, %v2935
      %v2937 = vpop.f32.mrb[0].mxu0
      %2938 = vdwg.mxu0
      %v2939 = vadd.f32 %v2711, %v2813
      %v2940 = vadd.f32 %v2712, %v2816
      %v2941 = vadd.f32 %v2713, %v2821
      %v2942 = vadd.f32 %v2714, %v2824
      %v2943 = vadd.f32 %v2715, %v2829
      %v2944 = vadd.f32 %v2716, %v2832
      %v2945 = vadd.f32 %v2717, %v2837
      %v2946 = vadd.f32 %v2718, %v2840
      %v2947 = vadd.f32 %v2719, %v2845
      %v2948 = vadd.f32 %v2720, %v2848
      %v2949 = vadd.f32 %v2721, %v2853
      %v2950 = vadd.f32 %v2722, %v2856
      %v2951 = vadd.f32 %v2723, %v2861
      %v2952 = vadd.f32 %v2724, %v2864
      %v2953 = vadd.f32 %v2725, %v2869
      %v2954 = vadd.f32 %v2726, %v2872
      %v2955 = vadd.f32 %v2727, %v2877
      %v2956 = vadd.f32 %v2728, %v2880
      %v2957 = vadd.f32 %v2729, %v2885
      %v2958 = vadd.f32 %v2730, %v2888
      %v2959 = vadd.f32 %v2731, %v2893
      %v2960 = vadd.f32 %v2732, %v2896
      %v2961 = vadd.f32 %v2733, %v2901
      %v2962 = vadd.f32 %v2734, %v2904
      %v2963 = vadd.f32 %v2735, %v2909
      %v2964 = vadd.f32 %v2736, %v2912
      %v2965 = vadd.f32 %v2737, %v2917
      %v2966 = vadd.f32 %v2738, %v2920
      %v2967 = vadd.f32 %v2739, %v2925
      %v2968 = vadd.f32 %v2740, %v2928
      %v2969 = vadd.f32 %v2741, %v2933
      %v2970 = vadd.f32 %v2742, %v2936
      %v2972 = vrot.slane %v1162, 5
      %v2973 = vrot.slane %v2972, 4
      %v2974 = vrot.slane %v1163, 5
      %v2975 = vsel %vm2130, %v2973, %v2974
      %v2976 = vrot.slane %v2974, 4
      %v2977 = vrot.slane %v1164, 5
      %v2978 = vsel %vm2130, %v2976, %v2977
      %s2979 = scalar_lea.vmem %s1, 20
      %v2980 = vld [vmem:[%s2979] sm:$0xf]
      %v2981 = vunpack.c.l.b16 %v2975
      %v2982 = vunpack.c.l.b16 %v2978
      %v2983 = vpack.c.b16 %v2982, %v2981
      %v2985 = vsel %vm1606, %v2983, 0
      %v2988 = vsel %vm1655, %v2980, 0
      %2990 = vmatprep.subr.bf16.mxu0 0
      %2991 = vmatpush1.bf16.msra.mxu0 %v2988
      %2992 = vmatprep.subr.bf16.mxu0 0
      %2993 = vmatpush1.bf16.msra.mxu0 0
      %2994 = vmatprep.subr.bf16.mxu0 0
      %2995 = vmatpush1.bf16.msra.mxu0 0
      %2996 = vmatprep.subr.bf16.mxu0 0
      %2997 = vmatpush1.bf16.msra.mxu0 0
      %2998 = vmatprep.subr.bf16.mxu0 0
      %2999 = vmatpush1.bf16.msra.mxu0 0
      %3000 = vmatprep.subr.bf16.mxu0 0
      %3001 = vmatpush1.bf16.msra.mxu0 0
      %3002 = vmatprep.subr.bf16.mxu0 0
      %3003 = vmatpush1.bf16.msra.mxu0 0
      %3004 = vmatprep.subr.bf16.mxu0 0
      %3005 = vmatpush1.bf16.msra.mxu0 0
      %3006 = vmatprep.subr.bf16.mxu0 0
      %3007 = vmatpush1.bf16.msra.mxu0 0
      %3008 = vmatprep.subr.bf16.mxu0 0
      %3009 = vmatpush1.bf16.msra.mxu0 0
      %3010 = vmatprep.subr.bf16.mxu0 0
      %3011 = vmatpush1.bf16.msra.mxu0 0
      %3012 = vmatprep.subr.bf16.mxu0 0
      %3013 = vmatpush1.bf16.msra.mxu0 0
      %3014 = vmatprep.subr.bf16.mxu0 0
      %3015 = vmatpush1.bf16.msra.mxu0 0
      %3016 = vmatprep.subr.bf16.mxu0 0
      %3017 = vmatpush1.bf16.msra.mxu0 0
      %3018 = vmatprep.subr.bf16.mxu0 0
      %3019 = vmatpush1.bf16.msra.mxu0 0
      %3020 = vmatprep.subr.bf16.mxu0 0
      %3021 = vmatpush1.bf16.msra.mxu0 0
      %3022 = vmatprep.mubr.bf16.mxu0 0
      %3023 = vmatmul.mubr.bf16.gmra.mrb[0].mxu0 %v2297
      %v3024 = vpop.f32.mrb[0].mxu0
      %v3025 = vadd.f32 0.0, %v3024
      %v3026 = vpop.f32.mrb[0].mxu0
      %v3027 = vpop.f32.mrb[0].mxu0
      %v3028 = vadd.f32 0.0, %v3027
      %v3029 = vpop.f32.mrb[0].mxu0
      %3030 = vmatprep.mubr.bf16.mxu0 0
      %3031 = vmatmul.mubr.bf16.gmra.mrb[0].mxu0 %v2300
      %v3032 = vpop.f32.mrb[0].mxu0
      %v3033 = vadd.f32 0.0, %v3032
      %v3034 = vpop.f32.mrb[0].mxu0
      %v3035 = vpop.f32.mrb[0].mxu0
      %v3036 = vadd.f32 0.0, %v3035
      %v3037 = vpop.f32.mrb[0].mxu0
      %3038 = vmatprep.mubr.bf16.mxu0 0
      %3039 = vmatmul.mubr.bf16.gmra.mrb[0].mxu0 %v2303
      %v3040 = vpop.f32.mrb[0].mxu0
      %v3041 = vadd.f32 0.0, %v3040
      %v3042 = vpop.f32.mrb[0].mxu0
      %v3043 = vpop.f32.mrb[0].mxu0
      %v3044 = vadd.f32 0.0, %v3043
      %v3045 = vpop.f32.mrb[0].mxu0
      %3046 = vmatprep.mubr.bf16.mxu0 0
      %3047 = vmatmul.mubr.bf16.gmra.mrb[0].mxu0 %v2306
      %v3048 = vpop.f32.mrb[0].mxu0
      %v3049 = vadd.f32 0.0, %v3048
      %v3050 = vpop.f32.mrb[0].mxu0
      %v3051 = vpop.f32.mrb[0].mxu0
      %v3052 = vadd.f32 0.0, %v3051
      %v3053 = vpop.f32.mrb[0].mxu0
      %3054 = vmatprep.mubr.bf16.mxu0 0
      %3055 = vmatmul.mubr.bf16.gmra.mrb[0].mxu0 %v2309
      %v3056 = vpop.f32.mrb[0].mxu0
      %v3057 = vadd.f32 0.0, %v3056
      %v3058 = vpop.f32.mrb[0].mxu0
      %v3059 = vpop.f32.mrb[0].mxu0
      %v3060 = vadd.f32 0.0, %v3059
      %v3061 = vpop.f32.mrb[0].mxu0
      %3062 = vmatprep.mubr.bf16.mxu0 0
      %3063 = vmatmul.mubr.bf16.gmra.mrb[0].mxu0 %v2312
      %v3064 = vpop.f32.mrb[0].mxu0
      %v3065 = vadd.f32 0.0, %v3064
      %v3066 = vpop.f32.mrb[0].mxu0
      %v3067 = vpop.f32.mrb[0].mxu0
      %v3068 = vadd.f32 0.0, %v3067
      %v3069 = vpop.f32.mrb[0].mxu0
      %3070 = vmatprep.mubr.bf16.mxu0 0
      %3071 = vmatmul.mubr.bf16.gmra.mrb[0].mxu0 %v2315
      %v3072 = vpop.f32.mrb[0].mxu0
      %v3073 = vadd.f32 0.0, %v3072
      %v3074 = vpop.f32.mrb[0].mxu0
      %v3075 = vpop.f32.mrb[0].mxu0
      %v3076 = vadd.f32 0.0, %v3075
      %v3077 = vpop.f32.mrb[0].mxu0
      %3078 = vmatprep.mubr.bf16.mxu0 0
      %3079 = vmatmul.mubr.bf16.gmra.mrb[0].mxu0 %v2318
      %v3080 = vpop.f32.mrb[0].mxu0
      %v3081 = vadd.f32 0.0, %v3080
      %v3082 = vpop.f32.mrb[0].mxu0
      %v3083 = vpop.f32.mrb[0].mxu0
      %v3084 = vadd.f32 0.0, %v3083
      %v3085 = vpop.f32.mrb[0].mxu0
      %3086 = vmatprep.mubr.bf16.mxu0 0
      %3087 = vmatmul.mubr.bf16.gmra.mrb[0].mxu0 %v2321
      %v3088 = vpop.f32.mrb[0].mxu0
      %v3089 = vadd.f32 0.0, %v3088
      %v3090 = vpop.f32.mrb[0].mxu0
      %v3091 = vpop.f32.mrb[0].mxu0
      %v3092 = vadd.f32 0.0, %v3091
      %v3093 = vpop.f32.mrb[0].mxu0
      %3094 = vmatprep.mubr.bf16.mxu0 0
      %3095 = vmatmul.mubr.bf16.gmra.mrb[0].mxu0 %v2324
      %v3096 = vpop.f32.mrb[0].mxu0
      %v3097 = vadd.f32 0.0, %v3096
      %v3098 = vpop.f32.mrb[0].mxu0
      %v3099 = vpop.f32.mrb[0].mxu0
      %v3100 = vadd.f32 0.0, %v3099
      %v3101 = vpop.f32.mrb[0].mxu0
      %3102 = vmatprep.mubr.bf16.mxu0 0
      %3103 = vmatmul.mubr.bf16.gmra.mrb[0].mxu0 %v2327
      %v3104 = vpop.f32.mrb[0].mxu0
      %v3105 = vadd.f32 0.0, %v3104
      %v3106 = vpop.f32.mrb[0].mxu0
      %v3107 = vpop.f32.mrb[0].mxu0
      %v3108 = vadd.f32 0.0, %v3107
      %v3109 = vpop.f32.mrb[0].mxu0
      %3110 = vmatprep.mubr.bf16.mxu0 0
      %3111 = vmatmul.mubr.bf16.gmra.mrb[0].mxu0 %v2330
      %v3112 = vpop.f32.mrb[0].mxu0
      %v3113 = vadd.f32 0.0, %v3112
      %v3114 = vpop.f32.mrb[0].mxu0
      %v3115 = vpop.f32.mrb[0].mxu0
      %v3116 = vadd.f32 0.0, %v3115
      %v3117 = vpop.f32.mrb[0].mxu0
      %3118 = vmatprep.mubr.bf16.mxu0 0
      %3119 = vmatmul.mubr.bf16.gmra.mrb[0].mxu0 %v2333
      %v3120 = vpop.f32.mrb[0].mxu0
      %v3121 = vadd.f32 0.0, %v3120
      %v3122 = vpop.f32.mrb[0].mxu0
      %v3123 = vpop.f32.mrb[0].mxu0
      %v3124 = vadd.f32 0.0, %v3123
      %v3125 = vpop.f32.mrb[0].mxu0
      %3126 = vmatprep.mubr.bf16.mxu0 0
      %3127 = vmatmul.mubr.bf16.gmra.mrb[0].mxu0 %v2336
      %v3128 = vpop.f32.mrb[0].mxu0
      %v3129 = vadd.f32 0.0, %v3128
      %v3130 = vpop.f32.mrb[0].mxu0
      %v3131 = vpop.f32.mrb[0].mxu0
      %v3132 = vadd.f32 0.0, %v3131
      %v3133 = vpop.f32.mrb[0].mxu0
      %3134 = vmatprep.mubr.bf16.mxu0 0
      %3135 = vmatmul.mubr.bf16.gmra.mrb[0].mxu0 %v2339
      %v3136 = vpop.f32.mrb[0].mxu0
      %v3137 = vadd.f32 0.0, %v3136
      %v3138 = vpop.f32.mrb[0].mxu0
      %v3139 = vpop.f32.mrb[0].mxu0
      %v3140 = vadd.f32 0.0, %v3139
      %v3141 = vpop.f32.mrb[0].mxu0
      %3142 = vmatprep.mubr.bf16.mxu0 0
      %3143 = vmatmul.mubr.bf16.gmra.mrb[0].mxu0 %v2985
      %v3144 = vpop.f32.mrb[0].mxu0
      %v3145 = vadd.f32 0.0, %v3144
      %v3146 = vpop.f32.mrb[0].mxu0
      %v3147 = vpop.f32.mrb[0].mxu0
      %v3148 = vadd.f32 0.0, %v3147
      %v3149 = vpop.f32.mrb[0].mxu0
      %3150 = vdwg.mxu0
      %v3151 = vadd.f32 %v2939, %v3025
      %v3152 = vadd.f32 %v2940, %v3028
      %v3153 = vadd.f32 %v2941, %v3033
      %v3154 = vadd.f32 %v2942, %v3036
      %v3155 = vadd.f32 %v2943, %v3041
      %v3156 = vadd.f32 %v2944, %v3044
      %v3157 = vadd.f32 %v2945, %v3049
      %v3158 = vadd.f32 %v2946, %v3052
      %v3159 = vadd.f32 %v2947, %v3057
      %v3160 = vadd.f32 %v2948, %v3060
      %v3161 = vadd.f32 %v2949, %v3065
      %v3162 = vadd.f32 %v2950, %v3068
      %v3163 = vadd.f32 %v2951, %v3073
      %v3164 = vadd.f32 %v2952, %v3076
      %v3165 = vadd.f32 %v2953, %v3081
      %v3166 = vadd.f32 %v2954, %v3084
      %v3167 = vadd.f32 %v2955, %v3089
      %v3168 = vadd.f32 %v2956, %v3092
      %v3169 = vadd.f32 %v2957, %v3097
      %v3170 = vadd.f32 %v2958, %v3100
      %v3171 = vadd.f32 %v2959, %v3105
      %v3172 = vadd.f32 %v2960, %v3108
      %v3173 = vadd.f32 %v2961, %v3113
      %v3174 = vadd.f32 %v2962, %v3116
      %v3175 = vadd.f32 %v2963, %v3121
      %v3176 = vadd.f32 %v2964, %v3124
      %v3177 = vadd.f32 %v2965, %v3129
      %v3178 = vadd.f32 %v2966, %v3132
      %v3179 = vadd.f32 %v2967, %v3137
      %v3180 = vadd.f32 %v2968, %v3140
      %v3181 = vadd.f32 %v2969, %v3145
      %v3182 = vadd.f32 %v2970, %v3148
      %s3183 = scalar_lea.vmem %s1, 24
      %v3184 = vld [vmem:[%s3183] sm:$0xf]
      %v3187 = vunpack.c.l.b16 %v1165
      %v3188 = vunpack.c.l.b16 %v1166
      %v3189 = vpack.c.b16 %v3188, %v3187
      %v3191 = vsel %vm1606, %v3189, 0
      %v3194 = vsel %vm1655, %v3184, 0
      %3196 = vmatprep.subr.bf16.mxu0 0
      %3197 = vmatpush1.bf16.msra.mxu0 %v3194
      %3198 = vmatprep.subr.bf16.mxu0 0
      %3199 = vmatpush1.bf16.msra.mxu0 0
      %3200 = vmatprep.subr.bf16.mxu0 0
      %3201 = vmatpush1.bf16.msra.mxu0 0
      %3202 = vmatprep.subr.bf16.mxu0 0
      %3203 = vmatpush1.bf16.msra.mxu0 0
      %3204 = vmatprep.subr.bf16.mxu0 0
      %3205 = vmatpush1.bf16.msra.mxu0 0
      %3206 = vmatprep.subr.bf16.mxu0 0
      %3207 = vmatpush1.bf16.msra.mxu0 0
      %3208 = vmatprep.subr.bf16.mxu0 0
      %3209 = vmatpush1.bf16.msra.mxu0 0
      %3210 = vmatprep.subr.bf16.mxu0 0
      %3211 = vmatpush1.bf16.msra.mxu0 0
      %3212 = vmatprep.subr.bf16.mxu0 0
      %3213 = vmatpush1.bf16.msra.mxu0 0
      %3214 = vmatprep.subr.bf16.mxu0 0
      %3215 = vmatpush1.bf16.msra.mxu0 0
      %3216 = vmatprep.subr.bf16.mxu0 0
      %3217 = vmatpush1.bf16.msra.mxu0 0
      %3218 = vmatprep.subr.bf16.mxu0 0
      %3219 = vmatpush1.bf16.msra.mxu0 0
      %3220 = vmatprep.subr.bf16.mxu0 0
      %3221 = vmatpush1.bf16.msra.mxu0 0
      %3222 = vmatprep.subr.bf16.mxu0 0
      %3223 = vmatpush1.bf16.msra.mxu0 0
      %3224 = vmatprep.subr.bf16.mxu0 0
      %3225 = vmatpush1.bf16.msra.mxu0 0
      %3226 = vmatprep.subr.bf16.mxu0 0
      %3227 = vmatpush1.bf16.msra.mxu0 0
      %3228 = vmatprep.mubr.bf16.mxu0 0
      %3229 = vmatmul.mubr.bf16.gmra.mrb[0].mxu0 %v1907
      %v3230 = vpop.f32.mrb[0].mxu0
      %v3231 = vadd.f32 0.0, %v3230
      %v3232 = vpop.f32.mrb[0].mxu0
      %v3233 = vpop.f32.mrb[0].mxu0
      %v3234 = vadd.f32 0.0, %v3233
      %v3235 = vpop.f32.mrb[0].mxu0
      %3236 = vmatprep.mubr.bf16.mxu0 0
      %3237 = vmatmul.mubr.bf16.gmra.mrb[0].mxu0 %v1910
      %v3238 = vpop.f32.mrb[0].mxu0
      %v3239 = vadd.f32 0.0, %v3238
      %v3240 = vpop.f32.mrb[0].mxu0
      %v3241 = vpop.f32.mrb[0].mxu0
      %v3242 = vadd.f32 0.0, %v3241
      %v3243 = vpop.f32.mrb[0].mxu0
      %3244 = vmatprep.mubr.bf16.mxu0 0
      %3245 = vmatmul.mubr.bf16.gmra.mrb[0].mxu0 %v1913
      %v3246 = vpop.f32.mrb[0].mxu0
      %v3247 = vadd.f32 0.0, %v3246
      %v3248 = vpop.f32.mrb[0].mxu0
      %v3249 = vpop.f32.mrb[0].mxu0
      %v3250 = vadd.f32 0.0, %v3249
      %v3251 = vpop.f32.mrb[0].mxu0
      %3252 = vmatprep.mubr.bf16.mxu0 0
      %3253 = vmatmul.mubr.bf16.gmra.mrb[0].mxu0 %v1916
      %v3254 = vpop.f32.mrb[0].mxu0
      %v3255 = vadd.f32 0.0, %v3254
      %v3256 = vpop.f32.mrb[0].mxu0
      %v3257 = vpop.f32.mrb[0].mxu0
      %v3258 = vadd.f32 0.0, %v3257
      %v3259 = vpop.f32.mrb[0].mxu0
      %3260 = vmatprep.mubr.bf16.mxu0 0
      %3261 = vmatmul.mubr.bf16.gmra.mrb[0].mxu0 %v1919
      %v3262 = vpop.f32.mrb[0].mxu0
      %v3263 = vadd.f32 0.0, %v3262
      %v3264 = vpop.f32.mrb[0].mxu0
      %v3265 = vpop.f32.mrb[0].mxu0
      %v3266 = vadd.f32 0.0, %v3265
      %v3267 = vpop.f32.mrb[0].mxu0
      %3268 = vmatprep.mubr.bf16.mxu0 0
      %3269 = vmatmul.mubr.bf16.gmra.mrb[0].mxu0 %v1922
      %v3270 = vpop.f32.mrb[0].mxu0
      %v3271 = vadd.f32 0.0, %v3270
      %v3272 = vpop.f32.mrb[0].mxu0
      %v3273 = vpop.f32.mrb[0].mxu0
      %v3274 = vadd.f32 0.0, %v3273
      %v3275 = vpop.f32.mrb[0].mxu0
      %3276 = vmatprep.mubr.bf16.mxu0 0
      %3277 = vmatmul.mubr.bf16.gmra.mrb[0].mxu0 %v1925
      %v3278 = vpop.f32.mrb[0].mxu0
      %v3279 = vadd.f32 0.0, %v3278
      %v3280 = vpop.f32.mrb[0].mxu0
      %v3281 = vpop.f32.mrb[0].mxu0
      %v3282 = vadd.f32 0.0, %v3281
      %v3283 = vpop.f32.mrb[0].mxu0
      %3284 = vmatprep.mubr.bf16.mxu0 0
      %3285 = vmatmul.mubr.bf16.gmra.mrb[0].mxu0 %v1928
      %v3286 = vpop.f32.mrb[0].mxu0
      %v3287 = vadd.f32 0.0, %v3286
      %v3288 = vpop.f32.mrb[0].mxu0
      %v3289 = vpop.f32.mrb[0].mxu0
      %v3290 = vadd.f32 0.0, %v3289
      %v3291 = vpop.f32.mrb[0].mxu0
      %3292 = vmatprep.mubr.bf16.mxu0 0
      %3293 = vmatmul.mubr.bf16.gmra.mrb[0].mxu0 %v1931
      %v3294 = vpop.f32.mrb[0].mxu0
      %v3295 = vadd.f32 0.0, %v3294
      %v3296 = vpop.f32.mrb[0].mxu0
      %v3297 = vpop.f32.mrb[0].mxu0
      %v3298 = vadd.f32 0.0, %v3297
      %v3299 = vpop.f32.mrb[0].mxu0
      %3300 = vmatprep.mubr.bf16.mxu0 0
      %3301 = vmatmul.mubr.bf16.gmra.mrb[0].mxu0 %v1934
      %v3302 = vpop.f32.mrb[0].mxu0
      %v3303 = vadd.f32 0.0, %v3302
      %v3304 = vpop.f32.mrb[0].mxu0
      %v3305 = vpop.f32.mrb[0].mxu0
      %v3306 = vadd.f32 0.0, %v3305
      %v3307 = vpop.f32.mrb[0].mxu0
      %3308 = vmatprep.mubr.bf16.mxu0 0
      %3309 = vmatmul.mubr.bf16.gmra.mrb[0].mxu0 %v1937
      %v3310 = vpop.f32.mrb[0].mxu0
      %v3311 = vadd.f32 0.0, %v3310
      %v3312 = vpop.f32.mrb[0].mxu0
      %v3313 = vpop.f32.mrb[0].mxu0
      %v3314 = vadd.f32 0.0, %v3313
      %v3315 = vpop.f32.mrb[0].mxu0
      %3316 = vmatprep.mubr.bf16.mxu0 0
      %3317 = vmatmul.mubr.bf16.gmra.mrb[0].mxu0 %v1940
      %v3318 = vpop.f32.mrb[0].mxu0
      %v3319 = vadd.f32 0.0, %v3318
      %v3320 = vpop.f32.mrb[0].mxu0
      %v3321 = vpop.f32.mrb[0].mxu0
      %v3322 = vadd.f32 0.0, %v3321
      %v3323 = vpop.f32.mrb[0].mxu0
      %3324 = vmatprep.mubr.bf16.mxu0 0
      %3325 = vmatmul.mubr.bf16.gmra.mrb[0].mxu0 %v1943
      %v3326 = vpop.f32.mrb[0].mxu0
      %v3327 = vadd.f32 0.0, %v3326
      %v3328 = vpop.f32.mrb[0].mxu0
      %v3329 = vpop.f32.mrb[0].mxu0
      %v3330 = vadd.f32 0.0, %v3329
      %v3331 = vpop.f32.mrb[0].mxu0
      %3332 = vmatprep.mubr.bf16.mxu0 0
      %3333 = vmatmul.mubr.bf16.gmra.mrb[0].mxu0 %v1946
      %v3334 = vpop.f32.mrb[0].mxu0
      %v3335 = vadd.f32 0.0, %v3334
      %v3336 = vpop.f32.mrb[0].mxu0
      %v3337 = vpop.f32.mrb[0].mxu0
      %v3338 = vadd.f32 0.0, %v3337
      %v3339 = vpop.f32.mrb[0].mxu0
      %3340 = vmatprep.mubr.bf16.mxu0 0
      %3341 = vmatmul.mubr.bf16.gmra.mrb[0].mxu0 %v2545
      %v3342 = vpop.f32.mrb[0].mxu0
      %v3343 = vadd.f32 0.0, %v3342
      %v3344 = vpop.f32.mrb[0].mxu0
      %v3345 = vpop.f32.mrb[0].mxu0
      %v3346 = vadd.f32 0.0, %v3345
      %v3347 = vpop.f32.mrb[0].mxu0
      %3348 = vmatprep.mubr.bf16.mxu0 0
      %3349 = vmatmul.mubr.bf16.gmra.mrb[0].mxu0 %v3191
      %v3350 = vpop.f32.mrb[0].mxu0
      %v3351 = vadd.f32 0.0, %v3350
      %v3352 = vpop.f32.mrb[0].mxu0
      %v3353 = vpop.f32.mrb[0].mxu0
      %v3354 = vadd.f32 0.0, %v3353
      %v3355 = vpop.f32.mrb[0].mxu0
      %3356 = vdwg.mxu0
      %v3357 = vadd.f32 %v3151, %v3231
      %v3358 = vadd.f32 %v3152, %v3234
      %v3359 = vadd.f32 %v3153, %v3239
      %v3360 = vadd.f32 %v3154, %v3242
      %v3361 = vadd.f32 %v3155, %v3247
      %v3362 = vadd.f32 %v3156, %v3250
      %v3363 = vadd.f32 %v3157, %v3255
      %v3364 = vadd.f32 %v3158, %v3258
      %v3365 = vadd.f32 %v3159, %v3263
      %v3366 = vadd.f32 %v3160, %v3266
      %v3367 = vadd.f32 %v3161, %v3271
      %v3368 = vadd.f32 %v3162, %v3274
      %v3369 = vadd.f32 %v3163, %v3279
      %v3370 = vadd.f32 %v3164, %v3282
      %v3371 = vadd.f32 %v3165, %v3287
      %v3372 = vadd.f32 %v3166, %v3290
      %v3373 = vadd.f32 %v3167, %v3295
      %v3374 = vadd.f32 %v3168, %v3298
      %v3375 = vadd.f32 %v3169, %v3303
      %v3376 = vadd.f32 %v3170, %v3306
      %v3377 = vadd.f32 %v3171, %v3311
      %v3378 = vadd.f32 %v3172, %v3314
      %v3379 = vadd.f32 %v3173, %v3319
      %v3380 = vadd.f32 %v3174, %v3322
      %v3381 = vadd.f32 %v3175, %v3327
      %v3382 = vadd.f32 %v3176, %v3330
      %v3383 = vadd.f32 %v3177, %v3335
      %v3384 = vadd.f32 %v3178, %v3338
      %v3385 = vadd.f32 %v3179, %v3343
      %v3386 = vadd.f32 %v3180, %v3346
      %v3387 = vadd.f32 %v3181, %v3351
      %v3388 = vadd.f32 %v3182, %v3354
      %v3390 = vshrl.u32 %v1165, 16
      %v3392 = vrot.slane %v3390, 4
      %v3393 = vshll.u32 %v1165, 16
      %v3395 = vrot.slane %v3393, 5
      %v3396 = vor.u32 %v3392, %v3395
      %v3397 = vrot.slane %v3396, 4
      %v3399 = vshll.u32 %v1166, 16
      %v3401 = vrot.slane %v3399, 5
      %v3402 = vsel %vm1171, %v3397, %v3401
      %v3403 = vshrl.u32 %v1166, 16
      %v3405 = vrot.slane %v3403, 4
      %v3406 = vor.u32 %v3405, %v3401
      %v3407 = vrot.slane %v3406, 4
      %v3409 = vshll.u32 %v1167, 16
      %v3411 = vrot.slane %v3409, 5
      %v3412 = vsel %vm1171, %v3407, %v3411
      %s3413 = scalar_lea.vmem %s1, 28
      %v3414 = vld [vmem:[%s3413] sm:$0xf]
      %v3415 = vunpack.c.l.b16 %v3402
      %v3416 = vunpack.c.l.b16 %v3412
      %v3417 = vpack.c.b16 %v3416, %v3415
      %v3419 = vsel %vm1606, %v3417, 0
      %v3422 = vsel %vm1655, %v3414, 0
      %3424 = vmatprep.subr.bf16.mxu0 0
      %3425 = vmatpush1.bf16.msra.mxu0 %v3422
      %3426 = vmatprep.subr.bf16.mxu0 0
      %3427 = vmatpush1.bf16.msra.mxu0 0
      %3428 = vmatprep.subr.bf16.mxu0 0
      %3429 = vmatpush1.bf16.msra.mxu0 0
      %3430 = vmatprep.subr.bf16.mxu0 0
      %3431 = vmatpush1.bf16.msra.mxu0 0
      %3432 = vmatprep.subr.bf16.mxu0 0
      %3433 = vmatpush1.bf16.msra.mxu0 0
      %3434 = vmatprep.subr.bf16.mxu0 0
      %3435 = vmatpush1.bf16.msra.mxu0 0
      %3436 = vmatprep.subr.bf16.mxu0 0
      %3437 = vmatpush1.bf16.msra.mxu0 0
      %3438 = vmatprep.subr.bf16.mxu0 0
      %3439 = vmatpush1.bf16.msra.mxu0 0
      %3440 = vmatprep.subr.bf16.mxu0 0
      %3441 = vmatpush1.bf16.msra.mxu0 0
      %3442 = vmatprep.subr.bf16.mxu0 0
      %3443 = vmatpush1.bf16.msra.mxu0 0
      %3444 = vmatprep.subr.bf16.mxu0 0
      %3445 = vmatpush1.bf16.msra.mxu0 0
      %3446 = vmatprep.subr.bf16.mxu0 0
      %3447 = vmatpush1.bf16.msra.mxu0 0
      %3448 = vmatprep.subr.bf16.mxu0 0
      %3449 = vmatpush1.bf16.msra.mxu0 0
      %3450 = vmatprep.subr.bf16.mxu0 0
      %3451 = vmatpush1.bf16.msra.mxu0 0
      %3452 = vmatprep.subr.bf16.mxu0 0
      %3453 = vmatpush1.bf16.msra.mxu0 0
      %3454 = vmatprep.subr.bf16.mxu0 0
      %3455 = vmatpush1.bf16.msra.mxu0 0
      %3456 = vmatprep.mubr.bf16.mxu0 0
      %3457 = vmatmul.mubr.bf16.gmra.mrb[0].mxu0 %v1614
      %v3458 = vpop.f32.mrb[0].mxu0
      %v3459 = vadd.f32 0.0, %v3458
      %v3460 = vpop.f32.mrb[0].mxu0
      %v3461 = vpop.f32.mrb[0].mxu0
      %v3462 = vadd.f32 0.0, %v3461
      %v3463 = vpop.f32.mrb[0].mxu0
      %3464 = vmatprep.mubr.bf16.mxu0 0
      %3465 = vmatmul.mubr.bf16.gmra.mrb[0].mxu0 %v1617
      %v3466 = vpop.f32.mrb[0].mxu0
      %v3467 = vadd.f32 0.0, %v3466
      %v3468 = vpop.f32.mrb[0].mxu0
      %v3469 = vpop.f32.mrb[0].mxu0
      %v3470 = vadd.f32 0.0, %v3469
      %v3471 = vpop.f32.mrb[0].mxu0
      %3472 = vmatprep.mubr.bf16.mxu0 0
      %3473 = vmatmul.mubr.bf16.gmra.mrb[0].mxu0 %v1620
      %v3474 = vpop.f32.mrb[0].mxu0
      %v3475 = vadd.f32 0.0, %v3474
      %v3476 = vpop.f32.mrb[0].mxu0
      %v3477 = vpop.f32.mrb[0].mxu0
      %v3478 = vadd.f32 0.0, %v3477
      %v3479 = vpop.f32.mrb[0].mxu0
      %3480 = vmatprep.mubr.bf16.mxu0 0
      %3481 = vmatmul.mubr.bf16.gmra.mrb[0].mxu0 %v1623
      %v3482 = vpop.f32.mrb[0].mxu0
      %v3483 = vadd.f32 0.0, %v3482
      %v3484 = vpop.f32.mrb[0].mxu0
      %v3485 = vpop.f32.mrb[0].mxu0
      %v3486 = vadd.f32 0.0, %v3485
      %v3487 = vpop.f32.mrb[0].mxu0
      %3488 = vmatprep.mubr.bf16.mxu0 0
      %3489 = vmatmul.mubr.bf16.gmra.mrb[0].mxu0 %v1626
      %v3490 = vpop.f32.mrb[0].mxu0
      %v3491 = vadd.f32 0.0, %v3490
      %v3492 = vpop.f32.mrb[0].mxu0
      %v3493 = vpop.f32.mrb[0].mxu0
      %v3494 = vadd.f32 0.0, %v3493
      %v3495 = vpop.f32.mrb[0].mxu0
      %3496 = vmatprep.mubr.bf16.mxu0 0
      %3497 = vmatmul.mubr.bf16.gmra.mrb[0].mxu0 %v1629
      %v3498 = vpop.f32.mrb[0].mxu0
      %v3499 = vadd.f32 0.0, %v3498
      %v3500 = vpop.f32.mrb[0].mxu0
      %v3501 = vpop.f32.mrb[0].mxu0
      %v3502 = vadd.f32 0.0, %v3501
      %v3503 = vpop.f32.mrb[0].mxu0
      %3504 = vmatprep.mubr.bf16.mxu0 0
      %3505 = vmatmul.mubr.bf16.gmra.mrb[0].mxu0 %v1632
      %v3506 = vpop.f32.mrb[0].mxu0
      %v3507 = vadd.f32 0.0, %v3506
      %v3508 = vpop.f32.mrb[0].mxu0
      %v3509 = vpop.f32.mrb[0].mxu0
      %v3510 = vadd.f32 0.0, %v3509
      %v3511 = vpop.f32.mrb[0].mxu0
      %3512 = vmatprep.mubr.bf16.mxu0 0
      %3513 = vmatmul.mubr.bf16.gmra.mrb[0].mxu0 %v1635
      %v3514 = vpop.f32.mrb[0].mxu0
      %v3515 = vadd.f32 0.0, %v3514
      %v3516 = vpop.f32.mrb[0].mxu0
      %v3517 = vpop.f32.mrb[0].mxu0
      %v3518 = vadd.f32 0.0, %v3517
      %v3519 = vpop.f32.mrb[0].mxu0
      %3520 = vmatprep.mubr.bf16.mxu0 0
      %3521 = vmatmul.mubr.bf16.gmra.mrb[0].mxu0 %v1638
      %v3522 = vpop.f32.mrb[0].mxu0
      %v3523 = vadd.f32 0.0, %v3522
      %v3524 = vpop.f32.mrb[0].mxu0
      %v3525 = vpop.f32.mrb[0].mxu0
      %v3526 = vadd.f32 0.0, %v3525
      %v3527 = vpop.f32.mrb[0].mxu0
      %3528 = vmatprep.mubr.bf16.mxu0 0
      %3529 = vmatmul.mubr.bf16.gmra.mrb[0].mxu0 %v1641
      %v3530 = vpop.f32.mrb[0].mxu0
      %v3531 = vadd.f32 0.0, %v3530
      %v3532 = vpop.f32.mrb[0].mxu0
      %v3533 = vpop.f32.mrb[0].mxu0
      %v3534 = vadd.f32 0.0, %v3533
      %v3535 = vpop.f32.mrb[0].mxu0
      %3536 = vmatprep.mubr.bf16.mxu0 0
      %3537 = vmatmul.mubr.bf16.gmra.mrb[0].mxu0 %v1644
      %v3538 = vpop.f32.mrb[0].mxu0
      %v3539 = vadd.f32 0.0, %v3538
      %v3540 = vpop.f32.mrb[0].mxu0
      %v3541 = vpop.f32.mrb[0].mxu0
      %v3542 = vadd.f32 0.0, %v3541
      %v3543 = vpop.f32.mrb[0].mxu0
      %3544 = vmatprep.mubr.bf16.mxu0 0
      %3545 = vmatmul.mubr.bf16.gmra.mrb[0].mxu0 %v1647
      %v3546 = vpop.f32.mrb[0].mxu0
      %v3547 = vadd.f32 0.0, %v3546
      %v3548 = vpop.f32.mrb[0].mxu0
      %v3549 = vpop.f32.mrb[0].mxu0
      %v3550 = vadd.f32 0.0, %v3549
      %v3551 = vpop.f32.mrb[0].mxu0
      %3552 = vmatprep.mubr.bf16.mxu0 0
      %3553 = vmatmul.mubr.bf16.gmra.mrb[0].mxu0 %v1650
      %v3554 = vpop.f32.mrb[0].mxu0
      %v3555 = vadd.f32 0.0, %v3554
      %v3556 = vpop.f32.mrb[0].mxu0
      %v3557 = vpop.f32.mrb[0].mxu0
      %v3558 = vadd.f32 0.0, %v3557
      %v3559 = vpop.f32.mrb[0].mxu0
      %3560 = vmatprep.mubr.bf16.mxu0 0
      %3561 = vmatmul.mubr.bf16.gmra.mrb[0].mxu0 %v1653
      %v3562 = vpop.f32.mrb[0].mxu0
      %v3563 = vadd.f32 0.0, %v3562
      %v3564 = vpop.f32.mrb[0].mxu0
      %v3565 = vpop.f32.mrb[0].mxu0
      %v3566 = vadd.f32 0.0, %v3565
      %v3567 = vpop.f32.mrb[0].mxu0
      %3568 = vmatprep.mubr.bf16.mxu0 0
      %3569 = vmatmul.mubr.bf16.gmra.mrb[0].mxu0 %v2773
      %v3570 = vpop.f32.mrb[0].mxu0
      %v3571 = vadd.f32 0.0, %v3570
      %v3572 = vpop.f32.mrb[0].mxu0
      %v3573 = vpop.f32.mrb[0].mxu0
      %v3574 = vadd.f32 0.0, %v3573
      %v3575 = vpop.f32.mrb[0].mxu0
      %3576 = vmatprep.mubr.bf16.mxu0 0
      %3577 = vmatmul.mubr.bf16.gmra.mrb[0].mxu0 %v3419
      %v3578 = vpop.f32.mrb[0].mxu0
      %v3579 = vadd.f32 0.0, %v3578
      %v3580 = vpop.f32.mrb[0].mxu0
      %v3581 = vpop.f32.mrb[0].mxu0
      %v3582 = vadd.f32 0.0, %v3581
      %v3583 = vpop.f32.mrb[0].mxu0
      %3584 = vdwg.mxu0
      %v3585 = vadd.f32 %v3357, %v3459
      %v3586 = vadd.f32 %v3358, %v3462
      %v3587 = vadd.f32 %v3359, %v3467
      %v3588 = vadd.f32 %v3360, %v3470
      %v3589 = vadd.f32 %v3361, %v3475
      %v3590 = vadd.f32 %v3362, %v3478
      %v3591 = vadd.f32 %v3363, %v3483
      %v3592 = vadd.f32 %v3364, %v3486
      %v3593 = vadd.f32 %v3365, %v3491
      %v3594 = vadd.f32 %v3366, %v3494
      %v3595 = vadd.f32 %v3367, %v3499
      %v3596 = vadd.f32 %v3368, %v3502
      %v3597 = vadd.f32 %v3369, %v3507
      %v3598 = vadd.f32 %v3370, %v3510
      %v3599 = vadd.f32 %v3371, %v3515
      %v3600 = vadd.f32 %v3372, %v3518
      %v3601 = vadd.f32 %v3373, %v3523
      %v3602 = vadd.f32 %v3374, %v3526
      %v3603 = vadd.f32 %v3375, %v3531
      %v3604 = vadd.f32 %v3376, %v3534
      %v3605 = vadd.f32 %v3377, %v3539
      %v3606 = vadd.f32 %v3378, %v3542
      %v3607 = vadd.f32 %v3379, %v3547
      %v3608 = vadd.f32 %v3380, %v3550
      %v3609 = vadd.f32 %v3381, %v3555
      %v3610 = vadd.f32 %v3382, %v3558
      %v3611 = vadd.f32 %v3383, %v3563
      %v3612 = vadd.f32 %v3384, %v3566
      %v3613 = vadd.f32 %v3385, %v3571
      %v3614 = vadd.f32 %v3386, %v3574
      %v3615 = vadd.f32 %v3387, %v3579
      %v3616 = vadd.f32 %v3388, %v3582
      %v3618 = vrot.slane %v1165, 5
      %v3619 = vrot.slane %v3618, 4
      %v3620 = vrot.slane %v1166, 5
      %v3621 = vsel %vm2130, %v3619, %v3620
      %v3622 = vrot.slane %v3620, 4
      %v3623 = vrot.slane %v1167, 5
      %v3624 = vsel %vm2130, %v3622, %v3623
      %s3625 = scalar_lea.vmem %s1, 32
      %v3626 = vld [vmem:[%s3625] sm:$0xf]
      %v3627 = vunpack.c.l.b16 %v3621
      %v3628 = vunpack.c.l.b16 %v3624
      %v3629 = vpack.c.b16 %v3628, %v3627
      %v3631 = vsel %vm1606, %v3629, 0
      %v3634 = vsel %vm1655, %v3626, 0
      %3636 = vmatprep.subr.bf16.mxu0 0
      %3637 = vmatpush1.bf16.msra.mxu0 %v3634
      %3638 = vmatprep.subr.bf16.mxu0 0
      %3639 = vmatpush1.bf16.msra.mxu0 0
      %3640 = vmatprep.subr.bf16.mxu0 0
      %3641 = vmatpush1.bf16.msra.mxu0 0
      %3642 = vmatprep.subr.bf16.mxu0 0
      %3643 = vmatpush1.bf16.msra.mxu0 0
      %3644 = vmatprep.subr.bf16.mxu0 0
      %3645 = vmatpush1.bf16.msra.mxu0 0
      %3646 = vmatprep.subr.bf16.mxu0 0
      %3647 = vmatpush1.bf16.msra.mxu0 0
      %3648 = vmatprep.subr.bf16.mxu0 0
      %3649 = vmatpush1.bf16.msra.mxu0 0
      %3650 = vmatprep.subr.bf16.mxu0 0
      %3651 = vmatpush1.bf16.msra.mxu0 0
      %3652 = vmatprep.subr.bf16.mxu0 0
      %3653 = vmatpush1.bf16.msra.mxu0 0
      %3654 = vmatprep.subr.bf16.mxu0 0
      %3655 = vmatpush1.bf16.msra.mxu0 0
      %3656 = vmatprep.subr.bf16.mxu0 0
      %3657 = vmatpush1.bf16.msra.mxu0 0
      %3658 = vmatprep.subr.bf16.mxu0 0
      %3659 = vmatpush1.bf16.msra.mxu0 0
      %3660 = vmatprep.subr.bf16.mxu0 0
      %3661 = vmatpush1.bf16.msra.mxu0 0
      %3662 = vmatprep.subr.bf16.mxu0 0
      %3663 = vmatpush1.bf16.msra.mxu0 0
      %3664 = vmatprep.subr.bf16.mxu0 0
      %3665 = vmatpush1.bf16.msra.mxu0 0
      %3666 = vmatprep.subr.bf16.mxu0 0
      %3667 = vmatpush1.bf16.msra.mxu0 0
      %3668 = vmatprep.mubr.bf16.mxu0 0
      %3669 = vmatmul.mubr.bf16.gmra.mrb[0].mxu0 %v2300
      %v3670 = vpop.f32.mrb[0].mxu0
      %v3671 = vadd.f32 0.0, %v3670
      %v3672 = vpop.f32.mrb[0].mxu0
      %v3673 = vpop.f32.mrb[0].mxu0
      %v3674 = vadd.f32 0.0, %v3673
      %v3675 = vpop.f32.mrb[0].mxu0
      %3676 = vmatprep.mubr.bf16.mxu0 0
      %3677 = vmatmul.mubr.bf16.gmra.mrb[0].mxu0 %v2303
      %v3678 = vpop.f32.mrb[0].mxu0
      %v3679 = vadd.f32 0.0, %v3678
      %v3680 = vpop.f32.mrb[0].mxu0
      %v3681 = vpop.f32.mrb[0].mxu0
      %v3682 = vadd.f32 0.0, %v3681
      %v3683 = vpop.f32.mrb[0].mxu0
      %3684 = vmatprep.mubr.bf16.mxu0 0
      %3685 = vmatmul.mubr.bf16.gmra.mrb[0].mxu0 %v2306
      %v3686 = vpop.f32.mrb[0].mxu0
      %v3687 = vadd.f32 0.0, %v3686
      %v3688 = vpop.f32.mrb[0].mxu0
      %v3689 = vpop.f32.mrb[0].mxu0
      %v3690 = vadd.f32 0.0, %v3689
      %v3691 = vpop.f32.mrb[0].mxu0
      %3692 = vmatprep.mubr.bf16.mxu0 0
      %3693 = vmatmul.mubr.bf16.gmra.mrb[0].mxu0 %v2309
      %v3694 = vpop.f32.mrb[0].mxu0
      %v3695 = vadd.f32 0.0, %v3694
      %v3696 = vpop.f32.mrb[0].mxu0
      %v3697 = vpop.f32.mrb[0].mxu0
      %v3698 = vadd.f32 0.0, %v3697
      %v3699 = vpop.f32.mrb[0].mxu0
      %3700 = vmatprep.mubr.bf16.mxu0 0
      %3701 = vmatmul.mubr.bf16.gmra.mrb[0].mxu0 %v2312
      %v3702 = vpop.f32.mrb[0].mxu0
      %v3703 = vadd.f32 0.0, %v3702
      %v3704 = vpop.f32.mrb[0].mxu0
      %v3705 = vpop.f32.mrb[0].mxu0
      %v3706 = vadd.f32 0.0, %v3705
      %v3707 = vpop.f32.mrb[0].mxu0
      %3708 = vmatprep.mubr.bf16.mxu0 0
      %3709 = vmatmul.mubr.bf16.gmra.mrb[0].mxu0 %v2315
      %v3710 = vpop.f32.mrb[0].mxu0
      %v3711 = vadd.f32 0.0, %v3710
      %v3712 = vpop.f32.mrb[0].mxu0
      %v3713 = vpop.f32.mrb[0].mxu0
      %v3714 = vadd.f32 0.0, %v3713
      %v3715 = vpop.f32.mrb[0].mxu0
      %3716 = vmatprep.mubr.bf16.mxu0 0
      %3717 = vmatmul.mubr.bf16.gmra.mrb[0].mxu0 %v2318
      %v3718 = vpop.f32.mrb[0].mxu0
      %v3719 = vadd.f32 0.0, %v3718
      %v3720 = vpop.f32.mrb[0].mxu0
      %v3721 = vpop.f32.mrb[0].mxu0
      %v3722 = vadd.f32 0.0, %v3721
      %v3723 = vpop.f32.mrb[0].mxu0
      %3724 = vmatprep.mubr.bf16.mxu0 0
      %3725 = vmatmul.mubr.bf16.gmra.mrb[0].mxu0 %v2321
      %v3726 = vpop.f32.mrb[0].mxu0
      %v3727 = vadd.f32 0.0, %v3726
      %v3728 = vpop.f32.mrb[0].mxu0
      %v3729 = vpop.f32.mrb[0].mxu0
      %v3730 = vadd.f32 0.0, %v3729
      %v3731 = vpop.f32.mrb[0].mxu0
      %3732 = vmatprep.mubr.bf16.mxu0 0
      %3733 = vmatmul.mubr.bf16.gmra.mrb[0].mxu0 %v2324
      %v3734 = vpop.f32.mrb[0].mxu0
      %v3735 = vadd.f32 0.0, %v3734
      %v3736 = vpop.f32.mrb[0].mxu0
      %v3737 = vpop.f32.mrb[0].mxu0
      %v3738 = vadd.f32 0.0, %v3737
      %v3739 = vpop.f32.mrb[0].mxu0
      %3740 = vmatprep.mubr.bf16.mxu0 0
      %3741 = vmatmul.mubr.bf16.gmra.mrb[0].mxu0 %v2327
      %v3742 = vpop.f32.mrb[0].mxu0
      %v3743 = vadd.f32 0.0, %v3742
      %v3744 = vpop.f32.mrb[0].mxu0
      %v3745 = vpop.f32.mrb[0].mxu0
      %v3746 = vadd.f32 0.0, %v3745
      %v3747 = vpop.f32.mrb[0].mxu0
      %3748 = vmatprep.mubr.bf16.mxu0 0
      %3749 = vmatmul.mubr.bf16.gmra.mrb[0].mxu0 %v2330
      %v3750 = vpop.f32.mrb[0].mxu0
      %v3751 = vadd.f32 0.0, %v3750
      %v3752 = vpop.f32.mrb[0].mxu0
      %v3753 = vpop.f32.mrb[0].mxu0
      %v3754 = vadd.f32 0.0, %v3753
      %v3755 = vpop.f32.mrb[0].mxu0
      %3756 = vmatprep.mubr.bf16.mxu0 0
      %3757 = vmatmul.mubr.bf16.gmra.mrb[0].mxu0 %v2333
      %v3758 = vpop.f32.mrb[0].mxu0
      %v3759 = vadd.f32 0.0, %v3758
      %v3760 = vpop.f32.mrb[0].mxu0
      %v3761 = vpop.f32.mrb[0].mxu0
      %v3762 = vadd.f32 0.0, %v3761
      %v3763 = vpop.f32.mrb[0].mxu0
      %3764 = vmatprep.mubr.bf16.mxu0 0
      %3765 = vmatmul.mubr.bf16.gmra.mrb[0].mxu0 %v2336
      %v3766 = vpop.f32.mrb[0].mxu0
      %v3767 = vadd.f32 0.0, %v3766
      %v3768 = vpop.f32.mrb[0].mxu0
      %v3769 = vpop.f32.mrb[0].mxu0
      %v3770 = vadd.f32 0.0, %v3769
      %v3771 = vpop.f32.mrb[0].mxu0
      %3772 = vmatprep.mubr.bf16.mxu0 0
      %3773 = vmatmul.mubr.bf16.gmra.mrb[0].mxu0 %v2339
      %v3774 = vpop.f32.mrb[0].mxu0
      %v3775 = vadd.f32 0.0, %v3774
      %v3776 = vpop.f32.mrb[0].mxu0
      %v3777 = vpop.f32.mrb[0].mxu0
      %v3778 = vadd.f32 0.0, %v3777
      %v3779 = vpop.f32.mrb[0].mxu0
      %3780 = vmatprep.mubr.bf16.mxu0 0
      %3781 = vmatmul.mubr.bf16.gmra.mrb[0].mxu0 %v2985
      %v3782 = vpop.f32.mrb[0].mxu0
      %v3783 = vadd.f32 0.0, %v3782
      %v3784 = vpop.f32.mrb[0].mxu0
      %v3785 = vpop.f32.mrb[0].mxu0
      %v3786 = vadd.f32 0.0, %v3785
      %v3787 = vpop.f32.mrb[0].mxu0
      %3788 = vmatprep.mubr.bf16.mxu0 0
      %3789 = vmatmul.mubr.bf16.gmra.mrb[0].mxu0 %v3631
      %v3790 = vpop.f32.mrb[0].mxu0
      %v3791 = vadd.f32 0.0, %v3790
      %v3792 = vpop.f32.mrb[0].mxu0
      %v3793 = vpop.f32.mrb[0].mxu0
      %v3794 = vadd.f32 0.0, %v3793
      %v3795 = vpop.f32.mrb[0].mxu0
      %3796 = vdwg.mxu0
      %v3797 = vadd.f32 %v3585, %v3671
      %v3798 = vadd.f32 %v3586, %v3674
      %v3799 = vadd.f32 %v3587, %v3679
      %v3800 = vadd.f32 %v3588, %v3682
      %v3801 = vadd.f32 %v3589, %v3687
      %v3802 = vadd.f32 %v3590, %v3690
      %v3803 = vadd.f32 %v3591, %v3695
      %v3804 = vadd.f32 %v3592, %v3698
      %v3805 = vadd.f32 %v3593, %v3703
      %v3806 = vadd.f32 %v3594, %v3706
      %v3807 = vadd.f32 %v3595, %v3711
      %v3808 = vadd.f32 %v3596, %v3714
      %v3809 = vadd.f32 %v3597, %v3719
      %v3810 = vadd.f32 %v3598, %v3722
      %v3811 = vadd.f32 %v3599, %v3727
      %v3812 = vadd.f32 %v3600, %v3730
      %v3813 = vadd.f32 %v3601, %v3735
      %v3814 = vadd.f32 %v3602, %v3738
      %v3815 = vadd.f32 %v3603, %v3743
      %v3816 = vadd.f32 %v3604, %v3746
      %v3817 = vadd.f32 %v3605, %v3751
      %v3818 = vadd.f32 %v3606, %v3754
      %v3819 = vadd.f32 %v3607, %v3759
      %v3820 = vadd.f32 %v3608, %v3762
      %v3821 = vadd.f32 %v3609, %v3767
      %v3822 = vadd.f32 %v3610, %v3770
      %v3823 = vadd.f32 %v3611, %v3775
      %v3824 = vadd.f32 %v3612, %v3778
      %v3825 = vadd.f32 %v3613, %v3783
      %v3826 = vadd.f32 %v3614, %v3786
      %v3827 = vadd.f32 %v3615, %v3791
      %v3828 = vadd.f32 %v3616, %v3794
      %v3829 = vld [vmem:[%s5] sm:$0x1]
      %v3831 = vlaneseq
      %v3832 = vshrl.u32 %v3831, 7
      %v3833 = vsub.s32 0, %v3832
      %v3834 = vrot.slane %v3829, %v3833
      %v3836 = vadd.f32 %v3797, %v3834
      %v3837 = vadd.f32 %v3798, %v3834
      %v3838 = vadd.f32 %v3799, %v3834
      %v3839 = vadd.f32 %v3800, %v3834
      %v3840 = vadd.f32 %v3801, %v3834
      %v3841 = vadd.f32 %v3802, %v3834
      %v3842 = vadd.f32 %v3803, %v3834
      %v3843 = vadd.f32 %v3804, %v3834
      %v3844 = vadd.f32 %v3805, %v3834
      %v3845 = vadd.f32 %v3806, %v3834
      %v3846 = vadd.f32 %v3807, %v3834
      %v3847 = vadd.f32 %v3808, %v3834
      %v3848 = vadd.f32 %v3809, %v3834
      %v3849 = vadd.f32 %v3810, %v3834
      %v3850 = vadd.f32 %v3811, %v3834
      %v3851 = vadd.f32 %v3812, %v3834
      %v3852 = vadd.f32 %v3813, %v3834
      %v3853 = vadd.f32 %v3814, %v3834
      %v3854 = vadd.f32 %v3815, %v3834
      %v3855 = vadd.f32 %v3816, %v3834
      %v3856 = vadd.f32 %v3817, %v3834
      %v3857 = vadd.f32 %v3818, %v3834
      %v3858 = vadd.f32 %v3819, %v3834
      %v3859 = vadd.f32 %v3820, %v3834
      %v3860 = vadd.f32 %v3821, %v3834
      %v3861 = vadd.f32 %v3822, %v3834
      %v3862 = vadd.f32 %v3823, %v3834
      %v3863 = vadd.f32 %v3824, %v3834
      %v3864 = vadd.f32 %v3825, %v3834
      %v3865 = vadd.f32 %v3826, %v3834
      %v3866 = vadd.f32 %v3827, %v3834
      %v3867 = vadd.f32 %v3828, %v3834
      %vm3868 = vcmp.gt.f32.partialorder %v3836, 0.0
      %vm3869 = vcmp.gt.f32.partialorder %v3837, 0.0
      %vm3870 = vcmp.gt.f32.partialorder %v3838, 0.0
      %vm3871 = vcmp.gt.f32.partialorder %v3839, 0.0
      %vm3872 = vcmp.gt.f32.partialorder %v3840, 0.0
      %vm3873 = vcmp.gt.f32.partialorder %v3841, 0.0
      %vm3874 = vcmp.gt.f32.partialorder %v3842, 0.0
      %vm3875 = vcmp.gt.f32.partialorder %v3843, 0.0
      %vm3876 = vcmp.gt.f32.partialorder %v3844, 0.0
      %vm3877 = vcmp.gt.f32.partialorder %v3845, 0.0
      %vm3878 = vcmp.gt.f32.partialorder %v3846, 0.0
      %vm3879 = vcmp.gt.f32.partialorder %v3847, 0.0
      %vm3880 = vcmp.gt.f32.partialorder %v3848, 0.0
      %vm3881 = vcmp.gt.f32.partialorder %v3849, 0.0
      %vm3882 = vcmp.gt.f32.partialorder %v3850, 0.0
      %vm3883 = vcmp.gt.f32.partialorder %v3851, 0.0
      %vm3884 = vcmp.gt.f32.partialorder %v3852, 0.0
      %vm3885 = vcmp.gt.f32.partialorder %v3853, 0.0
      %vm3886 = vcmp.gt.f32.partialorder %v3854, 0.0
      %vm3887 = vcmp.gt.f32.partialorder %v3855, 0.0
      %vm3888 = vcmp.gt.f32.partialorder %v3856, 0.0
      %vm3889 = vcmp.gt.f32.partialorder %v3857, 0.0
      %vm3890 = vcmp.gt.f32.partialorder %v3858, 0.0
      %vm3891 = vcmp.gt.f32.partialorder %v3859, 0.0
      %vm3892 = vcmp.gt.f32.partialorder %v3860, 0.0
      %vm3893 = vcmp.gt.f32.partialorder %v3861, 0.0
      %vm3894 = vcmp.gt.f32.partialorder %v3862, 0.0
      %vm3895 = vcmp.gt.f32.partialorder %v3863, 0.0
      %vm3896 = vcmp.gt.f32.partialorder %v3864, 0.0
      %vm3897 = vcmp.gt.f32.partialorder %v3865, 0.0
      %vm3898 = vcmp.gt.f32.partialorder %v3866, 0.0
      %vm3899 = vcmp.gt.f32.partialorder %v3867, 0.0
      %v3900 = vmul.f32 %v3836, 0.01
      %v3901 = vmul.f32 %v3837, 0.01
      %v3902 = vmul.f32 %v3838, 0.01
      %v3903 = vmul.f32 %v3839, 0.01
      %v3904 = vmul.f32 %v3840, 0.01
      %v3905 = vmul.f32 %v3841, 0.01
      %v3906 = vmul.f32 %v3842, 0.01
      %v3907 = vmul.f32 %v3843, 0.01
      %v3908 = vmul.f32 %v3844, 0.01
      %v3909 = vmul.f32 %v3845, 0.01
      %v3910 = vmul.f32 %v3846, 0.01
      %v3911 = vmul.f32 %v3847, 0.01
      %v3912 = vmul.f32 %v3848, 0.01
      %v3913 = vmul.f32 %v3849, 0.01
      %v3914 = vmul.f32 %v3850, 0.01
      %v3915 = vmul.f32 %v3851, 0.01
      %v3916 = vmul.f32 %v3852, 0.01
      %v3917 = vmul.f32 %v3853, 0.01
      %v3918 = vmul.f32 %v3854, 0.01
      %v3919 = vmul.f32 %v3855, 0.01
      %v3920 = vmul.f32 %v3856, 0.01
      %v3921 = vmul.f32 %v3857, 0.01
      %v3922 = vmul.f32 %v3858, 0.01
      %v3923 = vmul.f32 %v3859, 0.01
      %v3924 = vmul.f32 %v3860, 0.01
      %v3925 = vmul.f32 %v3861, 0.01
      %v3926 = vmul.f32 %v3862, 0.01
      %v3927 = vmul.f32 %v3863, 0.01
      %v3928 = vmul.f32 %v3864, 0.01
      %v3929 = vmul.f32 %v3865, 0.01
      %v3930 = vmul.f32 %v3866, 0.01
      %v3931 = vmul.f32 %v3867, 0.01
      %v3932 = vsel %vm3868, %v3836, %v3900
      %v3933 = vsel %vm3869, %v3837, %v3901
      %v3934 = vsel %vm3870, %v3838, %v3902
      %v3935 = vsel %vm3871, %v3839, %v3903
      %v3936 = vsel %vm3872, %v3840, %v3904
      %v3937 = vsel %vm3873, %v3841, %v3905
      %v3938 = vsel %vm3874, %v3842, %v3906
      %v3939 = vsel %vm3875, %v3843, %v3907
      %v3940 = vsel %vm3876, %v3844, %v3908
      %v3941 = vsel %vm3877, %v3845, %v3909
      %v3942 = vsel %vm3878, %v3846, %v3910
      %v3943 = vsel %vm3879, %v3847, %v3911
      %v3944 = vsel %vm3880, %v3848, %v3912
      %v3945 = vsel %vm3881, %v3849, %v3913
      %v3946 = vsel %vm3882, %v3850, %v3914
      %v3947 = vsel %vm3883, %v3851, %v3915
      %v3948 = vsel %vm3884, %v3852, %v3916
      %v3949 = vsel %vm3885, %v3853, %v3917
      %v3950 = vsel %vm3886, %v3854, %v3918
      %v3951 = vsel %vm3887, %v3855, %v3919
      %v3952 = vsel %vm3888, %v3856, %v3920
      %v3953 = vsel %vm3889, %v3857, %v3921
      %v3954 = vsel %vm3890, %v3858, %v3922
      %v3955 = vsel %vm3891, %v3859, %v3923
      %v3956 = vsel %vm3892, %v3860, %v3924
      %v3957 = vsel %vm3893, %v3861, %v3925
      %v3958 = vsel %vm3894, %v3862, %v3926
      %v3959 = vsel %vm3895, %v3863, %v3927
      %v3960 = vsel %vm3896, %v3864, %v3928
      %v3961 = vsel %vm3897, %v3865, %v3929
      %v3962 = vsel %vm3898, %v3866, %v3930
      %v3963 = vsel %vm3899, %v3867, %v3931
      %v3964 = vpack.c.bf16 %v3933, %v3932
      %v3965 = vpack.c.bf16 %v3935, %v3934
      %v3966 = vpack.c.bf16 %v3937, %v3936
      %v3967 = vpack.c.bf16 %v3939, %v3938
      %v3968 = vpack.c.bf16 %v3941, %v3940
      %v3969 = vpack.c.bf16 %v3943, %v3942
      %v3970 = vpack.c.bf16 %v3945, %v3944
      %v3971 = vpack.c.bf16 %v3947, %v3946
      %v3972 = vpack.c.bf16 %v3949, %v3948
      %v3973 = vpack.c.bf16 %v3951, %v3950
      %v3974 = vpack.c.bf16 %v3953, %v3952
      %v3975 = vpack.c.bf16 %v3955, %v3954
      %v3976 = vpack.c.bf16 %v3957, %v3956
      %v3977 = vpack.c.bf16 %v3959, %v3958
      %v3978 = vpack.c.bf16 %v3961, %v3960
      %v3979 = vpack.c.bf16 %v3963, %v3962
      %v3996 = vunpack.c.l.b16 %v3964
      %v3997 = vunpack.c.h.b16 %v3964
      %v3998 = vunpack.c.l.b16 %v3965
      %v3999 = vunpack.c.h.b16 %v3965
      %v4000 = vunpack.c.l.b16 %v3966
      %v4001 = vunpack.c.h.b16 %v3966
      %v4002 = vunpack.c.l.b16 %v3967
      %v4003 = vunpack.c.h.b16 %v3967
      %v4004 = vunpack.c.l.b16 %v3968
      %v4005 = vunpack.c.h.b16 %v3968
      %v4006 = vunpack.c.l.b16 %v3969
      %v4007 = vunpack.c.h.b16 %v3969
      %v4008 = vunpack.c.l.b16 %v3970
      %v4009 = vunpack.c.h.b16 %v3970
      %v4010 = vunpack.c.l.b16 %v3971
      %v4011 = vunpack.c.h.b16 %v3971
      %v4012 = vunpack.c.l.b16 %v3972
      %v4013 = vunpack.c.h.b16 %v3972
      %v4014 = vunpack.c.l.b16 %v3973
      %v4015 = vunpack.c.h.b16 %v3973
      %v4016 = vunpack.c.l.b16 %v3974
      %v4017 = vunpack.c.h.b16 %v3974
      %v4018 = vunpack.c.l.b16 %v3975
      %v4019 = vunpack.c.h.b16 %v3975
      %v4020 = vunpack.c.l.b16 %v3976
      %v4021 = vunpack.c.h.b16 %v3976
      %v4022 = vunpack.c.l.b16 %v3977
      %v4023 = vunpack.c.h.b16 %v3977
      %v4024 = vunpack.c.l.b16 %v3978
      %v4025 = vunpack.c.h.b16 %v3978
      %v4026 = vunpack.c.l.b16 %v3979
      %v4027 = vunpack.c.h.b16 %v3979
      %v4028 = vpack.c.b16 %v3996, %v3996
      %v4029 = vpack.c.b16 %v3997, %v3997
      %v4030 = vpack.c.b16 %v3998, %v3998
      %v4031 = vpack.c.b16 %v3999, %v3999
      %v4032 = vpack.c.b16 %v4000, %v4000
      %v4033 = vpack.c.b16 %v4001, %v4001
      %v4034 = vpack.c.b16 %v4002, %v4002
      %v4035 = vpack.c.b16 %v4003, %v4003
      %v4036 = vpack.c.b16 %v4004, %v4004
      %v4037 = vpack.c.b16 %v4005, %v4005
      %v4038 = vpack.c.b16 %v4006, %v4006
      %v4039 = vpack.c.b16 %v4007, %v4007
      %v4040 = vpack.c.b16 %v4008, %v4008
      %v4041 = vpack.c.b16 %v4009, %v4009
      %v4042 = vpack.c.b16 %v4010, %v4010
      %v4043 = vpack.c.b16 %v4011, %v4011
      %v4044 = vpack.c.b16 %v4012, %v4012
      %v4045 = vpack.c.b16 %v4013, %v4013
      %v4046 = vpack.c.b16 %v4014, %v4014
      %v4047 = vpack.c.b16 %v4015, %v4015
      %v4048 = vpack.c.b16 %v4016, %v4016
      %v4049 = vpack.c.b16 %v4017, %v4017
      %v4050 = vpack.c.b16 %v4018, %v4018
      %v4051 = vpack.c.b16 %v4019, %v4019
      %v4052 = vpack.c.b16 %v4020, %v4020
      %v4053 = vpack.c.b16 %v4021, %v4021
      %v4054 = vpack.c.b16 %v4022, %v4022
      %v4055 = vpack.c.b16 %v4023, %v4023
      %v4056 = vpack.c.b16 %v4024, %v4024
      %v4057 = vpack.c.b16 %v4025, %v4025
      %v4058 = vpack.c.b16 %v4026, %v4026
      %v4059 = vpack.c.b16 %v4027, %v4027
      %v4061 = vshrl.u32 %v4028, 16
      %v4063 = vrot.slane %v4061, 7
      %v4064 = vshll.u32 %v4028, 16
      %v4066 = vor.u32 %v4063, %v4064
      %v4067 = vrot.slane %v4063, 4
      %v4069 = vshrl.u32 %v4029, 16
      %v4071 = vrot.slane %v4069, 7
      %v4072 = vshll.u32 %v4029, 16
      %v4074 = vor.u32 %v4071, %v4072
      %v4075 = vsel %vm678, %v4067, %v4074
      %v4076 = vrot.slane %v4071, 4
      %v4078 = vshrl.u32 %v4030, 16
      %v4080 = vrot.slane %v4078, 7
      %v4081 = vshll.u32 %v4030, 16
      %v4083 = vor.u32 %v4080, %v4081
      %v4084 = vrot.slane %v4080, 4
      %v4086 = vshrl.u32 %v4031, 16
      %v4088 = vrot.slane %v4086, 7
      %v4089 = vshll.u32 %v4031, 16
      %v4091 = vor.u32 %v4088, %v4089
      %v4092 = vsel %vm678, %v4084, %v4091
      %v4093 = vrot.slane %v4088, 4
      %v4095 = vshrl.u32 %v4032, 16
      %v4097 = vrot.slane %v4095, 7
      %v4098 = vshll.u32 %v4032, 16
      %v4100 = vor.u32 %v4097, %v4098
      %v4101 = vrot.slane %v4097, 4
      %v4103 = vshrl.u32 %v4033, 16
      %v4105 = vrot.slane %v4103, 7
      %v4106 = vshll.u32 %v4033, 16
      %v4108 = vor.u32 %v4105, %v4106
      %v4109 = vsel %vm678, %v4101, %v4108
      %v4110 = vrot.slane %v4105, 4
      %v4112 = vshrl.u32 %v4034, 16
      %v4114 = vrot.slane %v4112, 7
      %v4115 = vshll.u32 %v4034, 16
      %v4117 = vor.u32 %v4114, %v4115
      %v4118 = vrot.slane %v4114, 4
      %v4120 = vshrl.u32 %v4035, 16
      %v4122 = vrot.slane %v4120, 7
      %v4123 = vshll.u32 %v4035, 16
      %v4125 = vor.u32 %v4122, %v4123
      %v4126 = vsel %vm678, %v4118, %v4125
      %v4127 = vrot.slane %v4122, 4
      %v4129 = vshrl.u32 %v4036, 16
      %v4131 = vrot.slane %v4129, 7
      %v4132 = vshll.u32 %v4036, 16
      %v4134 = vor.u32 %v4131, %v4132
      %v4135 = vrot.slane %v4131, 4
      %v4137 = vshrl.u32 %v4037, 16
      %v4139 = vrot.slane %v4137, 7
      %v4140 = vshll.u32 %v4037, 16
      %v4142 = vor.u32 %v4139, %v4140
      %v4143 = vsel %vm678, %v4135, %v4142
      %v4144 = vrot.slane %v4139, 4
      %v4146 = vshrl.u32 %v4038, 16
      %v4148 = vrot.slane %v4146, 7
      %v4149 = vshll.u32 %v4038, 16
      %v4151 = vor.u32 %v4148, %v4149
      %v4152 = vrot.slane %v4148, 4
      %v4154 = vshrl.u32 %v4039, 16
      %v4156 = vrot.slane %v4154, 7
      %v4157 = vshll.u32 %v4039, 16
      %v4159 = vor.u32 %v4156, %v4157
      %v4160 = vsel %vm678, %v4152, %v4159
      %v4161 = vrot.slane %v4156, 4
      %v4163 = vshrl.u32 %v4040, 16
      %v4165 = vrot.slane %v4163, 7
      %v4166 = vshll.u32 %v4040, 16
      %v4168 = vor.u32 %v4165, %v4166
      %v4169 = vrot.slane %v4165, 4
      %v4171 = vshrl.u32 %v4041, 16
      %v4173 = vrot.slane %v4171, 7
      %v4174 = vshll.u32 %v4041, 16
      %v4176 = vor.u32 %v4173, %v4174
      %v4177 = vsel %vm678, %v4169, %v4176
      %v4178 = vrot.slane %v4173, 4
      %v4180 = vshrl.u32 %v4042, 16
      %v4182 = vrot.slane %v4180, 7
      %v4183 = vshll.u32 %v4042, 16
      %v4185 = vor.u32 %v4182, %v4183
      %v4186 = vrot.slane %v4182, 4
      %v4188 = vshrl.u32 %v4043, 16
      %v4190 = vrot.slane %v4188, 7
      %v4191 = vshll.u32 %v4043, 16
      %v4193 = vor.u32 %v4190, %v4191
      %v4194 = vsel %vm678, %v4186, %v4193
      %v4195 = vrot.slane %v4190, 4
      %v4197 = vshrl.u32 %v4044, 16
      %v4199 = vrot.slane %v4197, 7
      %v4200 = vshll.u32 %v4044, 16
      %v4202 = vor.u32 %v4199, %v4200
      %v4203 = vrot.slane %v4199, 4
      %v4205 = vshrl.u32 %v4045, 16
      %v4207 = vrot.slane %v4205, 7
      %v4208 = vshll.u32 %v4045, 16
      %v4210 = vor.u32 %v4207, %v4208
      %v4211 = vsel %vm678, %v4203, %v4210
      %v4212 = vrot.slane %v4207, 4
      %v4214 = vshrl.u32 %v4046, 16
      %v4216 = vrot.slane %v4214, 7
      %v4217 = vshll.u32 %v4046, 16
      %v4219 = vor.u32 %v4216, %v4217
      %v4220 = vrot.slane %v4216, 4
      %v4222 = vshrl.u32 %v4047, 16
      %v4224 = vrot.slane %v4222, 7
      %v4225 = vshll.u32 %v4047, 16
      %v4227 = vor.u32 %v4224, %v4225
      %v4228 = vsel %vm678, %v4220, %v4227
      %v4229 = vrot.slane %v4224, 4
      %v4231 = vshrl.u32 %v4048, 16
      %v4233 = vrot.slane %v4231, 7
      %v4234 = vshll.u32 %v4048, 16
      %v4236 = vor.u32 %v4233, %v4234
      %v4237 = vrot.slane %v4233, 4
      %v4239 = vshrl.u32 %v4049, 16
      %v4241 = vrot.slane %v4239, 7
      %v4242 = vshll.u32 %v4049, 16
      %v4244 = vor.u32 %v4241, %v4242
      %v4245 = vsel %vm678, %v4237, %v4244
      %v4246 = vrot.slane %v4241, 4
      %v4248 = vshrl.u32 %v4050, 16
      %v4250 = vrot.slane %v4248, 7
      %v4251 = vshll.u32 %v4050, 16
      %v4253 = vor.u32 %v4250, %v4251
      %v4254 = vrot.slane %v4250, 4
      %v4256 = vshrl.u32 %v4051, 16
      %v4258 = vrot.slane %v4256, 7
      %v4259 = vshll.u32 %v4051, 16
      %v4261 = vor.u32 %v4258, %v4259
      %v4262 = vsel %vm678, %v4254, %v4261
      %v4263 = vrot.slane %v4258, 4
      %v4265 = vshrl.u32 %v4052, 16
      %v4267 = vrot.slane %v4265, 7
      %v4268 = vshll.u32 %v4052, 16
      %v4270 = vor.u32 %v4267, %v4268
      %v4271 = vrot.slane %v4267, 4
      %v4273 = vshrl.u32 %v4053, 16
      %v4275 = vrot.slane %v4273, 7
      %v4276 = vshll.u32 %v4053, 16
      %v4278 = vor.u32 %v4275, %v4276
      %v4279 = vsel %vm678, %v4271, %v4278
      %v4280 = vrot.slane %v4275, 4
      %v4282 = vshrl.u32 %v4054, 16
      %v4284 = vrot.slane %v4282, 7
      %v4285 = vshll.u32 %v4054, 16
      %v4287 = vor.u32 %v4284, %v4285
      %v4288 = vrot.slane %v4284, 4
      %v4290 = vshrl.u32 %v4055, 16
      %v4292 = vrot.slane %v4290, 7
      %v4293 = vshll.u32 %v4055, 16
      %v4295 = vor.u32 %v4292, %v4293
      %v4296 = vsel %vm678, %v4288, %v4295
      %v4297 = vrot.slane %v4292, 4
      %v4299 = vshrl.u32 %v4056, 16
      %v4301 = vrot.slane %v4299, 7
      %v4302 = vshll.u32 %v4056, 16
      %v4304 = vor.u32 %v4301, %v4302
      %v4305 = vrot.slane %v4301, 4
      %v4307 = vshrl.u32 %v4057, 16
      %v4309 = vrot.slane %v4307, 7
      %v4310 = vshll.u32 %v4057, 16
      %v4312 = vor.u32 %v4309, %v4310
      %v4313 = vsel %vm678, %v4305, %v4312
      %v4314 = vrot.slane %v4309, 4
      %v4316 = vshrl.u32 %v4058, 16
      %v4318 = vrot.slane %v4316, 7
      %v4319 = vshll.u32 %v4058, 16
      %v4321 = vor.u32 %v4318, %v4319
      %v4322 = vrot.slane %v4318, 4
      %v4324 = vshrl.u32 %v4059, 16
      %v4326 = vrot.slane %v4324, 7
      %v4327 = vshll.u32 %v4059, 16
      %v4329 = vor.u32 %v4326, %v4327
      %v4330 = vsel %vm678, %v4322, %v4329
      %v4331 = vrot.slane %v4326, 4
      %v4380 = vld [vmem:[%s999] sm:$0xf]
      %v4381 = vsel %vm1001, %v4066, %v4380
      %4382 = vst [vmem:[%s999] sm:$0xf] %v4381
      %4383 = vst.msk [vmem:[%s999 + $0x4] sm:$0xf] %vm253, %v4075
      %v4384 = vld [vmem:[%s999 + $0x8] sm:$0x1]
      %v4385 = vsel %vm264, %v4076, %v4384
      %4386 = vst [vmem:[%s999 + $0x8] sm:$0x1] %v4385
      %v4387 = vld [vmem:[%s999 + $0xc] sm:$0xf]
      %v4388 = vsel %vm1001, %v4083, %v4387
      %4389 = vst [vmem:[%s999 + $0xc] sm:$0xf] %v4388
      %4390 = vst.msk [vmem:[%s999 + $0x10] sm:$0xf] %vm253, %v4092
      %v4391 = vld [vmem:[%s999 + $0x14] sm:$0x1]
      %v4392 = vsel %vm264, %v4093, %v4391
      %4393 = vst [vmem:[%s999 + $0x14] sm:$0x1] %v4392
      %v4394 = vld [vmem:[%s999 + $0x18] sm:$0xf]
      %v4395 = vsel %vm1001, %v4100, %v4394
      %4396 = vst [vmem:[%s999 + $0x18] sm:$0xf] %v4395
      %4397 = vst.msk [vmem:[%s999 + $0x1c] sm:$0xf] %vm253, %v4109
      %v4398 = vld [vmem:[%s999 + $0x20] sm:$0x1]
      %v4399 = vsel %vm264, %v4110, %v4398
      %4400 = vst [vmem:[%s999 + $0x20] sm:$0x1] %v4399
      %v4401 = vld [vmem:[%s999 + $0x24] sm:$0xf]
      %v4402 = vsel %vm1001, %v4117, %v4401
      %4403 = vst [vmem:[%s999 + $0x24] sm:$0xf] %v4402
      %4404 = vst.msk [vmem:[%s999 + $0x28] sm:$0xf] %vm253, %v4126
      %v4405 = vld [vmem:[%s999 + $0x2c] sm:$0x1]
      %v4406 = vsel %vm264, %v4127, %v4405
      %4407 = vst [vmem:[%s999 + $0x2c] sm:$0x1] %v4406
      %v4408 = vld [vmem:[%s999 + $0x30] sm:$0xf]
      %v4409 = vsel %vm1001, %v4134, %v4408
      %4410 = vst [vmem:[%s999 + $0x30] sm:$0xf] %v4409
      %4411 = vst.msk [vmem:[%s999 + $0x34] sm:$0xf] %vm253, %v4143
      %v4412 = vld [vmem:[%s999 + $0x38] sm:$0x1]
      %v4413 = vsel %vm264, %v4144, %v4412
      %4414 = vst [vmem:[%s999 + $0x38] sm:$0x1] %v4413
      %v4415 = vld [vmem:[%s999 + $0x3c] sm:$0xf]
      %v4416 = vsel %vm1001, %v4151, %v4415
      %4417 = vst [vmem:[%s999 + $0x3c] sm:$0xf] %v4416
      %4418 = vst.msk [vmem:[%s999 + $0x40] sm:$0xf] %vm253, %v4160
      %v4419 = vld [vmem:[%s999 + $0x44] sm:$0x1]
      %v4420 = vsel %vm264, %v4161, %v4419
      %4421 = vst [vmem:[%s999 + $0x44] sm:$0x1] %v4420
      %v4422 = vld [vmem:[%s999 + $0x48] sm:$0xf]
      %v4423 = vsel %vm1001, %v4168, %v4422
      %4424 = vst [vmem:[%s999 + $0x48] sm:$0xf] %v4423
      %4425 = vst.msk [vmem:[%s999 + $0x4c] sm:$0xf] %vm253, %v4177
      %v4426 = vld [vmem:[%s999 + $0x50] sm:$0x1]
      %v4427 = vsel %vm264, %v4178, %v4426
      %4428 = vst [vmem:[%s999 + $0x50] sm:$0x1] %v4427
      %v4429 = vld [vmem:[%s999 + $0x54] sm:$0xf]
      %v4430 = vsel %vm1001, %v4185, %v4429
      %4431 = vst [vmem:[%s999 + $0x54] sm:$0xf] %v4430
      %4432 = vst.msk [vmem:[%s999 + $0x58] sm:$0xf] %vm253, %v4194
      %v4433 = vld [vmem:[%s999 + $0x5c] sm:$0x1]
      %v4434 = vsel %vm264, %v4195, %v4433
      %4435 = vst [vmem:[%s999 + $0x5c] sm:$0x1] %v4434
      %v4436 = vld [vmem:[%s999 + $0x60] sm:$0xf]
      %v4437 = vsel %vm1001, %v4202, %v4436
      %4438 = vst [vmem:[%s999 + $0x60] sm:$0xf] %v4437
      %4439 = vst.msk [vmem:[%s999 + $0x64] sm:$0xf] %vm253, %v4211
      %v4440 = vld [vmem:[%s999 + $0x68] sm:$0x1]
      %v4441 = vsel %vm264, %v4212, %v4440
      %4442 = vst [vmem:[%s999 + $0x68] sm:$0x1] %v4441
      %v4443 = vld [vmem:[%s999 + $0x6c] sm:$0xf]
      %v4444 = vsel %vm1001, %v4219, %v4443
      %4445 = vst [vmem:[%s999 + $0x6c] sm:$0xf] %v4444
      %4446 = vst.msk [vmem:[%s999 + $0x70] sm:$0xf] %vm253, %v4228
      %v4447 = vld [vmem:[%s999 + $0x74] sm:$0x1]
      %v4448 = vsel %vm264, %v4229, %v4447
      %4449 = vst [vmem:[%s999 + $0x74] sm:$0x1] %v4448
      %v4450 = vld [vmem:[%s999 + $0x78] sm:$0xf]
      %v4451 = vsel %vm1001, %v4236, %v4450
      %4452 = vst [vmem:[%s999 + $0x78] sm:$0xf] %v4451
      %4453 = vst.msk [vmem:[%s999 + $0x7c] sm:$0xf] %vm253, %v4245
      %v4454 = vld [vmem:[%s999 + $0x80] sm:$0x1]
      %v4455 = vsel %vm264, %v4246, %v4454
      %4456 = vst [vmem:[%s999 + $0x80] sm:$0x1] %v4455
      %v4457 = vld [vmem:[%s999 + $0x84] sm:$0xf]
      %v4458 = vsel %vm1001, %v4253, %v4457
      %4459 = vst [vmem:[%s999 + $0x84] sm:$0xf] %v4458
      %4460 = vst.msk [vmem:[%s999 + $0x88] sm:$0xf] %vm253, %v4262
      %v4461 = vld [vmem:[%s999 + $0x8c] sm:$0x1]
      %v4462 = vsel %vm264, %v4263, %v4461
      %4463 = vst [vmem:[%s999 + $0x8c] sm:$0x1] %v4462
      %v4464 = vld [vmem:[%s999 + $0x90] sm:$0xf]
      %v4465 = vsel %vm1001, %v4270, %v4464
      %4466 = vst [vmem:[%s999 + $0x90] sm:$0xf] %v4465
      %4467 = vst.msk [vmem:[%s999 + $0x94] sm:$0xf] %vm253, %v4279
      %v4468 = vld [vmem:[%s999 + $0x98] sm:$0x1]
      %v4469 = vsel %vm264, %v4280, %v4468
      %4470 = vst [vmem:[%s999 + $0x98] sm:$0x1] %v4469
      %v4471 = vld [vmem:[%s999 + $0x9c] sm:$0xf]
      %v4472 = vsel %vm1001, %v4287, %v4471
      %4473 = vst [vmem:[%s999 + $0x9c] sm:$0xf] %v4472
      %4474 = vst.msk [vmem:[%s999 + $0xa0] sm:$0xf] %vm253, %v4296
      %v4475 = vld [vmem:[%s999 + $0xa4] sm:$0x1]
      %v4476 = vsel %vm264, %v4297, %v4475
      %4477 = vst [vmem:[%s999 + $0xa4] sm:$0x1] %v4476
      %v4478 = vld [vmem:[%s999 + $0xa8] sm:$0xf]
      %v4479 = vsel %vm1001, %v4304, %v4478
      %4480 = vst [vmem:[%s999 + $0xa8] sm:$0xf] %v4479
      %4481 = vst.msk [vmem:[%s999 + $0xac] sm:$0xf] %vm253, %v4313
      %v4482 = vld [vmem:[%s999 + $0xb0] sm:$0x1]
      %v4483 = vsel %vm264, %v4314, %v4482
      %4484 = vst [vmem:[%s999 + $0xb0] sm:$0x1] %v4483
      %v4485 = vld [vmem:[%s999 + $0xb4] sm:$0xf]
      %v4486 = vsel %vm1001, %v4321, %v4485
      %4487 = vst [vmem:[%s999 + $0xb4] sm:$0xf] %v4486
      %4488 = vst.msk [vmem:[%s999 + $0xb8] sm:$0xf] %vm253, %v4330
      %v4489 = vld [vmem:[%s999 + $0xbc] sm:$0x1]
      %v4490 = vsel %vm264, %v4331, %v4489
      %4491 = vst [vmem:[%s999 + $0xbc] sm:$0x1] %v4490
      %v4492 = vld [vmem:[#allocation2] sm:$0xf]
      %v4493 = vld [vmem:[#allocation2 + $0x4] sm:$0xf]
      %v4494 = vld [vmem:[#allocation2 + $0x8] sm:$0x1]
      %v4495 = vld [vmem:[#allocation2 + $0xc] sm:$0xf]
      %v4496 = vld [vmem:[#allocation2 + $0x10] sm:$0xf]
      %v4497 = vld [vmem:[#allocation2 + $0x14] sm:$0x1]
      %v4498 = vld [vmem:[#allocation2 + $0x18] sm:$0xf]
      %v4499 = vld [vmem:[#allocation2 + $0x1c] sm:$0xf]
      %v4500 = vld [vmem:[#allocation2 + $0x20] sm:$0x1]
      %v4501 = vld [vmem:[#allocation2 + $0x24] sm:$0xf]
      %v4502 = vld [vmem:[#allocation2 + $0x28] sm:$0xf]
      %v4503 = vld [vmem:[#allocation2 + $0x2c] sm:$0x1]
      %v4504 = vld [vmem:[#allocation2 + $0x30] sm:$0xf]
      %v4505 = vld [vmem:[#allocation2 + $0x34] sm:$0xf]
      %v4506 = vld [vmem:[#allocation2 + $0x38] sm:$0x1]
      %v4507 = vld [vmem:[#allocation2 + $0x3c] sm:$0xf]
      %v4508 = vld [vmem:[#allocation2 + $0x40] sm:$0xf]
      %v4509 = vld [vmem:[#allocation2 + $0x44] sm:$0x1]
      %v4510 = vld [vmem:[#allocation2 + $0x48] sm:$0xf]
      %v4511 = vld [vmem:[#allocation2 + $0x4c] sm:$0xf]
      %v4512 = vld [vmem:[#allocation2 + $0x50] sm:$0x1]
      %v4513 = vld [vmem:[#allocation2 + $0x54] sm:$0xf]
      %v4514 = vld [vmem:[#allocation2 + $0x58] sm:$0xf]
      %v4515 = vld [vmem:[#allocation2 + $0x5c] sm:$0x1]
      %v4516 = vld [vmem:[#allocation2 + $0x60] sm:$0xf]
      %v4517 = vld [vmem:[#allocation2 + $0x64] sm:$0xf]
      %v4518 = vld [vmem:[#allocation2 + $0x68] sm:$0x1]
      %v4519 = vld [vmem:[#allocation2 + $0x6c] sm:$0xf]
      %v4520 = vld [vmem:[#allocation2 + $0x70] sm:$0xf]
      %v4521 = vld [vmem:[#allocation2 + $0x74] sm:$0x1]
      %v4522 = vld [vmem:[#allocation2 + $0x78] sm:$0xf]
      %v4523 = vld [vmem:[#allocation2 + $0x7c] sm:$0xf]
      %v4524 = vld [vmem:[#allocation2 + $0x80] sm:$0x1]
      %v4525 = vld [vmem:[#allocation2 + $0x84] sm:$0xf]
      %v4526 = vld [vmem:[#allocation2 + $0x88] sm:$0xf]
      %v4527 = vld [vmem:[#allocation2 + $0x8c] sm:$0x1]
      %v4528 = vld [vmem:[#allocation2 + $0x90] sm:$0xf]
      %v4529 = vld [vmem:[#allocation2 + $0x94] sm:$0xf]
      %v4530 = vld [vmem:[#allocation2 + $0x98] sm:$0x1]
      %v4531 = vld [vmem:[#allocation2 + $0x9c] sm:$0xf]
      %v4532 = vld [vmem:[#allocation2 + $0xa0] sm:$0xf]
      %v4533 = vld [vmem:[#allocation2 + $0xa4] sm:$0x1]
      %v4534 = vld [vmem:[#allocation2 + $0xa8] sm:$0xf]
      %v4535 = vld [vmem:[#allocation2 + $0xac] sm:$0xf]
      %v4536 = vld [vmem:[#allocation2 + $0xb0] sm:$0x1]
      %v4537 = vld [vmem:[#allocation2 + $0xb4] sm:$0xf]
      %v4538 = vld [vmem:[#allocation2 + $0xb8] sm:$0xf]
      %v4539 = vld [vmem:[#allocation2 + $0xbc] sm:$0x1]
      %v4540 = vld [vmem:[#allocation2 + $0xc0] sm:$0xf]
      %v4541 = vld [vmem:[#allocation2 + $0xc4] sm:$0xf]
      %v4542 = vld [vmem:[#allocation2 + $0xc8] sm:$0x1]
      %v4543 = vld [vmem:[#allocation2 + $0xcc] sm:$0xf]
      %v4544 = vld [vmem:[#allocation2 + $0xd0] sm:$0xf]
      %v4545 = vld [vmem:[#allocation2 + $0xd4] sm:$0x1]
      %v4546 = vld [vmem:[%s2] sm:$0xf]
      %v4548 = vshrl.u32 %v4492, 16
      %v4550 = vrot.slane %v4548, 4
      %v4551 = vshll.u32 %v4492, 16
      %v4553 = vrot.slane %v4551, 5
      %v4554 = vor.u32 %v4550, %v4553
      %v4555 = vrot.slane %v4554, 4
      %v4557 = vshll.u32 %v4493, 16
      %v4559 = vrot.slane %v4557, 5
      %v4560 = vsel %vm1171, %v4555, %v4559
      %v4561 = vshrl.u32 %v4493, 16
      %v4563 = vrot.slane %v4561, 4
      %v4564 = vor.u32 %v4563, %v4559
      %v4565 = vrot.slane %v4564, 4
      %v4567 = vshll.u32 %v4494, 16
      %v4569 = vrot.slane %v4567, 5
      %v4570 = vsel %vm1171, %v4565, %v4569
      %v4572 = vshrl.u32 %v4495, 16
      %v4574 = vrot.slane %v4572, 4
      %v4575 = vshll.u32 %v4495, 16
      %v4577 = vrot.slane %v4575, 5
      %v4578 = vor.u32 %v4574, %v4577
      %v4579 = vrot.slane %v4578, 4
      %v4581 = vshll.u32 %v4496, 16
      %v4583 = vrot.slane %v4581, 5
      %v4584 = vsel %vm1171, %v4579, %v4583
      %v4585 = vshrl.u32 %v4496, 16
      %v4587 = vrot.slane %v4585, 4
      %v4588 = vor.u32 %v4587, %v4583
      %v4589 = vrot.slane %v4588, 4
      %v4591 = vshll.u32 %v4497, 16
      %v4593 = vrot.slane %v4591, 5
      %v4594 = vsel %vm1171, %v4589, %v4593
      %v4596 = vshrl.u32 %v4498, 16
      %v4598 = vrot.slane %v4596, 4
      %v4599 = vshll.u32 %v4498, 16
      %v4601 = vrot.slane %v4599, 5
      %v4602 = vor.u32 %v4598, %v4601
      %v4603 = vrot.slane %v4602, 4
      %v4605 = vshll.u32 %v4499, 16
      %v4607 = vrot.slane %v4605, 5
      %v4608 = vsel %vm1171, %v4603, %v4607
      %v4609 = vshrl.u32 %v4499, 16
      %v4611 = vrot.slane %v4609, 4
      %v4612 = vor.u32 %v4611, %v4607
      %v4613 = vrot.slane %v4612, 4
      %v4615 = vshll.u32 %v4500, 16
      %v4617 = vrot.slane %v4615, 5
      %v4618 = vsel %vm1171, %v4613, %v4617
      %v4620 = vshrl.u32 %v4501, 16
      %v4622 = vrot.slane %v4620, 4
      %v4623 = vshll.u32 %v4501, 16
      %v4625 = vrot.slane %v4623, 5
      %v4626 = vor.u32 %v4622, %v4625
      %v4627 = vrot.slane %v4626, 4
      %v4629 = vshll.u32 %v4502, 16
      %v4631 = vrot.slane %v4629, 5
      %v4632 = vsel %vm1171, %v4627, %v4631
      %v4633 = vshrl.u32 %v4502, 16
      %v4635 = vrot.slane %v4633, 4
      %v4636 = vor.u32 %v4635, %v4631
      %v4637 = vrot.slane %v4636, 4
      %v4639 = vshll.u32 %v4503, 16
      %v4641 = vrot.slane %v4639, 5
      %v4642 = vsel %vm1171, %v4637, %v4641
      %v4644 = vshrl.u32 %v4504, 16
      %v4646 = vrot.slane %v4644, 4
      %v4647 = vshll.u32 %v4504, 16
      %v4649 = vrot.slane %v4647, 5
      %v4650 = vor.u32 %v4646, %v4649
      %v4651 = vrot.slane %v4650, 4
      %v4653 = vshll.u32 %v4505, 16
      %v4655 = vrot.slane %v4653, 5
      %v4656 = vsel %vm1171, %v4651, %v4655
      %v4657 = vshrl.u32 %v4505, 16
      %v4659 = vrot.slane %v4657, 4
      %v4660 = vor.u32 %v4659, %v4655
      %v4661 = vrot.slane %v4660, 4
      %v4663 = vshll.u32 %v4506, 16
      %v4665 = vrot.slane %v4663, 5
      %v4666 = vsel %vm1171, %v4661, %v4665
      %v4668 = vshrl.u32 %v4507, 16
      %v4670 = vrot.slane %v4668, 4
      %v4671 = vshll.u32 %v4507, 16
      %v4673 = vrot.slane %v4671, 5
      %v4674 = vor.u32 %v4670, %v4673
      %v4675 = vrot.slane %v4674, 4
      %v4677 = vshll.u32 %v4508, 16
      %v4679 = vrot.slane %v4677, 5
      %v4680 = vsel %vm1171, %v4675, %v4679
      %v4681 = vshrl.u32 %v4508, 16
      %v4683 = vrot.slane %v4681, 4
      %v4684 = vor.u32 %v4683, %v4679
      %v4685 = vrot.slane %v4684, 4
      %v4687 = vshll.u32 %v4509, 16
      %v4689 = vrot.slane %v4687, 5
      %v4690 = vsel %vm1171, %v4685, %v4689
      %v4692 = vshrl.u32 %v4510, 16
      %v4694 = vrot.slane %v4692, 4
      %v4695 = vshll.u32 %v4510, 16
      %v4697 = vrot.slane %v4695, 5
      %v4698 = vor.u32 %v4694, %v4697
      %v4699 = vrot.slane %v4698, 4
      %v4701 = vshll.u32 %v4511, 16
      %v4703 = vrot.slane %v4701, 5
      %v4704 = vsel %vm1171, %v4699, %v4703
      %v4705 = vshrl.u32 %v4511, 16
      %v4707 = vrot.slane %v4705, 4
      %v4708 = vor.u32 %v4707, %v4703
      %v4709 = vrot.slane %v4708, 4
      %v4711 = vshll.u32 %v4512, 16
      %v4713 = vrot.slane %v4711, 5
      %v4714 = vsel %vm1171, %v4709, %v4713
      %v4716 = vshrl.u32 %v4513, 16
      %v4718 = vrot.slane %v4716, 4
      %v4719 = vshll.u32 %v4513, 16
      %v4721 = vrot.slane %v4719, 5
      %v4722 = vor.u32 %v4718, %v4721
      %v4723 = vrot.slane %v4722, 4
      %v4725 = vshll.u32 %v4514, 16
      %v4727 = vrot.slane %v4725, 5
      %v4728 = vsel %vm1171, %v4723, %v4727
      %v4729 = vshrl.u32 %v4514, 16
      %v4731 = vrot.slane %v4729, 4
      %v4732 = vor.u32 %v4731, %v4727
      %v4733 = vrot.slane %v4732, 4
      %v4735 = vshll.u32 %v4515, 16
      %v4737 = vrot.slane %v4735, 5
      %v4738 = vsel %vm1171, %v4733, %v4737
      %v4740 = vshrl.u32 %v4516, 16
      %v4742 = vrot.slane %v4740, 4
      %v4743 = vshll.u32 %v4516, 16
      %v4745 = vrot.slane %v4743, 5
      %v4746 = vor.u32 %v4742, %v4745
      %v4747 = vrot.slane %v4746, 4
      %v4749 = vshll.u32 %v4517, 16
      %v4751 = vrot.slane %v4749, 5
      %v4752 = vsel %vm1171, %v4747, %v4751
      %v4753 = vshrl.u32 %v4517, 16
      %v4755 = vrot.slane %v4753, 4
      %v4756 = vor.u32 %v4755, %v4751
      %v4757 = vrot.slane %v4756, 4
      %v4759 = vshll.u32 %v4518, 16
      %v4761 = vrot.slane %v4759, 5
      %v4762 = vsel %vm1171, %v4757, %v4761
      %v4764 = vshrl.u32 %v4519, 16
      %v4766 = vrot.slane %v4764, 4
      %v4767 = vshll.u32 %v4519, 16
      %v4769 = vrot.slane %v4767, 5
      %v4770 = vor.u32 %v4766, %v4769
      %v4771 = vrot.slane %v4770, 4
      %v4773 = vshll.u32 %v4520, 16
      %v4775 = vrot.slane %v4773, 5
      %v4776 = vsel %vm1171, %v4771, %v4775
      %v4777 = vshrl.u32 %v4520, 16
      %v4779 = vrot.slane %v4777, 4
      %v4780 = vor.u32 %v4779, %v4775
      %v4781 = vrot.slane %v4780, 4
      %v4783 = vshll.u32 %v4521, 16
      %v4785 = vrot.slane %v4783, 5
      %v4786 = vsel %vm1171, %v4781, %v4785
      %v4788 = vshrl.u32 %v4522, 16
      %v4790 = vrot.slane %v4788, 4
      %v4791 = vshll.u32 %v4522, 16
      %v4793 = vrot.slane %v4791, 5
      %v4794 = vor.u32 %v4790, %v4793
      %v4795 = vrot.slane %v4794, 4
      %v4797 = vshll.u32 %v4523, 16
      %v4799 = vrot.slane %v4797, 5
      %v4800 = vsel %vm1171, %v4795, %v4799
      %v4801 = vshrl.u32 %v4523, 16
      %v4803 = vrot.slane %v4801, 4
      %v4804 = vor.u32 %v4803, %v4799
      %v4805 = vrot.slane %v4804, 4
      %v4807 = vshll.u32 %v4524, 16
      %v4809 = vrot.slane %v4807, 5
      %v4810 = vsel %vm1171, %v4805, %v4809
      %v4812 = vshrl.u32 %v4525, 16
      %v4814 = vrot.slane %v4812, 4
      %v4815 = vshll.u32 %v4525, 16
      %v4817 = vrot.slane %v4815, 5
      %v4818 = vor.u32 %v4814, %v4817
      %v4819 = vrot.slane %v4818, 4
      %v4821 = vshll.u32 %v4526, 16
      %v4823 = vrot.slane %v4821, 5
      %v4824 = vsel %vm1171, %v4819, %v4823
      %v4825 = vshrl.u32 %v4526, 16
      %v4827 = vrot.slane %v4825, 4
      %v4828 = vor.u32 %v4827, %v4823
      %v4829 = vrot.slane %v4828, 4
      %v4831 = vshll.u32 %v4527, 16
      %v4833 = vrot.slane %v4831, 5
      %v4834 = vsel %vm1171, %v4829, %v4833
      %v4836 = vshrl.u32 %v4528, 16
      %v4838 = vrot.slane %v4836, 4
      %v4839 = vshll.u32 %v4528, 16
      %v4841 = vrot.slane %v4839, 5
      %v4842 = vor.u32 %v4838, %v4841
      %v4843 = vrot.slane %v4842, 4
      %v4845 = vshll.u32 %v4529, 16
      %v4847 = vrot.slane %v4845, 5
      %v4848 = vsel %vm1171, %v4843, %v4847
      %v4849 = vshrl.u32 %v4529, 16
      %v4851 = vrot.slane %v4849, 4
      %v4852 = vor.u32 %v4851, %v4847
      %v4853 = vrot.slane %v4852, 4
      %v4855 = vshll.u32 %v4530, 16
      %v4857 = vrot.slane %v4855, 5
      %v4858 = vsel %vm1171, %v4853, %v4857
      %v4860 = vshrl.u32 %v4531, 16
      %v4862 = vrot.slane %v4860, 4
      %v4863 = vshll.u32 %v4531, 16
      %v4865 = vrot.slane %v4863, 5
      %v4866 = vor.u32 %v4862, %v4865
      %v4867 = vrot.slane %v4866, 4
      %v4869 = vshll.u32 %v4532, 16
      %v4871 = vrot.slane %v4869, 5
      %v4872 = vsel %vm1171, %v4867, %v4871
      %v4873 = vshrl.u32 %v4532, 16
      %v4875 = vrot.slane %v4873, 4
      %v4876 = vor.u32 %v4875, %v4871
      %v4877 = vrot.slane %v4876, 4
      %v4879 = vshll.u32 %v4533, 16
      %v4881 = vrot.slane %v4879, 5
      %v4882 = vsel %vm1171, %v4877, %v4881
      %v4884 = vshrl.u32 %v4534, 16
      %v4886 = vrot.slane %v4884, 4
      %v4887 = vshll.u32 %v4534, 16
      %v4889 = vrot.slane %v4887, 5
      %v4890 = vor.u32 %v4886, %v4889
      %v4891 = vrot.slane %v4890, 4
      %v4893 = vshll.u32 %v4535, 16
      %v4895 = vrot.slane %v4893, 5
      %v4896 = vsel %vm1171, %v4891, %v4895
      %v4897 = vshrl.u32 %v4535, 16
      %v4899 = vrot.slane %v4897, 4
      %v4900 = vor.u32 %v4899, %v4895
      %v4901 = vrot.slane %v4900, 4
      %v4903 = vshll.u32 %v4536, 16
      %v4905 = vrot.slane %v4903, 5
      %v4906 = vsel %vm1171, %v4901, %v4905
      %v4908 = vshrl.u32 %v4537, 16
      %v4910 = vrot.slane %v4908, 4
      %v4911 = vshll.u32 %v4537, 16
      %v4913 = vrot.slane %v4911, 5
      %v4914 = vor.u32 %v4910, %v4913
      %v4915 = vrot.slane %v4914, 4
      %v4917 = vshll.u32 %v4538, 16
      %v4919 = vrot.slane %v4917, 5
      %v4920 = vsel %vm1171, %v4915, %v4919
      %v4921 = vshrl.u32 %v4538, 16
      %v4923 = vrot.slane %v4921, 4
      %v4924 = vor.u32 %v4923, %v4919
      %v4925 = vrot.slane %v4924, 4
      %v4927 = vshll.u32 %v4539, 16
      %v4929 = vrot.slane %v4927, 5
      %v4930 = vsel %vm1171, %v4925, %v4929
      %s4931 = scalar_lea.vmem %s2, 4
      %v4932 = vld [vmem:[%s4931] sm:$0xf]
      %v4933 = vunpack.c.l.b16 %v4560
      %v4934 = vunpack.c.l.b16 %v4570
      %v4935 = vunpack.c.l.b16 %v4584
      %v4936 = vunpack.c.l.b16 %v4594
      %v4937 = vunpack.c.l.b16 %v4608
      %v4938 = vunpack.c.l.b16 %v4618
      %v4939 = vunpack.c.l.b16 %v4632
      %v4940 = vunpack.c.l.b16 %v4642
      %v4941 = vunpack.c.l.b16 %v4656
      %v4942 = vunpack.c.l.b16 %v4666
      %v4943 = vunpack.c.l.b16 %v4680
      %v4944 = vunpack.c.l.b16 %v4690
      %v4945 = vunpack.c.l.b16 %v4704
      %v4946 = vunpack.c.l.b16 %v4714
      %v4947 = vunpack.c.l.b16 %v4728
      %v4948 = vunpack.c.l.b16 %v4738
      %v4949 = vunpack.c.l.b16 %v4752
      %v4950 = vunpack.c.l.b16 %v4762
      %v4951 = vunpack.c.l.b16 %v4776
      %v4952 = vunpack.c.l.b16 %v4786
      %v4953 = vunpack.c.l.b16 %v4800
      %v4954 = vunpack.c.l.b16 %v4810
      %v4955 = vunpack.c.l.b16 %v4824
      %v4956 = vunpack.c.l.b16 %v4834
      %v4957 = vunpack.c.l.b16 %v4848
      %v4958 = vunpack.c.l.b16 %v4858
      %v4959 = vunpack.c.l.b16 %v4872
      %v4960 = vunpack.c.l.b16 %v4882
      %v4961 = vunpack.c.l.b16 %v4896
      %v4962 = vunpack.c.l.b16 %v4906
      %v4963 = vunpack.c.l.b16 %v4920
      %v4964 = vunpack.c.l.b16 %v4930
      %v4965 = vpack.c.b16 %v4934, %v4933
      %v4966 = vpack.c.b16 %v4936, %v4935
      %v4967 = vpack.c.b16 %v4938, %v4937
      %v4968 = vpack.c.b16 %v4940, %v4939
      %v4969 = vpack.c.b16 %v4942, %v4941
      %v4970 = vpack.c.b16 %v4944, %v4943
      %v4971 = vpack.c.b16 %v4946, %v4945
      %v4972 = vpack.c.b16 %v4948, %v4947
      %v4973 = vpack.c.b16 %v4950, %v4949
      %v4974 = vpack.c.b16 %v4952, %v4951
      %v4975 = vpack.c.b16 %v4954, %v4953
      %v4976 = vpack.c.b16 %v4956, %v4955
      %v4977 = vpack.c.b16 %v4958, %v4957
      %v4978 = vpack.c.b16 %v4960, %v4959
      %v4979 = vpack.c.b16 %v4962, %v4961
      %v4980 = vpack.c.b16 %v4964, %v4963
      %v4982 = vsel %vm1606, %v4965, 0
      %v4985 = vsel %vm1606, %v4966, 0
      %v4988 = vsel %vm1606, %v4967, 0
      %v4991 = vsel %vm1606, %v4968, 0
      %v4994 = vsel %vm1606, %v4969, 0
      %v4997 = vsel %vm1606, %v4970, 0
      %v5000 = vsel %vm1606, %v4971, 0
      %v5003 = vsel %vm1606, %v4972, 0
      %v5006 = vsel %vm1606, %v4973, 0
      %v5009 = vsel %vm1606, %v4974, 0
      %v5012 = vsel %vm1606, %v4975, 0
      %v5015 = vsel %vm1606, %v4976, 0
      %v5018 = vsel %vm1606, %v4977, 0
      %v5021 = vsel %vm1606, %v4978, 0
      %v5024 = vsel %vm1606, %v4979, 0
      %v5027 = vsel %vm1606, %v4980, 0
      %v5030 = vsel %vm1655, %v4932, 0
      %5032 = vmatprep.subr.bf16.mxu0 0
      %5033 = vmatpush1.bf16.msra.mxu0 %v5030
      %5034 = vmatprep.subr.bf16.mxu0 0
      %5035 = vmatpush1.bf16.msra.mxu0 0
      %5036 = vmatprep.subr.bf16.mxu0 0
      %5037 = vmatpush1.bf16.msra.mxu0 0
      %5038 = vmatprep.subr.bf16.mxu0 0
      %5039 = vmatpush1.bf16.msra.mxu0 0
      %5040 = vmatprep.subr.bf16.mxu0 0
      %5041 = vmatpush1.bf16.msra.mxu0 0
      %5042 = vmatprep.subr.bf16.mxu0 0
      %5043 = vmatpush1.bf16.msra.mxu0 0
      %5044 = vmatprep.subr.bf16.mxu0 0
      %5045 = vmatpush1.bf16.msra.mxu0 0
      %5046 = vmatprep.subr.bf16.mxu0 0
      %5047 = vmatpush1.bf16.msra.mxu0 0
      %5048 = vmatprep.subr.bf16.mxu0 0
      %5049 = vmatpush1.bf16.msra.mxu0 0
      %5050 = vmatprep.subr.bf16.mxu0 0
      %5051 = vmatpush1.bf16.msra.mxu0 0
      %5052 = vmatprep.subr.bf16.mxu0 0
      %5053 = vmatpush1.bf16.msra.mxu0 0
      %5054 = vmatprep.subr.bf16.mxu0 0
      %5055 = vmatpush1.bf16.msra.mxu0 0
      %5056 = vmatprep.subr.bf16.mxu0 0
      %5057 = vmatpush1.bf16.msra.mxu0 0
      %5058 = vmatprep.subr.bf16.mxu0 0
      %5059 = vmatpush1.bf16.msra.mxu0 0
      %5060 = vmatprep.subr.bf16.mxu0 0
      %5061 = vmatpush1.bf16.msra.mxu0 0
      %5062 = vmatprep.subr.bf16.mxu0 0
      %5063 = vmatpush1.bf16.msra.mxu0 0
      %5064 = vmatprep.mubr.bf16.mxu0 0
      %5065 = vmatmul.mubr.bf16.gmra.mrb[0].mxu0 %v4982
      %v5066 = vpop.f32.mrb[0].mxu0
      %v5067 = vadd.f32 0.0, %v5066
      %v5068 = vpop.f32.mrb[0].mxu0
      %v5069 = vpop.f32.mrb[0].mxu0
      %v5070 = vadd.f32 0.0, %v5069
      %v5071 = vpop.f32.mrb[0].mxu0
      %5072 = vmatprep.mubr.bf16.mxu0 0
      %5073 = vmatmul.mubr.bf16.gmra.mrb[0].mxu0 %v4985
      %v5074 = vpop.f32.mrb[0].mxu0
      %v5075 = vadd.f32 0.0, %v5074
      %v5076 = vpop.f32.mrb[0].mxu0
      %v5077 = vpop.f32.mrb[0].mxu0
      %v5078 = vadd.f32 0.0, %v5077
      %v5079 = vpop.f32.mrb[0].mxu0
      %5080 = vmatprep.mubr.bf16.mxu0 0
      %5081 = vmatmul.mubr.bf16.gmra.mrb[0].mxu0 %v4988
      %v5082 = vpop.f32.mrb[0].mxu0
      %v5083 = vadd.f32 0.0, %v5082
      %v5084 = vpop.f32.mrb[0].mxu0
      %v5085 = vpop.f32.mrb[0].mxu0
      %v5086 = vadd.f32 0.0, %v5085
      %v5087 = vpop.f32.mrb[0].mxu0
      %5088 = vmatprep.mubr.bf16.mxu0 0
      %5089 = vmatmul.mubr.bf16.gmra.mrb[0].mxu0 %v4991
      %v5090 = vpop.f32.mrb[0].mxu0
      %v5091 = vadd.f32 0.0, %v5090
      %v5092 = vpop.f32.mrb[0].mxu0
      %v5093 = vpop.f32.mrb[0].mxu0
      %v5094 = vadd.f32 0.0, %v5093
      %v5095 = vpop.f32.mrb[0].mxu0
      %5096 = vmatprep.mubr.bf16.mxu0 0
      %5097 = vmatmul.mubr.bf16.gmra.mrb[0].mxu0 %v4994
      %v5098 = vpop.f32.mrb[0].mxu0
      %v5099 = vadd.f32 0.0, %v5098
      %v5100 = vpop.f32.mrb[0].mxu0
      %v5101 = vpop.f32.mrb[0].mxu0
      %v5102 = vadd.f32 0.0, %v5101
      %v5103 = vpop.f32.mrb[0].mxu0
      %5104 = vmatprep.mubr.bf16.mxu0 0
      %5105 = vmatmul.mubr.bf16.gmra.mrb[0].mxu0 %v4997
      %v5106 = vpop.f32.mrb[0].mxu0
      %v5107 = vadd.f32 0.0, %v5106
      %v5108 = vpop.f32.mrb[0].mxu0
      %v5109 = vpop.f32.mrb[0].mxu0
      %v5110 = vadd.f32 0.0, %v5109
      %v5111 = vpop.f32.mrb[0].mxu0
      %5112 = vmatprep.mubr.bf16.mxu0 0
      %5113 = vmatmul.mubr.bf16.gmra.mrb[0].mxu0 %v5000
      %v5114 = vpop.f32.mrb[0].mxu0
      %v5115 = vadd.f32 0.0, %v5114
      %v5116 = vpop.f32.mrb[0].mxu0
      %v5117 = vpop.f32.mrb[0].mxu0
      %v5118 = vadd.f32 0.0, %v5117
      %v5119 = vpop.f32.mrb[0].mxu0
      %5120 = vmatprep.mubr.bf16.mxu0 0
      %5121 = vmatmul.mubr.bf16.gmra.mrb[0].mxu0 %v5003
      %v5122 = vpop.f32.mrb[0].mxu0
      %v5123 = vadd.f32 0.0, %v5122
      %v5124 = vpop.f32.mrb[0].mxu0
      %v5125 = vpop.f32.mrb[0].mxu0
      %v5126 = vadd.f32 0.0, %v5125
      %v5127 = vpop.f32.mrb[0].mxu0
      %5128 = vmatprep.mubr.bf16.mxu0 0
      %5129 = vmatmul.mubr.bf16.gmra.mrb[0].mxu0 %v5006
      %v5130 = vpop.f32.mrb[0].mxu0
      %v5131 = vadd.f32 0.0, %v5130
      %v5132 = vpop.f32.mrb[0].mxu0
      %v5133 = vpop.f32.mrb[0].mxu0
      %v5134 = vadd.f32 0.0, %v5133
      %v5135 = vpop.f32.mrb[0].mxu0
      %5136 = vmatprep.mubr.bf16.mxu0 0
      %5137 = vmatmul.mubr.bf16.gmra.mrb[0].mxu0 %v5009
      %v5138 = vpop.f32.mrb[0].mxu0
      %v5139 = vadd.f32 0.0, %v5138
      %v5140 = vpop.f32.mrb[0].mxu0
      %v5141 = vpop.f32.mrb[0].mxu0
      %v5142 = vadd.f32 0.0, %v5141
      %v5143 = vpop.f32.mrb[0].mxu0
      %5144 = vmatprep.mubr.bf16.mxu0 0
      %5145 = vmatmul.mubr.bf16.gmra.mrb[0].mxu0 %v5012
      %v5146 = vpop.f32.mrb[0].mxu0
      %v5147 = vadd.f32 0.0, %v5146
      %v5148 = vpop.f32.mrb[0].mxu0
      %v5149 = vpop.f32.mrb[0].mxu0
      %v5150 = vadd.f32 0.0, %v5149
      %v5151 = vpop.f32.mrb[0].mxu0
      %5152 = vmatprep.mubr.bf16.mxu0 0
      %5153 = vmatmul.mubr.bf16.gmra.mrb[0].mxu0 %v5015
      %v5154 = vpop.f32.mrb[0].mxu0
      %v5155 = vadd.f32 0.0, %v5154
      %v5156 = vpop.f32.mrb[0].mxu0
      %v5157 = vpop.f32.mrb[0].mxu0
      %v5158 = vadd.f32 0.0, %v5157
      %v5159 = vpop.f32.mrb[0].mxu0
      %5160 = vmatprep.mubr.bf16.mxu0 0
      %5161 = vmatmul.mubr.bf16.gmra.mrb[0].mxu0 %v5018
      %v5162 = vpop.f32.mrb[0].mxu0
      %v5163 = vadd.f32 0.0, %v5162
      %v5164 = vpop.f32.mrb[0].mxu0
      %v5165 = vpop.f32.mrb[0].mxu0
      %v5166 = vadd.f32 0.0, %v5165
      %v5167 = vpop.f32.mrb[0].mxu0
      %5168 = vmatprep.mubr.bf16.mxu0 0
      %5169 = vmatmul.mubr.bf16.gmra.mrb[0].mxu0 %v5021
      %v5170 = vpop.f32.mrb[0].mxu0
      %v5171 = vadd.f32 0.0, %v5170
      %v5172 = vpop.f32.mrb[0].mxu0
      %v5173 = vpop.f32.mrb[0].mxu0
      %v5174 = vadd.f32 0.0, %v5173
      %v5175 = vpop.f32.mrb[0].mxu0
      %5176 = vmatprep.mubr.bf16.mxu0 0
      %5177 = vmatmul.mubr.bf16.gmra.mrb[0].mxu0 %v5024
      %v5178 = vpop.f32.mrb[0].mxu0
      %v5179 = vadd.f32 0.0, %v5178
      %v5180 = vpop.f32.mrb[0].mxu0
      %v5181 = vpop.f32.mrb[0].mxu0
      %v5182 = vadd.f32 0.0, %v5181
      %v5183 = vpop.f32.mrb[0].mxu0
      %5184 = vmatprep.mubr.bf16.mxu0 0
      %5185 = vmatmul.mubr.bf16.gmra.mrb[0].mxu0 %v5027
      %v5186 = vpop.f32.mrb[0].mxu0
      %v5187 = vadd.f32 0.0, %v5186
      %v5188 = vpop.f32.mrb[0].mxu0
      %v5189 = vpop.f32.mrb[0].mxu0
      %v5190 = vadd.f32 0.0, %v5189
      %v5191 = vpop.f32.mrb[0].mxu0
      %5192 = vdwg.mxu0
      %v5225 = vunpack.c.l.b16 %v4492
      %v5226 = vunpack.c.l.b16 %v4493
      %v5227 = vunpack.c.l.b16 %v4495
      %v5228 = vunpack.c.l.b16 %v4496
      %v5229 = vunpack.c.l.b16 %v4498
      %v5230 = vunpack.c.l.b16 %v4499
      %v5231 = vunpack.c.l.b16 %v4501
      %v5232 = vunpack.c.l.b16 %v4502
      %v5233 = vunpack.c.l.b16 %v4504
      %v5234 = vunpack.c.l.b16 %v4505
      %v5235 = vunpack.c.l.b16 %v4507
      %v5236 = vunpack.c.l.b16 %v4508
      %v5237 = vunpack.c.l.b16 %v4510
      %v5238 = vunpack.c.l.b16 %v4511
      %v5239 = vunpack.c.l.b16 %v4513
      %v5240 = vunpack.c.l.b16 %v4514
      %v5241 = vunpack.c.l.b16 %v4516
      %v5242 = vunpack.c.l.b16 %v4517
      %v5243 = vunpack.c.l.b16 %v4519
      %v5244 = vunpack.c.l.b16 %v4520
      %v5245 = vunpack.c.l.b16 %v4522
      %v5246 = vunpack.c.l.b16 %v4523
      %v5247 = vunpack.c.l.b16 %v4525
      %v5248 = vunpack.c.l.b16 %v4526
      %v5249 = vunpack.c.l.b16 %v4528
      %v5250 = vunpack.c.l.b16 %v4529
      %v5251 = vunpack.c.l.b16 %v4531
      %v5252 = vunpack.c.l.b16 %v4532
      %v5253 = vunpack.c.l.b16 %v4534
      %v5254 = vunpack.c.l.b16 %v4535
      %v5255 = vunpack.c.l.b16 %v4537
      %v5256 = vunpack.c.l.b16 %v4538
      %v5257 = vpack.c.b16 %v5226, %v5225
      %v5258 = vpack.c.b16 %v5228, %v5227
      %v5259 = vpack.c.b16 %v5230, %v5229
      %v5260 = vpack.c.b16 %v5232, %v5231
      %v5261 = vpack.c.b16 %v5234, %v5233
      %v5262 = vpack.c.b16 %v5236, %v5235
      %v5263 = vpack.c.b16 %v5238, %v5237
      %v5264 = vpack.c.b16 %v5240, %v5239
      %v5265 = vpack.c.b16 %v5242, %v5241
      %v5266 = vpack.c.b16 %v5244, %v5243
      %v5267 = vpack.c.b16 %v5246, %v5245
      %v5268 = vpack.c.b16 %v5248, %v5247
      %v5269 = vpack.c.b16 %v5250, %v5249
      %v5270 = vpack.c.b16 %v5252, %v5251
      %v5271 = vpack.c.b16 %v5254, %v5253
      %v5272 = vpack.c.b16 %v5256, %v5255
      %v5274 = vsel %vm1606, %v5257, 0
      %v5277 = vsel %vm1606, %v5258, 0
      %v5280 = vsel %vm1606, %v5259, 0
      %v5283 = vsel %vm1606, %v5260, 0
      %v5286 = vsel %vm1606, %v5261, 0
      %v5289 = vsel %vm1606, %v5262, 0
      %v5292 = vsel %vm1606, %v5263, 0
      %v5295 = vsel %vm1606, %v5264, 0
      %v5298 = vsel %vm1606, %v5265, 0
      %v5301 = vsel %vm1606, %v5266, 0
      %v5304 = vsel %vm1606, %v5267, 0
      %v5307 = vsel %vm1606, %v5268, 0
      %v5310 = vsel %vm1606, %v5269, 0
      %v5313 = vsel %vm1606, %v5270, 0
      %v5316 = vsel %vm1606, %v5271, 0
      %v5319 = vsel %vm1606, %v5272, 0
      %v5322 = vsel %vm1655, %v4546, 0
      %5324 = vmatprep.subr.bf16.mxu0 0
      %5325 = vmatpush1.bf16.msra.mxu0 %v5322
      %5326 = vmatprep.subr.bf16.mxu0 0
      %5327 = vmatpush1.bf16.msra.mxu0 0
      %5328 = vmatprep.subr.bf16.mxu0 0
      %5329 = vmatpush1.bf16.msra.mxu0 0
      %5330 = vmatprep.subr.bf16.mxu0 0
      %5331 = vmatpush1.bf16.msra.mxu0 0
      %5332 = vmatprep.subr.bf16.mxu0 0
      %5333 = vmatpush1.bf16.msra.mxu0 0
      %5334 = vmatprep.subr.bf16.mxu0 0
      %5335 = vmatpush1.bf16.msra.mxu0 0
      %5336 = vmatprep.subr.bf16.mxu0 0
      %5337 = vmatpush1.bf16.msra.mxu0 0
      %5338 = vmatprep.subr.bf16.mxu0 0
      %5339 = vmatpush1.bf16.msra.mxu0 0
      %5340 = vmatprep.subr.bf16.mxu0 0
      %5341 = vmatpush1.bf16.msra.mxu0 0
      %5342 = vmatprep.subr.bf16.mxu0 0
      %5343 = vmatpush1.bf16.msra.mxu0 0
      %5344 = vmatprep.subr.bf16.mxu0 0
      %5345 = vmatpush1.bf16.msra.mxu0 0
      %5346 = vmatprep.subr.bf16.mxu0 0
      %5347 = vmatpush1.bf16.msra.mxu0 0
      %5348 = vmatprep.subr.bf16.mxu0 0
      %5349 = vmatpush1.bf16.msra.mxu0 0
      %5350 = vmatprep.subr.bf16.mxu0 0
      %5351 = vmatpush1.bf16.msra.mxu0 0
      %5352 = vmatprep.subr.bf16.mxu0 0
      %5353 = vmatpush1.bf16.msra.mxu0 0
      %5354 = vmatprep.subr.bf16.mxu0 0
      %5355 = vmatpush1.bf16.msra.mxu0 0
      %5356 = vmatprep.mubr.bf16.mxu0 0
      %5357 = vmatmul.mubr.bf16.gmra.mrb[0].mxu0 %v5274
      %v5358 = vpop.f32.mrb[0].mxu0
      %v5359 = vadd.f32 %v5067, %v5358
      %v5360 = vpop.f32.mrb[0].mxu0
      %v5361 = vpop.f32.mrb[0].mxu0
      %v5362 = vadd.f32 %v5070, %v5361
      %v5363 = vpop.f32.mrb[0].mxu0
      %5364 = vmatprep.mubr.bf16.mxu0 0
      %5365 = vmatmul.mubr.bf16.gmra.mrb[0].mxu0 %v5277
      %v5366 = vpop.f32.mrb[0].mxu0
      %v5367 = vadd.f32 %v5075, %v5366
      %v5368 = vpop.f32.mrb[0].mxu0
      %v5369 = vpop.f32.mrb[0].mxu0
      %v5370 = vadd.f32 %v5078, %v5369
      %v5371 = vpop.f32.mrb[0].mxu0
      %5372 = vmatprep.mubr.bf16.mxu0 0
      %5373 = vmatmul.mubr.bf16.gmra.mrb[0].mxu0 %v5280
      %v5374 = vpop.f32.mrb[0].mxu0
      %v5375 = vadd.f32 %v5083, %v5374
      %v5376 = vpop.f32.mrb[0].mxu0
      %v5377 = vpop.f32.mrb[0].mxu0
      %v5378 = vadd.f32 %v5086, %v5377
      %v5379 = vpop.f32.mrb[0].mxu0
      %5380 = vmatprep.mubr.bf16.mxu0 0
      %5381 = vmatmul.mubr.bf16.gmra.mrb[0].mxu0 %v5283
      %v5382 = vpop.f32.mrb[0].mxu0
      %v5383 = vadd.f32 %v5091, %v5382
      %v5384 = vpop.f32.mrb[0].mxu0
      %v5385 = vpop.f32.mrb[0].mxu0
      %v5386 = vadd.f32 %v5094, %v5385
      %v5387 = vpop.f32.mrb[0].mxu0
      %5388 = vmatprep.mubr.bf16.mxu0 0
      %5389 = vmatmul.mubr.bf16.gmra.mrb[0].mxu0 %v5286
      %v5390 = vpop.f32.mrb[0].mxu0
      %v5391 = vadd.f32 %v5099, %v5390
      %v5392 = vpop.f32.mrb[0].mxu0
      %v5393 = vpop.f32.mrb[0].mxu0
      %v5394 = vadd.f32 %v5102, %v5393
      %v5395 = vpop.f32.mrb[0].mxu0
      %5396 = vmatprep.mubr.bf16.mxu0 0
      %5397 = vmatmul.mubr.bf16.gmra.mrb[0].mxu0 %v5289
      %v5398 = vpop.f32.mrb[0].mxu0
      %v5399 = vadd.f32 %v5107, %v5398
      %v5400 = vpop.f32.mrb[0].mxu0
      %v5401 = vpop.f32.mrb[0].mxu0
      %v5402 = vadd.f32 %v5110, %v5401
      %v5403 = vpop.f32.mrb[0].mxu0
      %5404 = vmatprep.mubr.bf16.mxu0 0
      %5405 = vmatmul.mubr.bf16.gmra.mrb[0].mxu0 %v5292
      %v5406 = vpop.f32.mrb[0].mxu0
      %v5407 = vadd.f32 %v5115, %v5406
      %v5408 = vpop.f32.mrb[0].mxu0
      %v5409 = vpop.f32.mrb[0].mxu0
      %v5410 = vadd.f32 %v5118, %v5409
      %v5411 = vpop.f32.mrb[0].mxu0
      %5412 = vmatprep.mubr.bf16.mxu0 0
      %5413 = vmatmul.mubr.bf16.gmra.mrb[0].mxu0 %v5295
      %v5414 = vpop.f32.mrb[0].mxu0
      %v5415 = vadd.f32 %v5123, %v5414
      %v5416 = vpop.f32.mrb[0].mxu0
      %v5417 = vpop.f32.mrb[0].mxu0
      %v5418 = vadd.f32 %v5126, %v5417
      %v5419 = vpop.f32.mrb[0].mxu0
      %5420 = vmatprep.mubr.bf16.mxu0 0
      %5421 = vmatmul.mubr.bf16.gmra.mrb[0].mxu0 %v5298
      %v5422 = vpop.f32.mrb[0].mxu0
      %v5423 = vadd.f32 %v5131, %v5422
      %v5424 = vpop.f32.mrb[0].mxu0
      %v5425 = vpop.f32.mrb[0].mxu0
      %v5426 = vadd.f32 %v5134, %v5425
      %v5427 = vpop.f32.mrb[0].mxu0
      %5428 = vmatprep.mubr.bf16.mxu0 0
      %5429 = vmatmul.mubr.bf16.gmra.mrb[0].mxu0 %v5301
      %v5430 = vpop.f32.mrb[0].mxu0
      %v5431 = vadd.f32 %v5139, %v5430
      %v5432 = vpop.f32.mrb[0].mxu0
      %v5433 = vpop.f32.mrb[0].mxu0
      %v5434 = vadd.f32 %v5142, %v5433
      %v5435 = vpop.f32.mrb[0].mxu0
      %5436 = vmatprep.mubr.bf16.mxu0 0
      %5437 = vmatmul.mubr.bf16.gmra.mrb[0].mxu0 %v5304
      %v5438 = vpop.f32.mrb[0].mxu0
      %v5439 = vadd.f32 %v5147, %v5438
      %v5440 = vpop.f32.mrb[0].mxu0
      %v5441 = vpop.f32.mrb[0].mxu0
      %v5442 = vadd.f32 %v5150, %v5441
      %v5443 = vpop.f32.mrb[0].mxu0
      %5444 = vmatprep.mubr.bf16.mxu0 0
      %5445 = vmatmul.mubr.bf16.gmra.mrb[0].mxu0 %v5307
      %v5446 = vpop.f32.mrb[0].mxu0
      %v5447 = vadd.f32 %v5155, %v5446
      %v5448 = vpop.f32.mrb[0].mxu0
      %v5449 = vpop.f32.mrb[0].mxu0
      %v5450 = vadd.f32 %v5158, %v5449
      %v5451 = vpop.f32.mrb[0].mxu0
      %5452 = vmatprep.mubr.bf16.mxu0 0
      %5453 = vmatmul.mubr.bf16.gmra.mrb[0].mxu0 %v5310
      %v5454 = vpop.f32.mrb[0].mxu0
      %v5455 = vadd.f32 %v5163, %v5454
      %v5456 = vpop.f32.mrb[0].mxu0
      %v5457 = vpop.f32.mrb[0].mxu0
      %v5458 = vadd.f32 %v5166, %v5457
      %v5459 = vpop.f32.mrb[0].mxu0
      %5460 = vmatprep.mubr.bf16.mxu0 0
      %5461 = vmatmul.mubr.bf16.gmra.mrb[0].mxu0 %v5313
      %v5462 = vpop.f32.mrb[0].mxu0
      %v5463 = vadd.f32 %v5171, %v5462
      %v5464 = vpop.f32.mrb[0].mxu0
      %v5465 = vpop.f32.mrb[0].mxu0
      %v5466 = vadd.f32 %v5174, %v5465
      %v5467 = vpop.f32.mrb[0].mxu0
      %5468 = vmatprep.mubr.bf16.mxu0 0
      %5469 = vmatmul.mubr.bf16.gmra.mrb[0].mxu0 %v5316
      %v5470 = vpop.f32.mrb[0].mxu0
      %v5471 = vadd.f32 %v5179, %v5470
      %v5472 = vpop.f32.mrb[0].mxu0
      %v5473 = vpop.f32.mrb[0].mxu0
      %v5474 = vadd.f32 %v5182, %v5473
      %v5475 = vpop.f32.mrb[0].mxu0
      %5476 = vmatprep.mubr.bf16.mxu0 0
      %5477 = vmatmul.mubr.bf16.gmra.mrb[0].mxu0 %v5319
      %v5478 = vpop.f32.mrb[0].mxu0
      %v5479 = vadd.f32 %v5187, %v5478
      %v5480 = vpop.f32.mrb[0].mxu0
      %v5481 = vpop.f32.mrb[0].mxu0
      %v5482 = vadd.f32 %v5190, %v5481
      %v5483 = vpop.f32.mrb[0].mxu0
      %5484 = vdwg.mxu0
      %v5501 = vrot.slane %v4492, 5
      %v5502 = vrot.slane %v5501, 4
      %v5503 = vrot.slane %v4493, 5
      %v5504 = vsel %vm2130, %v5502, %v5503
      %v5505 = vrot.slane %v5503, 4
      %v5506 = vrot.slane %v4494, 5
      %v5507 = vsel %vm2130, %v5505, %v5506
      %v5508 = vrot.slane %v4495, 5
      %v5509 = vrot.slane %v5508, 4
      %v5510 = vrot.slane %v4496, 5
      %v5511 = vsel %vm2130, %v5509, %v5510
      %v5512 = vrot.slane %v5510, 4
      %v5513 = vrot.slane %v4497, 5
      %v5514 = vsel %vm2130, %v5512, %v5513
      %v5515 = vrot.slane %v4498, 5
      %v5516 = vrot.slane %v5515, 4
      %v5517 = vrot.slane %v4499, 5
      %v5518 = vsel %vm2130, %v5516, %v5517
      %v5519 = vrot.slane %v5517, 4
      %v5520 = vrot.slane %v4500, 5
      %v5521 = vsel %vm2130, %v5519, %v5520
      %v5522 = vrot.slane %v4501, 5
      %v5523 = vrot.slane %v5522, 4
      %v5524 = vrot.slane %v4502, 5
      %v5525 = vsel %vm2130, %v5523, %v5524
      %v5526 = vrot.slane %v5524, 4
      %v5527 = vrot.slane %v4503, 5
      %v5528 = vsel %vm2130, %v5526, %v5527
      %v5529 = vrot.slane %v4504, 5
      %v5530 = vrot.slane %v5529, 4
      %v5531 = vrot.slane %v4505, 5
      %v5532 = vsel %vm2130, %v5530, %v5531
      %v5533 = vrot.slane %v5531, 4
      %v5534 = vrot.slane %v4506, 5
      %v5535 = vsel %vm2130, %v5533, %v5534
      %v5536 = vrot.slane %v4507, 5
      %v5537 = vrot.slane %v5536, 4
      %v5538 = vrot.slane %v4508, 5
      %v5539 = vsel %vm2130, %v5537, %v5538
      %v5540 = vrot.slane %v5538, 4
      %v5541 = vrot.slane %v4509, 5
      %v5542 = vsel %vm2130, %v5540, %v5541
      %v5543 = vrot.slane %v4510, 5
      %v5544 = vrot.slane %v5543, 4
      %v5545 = vrot.slane %v4511, 5
      %v5546 = vsel %vm2130, %v5544, %v5545
      %v5547 = vrot.slane %v5545, 4
      %v5548 = vrot.slane %v4512, 5
      %v5549 = vsel %vm2130, %v5547, %v5548
      %v5550 = vrot.slane %v4513, 5
      %v5551 = vrot.slane %v5550, 4
      %v5552 = vrot.slane %v4514, 5
      %v5553 = vsel %vm2130, %v5551, %v5552
      %v5554 = vrot.slane %v5552, 4
      %v5555 = vrot.slane %v4515, 5
      %v5556 = vsel %vm2130, %v5554, %v5555
      %v5557 = vrot.slane %v4516, 5
      %v5558 = vrot.slane %v5557, 4
      %v5559 = vrot.slane %v4517, 5
      %v5560 = vsel %vm2130, %v5558, %v5559
      %v5561 = vrot.slane %v5559, 4
      %v5562 = vrot.slane %v4518, 5
      %v5563 = vsel %vm2130, %v5561, %v5562
      %v5564 = vrot.slane %v4519, 5
      %v5565 = vrot.slane %v5564, 4
      %v5566 = vrot.slane %v4520, 5
      %v5567 = vsel %vm2130, %v5565, %v5566
      %v5568 = vrot.slane %v5566, 4
      %v5569 = vrot.slane %v4521, 5
      %v5570 = vsel %vm2130, %v5568, %v5569
      %v5571 = vrot.slane %v4522, 5
      %v5572 = vrot.slane %v5571, 4
      %v5573 = vrot.slane %v4523, 5
      %v5574 = vsel %vm2130, %v5572, %v5573
      %v5575 = vrot.slane %v5573, 4
      %v5576 = vrot.slane %v4524, 5
      %v5577 = vsel %vm2130, %v5575, %v5576
      %v5578 = vrot.slane %v4525, 5
      %v5579 = vrot.slane %v5578, 4
      %v5580 = vrot.slane %v4526, 5
      %v5581 = vsel %vm2130, %v5579, %v5580
      %v5582 = vrot.slane %v5580, 4
      %v5583 = vrot.slane %v4527, 5
      %v5584 = vsel %vm2130, %v5582, %v5583
      %v5585 = vrot.slane %v4528, 5
      %v5586 = vrot.slane %v5585, 4
      %v5587 = vrot.slane %v4529, 5
      %v5588 = vsel %vm2130, %v5586, %v5587
      %v5589 = vrot.slane %v5587, 4
      %v5590 = vrot.slane %v4530, 5
      %v5591 = vsel %vm2130, %v5589, %v5590
      %v5592 = vrot.slane %v4531, 5
      %v5593 = vrot.slane %v5592, 4
      %v5594 = vrot.slane %v4532, 5
      %v5595 = vsel %vm2130, %v5593, %v5594
      %v5596 = vrot.slane %v5594, 4
      %v5597 = vrot.slane %v4533, 5
      %v5598 = vsel %vm2130, %v5596, %v5597
      %v5599 = vrot.slane %v4534, 5
      %v5600 = vrot.slane %v5599, 4
      %v5601 = vrot.slane %v4535, 5
      %v5602 = vsel %vm2130, %v5600, %v5601
      %v5603 = vrot.slane %v5601, 4
      %v5604 = vrot.slane %v4536, 5
      %v5605 = vsel %vm2130, %v5603, %v5604
      %v5606 = vrot.slane %v4537, 5
      %v5607 = vrot.slane %v5606, 4
      %v5608 = vrot.slane %v4538, 5
      %v5609 = vsel %vm2130, %v5607, %v5608
      %v5610 = vrot.slane %v5608, 4
      %v5611 = vrot.slane %v4539, 5
      %v5612 = vsel %vm2130, %v5610, %v5611
      %s5613 = scalar_lea.vmem %s2, 8
      %v5614 = vld [vmem:[%s5613] sm:$0xf]
      %v5615 = vunpack.c.l.b16 %v5504
      %v5616 = vunpack.c.l.b16 %v5507
      %v5617 = vunpack.c.l.b16 %v5511
      %v5618 = vunpack.c.l.b16 %v5514
      %v5619 = vunpack.c.l.b16 %v5518
      %v5620 = vunpack.c.l.b16 %v5521
      %v5621 = vunpack.c.l.b16 %v5525
      %v5622 = vunpack.c.l.b16 %v5528
      %v5623 = vunpack.c.l.b16 %v5532
      %v5624 = vunpack.c.l.b16 %v5535
      %v5625 = vunpack.c.l.b16 %v5539
      %v5626 = vunpack.c.l.b16 %v5542
      %v5627 = vunpack.c.l.b16 %v5546
      %v5628 = vunpack.c.l.b16 %v5549
      %v5629 = vunpack.c.l.b16 %v5553
      %v5630 = vunpack.c.l.b16 %v5556
      %v5631 = vunpack.c.l.b16 %v5560
      %v5632 = vunpack.c.l.b16 %v5563
      %v5633 = vunpack.c.l.b16 %v5567
      %v5634 = vunpack.c.l.b16 %v5570
      %v5635 = vunpack.c.l.b16 %v5574
      %v5636 = vunpack.c.l.b16 %v5577
      %v5637 = vunpack.c.l.b16 %v5581
      %v5638 = vunpack.c.l.b16 %v5584
      %v5639 = vunpack.c.l.b16 %v5588
      %v5640 = vunpack.c.l.b16 %v5591
      %v5641 = vunpack.c.l.b16 %v5595
      %v5642 = vunpack.c.l.b16 %v5598
      %v5643 = vunpack.c.l.b16 %v5602
      %v5644 = vunpack.c.l.b16 %v5605
      %v5645 = vunpack.c.l.b16 %v5609
      %v5646 = vunpack.c.l.b16 %v5612
      %v5647 = vpack.c.b16 %v5616, %v5615
      %v5648 = vpack.c.b16 %v5618, %v5617
      %v5649 = vpack.c.b16 %v5620, %v5619
      %v5650 = vpack.c.b16 %v5622, %v5621
      %v5651 = vpack.c.b16 %v5624, %v5623
      %v5652 = vpack.c.b16 %v5626, %v5625
      %v5653 = vpack.c.b16 %v5628, %v5627
      %v5654 = vpack.c.b16 %v5630, %v5629
      %v5655 = vpack.c.b16 %v5632, %v5631
      %v5656 = vpack.c.b16 %v5634, %v5633
      %v5657 = vpack.c.b16 %v5636, %v5635
      %v5658 = vpack.c.b16 %v5638, %v5637
      %v5659 = vpack.c.b16 %v5640, %v5639
      %v5660 = vpack.c.b16 %v5642, %v5641
      %v5661 = vpack.c.b16 %v5644, %v5643
      %v5662 = vpack.c.b16 %v5646, %v5645
      %v5664 = vsel %vm1606, %v5647, 0
      %v5667 = vsel %vm1606, %v5648, 0
      %v5670 = vsel %vm1606, %v5649, 0
      %v5673 = vsel %vm1606, %v5650, 0
      %v5676 = vsel %vm1606, %v5651, 0
      %v5679 = vsel %vm1606, %v5652, 0
      %v5682 = vsel %vm1606, %v5653, 0
      %v5685 = vsel %vm1606, %v5654, 0
      %v5688 = vsel %vm1606, %v5655, 0
      %v5691 = vsel %vm1606, %v5656, 0
      %v5694 = vsel %vm1606, %v5657, 0
      %v5697 = vsel %vm1606, %v5658, 0
      %v5700 = vsel %vm1606, %v5659, 0
      %v5703 = vsel %vm1606, %v5660, 0
      %v5706 = vsel %vm1606, %v5661, 0
      %v5709 = vsel %vm1606, %v5662, 0
      %v5712 = vsel %vm1655, %v5614, 0
      %5714 = vmatprep.subr.bf16.mxu0 0
      %5715 = vmatpush1.bf16.msra.mxu0 %v5712
      %5716 = vmatprep.subr.bf16.mxu0 0
      %5717 = vmatpush1.bf16.msra.mxu0 0
      %5718 = vmatprep.subr.bf16.mxu0 0
      %5719 = vmatpush1.bf16.msra.mxu0 0
      %5720 = vmatprep.subr.bf16.mxu0 0
      %5721 = vmatpush1.bf16.msra.mxu0 0
      %5722 = vmatprep.subr.bf16.mxu0 0
      %5723 = vmatpush1.bf16.msra.mxu0 0
      %5724 = vmatprep.subr.bf16.mxu0 0
      %5725 = vmatpush1.bf16.msra.mxu0 0
      %5726 = vmatprep.subr.bf16.mxu0 0
      %5727 = vmatpush1.bf16.msra.mxu0 0
      %5728 = vmatprep.subr.bf16.mxu0 0
      %5729 = vmatpush1.bf16.msra.mxu0 0
      %5730 = vmatprep.subr.bf16.mxu0 0
      %5731 = vmatpush1.bf16.msra.mxu0 0
      %5732 = vmatprep.subr.bf16.mxu0 0
      %5733 = vmatpush1.bf16.msra.mxu0 0
      %5734 = vmatprep.subr.bf16.mxu0 0
      %5735 = vmatpush1.bf16.msra.mxu0 0
      %5736 = vmatprep.subr.bf16.mxu0 0
      %5737 = vmatpush1.bf16.msra.mxu0 0
      %5738 = vmatprep.subr.bf16.mxu0 0
      %5739 = vmatpush1.bf16.msra.mxu0 0
      %5740 = vmatprep.subr.bf16.mxu0 0
      %5741 = vmatpush1.bf16.msra.mxu0 0
      %5742 = vmatprep.subr.bf16.mxu0 0
      %5743 = vmatpush1.bf16.msra.mxu0 0
      %5744 = vmatprep.subr.bf16.mxu0 0
      %5745 = vmatpush1.bf16.msra.mxu0 0
      %5746 = vmatprep.mubr.bf16.mxu0 0
      %5747 = vmatmul.mubr.bf16.gmra.mrb[0].mxu0 %v5664
      %v5748 = vpop.f32.mrb[0].mxu0
      %v5749 = vadd.f32 0.0, %v5748
      %v5750 = vpop.f32.mrb[0].mxu0
      %v5751 = vpop.f32.mrb[0].mxu0
      %v5752 = vadd.f32 0.0, %v5751
      %v5753 = vpop.f32.mrb[0].mxu0
      %5754 = vmatprep.mubr.bf16.mxu0 0
      %5755 = vmatmul.mubr.bf16.gmra.mrb[0].mxu0 %v5667
      %v5756 = vpop.f32.mrb[0].mxu0
      %v5757 = vadd.f32 0.0, %v5756
      %v5758 = vpop.f32.mrb[0].mxu0
      %v5759 = vpop.f32.mrb[0].mxu0
      %v5760 = vadd.f32 0.0, %v5759
      %v5761 = vpop.f32.mrb[0].mxu0
      %5762 = vmatprep.mubr.bf16.mxu0 0
      %5763 = vmatmul.mubr.bf16.gmra.mrb[0].mxu0 %v5670
      %v5764 = vpop.f32.mrb[0].mxu0
      %v5765 = vadd.f32 0.0, %v5764
      %v5766 = vpop.f32.mrb[0].mxu0
      %v5767 = vpop.f32.mrb[0].mxu0
      %v5768 = vadd.f32 0.0, %v5767
      %v5769 = vpop.f32.mrb[0].mxu0
      %5770 = vmatprep.mubr.bf16.mxu0 0
      %5771 = vmatmul.mubr.bf16.gmra.mrb[0].mxu0 %v5673
      %v5772 = vpop.f32.mrb[0].mxu0
      %v5773 = vadd.f32 0.0, %v5772
      %v5774 = vpop.f32.mrb[0].mxu0
      %v5775 = vpop.f32.mrb[0].mxu0
      %v5776 = vadd.f32 0.0, %v5775
      %v5777 = vpop.f32.mrb[0].mxu0
      %5778 = vmatprep.mubr.bf16.mxu0 0
      %5779 = vmatmul.mubr.bf16.gmra.mrb[0].mxu0 %v5676
      %v5780 = vpop.f32.mrb[0].mxu0
      %v5781 = vadd.f32 0.0, %v5780
      %v5782 = vpop.f32.mrb[0].mxu0
      %v5783 = vpop.f32.mrb[0].mxu0
      %v5784 = vadd.f32 0.0, %v5783
      %v5785 = vpop.f32.mrb[0].mxu0
      %5786 = vmatprep.mubr.bf16.mxu0 0
      %5787 = vmatmul.mubr.bf16.gmra.mrb[0].mxu0 %v5679
      %v5788 = vpop.f32.mrb[0].mxu0
      %v5789 = vadd.f32 0.0, %v5788
      %v5790 = vpop.f32.mrb[0].mxu0
      %v5791 = vpop.f32.mrb[0].mxu0
      %v5792 = vadd.f32 0.0, %v5791
      %v5793 = vpop.f32.mrb[0].mxu0
      %5794 = vmatprep.mubr.bf16.mxu0 0
      %5795 = vmatmul.mubr.bf16.gmra.mrb[0].mxu0 %v5682
      %v5796 = vpop.f32.mrb[0].mxu0
      %v5797 = vadd.f32 0.0, %v5796
      %v5798 = vpop.f32.mrb[0].mxu0
      %v5799 = vpop.f32.mrb[0].mxu0
      %v5800 = vadd.f32 0.0, %v5799
      %v5801 = vpop.f32.mrb[0].mxu0
      %5802 = vmatprep.mubr.bf16.mxu0 0
      %5803 = vmatmul.mubr.bf16.gmra.mrb[0].mxu0 %v5685
      %v5804 = vpop.f32.mrb[0].mxu0
      %v5805 = vadd.f32 0.0, %v5804
      %v5806 = vpop.f32.mrb[0].mxu0
      %v5807 = vpop.f32.mrb[0].mxu0
      %v5808 = vadd.f32 0.0, %v5807
      %v5809 = vpop.f32.mrb[0].mxu0
      %5810 = vmatprep.mubr.bf16.mxu0 0
      %5811 = vmatmul.mubr.bf16.gmra.mrb[0].mxu0 %v5688
      %v5812 = vpop.f32.mrb[0].mxu0
      %v5813 = vadd.f32 0.0, %v5812
      %v5814 = vpop.f32.mrb[0].mxu0
      %v5815 = vpop.f32.mrb[0].mxu0
      %v5816 = vadd.f32 0.0, %v5815
      %v5817 = vpop.f32.mrb[0].mxu0
      %5818 = vmatprep.mubr.bf16.mxu0 0
      %5819 = vmatmul.mubr.bf16.gmra.mrb[0].mxu0 %v5691
      %v5820 = vpop.f32.mrb[0].mxu0
      %v5821 = vadd.f32 0.0, %v5820
      %v5822 = vpop.f32.mrb[0].mxu0
      %v5823 = vpop.f32.mrb[0].mxu0
      %v5824 = vadd.f32 0.0, %v5823
      %v5825 = vpop.f32.mrb[0].mxu0
      %5826 = vmatprep.mubr.bf16.mxu0 0
      %5827 = vmatmul.mubr.bf16.gmra.mrb[0].mxu0 %v5694
      %v5828 = vpop.f32.mrb[0].mxu0
      %v5829 = vadd.f32 0.0, %v5828
      %v5830 = vpop.f32.mrb[0].mxu0
      %v5831 = vpop.f32.mrb[0].mxu0
      %v5832 = vadd.f32 0.0, %v5831
      %v5833 = vpop.f32.mrb[0].mxu0
      %5834 = vmatprep.mubr.bf16.mxu0 0
      %5835 = vmatmul.mubr.bf16.gmra.mrb[0].mxu0 %v5697
      %v5836 = vpop.f32.mrb[0].mxu0
      %v5837 = vadd.f32 0.0, %v5836
      %v5838 = vpop.f32.mrb[0].mxu0
      %v5839 = vpop.f32.mrb[0].mxu0
      %v5840 = vadd.f32 0.0, %v5839
      %v5841 = vpop.f32.mrb[0].mxu0
      %5842 = vmatprep.mubr.bf16.mxu0 0
      %5843 = vmatmul.mubr.bf16.gmra.mrb[0].mxu0 %v5700
      %v5844 = vpop.f32.mrb[0].mxu0
      %v5845 = vadd.f32 0.0, %v5844
      %v5846 = vpop.f32.mrb[0].mxu0
      %v5847 = vpop.f32.mrb[0].mxu0
      %v5848 = vadd.f32 0.0, %v5847
      %v5849 = vpop.f32.mrb[0].mxu0
      %5850 = vmatprep.mubr.bf16.mxu0 0
      %5851 = vmatmul.mubr.bf16.gmra.mrb[0].mxu0 %v5703
      %v5852 = vpop.f32.mrb[0].mxu0
      %v5853 = vadd.f32 0.0, %v5852
      %v5854 = vpop.f32.mrb[0].mxu0
      %v5855 = vpop.f32.mrb[0].mxu0
      %v5856 = vadd.f32 0.0, %v5855
      %v5857 = vpop.f32.mrb[0].mxu0
      %5858 = vmatprep.mubr.bf16.mxu0 0
      %5859 = vmatmul.mubr.bf16.gmra.mrb[0].mxu0 %v5706
      %v5860 = vpop.f32.mrb[0].mxu0
      %v5861 = vadd.f32 0.0, %v5860
      %v5862 = vpop.f32.mrb[0].mxu0
      %v5863 = vpop.f32.mrb[0].mxu0
      %v5864 = vadd.f32 0.0, %v5863
      %v5865 = vpop.f32.mrb[0].mxu0
      %5866 = vmatprep.mubr.bf16.mxu0 0
      %5867 = vmatmul.mubr.bf16.gmra.mrb[0].mxu0 %v5709
      %v5868 = vpop.f32.mrb[0].mxu0
      %v5869 = vadd.f32 0.0, %v5868
      %v5870 = vpop.f32.mrb[0].mxu0
      %v5871 = vpop.f32.mrb[0].mxu0
      %v5872 = vadd.f32 0.0, %v5871
      %v5873 = vpop.f32.mrb[0].mxu0
      %5874 = vdwg.mxu0
      %v5875 = vadd.f32 %v5359, %v5749
      %v5876 = vadd.f32 %v5362, %v5752
      %v5877 = vadd.f32 %v5367, %v5757
      %v5878 = vadd.f32 %v5370, %v5760
      %v5879 = vadd.f32 %v5375, %v5765
      %v5880 = vadd.f32 %v5378, %v5768
      %v5881 = vadd.f32 %v5383, %v5773
      %v5882 = vadd.f32 %v5386, %v5776
      %v5883 = vadd.f32 %v5391, %v5781
      %v5884 = vadd.f32 %v5394, %v5784
      %v5885 = vadd.f32 %v5399, %v5789
      %v5886 = vadd.f32 %v5402, %v5792
      %v5887 = vadd.f32 %v5407, %v5797
      %v5888 = vadd.f32 %v5410, %v5800
      %v5889 = vadd.f32 %v5415, %v5805
      %v5890 = vadd.f32 %v5418, %v5808
      %v5891 = vadd.f32 %v5423, %v5813
      %v5892 = vadd.f32 %v5426, %v5816
      %v5893 = vadd.f32 %v5431, %v5821
      %v5894 = vadd.f32 %v5434, %v5824
      %v5895 = vadd.f32 %v5439, %v5829
      %v5896 = vadd.f32 %v5442, %v5832
      %v5897 = vadd.f32 %v5447, %v5837
      %v5898 = vadd.f32 %v5450, %v5840
      %v5899 = vadd.f32 %v5455, %v5845
      %v5900 = vadd.f32 %v5458, %v5848
      %v5901 = vadd.f32 %v5463, %v5853
      %v5902 = vadd.f32 %v5466, %v5856
      %v5903 = vadd.f32 %v5471, %v5861
      %v5904 = vadd.f32 %v5474, %v5864
      %v5905 = vadd.f32 %v5479, %v5869
      %v5906 = vadd.f32 %v5482, %v5872
      %s5907 = scalar_lea.vmem %s2, 12
      %v5908 = vld [vmem:[%s5907] sm:$0xf]
      %v5911 = vunpack.c.l.b16 %v4540
      %v5912 = vunpack.c.l.b16 %v4541
      %v5913 = vpack.c.b16 %v5912, %v5911
      %v5915 = vsel %vm1606, %v5913, 0
      %v5918 = vsel %vm1655, %v5908, 0
      %5920 = vmatprep.subr.bf16.mxu0 0
      %5921 = vmatpush1.bf16.msra.mxu0 %v5918
      %5922 = vmatprep.subr.bf16.mxu0 0
      %5923 = vmatpush1.bf16.msra.mxu0 0
      %5924 = vmatprep.subr.bf16.mxu0 0
      %5925 = vmatpush1.bf16.msra.mxu0 0
      %5926 = vmatprep.subr.bf16.mxu0 0
      %5927 = vmatpush1.bf16.msra.mxu0 0
      %5928 = vmatprep.subr.bf16.mxu0 0
      %5929 = vmatpush1.bf16.msra.mxu0 0
      %5930 = vmatprep.subr.bf16.mxu0 0
      %5931 = vmatpush1.bf16.msra.mxu0 0
      %5932 = vmatprep.subr.bf16.mxu0 0
      %5933 = vmatpush1.bf16.msra.mxu0 0
      %5934 = vmatprep.subr.bf16.mxu0 0
      %5935 = vmatpush1.bf16.msra.mxu0 0
      %5936 = vmatprep.subr.bf16.mxu0 0
      %5937 = vmatpush1.bf16.msra.mxu0 0
      %5938 = vmatprep.subr.bf16.mxu0 0
      %5939 = vmatpush1.bf16.msra.mxu0 0
      %5940 = vmatprep.subr.bf16.mxu0 0
      %5941 = vmatpush1.bf16.msra.mxu0 0
      %5942 = vmatprep.subr.bf16.mxu0 0
      %5943 = vmatpush1.bf16.msra.mxu0 0
      %5944 = vmatprep.subr.bf16.mxu0 0
      %5945 = vmatpush1.bf16.msra.mxu0 0
      %5946 = vmatprep.subr.bf16.mxu0 0
      %5947 = vmatpush1.bf16.msra.mxu0 0
      %5948 = vmatprep.subr.bf16.mxu0 0
      %5949 = vmatpush1.bf16.msra.mxu0 0
      %5950 = vmatprep.subr.bf16.mxu0 0
      %5951 = vmatpush1.bf16.msra.mxu0 0
      %5952 = vmatprep.mubr.bf16.mxu0 0
      %5953 = vmatmul.mubr.bf16.gmra.mrb[0].mxu0 %v5277
      %v5954 = vpop.f32.mrb[0].mxu0
      %v5955 = vadd.f32 0.0, %v5954
      %v5956 = vpop.f32.mrb[0].mxu0
      %v5957 = vpop.f32.mrb[0].mxu0
      %v5958 = vadd.f32 0.0, %v5957
      %v5959 = vpop.f32.mrb[0].mxu0
      %5960 = vmatprep.mubr.bf16.mxu0 0
      %5961 = vmatmul.mubr.bf16.gmra.mrb[0].mxu0 %v5280
      %v5962 = vpop.f32.mrb[0].mxu0
      %v5963 = vadd.f32 0.0, %v5962
      %v5964 = vpop.f32.mrb[0].mxu0
      %v5965 = vpop.f32.mrb[0].mxu0
      %v5966 = vadd.f32 0.0, %v5965
      %v5967 = vpop.f32.mrb[0].mxu0
      %5968 = vmatprep.mubr.bf16.mxu0 0
      %5969 = vmatmul.mubr.bf16.gmra.mrb[0].mxu0 %v5283
      %v5970 = vpop.f32.mrb[0].mxu0
      %v5971 = vadd.f32 0.0, %v5970
      %v5972 = vpop.f32.mrb[0].mxu0
      %v5973 = vpop.f32.mrb[0].mxu0
      %v5974 = vadd.f32 0.0, %v5973
      %v5975 = vpop.f32.mrb[0].mxu0
      %5976 = vmatprep.mubr.bf16.mxu0 0
      %5977 = vmatmul.mubr.bf16.gmra.mrb[0].mxu0 %v5286
      %v5978 = vpop.f32.mrb[0].mxu0
      %v5979 = vadd.f32 0.0, %v5978
      %v5980 = vpop.f32.mrb[0].mxu0
      %v5981 = vpop.f32.mrb[0].mxu0
      %v5982 = vadd.f32 0.0, %v5981
      %v5983 = vpop.f32.mrb[0].mxu0
      %5984 = vmatprep.mubr.bf16.mxu0 0
      %5985 = vmatmul.mubr.bf16.gmra.mrb[0].mxu0 %v5289
      %v5986 = vpop.f32.mrb[0].mxu0
      %v5987 = vadd.f32 0.0, %v5986
      %v5988 = vpop.f32.mrb[0].mxu0
      %v5989 = vpop.f32.mrb[0].mxu0
      %v5990 = vadd.f32 0.0, %v5989
      %v5991 = vpop.f32.mrb[0].mxu0
      %5992 = vmatprep.mubr.bf16.mxu0 0
      %5993 = vmatmul.mubr.bf16.gmra.mrb[0].mxu0 %v5292
      %v5994 = vpop.f32.mrb[0].mxu0
      %v5995 = vadd.f32 0.0, %v5994
      %v5996 = vpop.f32.mrb[0].mxu0
      %v5997 = vpop.f32.mrb[0].mxu0
      %v5998 = vadd.f32 0.0, %v5997
      %v5999 = vpop.f32.mrb[0].mxu0
      %6000 = vmatprep.mubr.bf16.mxu0 0
      %6001 = vmatmul.mubr.bf16.gmra.mrb[0].mxu0 %v5295
      %v6002 = vpop.f32.mrb[0].mxu0
      %v6003 = vadd.f32 0.0, %v6002
      %v6004 = vpop.f32.mrb[0].mxu0
      %v6005 = vpop.f32.mrb[0].mxu0
      %v6006 = vadd.f32 0.0, %v6005
      %v6007 = vpop.f32.mrb[0].mxu0
      %6008 = vmatprep.mubr.bf16.mxu0 0
      %6009 = vmatmul.mubr.bf16.gmra.mrb[0].mxu0 %v5298
      %v6010 = vpop.f32.mrb[0].mxu0
      %v6011 = vadd.f32 0.0, %v6010
      %v6012 = vpop.f32.mrb[0].mxu0
      %v6013 = vpop.f32.mrb[0].mxu0
      %v6014 = vadd.f32 0.0, %v6013
      %v6015 = vpop.f32.mrb[0].mxu0
      %6016 = vmatprep.mubr.bf16.mxu0 0
      %6017 = vmatmul.mubr.bf16.gmra.mrb[0].mxu0 %v5301
      %v6018 = vpop.f32.mrb[0].mxu0
      %v6019 = vadd.f32 0.0, %v6018
      %v6020 = vpop.f32.mrb[0].mxu0
      %v6021 = vpop.f32.mrb[0].mxu0
      %v6022 = vadd.f32 0.0, %v6021
      %v6023 = vpop.f32.mrb[0].mxu0
      %6024 = vmatprep.mubr.bf16.mxu0 0
      %6025 = vmatmul.mubr.bf16.gmra.mrb[0].mxu0 %v5304
      %v6026 = vpop.f32.mrb[0].mxu0
      %v6027 = vadd.f32 0.0, %v6026
      %v6028 = vpop.f32.mrb[0].mxu0
      %v6029 = vpop.f32.mrb[0].mxu0
      %v6030 = vadd.f32 0.0, %v6029
      %v6031 = vpop.f32.mrb[0].mxu0
      %6032 = vmatprep.mubr.bf16.mxu0 0
      %6033 = vmatmul.mubr.bf16.gmra.mrb[0].mxu0 %v5307
      %v6034 = vpop.f32.mrb[0].mxu0
      %v6035 = vadd.f32 0.0, %v6034
      %v6036 = vpop.f32.mrb[0].mxu0
      %v6037 = vpop.f32.mrb[0].mxu0
      %v6038 = vadd.f32 0.0, %v6037
      %v6039 = vpop.f32.mrb[0].mxu0
      %6040 = vmatprep.mubr.bf16.mxu0 0
      %6041 = vmatmul.mubr.bf16.gmra.mrb[0].mxu0 %v5310
      %v6042 = vpop.f32.mrb[0].mxu0
      %v6043 = vadd.f32 0.0, %v6042
      %v6044 = vpop.f32.mrb[0].mxu0
      %v6045 = vpop.f32.mrb[0].mxu0
      %v6046 = vadd.f32 0.0, %v6045
      %v6047 = vpop.f32.mrb[0].mxu0
      %6048 = vmatprep.mubr.bf16.mxu0 0
      %6049 = vmatmul.mubr.bf16.gmra.mrb[0].mxu0 %v5313
      %v6050 = vpop.f32.mrb[0].mxu0
      %v6051 = vadd.f32 0.0, %v6050
      %v6052 = vpop.f32.mrb[0].mxu0
      %v6053 = vpop.f32.mrb[0].mxu0
      %v6054 = vadd.f32 0.0, %v6053
      %v6055 = vpop.f32.mrb[0].mxu0
      %6056 = vmatprep.mubr.bf16.mxu0 0
      %6057 = vmatmul.mubr.bf16.gmra.mrb[0].mxu0 %v5316
      %v6058 = vpop.f32.mrb[0].mxu0
      %v6059 = vadd.f32 0.0, %v6058
      %v6060 = vpop.f32.mrb[0].mxu0
      %v6061 = vpop.f32.mrb[0].mxu0
      %v6062 = vadd.f32 0.0, %v6061
      %v6063 = vpop.f32.mrb[0].mxu0
      %6064 = vmatprep.mubr.bf16.mxu0 0
      %6065 = vmatmul.mubr.bf16.gmra.mrb[0].mxu0 %v5319
      %v6066 = vpop.f32.mrb[0].mxu0
      %v6067 = vadd.f32 0.0, %v6066
      %v6068 = vpop.f32.mrb[0].mxu0
      %v6069 = vpop.f32.mrb[0].mxu0
      %v6070 = vadd.f32 0.0, %v6069
      %v6071 = vpop.f32.mrb[0].mxu0
      %6072 = vmatprep.mubr.bf16.mxu0 0
      %6073 = vmatmul.mubr.bf16.gmra.mrb[0].mxu0 %v5915
      %v6074 = vpop.f32.mrb[0].mxu0
      %v6075 = vadd.f32 0.0, %v6074
      %v6076 = vpop.f32.mrb[0].mxu0
      %v6077 = vpop.f32.mrb[0].mxu0
      %v6078 = vadd.f32 0.0, %v6077
      %v6079 = vpop.f32.mrb[0].mxu0
      %6080 = vdwg.mxu0
      %v6081 = vadd.f32 %v5875, %v5955
      %v6082 = vadd.f32 %v5876, %v5958
      %v6083 = vadd.f32 %v5877, %v5963
      %v6084 = vadd.f32 %v5878, %v5966
      %v6085 = vadd.f32 %v5879, %v5971
      %v6086 = vadd.f32 %v5880, %v5974
      %v6087 = vadd.f32 %v5881, %v5979
      %v6088 = vadd.f32 %v5882, %v5982
      %v6089 = vadd.f32 %v5883, %v5987
      %v6090 = vadd.f32 %v5884, %v5990
      %v6091 = vadd.f32 %v5885, %v5995
      %v6092 = vadd.f32 %v5886, %v5998
      %v6093 = vadd.f32 %v5887, %v6003
      %v6094 = vadd.f32 %v5888, %v6006
      %v6095 = vadd.f32 %v5889, %v6011
      %v6096 = vadd.f32 %v5890, %v6014
      %v6097 = vadd.f32 %v5891, %v6019
      %v6098 = vadd.f32 %v5892, %v6022
      %v6099 = vadd.f32 %v5893, %v6027
      %v6100 = vadd.f32 %v5894, %v6030
      %v6101 = vadd.f32 %v5895, %v6035
      %v6102 = vadd.f32 %v5896, %v6038
      %v6103 = vadd.f32 %v5897, %v6043
      %v6104 = vadd.f32 %v5898, %v6046
      %v6105 = vadd.f32 %v5899, %v6051
      %v6106 = vadd.f32 %v5900, %v6054
      %v6107 = vadd.f32 %v5901, %v6059
      %v6108 = vadd.f32 %v5902, %v6062
      %v6109 = vadd.f32 %v5903, %v6067
      %v6110 = vadd.f32 %v5904, %v6070
      %v6111 = vadd.f32 %v5905, %v6075
      %v6112 = vadd.f32 %v5906, %v6078
      %v6114 = vshrl.u32 %v4540, 16
      %v6116 = vrot.slane %v6114, 4
      %v6117 = vshll.u32 %v4540, 16
      %v6119 = vrot.slane %v6117, 5
      %v6120 = vor.u32 %v6116, %v6119
      %v6121 = vrot.slane %v6120, 4
      %v6123 = vshll.u32 %v4541, 16
      %v6125 = vrot.slane %v6123, 5
      %v6126 = vsel %vm1171, %v6121, %v6125
      %v6127 = vshrl.u32 %v4541, 16
      %v6129 = vrot.slane %v6127, 4
      %v6130 = vor.u32 %v6129, %v6125
      %v6131 = vrot.slane %v6130, 4
      %v6133 = vshll.u32 %v4542, 16
      %v6135 = vrot.slane %v6133, 5
      %v6136 = vsel %vm1171, %v6131, %v6135
      %s6137 = scalar_lea.vmem %s2, 16
      %v6138 = vld [vmem:[%s6137] sm:$0xf]
      %v6139 = vunpack.c.l.b16 %v6126
      %v6140 = vunpack.c.l.b16 %v6136
      %v6141 = vpack.c.b16 %v6140, %v6139
      %v6143 = vsel %vm1606, %v6141, 0
      %v6146 = vsel %vm1655, %v6138, 0
      %6148 = vmatprep.subr.bf16.mxu0 0
      %6149 = vmatpush1.bf16.msra.mxu0 %v6146
      %6150 = vmatprep.subr.bf16.mxu0 0
      %6151 = vmatpush1.bf16.msra.mxu0 0
      %6152 = vmatprep.subr.bf16.mxu0 0
      %6153 = vmatpush1.bf16.msra.mxu0 0
      %6154 = vmatprep.subr.bf16.mxu0 0
      %6155 = vmatpush1.bf16.msra.mxu0 0
      %6156 = vmatprep.subr.bf16.mxu0 0
      %6157 = vmatpush1.bf16.msra.mxu0 0
      %6158 = vmatprep.subr.bf16.mxu0 0
      %6159 = vmatpush1.bf16.msra.mxu0 0
      %6160 = vmatprep.subr.bf16.mxu0 0
      %6161 = vmatpush1.bf16.msra.mxu0 0
      %6162 = vmatprep.subr.bf16.mxu0 0
      %6163 = vmatpush1.bf16.msra.mxu0 0
      %6164 = vmatprep.subr.bf16.mxu0 0
      %6165 = vmatpush1.bf16.msra.mxu0 0
      %6166 = vmatprep.subr.bf16.mxu0 0
      %6167 = vmatpush1.bf16.msra.mxu0 0
      %6168 = vmatprep.subr.bf16.mxu0 0
      %6169 = vmatpush1.bf16.msra.mxu0 0
      %6170 = vmatprep.subr.bf16.mxu0 0
      %6171 = vmatpush1.bf16.msra.mxu0 0
      %6172 = vmatprep.subr.bf16.mxu0 0
      %6173 = vmatpush1.bf16.msra.mxu0 0
      %6174 = vmatprep.subr.bf16.mxu0 0
      %6175 = vmatpush1.bf16.msra.mxu0 0
      %6176 = vmatprep.subr.bf16.mxu0 0
      %6177 = vmatpush1.bf16.msra.mxu0 0
      %6178 = vmatprep.subr.bf16.mxu0 0
      %6179 = vmatpush1.bf16.msra.mxu0 0
      %6180 = vmatprep.mubr.bf16.mxu0 0
      %6181 = vmatmul.mubr.bf16.gmra.mrb[0].mxu0 %v4985
      %v6182 = vpop.f32.mrb[0].mxu0
      %v6183 = vadd.f32 0.0, %v6182
      %v6184 = vpop.f32.mrb[0].mxu0
      %v6185 = vpop.f32.mrb[0].mxu0
      %v6186 = vadd.f32 0.0, %v6185
      %v6187 = vpop.f32.mrb[0].mxu0
      %6188 = vmatprep.mubr.bf16.mxu0 0
      %6189 = vmatmul.mubr.bf16.gmra.mrb[0].mxu0 %v4988
      %v6190 = vpop.f32.mrb[0].mxu0
      %v6191 = vadd.f32 0.0, %v6190
      %v6192 = vpop.f32.mrb[0].mxu0
      %v6193 = vpop.f32.mrb[0].mxu0
      %v6194 = vadd.f32 0.0, %v6193
      %v6195 = vpop.f32.mrb[0].mxu0
      %6196 = vmatprep.mubr.bf16.mxu0 0
      %6197 = vmatmul.mubr.bf16.gmra.mrb[0].mxu0 %v4991
      %v6198 = vpop.f32.mrb[0].mxu0
      %v6199 = vadd.f32 0.0, %v6198
      %v6200 = vpop.f32.mrb[0].mxu0
      %v6201 = vpop.f32.mrb[0].mxu0
      %v6202 = vadd.f32 0.0, %v6201
      %v6203 = vpop.f32.mrb[0].mxu0
      %6204 = vmatprep.mubr.bf16.mxu0 0
      %6205 = vmatmul.mubr.bf16.gmra.mrb[0].mxu0 %v4994
      %v6206 = vpop.f32.mrb[0].mxu0
      %v6207 = vadd.f32 0.0, %v6206
      %v6208 = vpop.f32.mrb[0].mxu0
      %v6209 = vpop.f32.mrb[0].mxu0
      %v6210 = vadd.f32 0.0, %v6209
      %v6211 = vpop.f32.mrb[0].mxu0
      %6212 = vmatprep.mubr.bf16.mxu0 0
      %6213 = vmatmul.mubr.bf16.gmra.mrb[0].mxu0 %v4997
      %v6214 = vpop.f32.mrb[0].mxu0
      %v6215 = vadd.f32 0.0, %v6214
      %v6216 = vpop.f32.mrb[0].mxu0
      %v6217 = vpop.f32.mrb[0].mxu0
      %v6218 = vadd.f32 0.0, %v6217
      %v6219 = vpop.f32.mrb[0].mxu0
      %6220 = vmatprep.mubr.bf16.mxu0 0
      %6221 = vmatmul.mubr.bf16.gmra.mrb[0].mxu0 %v5000
      %v6222 = vpop.f32.mrb[0].mxu0
      %v6223 = vadd.f32 0.0, %v6222
      %v6224 = vpop.f32.mrb[0].mxu0
      %v6225 = vpop.f32.mrb[0].mxu0
      %v6226 = vadd.f32 0.0, %v6225
      %v6227 = vpop.f32.mrb[0].mxu0
      %6228 = vmatprep.mubr.bf16.mxu0 0
      %6229 = vmatmul.mubr.bf16.gmra.mrb[0].mxu0 %v5003
      %v6230 = vpop.f32.mrb[0].mxu0
      %v6231 = vadd.f32 0.0, %v6230
      %v6232 = vpop.f32.mrb[0].mxu0
      %v6233 = vpop.f32.mrb[0].mxu0
      %v6234 = vadd.f32 0.0, %v6233
      %v6235 = vpop.f32.mrb[0].mxu0
      %6236 = vmatprep.mubr.bf16.mxu0 0
      %6237 = vmatmul.mubr.bf16.gmra.mrb[0].mxu0 %v5006
      %v6238 = vpop.f32.mrb[0].mxu0
      %v6239 = vadd.f32 0.0, %v6238
      %v6240 = vpop.f32.mrb[0].mxu0
      %v6241 = vpop.f32.mrb[0].mxu0
      %v6242 = vadd.f32 0.0, %v6241
      %v6243 = vpop.f32.mrb[0].mxu0
      %6244 = vmatprep.mubr.bf16.mxu0 0
      %6245 = vmatmul.mubr.bf16.gmra.mrb[0].mxu0 %v5009
      %v6246 = vpop.f32.mrb[0].mxu0
      %v6247 = vadd.f32 0.0, %v6246
      %v6248 = vpop.f32.mrb[0].mxu0
      %v6249 = vpop.f32.mrb[0].mxu0
      %v6250 = vadd.f32 0.0, %v6249
      %v6251 = vpop.f32.mrb[0].mxu0
      %6252 = vmatprep.mubr.bf16.mxu0 0
      %6253 = vmatmul.mubr.bf16.gmra.mrb[0].mxu0 %v5012
      %v6254 = vpop.f32.mrb[0].mxu0
      %v6255 = vadd.f32 0.0, %v6254
      %v6256 = vpop.f32.mrb[0].mxu0
      %v6257 = vpop.f32.mrb[0].mxu0
      %v6258 = vadd.f32 0.0, %v6257
      %v6259 = vpop.f32.mrb[0].mxu0
      %6260 = vmatprep.mubr.bf16.mxu0 0
      %6261 = vmatmul.mubr.bf16.gmra.mrb[0].mxu0 %v5015
      %v6262 = vpop.f32.mrb[0].mxu0
      %v6263 = vadd.f32 0.0, %v6262
      %v6264 = vpop.f32.mrb[0].mxu0
      %v6265 = vpop.f32.mrb[0].mxu0
      %v6266 = vadd.f32 0.0, %v6265
      %v6267 = vpop.f32.mrb[0].mxu0
      %6268 = vmatprep.mubr.bf16.mxu0 0
      %6269 = vmatmul.mubr.bf16.gmra.mrb[0].mxu0 %v5018
      %v6270 = vpop.f32.mrb[0].mxu0
      %v6271 = vadd.f32 0.0, %v6270
      %v6272 = vpop.f32.mrb[0].mxu0
      %v6273 = vpop.f32.mrb[0].mxu0
      %v6274 = vadd.f32 0.0, %v6273
      %v6275 = vpop.f32.mrb[0].mxu0
      %6276 = vmatprep.mubr.bf16.mxu0 0
      %6277 = vmatmul.mubr.bf16.gmra.mrb[0].mxu0 %v5021
      %v6278 = vpop.f32.mrb[0].mxu0
      %v6279 = vadd.f32 0.0, %v6278
      %v6280 = vpop.f32.mrb[0].mxu0
      %v6281 = vpop.f32.mrb[0].mxu0
      %v6282 = vadd.f32 0.0, %v6281
      %v6283 = vpop.f32.mrb[0].mxu0
      %6284 = vmatprep.mubr.bf16.mxu0 0
      %6285 = vmatmul.mubr.bf16.gmra.mrb[0].mxu0 %v5024
      %v6286 = vpop.f32.mrb[0].mxu0
      %v6287 = vadd.f32 0.0, %v6286
      %v6288 = vpop.f32.mrb[0].mxu0
      %v6289 = vpop.f32.mrb[0].mxu0
      %v6290 = vadd.f32 0.0, %v6289
      %v6291 = vpop.f32.mrb[0].mxu0
      %6292 = vmatprep.mubr.bf16.mxu0 0
      %6293 = vmatmul.mubr.bf16.gmra.mrb[0].mxu0 %v5027
      %v6294 = vpop.f32.mrb[0].mxu0
      %v6295 = vadd.f32 0.0, %v6294
      %v6296 = vpop.f32.mrb[0].mxu0
      %v6297 = vpop.f32.mrb[0].mxu0
      %v6298 = vadd.f32 0.0, %v6297
      %v6299 = vpop.f32.mrb[0].mxu0
      %6300 = vmatprep.mubr.bf16.mxu0 0
      %6301 = vmatmul.mubr.bf16.gmra.mrb[0].mxu0 %v6143
      %v6302 = vpop.f32.mrb[0].mxu0
      %v6303 = vadd.f32 0.0, %v6302
      %v6304 = vpop.f32.mrb[0].mxu0
      %v6305 = vpop.f32.mrb[0].mxu0
      %v6306 = vadd.f32 0.0, %v6305
      %v6307 = vpop.f32.mrb[0].mxu0
      %6308 = vdwg.mxu0
      %v6309 = vadd.f32 %v6081, %v6183
      %v6310 = vadd.f32 %v6082, %v6186
      %v6311 = vadd.f32 %v6083, %v6191
      %v6312 = vadd.f32 %v6084, %v6194
      %v6313 = vadd.f32 %v6085, %v6199
      %v6314 = vadd.f32 %v6086, %v6202
      %v6315 = vadd.f32 %v6087, %v6207
      %v6316 = vadd.f32 %v6088, %v6210
      %v6317 = vadd.f32 %v6089, %v6215
      %v6318 = vadd.f32 %v6090, %v6218
      %v6319 = vadd.f32 %v6091, %v6223
      %v6320 = vadd.f32 %v6092, %v6226
      %v6321 = vadd.f32 %v6093, %v6231
      %v6322 = vadd.f32 %v6094, %v6234
      %v6323 = vadd.f32 %v6095, %v6239
      %v6324 = vadd.f32 %v6096, %v6242
      %v6325 = vadd.f32 %v6097, %v6247
      %v6326 = vadd.f32 %v6098, %v6250
      %v6327 = vadd.f32 %v6099, %v6255
      %v6328 = vadd.f32 %v6100, %v6258
      %v6329 = vadd.f32 %v6101, %v6263
      %v6330 = vadd.f32 %v6102, %v6266
      %v6331 = vadd.f32 %v6103, %v6271
      %v6332 = vadd.f32 %v6104, %v6274
      %v6333 = vadd.f32 %v6105, %v6279
      %v6334 = vadd.f32 %v6106, %v6282
      %v6335 = vadd.f32 %v6107, %v6287
      %v6336 = vadd.f32 %v6108, %v6290
      %v6337 = vadd.f32 %v6109, %v6295
      %v6338 = vadd.f32 %v6110, %v6298
      %v6339 = vadd.f32 %v6111, %v6303
      %v6340 = vadd.f32 %v6112, %v6306
      %v6342 = vrot.slane %v4540, 5
      %v6343 = vrot.slane %v6342, 4
      %v6344 = vrot.slane %v4541, 5
      %v6345 = vsel %vm2130, %v6343, %v6344
      %v6346 = vrot.slane %v6344, 4
      %v6347 = vrot.slane %v4542, 5
      %v6348 = vsel %vm2130, %v6346, %v6347
      %s6349 = scalar_lea.vmem %s2, 20
      %v6350 = vld [vmem:[%s6349] sm:$0xf]
      %v6351 = vunpack.c.l.b16 %v6345
      %v6352 = vunpack.c.l.b16 %v6348
      %v6353 = vpack.c.b16 %v6352, %v6351
      %v6355 = vsel %vm1606, %v6353, 0
      %v6358 = vsel %vm1655, %v6350, 0
      %6360 = vmatprep.subr.bf16.mxu0 0
      %6361 = vmatpush1.bf16.msra.mxu0 %v6358
      %6362 = vmatprep.subr.bf16.mxu0 0
      %6363 = vmatpush1.bf16.msra.mxu0 0
      %6364 = vmatprep.subr.bf16.mxu0 0
      %6365 = vmatpush1.bf16.msra.mxu0 0
      %6366 = vmatprep.subr.bf16.mxu0 0
      %6367 = vmatpush1.bf16.msra.mxu0 0
      %6368 = vmatprep.subr.bf16.mxu0 0
      %6369 = vmatpush1.bf16.msra.mxu0 0
      %6370 = vmatprep.subr.bf16.mxu0 0
      %6371 = vmatpush1.bf16.msra.mxu0 0
      %6372 = vmatprep.subr.bf16.mxu0 0
      %6373 = vmatpush1.bf16.msra.mxu0 0
      %6374 = vmatprep.subr.bf16.mxu0 0
      %6375 = vmatpush1.bf16.msra.mxu0 0
      %6376 = vmatprep.subr.bf16.mxu0 0
      %6377 = vmatpush1.bf16.msra.mxu0 0
      %6378 = vmatprep.subr.bf16.mxu0 0
      %6379 = vmatpush1.bf16.msra.mxu0 0
      %6380 = vmatprep.subr.bf16.mxu0 0
      %6381 = vmatpush1.bf16.msra.mxu0 0
      %6382 = vmatprep.subr.bf16.mxu0 0
      %6383 = vmatpush1.bf16.msra.mxu0 0
      %6384 = vmatprep.subr.bf16.mxu0 0
      %6385 = vmatpush1.bf16.msra.mxu0 0
      %6386 = vmatprep.subr.bf16.mxu0 0
      %6387 = vmatpush1.bf16.msra.mxu0 0
      %6388 = vmatprep.subr.bf16.mxu0 0
      %6389 = vmatpush1.bf16.msra.mxu0 0
      %6390 = vmatprep.subr.bf16.mxu0 0
      %6391 = vmatpush1.bf16.msra.mxu0 0
      %6392 = vmatprep.mubr.bf16.mxu0 0
      %6393 = vmatmul.mubr.bf16.gmra.mrb[0].mxu0 %v5667
      %v6394 = vpop.f32.mrb[0].mxu0
      %v6395 = vadd.f32 0.0, %v6394
      %v6396 = vpop.f32.mrb[0].mxu0
      %v6397 = vpop.f32.mrb[0].mxu0
      %v6398 = vadd.f32 0.0, %v6397
      %v6399 = vpop.f32.mrb[0].mxu0
      %6400 = vmatprep.mubr.bf16.mxu0 0
      %6401 = vmatmul.mubr.bf16.gmra.mrb[0].mxu0 %v5670
      %v6402 = vpop.f32.mrb[0].mxu0
      %v6403 = vadd.f32 0.0, %v6402
      %v6404 = vpop.f32.mrb[0].mxu0
      %v6405 = vpop.f32.mrb[0].mxu0
      %v6406 = vadd.f32 0.0, %v6405
      %v6407 = vpop.f32.mrb[0].mxu0
      %6408 = vmatprep.mubr.bf16.mxu0 0
      %6409 = vmatmul.mubr.bf16.gmra.mrb[0].mxu0 %v5673
      %v6410 = vpop.f32.mrb[0].mxu0
      %v6411 = vadd.f32 0.0, %v6410
      %v6412 = vpop.f32.mrb[0].mxu0
      %v6413 = vpop.f32.mrb[0].mxu0
      %v6414 = vadd.f32 0.0, %v6413
      %v6415 = vpop.f32.mrb[0].mxu0
      %6416 = vmatprep.mubr.bf16.mxu0 0
      %6417 = vmatmul.mubr.bf16.gmra.mrb[0].mxu0 %v5676
      %v6418 = vpop.f32.mrb[0].mxu0
      %v6419 = vadd.f32 0.0, %v6418
      %v6420 = vpop.f32.mrb[0].mxu0
      %v6421 = vpop.f32.mrb[0].mxu0
      %v6422 = vadd.f32 0.0, %v6421
      %v6423 = vpop.f32.mrb[0].mxu0
      %6424 = vmatprep.mubr.bf16.mxu0 0
      %6425 = vmatmul.mubr.bf16.gmra.mrb[0].mxu0 %v5679
      %v6426 = vpop.f32.mrb[0].mxu0
      %v6427 = vadd.f32 0.0, %v6426
      %v6428 = vpop.f32.mrb[0].mxu0
      %v6429 = vpop.f32.mrb[0].mxu0
      %v6430 = vadd.f32 0.0, %v6429
      %v6431 = vpop.f32.mrb[0].mxu0
      %6432 = vmatprep.mubr.bf16.mxu0 0
      %6433 = vmatmul.mubr.bf16.gmra.mrb[0].mxu0 %v5682
      %v6434 = vpop.f32.mrb[0].mxu0
      %v6435 = vadd.f32 0.0, %v6434
      %v6436 = vpop.f32.mrb[0].mxu0
      %v6437 = vpop.f32.mrb[0].mxu0
      %v6438 = vadd.f32 0.0, %v6437
      %v6439 = vpop.f32.mrb[0].mxu0
      %6440 = vmatprep.mubr.bf16.mxu0 0
      %6441 = vmatmul.mubr.bf16.gmra.mrb[0].mxu0 %v5685
      %v6442 = vpop.f32.mrb[0].mxu0
      %v6443 = vadd.f32 0.0, %v6442
      %v6444 = vpop.f32.mrb[0].mxu0
      %v6445 = vpop.f32.mrb[0].mxu0
      %v6446 = vadd.f32 0.0, %v6445
      %v6447 = vpop.f32.mrb[0].mxu0
      %6448 = vmatprep.mubr.bf16.mxu0 0
      %6449 = vmatmul.mubr.bf16.gmra.mrb[0].mxu0 %v5688
      %v6450 = vpop.f32.mrb[0].mxu0
      %v6451 = vadd.f32 0.0, %v6450
      %v6452 = vpop.f32.mrb[0].mxu0
      %v6453 = vpop.f32.mrb[0].mxu0
      %v6454 = vadd.f32 0.0, %v6453
      %v6455 = vpop.f32.mrb[0].mxu0
      %6456 = vmatprep.mubr.bf16.mxu0 0
      %6457 = vmatmul.mubr.bf16.gmra.mrb[0].mxu0 %v5691
      %v6458 = vpop.f32.mrb[0].mxu0
      %v6459 = vadd.f32 0.0, %v6458
      %v6460 = vpop.f32.mrb[0].mxu0
      %v6461 = vpop.f32.mrb[0].mxu0
      %v6462 = vadd.f32 0.0, %v6461
      %v6463 = vpop.f32.mrb[0].mxu0
      %6464 = vmatprep.mubr.bf16.mxu0 0
      %6465 = vmatmul.mubr.bf16.gmra.mrb[0].mxu0 %v5694
      %v6466 = vpop.f32.mrb[0].mxu0
      %v6467 = vadd.f32 0.0, %v6466
      %v6468 = vpop.f32.mrb[0].mxu0
      %v6469 = vpop.f32.mrb[0].mxu0
      %v6470 = vadd.f32 0.0, %v6469
      %v6471 = vpop.f32.mrb[0].mxu0
      %6472 = vmatprep.mubr.bf16.mxu0 0
      %6473 = vmatmul.mubr.bf16.gmra.mrb[0].mxu0 %v5697
      %v6474 = vpop.f32.mrb[0].mxu0
      %v6475 = vadd.f32 0.0, %v6474
      %v6476 = vpop.f32.mrb[0].mxu0
      %v6477 = vpop.f32.mrb[0].mxu0
      %v6478 = vadd.f32 0.0, %v6477
      %v6479 = vpop.f32.mrb[0].mxu0
      %6480 = vmatprep.mubr.bf16.mxu0 0
      %6481 = vmatmul.mubr.bf16.gmra.mrb[0].mxu0 %v5700
      %v6482 = vpop.f32.mrb[0].mxu0
      %v6483 = vadd.f32 0.0, %v6482
      %v6484 = vpop.f32.mrb[0].mxu0
      %v6485 = vpop.f32.mrb[0].mxu0
      %v6486 = vadd.f32 0.0, %v6485
      %v6487 = vpop.f32.mrb[0].mxu0
      %6488 = vmatprep.mubr.bf16.mxu0 0
      %6489 = vmatmul.mubr.bf16.gmra.mrb[0].mxu0 %v5703
      %v6490 = vpop.f32.mrb[0].mxu0
      %v6491 = vadd.f32 0.0, %v6490
      %v6492 = vpop.f32.mrb[0].mxu0
      %v6493 = vpop.f32.mrb[0].mxu0
      %v6494 = vadd.f32 0.0, %v6493
      %v6495 = vpop.f32.mrb[0].mxu0
      %6496 = vmatprep.mubr.bf16.mxu0 0
      %6497 = vmatmul.mubr.bf16.gmra.mrb[0].mxu0 %v5706
      %v6498 = vpop.f32.mrb[0].mxu0
      %v6499 = vadd.f32 0.0, %v6498
      %v6500 = vpop.f32.mrb[0].mxu0
      %v6501 = vpop.f32.mrb[0].mxu0
      %v6502 = vadd.f32 0.0, %v6501
      %v6503 = vpop.f32.mrb[0].mxu0
      %6504 = vmatprep.mubr.bf16.mxu0 0
      %6505 = vmatmul.mubr.bf16.gmra.mrb[0].mxu0 %v5709
      %v6506 = vpop.f32.mrb[0].mxu0
      %v6507 = vadd.f32 0.0, %v6506
      %v6508 = vpop.f32.mrb[0].mxu0
      %v6509 = vpop.f32.mrb[0].mxu0
      %v6510 = vadd.f32 0.0, %v6509
      %v6511 = vpop.f32.mrb[0].mxu0
      %6512 = vmatprep.mubr.bf16.mxu0 0
      %6513 = vmatmul.mubr.bf16.gmra.mrb[0].mxu0 %v6355
      %v6514 = vpop.f32.mrb[0].mxu0
      %v6515 = vadd.f32 0.0, %v6514
      %v6516 = vpop.f32.mrb[0].mxu0
      %v6517 = vpop.f32.mrb[0].mxu0
      %v6518 = vadd.f32 0.0, %v6517
      %v6519 = vpop.f32.mrb[0].mxu0
      %6520 = vdwg.mxu0
      %v6521 = vadd.f32 %v6309, %v6395
      %v6522 = vadd.f32 %v6310, %v6398
      %v6523 = vadd.f32 %v6311, %v6403
      %v6524 = vadd.f32 %v6312, %v6406
      %v6525 = vadd.f32 %v6313, %v6411
      %v6526 = vadd.f32 %v6314, %v6414
      %v6527 = vadd.f32 %v6315, %v6419
      %v6528 = vadd.f32 %v6316, %v6422
      %v6529 = vadd.f32 %v6317, %v6427
      %v6530 = vadd.f32 %v6318, %v6430
      %v6531 = vadd.f32 %v6319, %v6435
      %v6532 = vadd.f32 %v6320, %v6438
      %v6533 = vadd.f32 %v6321, %v6443
      %v6534 = vadd.f32 %v6322, %v6446
      %v6535 = vadd.f32 %v6323, %v6451
      %v6536 = vadd.f32 %v6324, %v6454
      %v6537 = vadd.f32 %v6325, %v6459
      %v6538 = vadd.f32 %v6326, %v6462
      %v6539 = vadd.f32 %v6327, %v6467
      %v6540 = vadd.f32 %v6328, %v6470
      %v6541 = vadd.f32 %v6329, %v6475
      %v6542 = vadd.f32 %v6330, %v6478
      %v6543 = vadd.f32 %v6331, %v6483
      %v6544 = vadd.f32 %v6332, %v6486
      %v6545 = vadd.f32 %v6333, %v6491
      %v6546 = vadd.f32 %v6334, %v6494
      %v6547 = vadd.f32 %v6335, %v6499
      %v6548 = vadd.f32 %v6336, %v6502
      %v6549 = vadd.f32 %v6337, %v6507
      %v6550 = vadd.f32 %v6338, %v6510
      %v6551 = vadd.f32 %v6339, %v6515
      %v6552 = vadd.f32 %v6340, %v6518
      %s6553 = scalar_lea.vmem %s2, 24
      %v6554 = vld [vmem:[%s6553] sm:$0xf]
      %v6557 = vunpack.c.l.b16 %v4543
      %v6558 = vunpack.c.l.b16 %v4544
      %v6559 = vpack.c.b16 %v6558, %v6557
      %v6561 = vsel %vm1606, %v6559, 0
      %v6564 = vsel %vm1655, %v6554, 0
      %6566 = vmatprep.subr.bf16.mxu0 0
      %6567 = vmatpush1.bf16.msra.mxu0 %v6564
      %6568 = vmatprep.subr.bf16.mxu0 0
      %6569 = vmatpush1.bf16.msra.mxu0 0
      %6570 = vmatprep.subr.bf16.mxu0 0
      %6571 = vmatpush1.bf16.msra.mxu0 0
      %6572 = vmatprep.subr.bf16.mxu0 0
      %6573 = vmatpush1.bf16.msra.mxu0 0
      %6574 = vmatprep.subr.bf16.mxu0 0
      %6575 = vmatpush1.bf16.msra.mxu0 0
      %6576 = vmatprep.subr.bf16.mxu0 0
      %6577 = vmatpush1.bf16.msra.mxu0 0
      %6578 = vmatprep.subr.bf16.mxu0 0
      %6579 = vmatpush1.bf16.msra.mxu0 0
      %6580 = vmatprep.subr.bf16.mxu0 0
      %6581 = vmatpush1.bf16.msra.mxu0 0
      %6582 = vmatprep.subr.bf16.mxu0 0
      %6583 = vmatpush1.bf16.msra.mxu0 0
      %6584 = vmatprep.subr.bf16.mxu0 0
      %6585 = vmatpush1.bf16.msra.mxu0 0
      %6586 = vmatprep.subr.bf16.mxu0 0
      %6587 = vmatpush1.bf16.msra.mxu0 0
      %6588 = vmatprep.subr.bf16.mxu0 0
      %6589 = vmatpush1.bf16.msra.mxu0 0
      %6590 = vmatprep.subr.bf16.mxu0 0
      %6591 = vmatpush1.bf16.msra.mxu0 0
      %6592 = vmatprep.subr.bf16.mxu0 0
      %6593 = vmatpush1.bf16.msra.mxu0 0
      %6594 = vmatprep.subr.bf16.mxu0 0
      %6595 = vmatpush1.bf16.msra.mxu0 0
      %6596 = vmatprep.subr.bf16.mxu0 0
      %6597 = vmatpush1.bf16.msra.mxu0 0
      %6598 = vmatprep.mubr.bf16.mxu0 0
      %6599 = vmatmul.mubr.bf16.gmra.mrb[0].mxu0 %v5280
      %v6600 = vpop.f32.mrb[0].mxu0
      %v6601 = vadd.f32 0.0, %v6600
      %v6602 = vpop.f32.mrb[0].mxu0
      %v6603 = vpop.f32.mrb[0].mxu0
      %v6604 = vadd.f32 0.0, %v6603
      %v6605 = vpop.f32.mrb[0].mxu0
      %6606 = vmatprep.mubr.bf16.mxu0 0
      %6607 = vmatmul.mubr.bf16.gmra.mrb[0].mxu0 %v5283
      %v6608 = vpop.f32.mrb[0].mxu0
      %v6609 = vadd.f32 0.0, %v6608
      %v6610 = vpop.f32.mrb[0].mxu0
      %v6611 = vpop.f32.mrb[0].mxu0
      %v6612 = vadd.f32 0.0, %v6611
      %v6613 = vpop.f32.mrb[0].mxu0
      %6614 = vmatprep.mubr.bf16.mxu0 0
      %6615 = vmatmul.mubr.bf16.gmra.mrb[0].mxu0 %v5286
      %v6616 = vpop.f32.mrb[0].mxu0
      %v6617 = vadd.f32 0.0, %v6616
      %v6618 = vpop.f32.mrb[0].mxu0
      %v6619 = vpop.f32.mrb[0].mxu0
      %v6620 = vadd.f32 0.0, %v6619
      %v6621 = vpop.f32.mrb[0].mxu0
      %6622 = vmatprep.mubr.bf16.mxu0 0
      %6623 = vmatmul.mubr.bf16.gmra.mrb[0].mxu0 %v5289
      %v6624 = vpop.f32.mrb[0].mxu0
      %v6625 = vadd.f32 0.0, %v6624
      %v6626 = vpop.f32.mrb[0].mxu0
      %v6627 = vpop.f32.mrb[0].mxu0
      %v6628 = vadd.f32 0.0, %v6627
      %v6629 = vpop.f32.mrb[0].mxu0
      %6630 = vmatprep.mubr.bf16.mxu0 0
      %6631 = vmatmul.mubr.bf16.gmra.mrb[0].mxu0 %v5292
      %v6632 = vpop.f32.mrb[0].mxu0
      %v6633 = vadd.f32 0.0, %v6632
      %v6634 = vpop.f32.mrb[0].mxu0
      %v6635 = vpop.f32.mrb[0].mxu0
      %v6636 = vadd.f32 0.0, %v6635
      %v6637 = vpop.f32.mrb[0].mxu0
      %6638 = vmatprep.mubr.bf16.mxu0 0
      %6639 = vmatmul.mubr.bf16.gmra.mrb[0].mxu0 %v5295
      %v6640 = vpop.f32.mrb[0].mxu0
      %v6641 = vadd.f32 0.0, %v6640
      %v6642 = vpop.f32.mrb[0].mxu0
      %v6643 = vpop.f32.mrb[0].mxu0
      %v6644 = vadd.f32 0.0, %v6643
      %v6645 = vpop.f32.mrb[0].mxu0
      %6646 = vmatprep.mubr.bf16.mxu0 0
      %6647 = vmatmul.mubr.bf16.gmra.mrb[0].mxu0 %v5298
      %v6648 = vpop.f32.mrb[0].mxu0
      %v6649 = vadd.f32 0.0, %v6648
      %v6650 = vpop.f32.mrb[0].mxu0
      %v6651 = vpop.f32.mrb[0].mxu0
      %v6652 = vadd.f32 0.0, %v6651
      %v6653 = vpop.f32.mrb[0].mxu0
      %6654 = vmatprep.mubr.bf16.mxu0 0
      %6655 = vmatmul.mubr.bf16.gmra.mrb[0].mxu0 %v5301
      %v6656 = vpop.f32.mrb[0].mxu0
      %v6657 = vadd.f32 0.0, %v6656
      %v6658 = vpop.f32.mrb[0].mxu0
      %v6659 = vpop.f32.mrb[0].mxu0
      %v6660 = vadd.f32 0.0, %v6659
      %v6661 = vpop.f32.mrb[0].mxu0
      %6662 = vmatprep.mubr.bf16.mxu0 0
      %6663 = vmatmul.mubr.bf16.gmra.mrb[0].mxu0 %v5304
      %v6664 = vpop.f32.mrb[0].mxu0
      %v6665 = vadd.f32 0.0, %v6664
      %v6666 = vpop.f32.mrb[0].mxu0
      %v6667 = vpop.f32.mrb[0].mxu0
      %v6668 = vadd.f32 0.0, %v6667
      %v6669 = vpop.f32.mrb[0].mxu0
      %6670 = vmatprep.mubr.bf16.mxu0 0
      %6671 = vmatmul.mubr.bf16.gmra.mrb[0].mxu0 %v5307
      %v6672 = vpop.f32.mrb[0].mxu0
      %v6673 = vadd.f32 0.0, %v6672
      %v6674 = vpop.f32.mrb[0].mxu0
      %v6675 = vpop.f32.mrb[0].mxu0
      %v6676 = vadd.f32 0.0, %v6675
      %v6677 = vpop.f32.mrb[0].mxu0
      %6678 = vmatprep.mubr.bf16.mxu0 0
      %6679 = vmatmul.mubr.bf16.gmra.mrb[0].mxu0 %v5310
      %v6680 = vpop.f32.mrb[0].mxu0
      %v6681 = vadd.f32 0.0, %v6680
      %v6682 = vpop.f32.mrb[0].mxu0
      %v6683 = vpop.f32.mrb[0].mxu0
      %v6684 = vadd.f32 0.0, %v6683
      %v6685 = vpop.f32.mrb[0].mxu0
      %6686 = vmatprep.mubr.bf16.mxu0 0
      %6687 = vmatmul.mubr.bf16.gmra.mrb[0].mxu0 %v5313
      %v6688 = vpop.f32.mrb[0].mxu0
      %v6689 = vadd.f32 0.0, %v6688
      %v6690 = vpop.f32.mrb[0].mxu0
      %v6691 = vpop.f32.mrb[0].mxu0
      %v6692 = vadd.f32 0.0, %v6691
      %v6693 = vpop.f32.mrb[0].mxu0
      %6694 = vmatprep.mubr.bf16.mxu0 0
      %6695 = vmatmul.mubr.bf16.gmra.mrb[0].mxu0 %v5316
      %v6696 = vpop.f32.mrb[0].mxu0
      %v6697 = vadd.f32 0.0, %v6696
      %v6698 = vpop.f32.mrb[0].mxu0
      %v6699 = vpop.f32.mrb[0].mxu0
      %v6700 = vadd.f32 0.0, %v6699
      %v6701 = vpop.f32.mrb[0].mxu0
      %6702 = vmatprep.mubr.bf16.mxu0 0
      %6703 = vmatmul.mubr.bf16.gmra.mrb[0].mxu0 %v5319
      %v6704 = vpop.f32.mrb[0].mxu0
      %v6705 = vadd.f32 0.0, %v6704
      %v6706 = vpop.f32.mrb[0].mxu0
      %v6707 = vpop.f32.mrb[0].mxu0
      %v6708 = vadd.f32 0.0, %v6707
      %v6709 = vpop.f32.mrb[0].mxu0
      %6710 = vmatprep.mubr.bf16.mxu0 0
      %6711 = vmatmul.mubr.bf16.gmra.mrb[0].mxu0 %v5915
      %v6712 = vpop.f32.mrb[0].mxu0
      %v6713 = vadd.f32 0.0, %v6712
      %v6714 = vpop.f32.mrb[0].mxu0
      %v6715 = vpop.f32.mrb[0].mxu0
      %v6716 = vadd.f32 0.0, %v6715
      %v6717 = vpop.f32.mrb[0].mxu0
      %6718 = vmatprep.mubr.bf16.mxu0 0
      %6719 = vmatmul.mubr.bf16.gmra.mrb[0].mxu0 %v6561
      %v6720 = vpop.f32.mrb[0].mxu0
      %v6721 = vadd.f32 0.0, %v6720
      %v6722 = vpop.f32.mrb[0].mxu0
      %v6723 = vpop.f32.mrb[0].mxu0
      %v6724 = vadd.f32 0.0, %v6723
      %v6725 = vpop.f32.mrb[0].mxu0
      %6726 = vdwg.mxu0
      %v6727 = vadd.f32 %v6521, %v6601
      %v6728 = vadd.f32 %v6522, %v6604
      %v6729 = vadd.f32 %v6523, %v6609
      %v6730 = vadd.f32 %v6524, %v6612
      %v6731 = vadd.f32 %v6525, %v6617
      %v6732 = vadd.f32 %v6526, %v6620
      %v6733 = vadd.f32 %v6527, %v6625
      %v6734 = vadd.f32 %v6528, %v6628
      %v6735 = vadd.f32 %v6529, %v6633
      %v6736 = vadd.f32 %v6530, %v6636
      %v6737 = vadd.f32 %v6531, %v6641
      %v6738 = vadd.f32 %v6532, %v6644
      %v6739 = vadd.f32 %v6533, %v6649
      %v6740 = vadd.f32 %v6534, %v6652
      %v6741 = vadd.f32 %v6535, %v6657
      %v6742 = vadd.f32 %v6536, %v6660
      %v6743 = vadd.f32 %v6537, %v6665
      %v6744 = vadd.f32 %v6538, %v6668
      %v6745 = vadd.f32 %v6539, %v6673
      %v6746 = vadd.f32 %v6540, %v6676
      %v6747 = vadd.f32 %v6541, %v6681
      %v6748 = vadd.f32 %v6542, %v6684
      %v6749 = vadd.f32 %v6543, %v6689
      %v6750 = vadd.f32 %v6544, %v6692
      %v6751 = vadd.f32 %v6545, %v6697
      %v6752 = vadd.f32 %v6546, %v6700
      %v6753 = vadd.f32 %v6547, %v6705
      %v6754 = vadd.f32 %v6548, %v6708
      %v6755 = vadd.f32 %v6549, %v6713
      %v6756 = vadd.f32 %v6550, %v6716
      %v6757 = vadd.f32 %v6551, %v6721
      %v6758 = vadd.f32 %v6552, %v6724
      %v6760 = vshrl.u32 %v4543, 16
      %v6762 = vrot.slane %v6760, 4
      %v6763 = vshll.u32 %v4543, 16
      %v6765 = vrot.slane %v6763, 5
      %v6766 = vor.u32 %v6762, %v6765
      %v6767 = vrot.slane %v6766, 4
      %v6769 = vshll.u32 %v4544, 16
      %v6771 = vrot.slane %v6769, 5
      %v6772 = vsel %vm1171, %v6767, %v6771
      %v6773 = vshrl.u32 %v4544, 16
      %v6775 = vrot.slane %v6773, 4
      %v6776 = vor.u32 %v6775, %v6771
      %v6777 = vrot.slane %v6776, 4
      %v6779 = vshll.u32 %v4545, 16
      %v6781 = vrot.slane %v6779, 5
      %v6782 = vsel %vm1171, %v6777, %v6781
      %s6783 = scalar_lea.vmem %s2, 28
      %v6784 = vld [vmem:[%s6783] sm:$0xf]
      %v6785 = vunpack.c.l.b16 %v6772
      %v6786 = vunpack.c.l.b16 %v6782
      %v6787 = vpack.c.b16 %v6786, %v6785
      %v6789 = vsel %vm1606, %v6787, 0
      %v6792 = vsel %vm1655, %v6784, 0
      %6794 = vmatprep.subr.bf16.mxu0 0
      %6795 = vmatpush1.bf16.msra.mxu0 %v6792
      %6796 = vmatprep.subr.bf16.mxu0 0
      %6797 = vmatpush1.bf16.msra.mxu0 0
      %6798 = vmatprep.subr.bf16.mxu0 0
      %6799 = vmatpush1.bf16.msra.mxu0 0
      %6800 = vmatprep.subr.bf16.mxu0 0
      %6801 = vmatpush1.bf16.msra.mxu0 0
      %6802 = vmatprep.subr.bf16.mxu0 0
      %6803 = vmatpush1.bf16.msra.mxu0 0
      %6804 = vmatprep.subr.bf16.mxu0 0
      %6805 = vmatpush1.bf16.msra.mxu0 0
      %6806 = vmatprep.subr.bf16.mxu0 0
      %6807 = vmatpush1.bf16.msra.mxu0 0
      %6808 = vmatprep.subr.bf16.mxu0 0
      %6809 = vmatpush1.bf16.msra.mxu0 0
      %6810 = vmatprep.subr.bf16.mxu0 0
      %6811 = vmatpush1.bf16.msra.mxu0 0
      %6812 = vmatprep.subr.bf16.mxu0 0
      %6813 = vmatpush1.bf16.msra.mxu0 0
      %6814 = vmatprep.subr.bf16.mxu0 0
      %6815 = vmatpush1.bf16.msra.mxu0 0
      %6816 = vmatprep.subr.bf16.mxu0 0
      %6817 = vmatpush1.bf16.msra.mxu0 0
      %6818 = vmatprep.subr.bf16.mxu0 0
      %6819 = vmatpush1.bf16.msra.mxu0 0
      %6820 = vmatprep.subr.bf16.mxu0 0
      %6821 = vmatpush1.bf16.msra.mxu0 0
      %6822 = vmatprep.subr.bf16.mxu0 0
      %6823 = vmatpush1.bf16.msra.mxu0 0
      %6824 = vmatprep.subr.bf16.mxu0 0
      %6825 = vmatpush1.bf16.msra.mxu0 0
      %6826 = vmatprep.mubr.bf16.mxu0 0
      %6827 = vmatmul.mubr.bf16.gmra.mrb[0].mxu0 %v4988
      %v6828 = vpop.f32.mrb[0].mxu0
      %v6829 = vadd.f32 0.0, %v6828
      %v6830 = vpop.f32.mrb[0].mxu0
      %v6831 = vpop.f32.mrb[0].mxu0
      %v6832 = vadd.f32 0.0, %v6831
      %v6833 = vpop.f32.mrb[0].mxu0
      %6834 = vmatprep.mubr.bf16.mxu0 0
      %6835 = vmatmul.mubr.bf16.gmra.mrb[0].mxu0 %v4991
      %v6836 = vpop.f32.mrb[0].mxu0
      %v6837 = vadd.f32 0.0, %v6836
      %v6838 = vpop.f32.mrb[0].mxu0
      %v6839 = vpop.f32.mrb[0].mxu0
      %v6840 = vadd.f32 0.0, %v6839
      %v6841 = vpop.f32.mrb[0].mxu0
      %6842 = vmatprep.mubr.bf16.mxu0 0
      %6843 = vmatmul.mubr.bf16.gmra.mrb[0].mxu0 %v4994
      %v6844 = vpop.f32.mrb[0].mxu0
      %v6845 = vadd.f32 0.0, %v6844
      %v6846 = vpop.f32.mrb[0].mxu0
      %v6847 = vpop.f32.mrb[0].mxu0
      %v6848 = vadd.f32 0.0, %v6847
      %v6849 = vpop.f32.mrb[0].mxu0
      %6850 = vmatprep.mubr.bf16.mxu0 0
      %6851 = vmatmul.mubr.bf16.gmra.mrb[0].mxu0 %v4997
      %v6852 = vpop.f32.mrb[0].mxu0
      %v6853 = vadd.f32 0.0, %v6852
      %v6854 = vpop.f32.mrb[0].mxu0
      %v6855 = vpop.f32.mrb[0].mxu0
      %v6856 = vadd.f32 0.0, %v6855
      %v6857 = vpop.f32.mrb[0].mxu0
      %6858 = vmatprep.mubr.bf16.mxu0 0
      %6859 = vmatmul.mubr.bf16.gmra.mrb[0].mxu0 %v5000
      %v6860 = vpop.f32.mrb[0].mxu0
      %v6861 = vadd.f32 0.0, %v6860
      %v6862 = vpop.f32.mrb[0].mxu0
      %v6863 = vpop.f32.mrb[0].mxu0
      %v6864 = vadd.f32 0.0, %v6863
      %v6865 = vpop.f32.mrb[0].mxu0
      %6866 = vmatprep.mubr.bf16.mxu0 0
      %6867 = vmatmul.mubr.bf16.gmra.mrb[0].mxu0 %v5003
      %v6868 = vpop.f32.mrb[0].mxu0
      %v6869 = vadd.f32 0.0, %v6868
      %v6870 = vpop.f32.mrb[0].mxu0
      %v6871 = vpop.f32.mrb[0].mxu0
      %v6872 = vadd.f32 0.0, %v6871
      %v6873 = vpop.f32.mrb[0].mxu0
      %6874 = vmatprep.mubr.bf16.mxu0 0
      %6875 = vmatmul.mubr.bf16.gmra.mrb[0].mxu0 %v5006
      %v6876 = vpop.f32.mrb[0].mxu0
      %v6877 = vadd.f32 0.0, %v6876
      %v6878 = vpop.f32.mrb[0].mxu0
      %v6879 = vpop.f32.mrb[0].mxu0
      %v6880 = vadd.f32 0.0, %v6879
      %v6881 = vpop.f32.mrb[0].mxu0
      %6882 = vmatprep.mubr.bf16.mxu0 0
      %6883 = vmatmul.mubr.bf16.gmra.mrb[0].mxu0 %v5009
      %v6884 = vpop.f32.mrb[0].mxu0
      %v6885 = vadd.f32 0.0, %v6884
      %v6886 = vpop.f32.mrb[0].mxu0
      %v6887 = vpop.f32.mrb[0].mxu0
      %v6888 = vadd.f32 0.0, %v6887
      %v6889 = vpop.f32.mrb[0].mxu0
      %6890 = vmatprep.mubr.bf16.mxu0 0
      %6891 = vmatmul.mubr.bf16.gmra.mrb[0].mxu0 %v5012
      %v6892 = vpop.f32.mrb[0].mxu0
      %v6893 = vadd.f32 0.0, %v6892
      %v6894 = vpop.f32.mrb[0].mxu0
      %v6895 = vpop.f32.mrb[0].mxu0
      %v6896 = vadd.f32 0.0, %v6895
      %v6897 = vpop.f32.mrb[0].mxu0
      %6898 = vmatprep.mubr.bf16.mxu0 0
      %6899 = vmatmul.mubr.bf16.gmra.mrb[0].mxu0 %v5015
      %v6900 = vpop.f32.mrb[0].mxu0
      %v6901 = vadd.f32 0.0, %v6900
      %v6902 = vpop.f32.mrb[0].mxu0
      %v6903 = vpop.f32.mrb[0].mxu0
      %v6904 = vadd.f32 0.0, %v6903
      %v6905 = vpop.f32.mrb[0].mxu0
      %6906 = vmatprep.mubr.bf16.mxu0 0
      %6907 = vmatmul.mubr.bf16.gmra.mrb[0].mxu0 %v5018
      %v6908 = vpop.f32.mrb[0].mxu0
      %v6909 = vadd.f32 0.0, %v6908
      %v6910 = vpop.f32.mrb[0].mxu0
      %v6911 = vpop.f32.mrb[0].mxu0
      %v6912 = vadd.f32 0.0, %v6911
      %v6913 = vpop.f32.mrb[0].mxu0
      %6914 = vmatprep.mubr.bf16.mxu0 0
      %6915 = vmatmul.mubr.bf16.gmra.mrb[0].mxu0 %v5021
      %v6916 = vpop.f32.mrb[0].mxu0
      %v6917 = vadd.f32 0.0, %v6916
      %v6918 = vpop.f32.mrb[0].mxu0
      %v6919 = vpop.f32.mrb[0].mxu0
      %v6920 = vadd.f32 0.0, %v6919
      %v6921 = vpop.f32.mrb[0].mxu0
      %6922 = vmatprep.mubr.bf16.mxu0 0
      %6923 = vmatmul.mubr.bf16.gmra.mrb[0].mxu0 %v5024
      %v6924 = vpop.f32.mrb[0].mxu0
      %v6925 = vadd.f32 0.0, %v6924
      %v6926 = vpop.f32.mrb[0].mxu0
      %v6927 = vpop.f32.mrb[0].mxu0
      %v6928 = vadd.f32 0.0, %v6927
      %v6929 = vpop.f32.mrb[0].mxu0
      %6930 = vmatprep.mubr.bf16.mxu0 0
      %6931 = vmatmul.mubr.bf16.gmra.mrb[0].mxu0 %v5027
      %v6932 = vpop.f32.mrb[0].mxu0
      %v6933 = vadd.f32 0.0, %v6932
      %v6934 = vpop.f32.mrb[0].mxu0
      %v6935 = vpop.f32.mrb[0].mxu0
      %v6936 = vadd.f32 0.0, %v6935
      %v6937 = vpop.f32.mrb[0].mxu0
      %6938 = vmatprep.mubr.bf16.mxu0 0
      %6939 = vmatmul.mubr.bf16.gmra.mrb[0].mxu0 %v6143
      %v6940 = vpop.f32.mrb[0].mxu0
      %v6941 = vadd.f32 0.0, %v6940
      %v6942 = vpop.f32.mrb[0].mxu0
      %v6943 = vpop.f32.mrb[0].mxu0
      %v6944 = vadd.f32 0.0, %v6943
      %v6945 = vpop.f32.mrb[0].mxu0
      %6946 = vmatprep.mubr.bf16.mxu0 0
      %6947 = vmatmul.mubr.bf16.gmra.mrb[0].mxu0 %v6789
      %v6948 = vpop.f32.mrb[0].mxu0
      %v6949 = vadd.f32 0.0, %v6948
      %v6950 = vpop.f32.mrb[0].mxu0
      %v6951 = vpop.f32.mrb[0].mxu0
      %v6952 = vadd.f32 0.0, %v6951
      %v6953 = vpop.f32.mrb[0].mxu0
      %6954 = vdwg.mxu0
      %v6955 = vadd.f32 %v6727, %v6829
      %v6956 = vadd.f32 %v6728, %v6832
      %v6957 = vadd.f32 %v6729, %v6837
      %v6958 = vadd.f32 %v6730, %v6840
      %v6959 = vadd.f32 %v6731, %v6845
      %v6960 = vadd.f32 %v6732, %v6848
      %v6961 = vadd.f32 %v6733, %v6853
      %v6962 = vadd.f32 %v6734, %v6856
      %v6963 = vadd.f32 %v6735, %v6861
      %v6964 = vadd.f32 %v6736, %v6864
      %v6965 = vadd.f32 %v6737, %v6869
      %v6966 = vadd.f32 %v6738, %v6872
      %v6967 = vadd.f32 %v6739, %v6877
      %v6968 = vadd.f32 %v6740, %v6880
      %v6969 = vadd.f32 %v6741, %v6885
      %v6970 = vadd.f32 %v6742, %v6888
      %v6971 = vadd.f32 %v6743, %v6893
      %v6972 = vadd.f32 %v6744, %v6896
      %v6973 = vadd.f32 %v6745, %v6901
      %v6974 = vadd.f32 %v6746, %v6904
      %v6975 = vadd.f32 %v6747, %v6909
      %v6976 = vadd.f32 %v6748, %v6912
      %v6977 = vadd.f32 %v6749, %v6917
      %v6978 = vadd.f32 %v6750, %v6920
      %v6979 = vadd.f32 %v6751, %v6925
      %v6980 = vadd.f32 %v6752, %v6928
      %v6981 = vadd.f32 %v6753, %v6933
      %v6982 = vadd.f32 %v6754, %v6936
      %v6983 = vadd.f32 %v6755, %v6941
      %v6984 = vadd.f32 %v6756, %v6944
      %v6985 = vadd.f32 %v6757, %v6949
      %v6986 = vadd.f32 %v6758, %v6952
      %v6988 = vrot.slane %v4543, 5
      %v6989 = vrot.slane %v6988, 4
      %v6990 = vrot.slane %v4544, 5
      %v6991 = vsel %vm2130, %v6989, %v6990
      %v6992 = vrot.slane %v6990, 4
      %v6993 = vrot.slane %v4545, 5
      %v6994 = vsel %vm2130, %v6992, %v6993
      %s6995 = scalar_lea.vmem %s2, 32
      %v6996 = vld [vmem:[%s6995] sm:$0xf]
      %v6997 = vunpack.c.l.b16 %v6991
      %v6998 = vunpack.c.l.b16 %v6994
      %v6999 = vpack.c.b16 %v6998, %v6997
      %v7001 = vsel %vm1606, %v6999, 0
      %v7004 = vsel %vm1655, %v6996, 0
      %7006 = vmatprep.subr.bf16.mxu0 0
      %7007 = vmatpush1.bf16.msra.mxu0 %v7004
      %7008 = vmatprep.subr.bf16.mxu0 0
      %7009 = vmatpush1.bf16.msra.mxu0 0
      %7010 = vmatprep.subr.bf16.mxu0 0
      %7011 = vmatpush1.bf16.msra.mxu0 0
      %7012 = vmatprep.subr.bf16.mxu0 0
      %7013 = vmatpush1.bf16.msra.mxu0 0
      %7014 = vmatprep.subr.bf16.mxu0 0
      %7015 = vmatpush1.bf16.msra.mxu0 0
      %7016 = vmatprep.subr.bf16.mxu0 0
      %7017 = vmatpush1.bf16.msra.mxu0 0
      %7018 = vmatprep.subr.bf16.mxu0 0
      %7019 = vmatpush1.bf16.msra.mxu0 0
      %7020 = vmatprep.subr.bf16.mxu0 0
      %7021 = vmatpush1.bf16.msra.mxu0 0
      %7022 = vmatprep.subr.bf16.mxu0 0
      %7023 = vmatpush1.bf16.msra.mxu0 0
      %7024 = vmatprep.subr.bf16.mxu0 0
      %7025 = vmatpush1.bf16.msra.mxu0 0
      %7026 = vmatprep.subr.bf16.mxu0 0
      %7027 = vmatpush1.bf16.msra.mxu0 0
      %7028 = vmatprep.subr.bf16.mxu0 0
      %7029 = vmatpush1.bf16.msra.mxu0 0
      %7030 = vmatprep.subr.bf16.mxu0 0
      %7031 = vmatpush1.bf16.msra.mxu0 0
      %7032 = vmatprep.subr.bf16.mxu0 0
      %7033 = vmatpush1.bf16.msra.mxu0 0
      %7034 = vmatprep.subr.bf16.mxu0 0
      %7035 = vmatpush1.bf16.msra.mxu0 0
      %7036 = vmatprep.subr.bf16.mxu0 0
      %7037 = vmatpush1.bf16.msra.mxu0 0
      %7038 = vmatprep.mubr.bf16.mxu0 0
      %7039 = vmatmul.mubr.bf16.gmra.mrb[0].mxu0 %v5670
      %v7040 = vpop.f32.mrb[0].mxu0
      %v7041 = vadd.f32 0.0, %v7040
      %v7042 = vpop.f32.mrb[0].mxu0
      %v7043 = vpop.f32.mrb[0].mxu0
      %v7044 = vadd.f32 0.0, %v7043
      %v7045 = vpop.f32.mrb[0].mxu0
      %7046 = vmatprep.mubr.bf16.mxu0 0
      %7047 = vmatmul.mubr.bf16.gmra.mrb[0].mxu0 %v5673
      %v7048 = vpop.f32.mrb[0].mxu0
      %v7049 = vadd.f32 0.0, %v7048
      %v7050 = vpop.f32.mrb[0].mxu0
      %v7051 = vpop.f32.mrb[0].mxu0
      %v7052 = vadd.f32 0.0, %v7051
      %v7053 = vpop.f32.mrb[0].mxu0
      %7054 = vmatprep.mubr.bf16.mxu0 0
      %7055 = vmatmul.mubr.bf16.gmra.mrb[0].mxu0 %v5676
      %v7056 = vpop.f32.mrb[0].mxu0
      %v7057 = vadd.f32 0.0, %v7056
      %v7058 = vpop.f32.mrb[0].mxu0
      %v7059 = vpop.f32.mrb[0].mxu0
      %v7060 = vadd.f32 0.0, %v7059
      %v7061 = vpop.f32.mrb[0].mxu0
      %7062 = vmatprep.mubr.bf16.mxu0 0
      %7063 = vmatmul.mubr.bf16.gmra.mrb[0].mxu0 %v5679
      %v7064 = vpop.f32.mrb[0].mxu0
      %v7065 = vadd.f32 0.0, %v7064
      %v7066 = vpop.f32.mrb[0].mxu0
      %v7067 = vpop.f32.mrb[0].mxu0
      %v7068 = vadd.f32 0.0, %v7067
      %v7069 = vpop.f32.mrb[0].mxu0
      %7070 = vmatprep.mubr.bf16.mxu0 0
      %7071 = vmatmul.mubr.bf16.gmra.mrb[0].mxu0 %v5682
      %v7072 = vpop.f32.mrb[0].mxu0
      %v7073 = vadd.f32 0.0, %v7072
      %v7074 = vpop.f32.mrb[0].mxu0
      %v7075 = vpop.f32.mrb[0].mxu0
      %v7076 = vadd.f32 0.0, %v7075
      %v7077 = vpop.f32.mrb[0].mxu0
      %7078 = vmatprep.mubr.bf16.mxu0 0
      %7079 = vmatmul.mubr.bf16.gmra.mrb[0].mxu0 %v5685
      %v7080 = vpop.f32.mrb[0].mxu0
      %v7081 = vadd.f32 0.0, %v7080
      %v7082 = vpop.f32.mrb[0].mxu0
      %v7083 = vpop.f32.mrb[0].mxu0
      %v7084 = vadd.f32 0.0, %v7083
      %v7085 = vpop.f32.mrb[0].mxu0
      %7086 = vmatprep.mubr.bf16.mxu0 0
      %7087 = vmatmul.mubr.bf16.gmra.mrb[0].mxu0 %v5688
      %v7088 = vpop.f32.mrb[0].mxu0
      %v7089 = vadd.f32 0.0, %v7088
      %v7090 = vpop.f32.mrb[0].mxu0
      %v7091 = vpop.f32.mrb[0].mxu0
      %v7092 = vadd.f32 0.0, %v7091
      %v7093 = vpop.f32.mrb[0].mxu0
      %7094 = vmatprep.mubr.bf16.mxu0 0
      %7095 = vmatmul.mubr.bf16.gmra.mrb[0].mxu0 %v5691
      %v7096 = vpop.f32.mrb[0].mxu0
      %v7097 = vadd.f32 0.0, %v7096
      %v7098 = vpop.f32.mrb[0].mxu0
      %v7099 = vpop.f32.mrb[0].mxu0
      %v7100 = vadd.f32 0.0, %v7099
      %v7101 = vpop.f32.mrb[0].mxu0
      %7102 = vmatprep.mubr.bf16.mxu0 0
      %7103 = vmatmul.mubr.bf16.gmra.mrb[0].mxu0 %v5694
      %v7104 = vpop.f32.mrb[0].mxu0
      %v7105 = vadd.f32 0.0, %v7104
      %v7106 = vpop.f32.mrb[0].mxu0
      %v7107 = vpop.f32.mrb[0].mxu0
      %v7108 = vadd.f32 0.0, %v7107
      %v7109 = vpop.f32.mrb[0].mxu0
      %7110 = vmatprep.mubr.bf16.mxu0 0
      %7111 = vmatmul.mubr.bf16.gmra.mrb[0].mxu0 %v5697
      %v7112 = vpop.f32.mrb[0].mxu0
      %v7113 = vadd.f32 0.0, %v7112
      %v7114 = vpop.f32.mrb[0].mxu0
      %v7115 = vpop.f32.mrb[0].mxu0
      %v7116 = vadd.f32 0.0, %v7115
      %v7117 = vpop.f32.mrb[0].mxu0
      %7118 = vmatprep.mubr.bf16.mxu0 0
      %7119 = vmatmul.mubr.bf16.gmra.mrb[0].mxu0 %v5700
      %v7120 = vpop.f32.mrb[0].mxu0
      %v7121 = vadd.f32 0.0, %v7120
      %v7122 = vpop.f32.mrb[0].mxu0
      %v7123 = vpop.f32.mrb[0].mxu0
      %v7124 = vadd.f32 0.0, %v7123
      %v7125 = vpop.f32.mrb[0].mxu0
      %7126 = vmatprep.mubr.bf16.mxu0 0
      %7127 = vmatmul.mubr.bf16.gmra.mrb[0].mxu0 %v5703
      %v7128 = vpop.f32.mrb[0].mxu0
      %v7129 = vadd.f32 0.0, %v7128
      %v7130 = vpop.f32.mrb[0].mxu0
      %v7131 = vpop.f32.mrb[0].mxu0
      %v7132 = vadd.f32 0.0, %v7131
      %v7133 = vpop.f32.mrb[0].mxu0
      %7134 = vmatprep.mubr.bf16.mxu0 0
      %7135 = vmatmul.mubr.bf16.gmra.mrb[0].mxu0 %v5706
      %v7136 = vpop.f32.mrb[0].mxu0
      %v7137 = vadd.f32 0.0, %v7136
      %v7138 = vpop.f32.mrb[0].mxu0
      %v7139 = vpop.f32.mrb[0].mxu0
      %v7140 = vadd.f32 0.0, %v7139
      %v7141 = vpop.f32.mrb[0].mxu0
      %7142 = vmatprep.mubr.bf16.mxu0 0
      %7143 = vmatmul.mubr.bf16.gmra.mrb[0].mxu0 %v5709
      %v7144 = vpop.f32.mrb[0].mxu0
      %v7145 = vadd.f32 0.0, %v7144
      %v7146 = vpop.f32.mrb[0].mxu0
      %v7147 = vpop.f32.mrb[0].mxu0
      %v7148 = vadd.f32 0.0, %v7147
      %v7149 = vpop.f32.mrb[0].mxu0
      %7150 = vmatprep.mubr.bf16.mxu0 0
      %7151 = vmatmul.mubr.bf16.gmra.mrb[0].mxu0 %v6355
      %v7152 = vpop.f32.mrb[0].mxu0
      %v7153 = vadd.f32 0.0, %v7152
      %v7154 = vpop.f32.mrb[0].mxu0
      %v7155 = vpop.f32.mrb[0].mxu0
      %v7156 = vadd.f32 0.0, %v7155
      %v7157 = vpop.f32.mrb[0].mxu0
      %7158 = vmatprep.mubr.bf16.mxu0 0
      %7159 = vmatmul.mubr.bf16.gmra.mrb[0].mxu0 %v7001
      %v7160 = vpop.f32.mrb[0].mxu0
      %v7161 = vadd.f32 0.0, %v7160
      %v7162 = vpop.f32.mrb[0].mxu0
      %v7163 = vpop.f32.mrb[0].mxu0
      %v7164 = vadd.f32 0.0, %v7163
      %v7165 = vpop.f32.mrb[0].mxu0
      %7166 = vdwg.mxu0
      %v7167 = vadd.f32 %v6955, %v7041
      %v7168 = vadd.f32 %v6956, %v7044
      %v7169 = vadd.f32 %v6957, %v7049
      %v7170 = vadd.f32 %v6958, %v7052
      %v7171 = vadd.f32 %v6959, %v7057
      %v7172 = vadd.f32 %v6960, %v7060
      %v7173 = vadd.f32 %v6961, %v7065
      %v7174 = vadd.f32 %v6962, %v7068
      %v7175 = vadd.f32 %v6963, %v7073
      %v7176 = vadd.f32 %v6964, %v7076
      %v7177 = vadd.f32 %v6965, %v7081
      %v7178 = vadd.f32 %v6966, %v7084
      %v7179 = vadd.f32 %v6967, %v7089
      %v7180 = vadd.f32 %v6968, %v7092
      %v7181 = vadd.f32 %v6969, %v7097
      %v7182 = vadd.f32 %v6970, %v7100
      %v7183 = vadd.f32 %v6971, %v7105
      %v7184 = vadd.f32 %v6972, %v7108
      %v7185 = vadd.f32 %v6973, %v7113
      %v7186 = vadd.f32 %v6974, %v7116
      %v7187 = vadd.f32 %v6975, %v7121
      %v7188 = vadd.f32 %v6976, %v7124
      %v7189 = vadd.f32 %v6977, %v7129
      %v7190 = vadd.f32 %v6978, %v7132
      %v7191 = vadd.f32 %v6979, %v7137
      %v7192 = vadd.f32 %v6980, %v7140
      %v7193 = vadd.f32 %v6981, %v7145
      %v7194 = vadd.f32 %v6982, %v7148
      %v7195 = vadd.f32 %v6983, %v7153
      %v7196 = vadd.f32 %v6984, %v7156
      %v7197 = vadd.f32 %v6985, %v7161
      %v7198 = vadd.f32 %v6986, %v7164
      %v7199 = vadd.f32 %v375, %v7167
      %v7200 = vadd.f32 %v376, %v7168
      %v7201 = vadd.f32 %v377, %v7169
      %v7202 = vadd.f32 %v378, %v7170
      %v7203 = vadd.f32 %v379, %v7171
      %v7204 = vadd.f32 %v380, %v7172
      %v7205 = vadd.f32 %v381, %v7173
      %v7206 = vadd.f32 %v382, %v7174
      %v7207 = vadd.f32 %v383, %v7175
      %v7208 = vadd.f32 %v384, %v7176
      %v7209 = vadd.f32 %v385, %v7177
      %v7210 = vadd.f32 %v386, %v7178
      %v7211 = vadd.f32 %v387, %v7179
      %v7212 = vadd.f32 %v388, %v7180
      %v7213 = vadd.f32 %v389, %v7181
      %v7214 = vadd.f32 %v390, %v7182
      %v7215 = vadd.f32 %v391, %v7183
      %v7216 = vadd.f32 %v392, %v7184
      %v7217 = vadd.f32 %v393, %v7185
      %v7218 = vadd.f32 %v394, %v7186
      %v7219 = vadd.f32 %v395, %v7187
      %v7220 = vadd.f32 %v396, %v7188
      %v7221 = vadd.f32 %v397, %v7189
      %v7222 = vadd.f32 %v398, %v7190
      %v7223 = vadd.f32 %v399, %v7191
      %v7224 = vadd.f32 %v400, %v7192
      %v7225 = vadd.f32 %v401, %v7193
      %v7226 = vadd.f32 %v402, %v7194
      %v7227 = vadd.f32 %v403, %v7195
      %v7228 = vadd.f32 %v404, %v7196
      %v7229 = vadd.f32 %v405, %v7197
      %v7230 = vadd.f32 %v406, %v7198
      %7231 = vst.msk [vmem:[%s251] sm:$0xff] %vm1606, %v7199
      %7232 = vst.msk [vmem:[%s251 + $0x8] sm:$0xff] %vm1606, %v7200
      %7233 = vst.msk [vmem:[%s251 + $0x10] sm:$0xff] %vm1606, %v7201
      %7234 = vst.msk [vmem:[%s251 + $0x18] sm:$0xff] %vm1606, %v7202
      %7235 = vst.msk [vmem:[%s251 + $0x20] sm:$0xff] %vm1606, %v7203
      %7236 = vst.msk [vmem:[%s251 + $0x28] sm:$0xff] %vm1606, %v7204
      %7237 = vst.msk [vmem:[%s251 + $0x30] sm:$0xff] %vm1606, %v7205
      %7238 = vst.msk [vmem:[%s251 + $0x38] sm:$0xff] %vm1606, %v7206
      %7239 = vst.msk [vmem:[%s251 + $0x40] sm:$0xff] %vm1606, %v7207
      %7240 = vst.msk [vmem:[%s251 + $0x48] sm:$0xff] %vm1606, %v7208
      %7241 = vst.msk [vmem:[%s251 + $0x50] sm:$0xff] %vm1606, %v7209
      %7242 = vst.msk [vmem:[%s251 + $0x58] sm:$0xff] %vm1606, %v7210
      %7243 = vst.msk [vmem:[%s251 + $0x60] sm:$0xff] %vm1606, %v7211
      %7244 = vst.msk [vmem:[%s251 + $0x68] sm:$0xff] %vm1606, %v7212
      %7245 = vst.msk [vmem:[%s251 + $0x70] sm:$0xff] %vm1606, %v7213
      %7246 = vst.msk [vmem:[%s251 + $0x78] sm:$0xff] %vm1606, %v7214
      %7247 = vst.msk [vmem:[%s251 + $0x80] sm:$0xff] %vm1606, %v7215
      %7248 = vst.msk [vmem:[%s251 + $0x88] sm:$0xff] %vm1606, %v7216
      %7249 = vst.msk [vmem:[%s251 + $0x90] sm:$0xff] %vm1606, %v7217
      %7250 = vst.msk [vmem:[%s251 + $0x98] sm:$0xff] %vm1606, %v7218
      %7251 = vst.msk [vmem:[%s251 + $0xa0] sm:$0xff] %vm1606, %v7219
      %7252 = vst.msk [vmem:[%s251 + $0xa8] sm:$0xff] %vm1606, %v7220
      %7253 = vst.msk [vmem:[%s251 + $0xb0] sm:$0xff] %vm1606, %v7221
      %7254 = vst.msk [vmem:[%s251 + $0xb8] sm:$0xff] %vm1606, %v7222
      %7255 = vst.msk [vmem:[%s251 + $0xc0] sm:$0xff] %vm1606, %v7223
      %7256 = vst.msk [vmem:[%s251 + $0xc8] sm:$0xff] %vm1606, %v7224
      %7257 = vst.msk [vmem:[%s251 + $0xd0] sm:$0xff] %vm1606, %v7225
      %7258 = vst.msk [vmem:[%s251 + $0xd8] sm:$0xff] %vm1606, %v7226
      %7259 = vst.msk [vmem:[%s251 + $0xe0] sm:$0xff] %vm1606, %v7227
      %7260 = vst.msk [vmem:[%s251 + $0xe8] sm:$0xff] %vm1606, %v7228
      %7261 = vst.msk [vmem:[%s251 + $0xf0] sm:$0xff] %vm1606, %v7229
      %7262 = vst.msk [vmem:[%s251 + $0xf8] sm:$0xff] %vm1606, %v7230
      %p7263 = scmp.lt.s32.totalorder %s17, 1
      %s7264 = scalar_select %p7263, %s17, 1
      %s7265 = smul.addr %s7264, 32
      %s7266 = smul.addr %s7265, 8
      %s7267 = scalar_lea.vmem %s6, %s7266
      // Predicated region
      $region45: #{tpu_custom_call.1} parent=43 // pred_check
        %p7268 = pneg %p166
      $region46: #{tpu_custom_call.1} parent=43 // pred_check_branch
        %7270 = sbr.rel (%p7268) target = $region48
      $region47: #{tpu_custom_call.1} parent=43 // pred_region
        _
      $region48: #{tpu_custom_call.1} parent=43 // pred_fallthru
        _
    $region44: #{tpu_custom_call.1} parent=5 // pred_fallthru
      _
    %p7271 = scmp.le.s32.totalorder 2, %s12
    // Predicated region
    $region49: #{tpu_custom_call.1} parent=5 // pred_check
      %p7272 = pneg %p7271
    $region50: #{tpu_custom_call.1} parent=5 // pred_check_branch
      %7274 = sbr.rel (%p7272) target = $region52
    $region51: #{tpu_custom_call.1} parent=5 // pred_region
      %s7275 = ssub.s32 %s12, 2
      // Predicated region
      $region53: #{tpu_custom_call.1} parent=51 // pred_check
        %p7276 = pneg %p172
      $region54: #{tpu_custom_call.1} parent=51 // pred_check_branch
        %7278 = sbr.rel (%p7276) target = $region56
      $region55: #{tpu_custom_call.1} parent=51 // pred_region
        %p7279 = scmp.lt.s32.totalorder %s18, 1
        %s7280 = scalar_select %p7279, %s18, 1
        %s7281 = smul.addr %s7280, 32
        %s7282 = smul.addr %s7281, 8
        %s7283 = scalar_lea.vmem %s6, %s7282
      $region56: #{tpu_custom_call.1} parent=51 // pred_fallthru
        _
    $region52: #{tpu_custom_call.1} parent=5 // pred_fallthru
      _
  $region6: #{tpu_custom_call.1} parent=0 // loop_footer
    %s16 = sadd.s32 1, %s12
  $region7: #{tpu_custom_call.1} parent=0 // loop_footer_branch
    %11 = sbr.rel target = $region3
  $region8: #{tpu_custom_call.1} parent=0 // loop_exit
    _

</llo_original>
